<compile_context>
chip_gen: v7x
topology: tpu7x:2x2x1
jax: 0.10.0
libtpu: 0.0.40
codegen_flags: <defaults>
</compile_context>

<pallas_src>
import functools

import jax
import jax.numpy as jnp
from jax import lax
from jax.experimental import pallas as pl
from jax.experimental.pallas import tpu as pltpu

BN_EPS = 1e-5
LANE = 128
COMPUTE_DTYPE = jnp.bfloat16      # MXU-native matmul operand dtype (f32 accumulate)


def _round_up(n, m):
    return ((n + m - 1) // m) * m


def _vmem_budget_bytes():
    """~75% of physical VMEM: v7x 64 MiB -> 48 MiB, v5e/v6e 128 MiB -> 96 MiB."""
    try:
        cap = int(pltpu.get_tpu_info().vmem_capacity_bytes)
    except Exception:
        cap = 64 * 1024 * 1024
    return max(32 * 1024 * 1024, min(cap * 3 // 4, 100 * 1024 * 1024))


def _lane0_rows(mat, rows):
    """mat: (rows, 128) whose meaningful value sits in lane 0 of every row.

    Returns (rows // 128, 128) with out[c, j] == mat[c*128 + j, 0], via
    128x128 transposes (XLU slot) so the result is stored lane-dense instead
    of as a width-1 masked column."""
    chunks = []
    for c in range(rows // LANE):
        chunk_t = jnp.transpose(mat[c * LANE:(c + 1) * LANE, :])   # (128, 128)
        chunks.append(chunk_t[0:1, :])                             # (1, 128)
    return jnp.concatenate(chunks, axis=0) if len(chunks) > 1 else chunks[0]


# ==========================================================================
# Fused kernel: grid = (3 phases, batch tiles); h1/h2 resident in VMEM.
# ==========================================================================

def _fused_kernel(x_ref, w1_ref, b1_ref, g1_ref, be1_ref,
                  w2_ref, b2_ref, g2_ref, be2_ref,
                  w3_ref, b3_ref,
                  o_ref,
                  h1_ref, h2_ref, s1_ref, q1_ref, s2_ref, q2_ref,
                  *, true_b, tb):
    p = pl.program_id(0)          # phase: 0 = layer1, 1 = layer2, 2 = output
    t = pl.program_id(1)          # batch tile
    row0 = pl.multiple_of(t * tb, tb)
    rows = t * tb + lax.broadcasted_iota(jnp.int32, (tb, 1), 0)
    valid = rows < true_b
    inv_n = jnp.float32(1.0 / true_b)

    def bn(h, s_ref, q_ref, g_ref, be_ref):
        mean = s_ref[...] * inv_n
        var = jnp.maximum(q_ref[...] * inv_n - mean * mean, 0.0)
        scale = lax.rsqrt(var + BN_EPS) * g_ref[...]
        return h * scale + (be_ref[...] - mean * scale)

    def accum(h, s_ref, q_ref):
        hm = jnp.where(valid, h, 0.0)          # exclude padded batch rows
        s_ref[...] += jnp.sum(hm, axis=0, keepdims=True)
        q_ref[...] += jnp.sum(hm * hm, axis=0, keepdims=True)

    @pl.when(p == 0)
    def _phase0():                # h1 = relu(x @ W1 + b1); accumulate stats
        @pl.when(t == 0)
        def _():
            s1_ref[...] = jnp.zeros_like(s1_ref)
            q1_ref[...] = jnp.zeros_like(q1_ref)
            s2_ref[...] = jnp.zeros_like(s2_ref)
            q2_ref[...] = jnp.zeros_like(q2_ref)
        h = jnp.dot(x_ref[...], w1_ref[...],
                    preferred_element_type=jnp.float32) + b1_ref[...]
        h = jnp.maximum(h, 0.0)
        accum(h, s1_ref, q1_ref)
        h1_ref[pl.ds(row0, tb), :] = h

    @pl.when(p == 1)
    def _phase1():                # h2 = relu(BN1(h1) @ W2 + b2); accumulate stats
        g = bn(h1_ref[pl.ds(row0, tb), :], s1_ref, q1_ref, g1_ref, be1_ref)
        h = jnp.dot(g.astype(COMPUTE_DTYPE), w2_ref[...],
                    preferred_element_type=jnp.float32) + b2_ref[...]
        h = jnp.maximum(h, 0.0)
        accum(h, s2_ref, q2_ref)
        h2_ref[pl.ds(row0, tb), :] = h

    @pl.when(p == 2)
    def _phase2():                # out = sigmoid(BN2(h2) @ W3 + b3), lane-packed
        g = bn(h2_ref[pl.ds(row0, tb), :], s2_ref, q2_ref, g2_ref, be2_ref)
        # TODO(synk): nn.Dropout(p=0.1) -> identity (eval semantics).
        logit = jnp.dot(g.astype(COMPUTE_DTYPE), w3_ref[...],
                        preferred_element_type=jnp.float32) + b3_ref[...]
        lane0 = _lane0_rows(logit, tb)                    # (tb//128, 128)
        o_ref[...] = 1.0 / (1.0 + jnp.exp(-lane0))


def _churn_forward_fused(x_bf, params, B, tb, budget):
    n_in = x_bf.shape[1]
    h1d = params["w1"].shape[1]
    h2d = params["w2"].shape[1]
    nod = params["w3"].shape[1]
    nt = pl.cdiv(B, tb)
    b_pad = nt * tb

    def const2d(shape):
        return pl.BlockSpec(shape, lambda p, t: (0, 0))

    # x is only needed in phase 0; output only written in phase 2.
    x_spec = pl.BlockSpec((tb, n_in), lambda p, t: (jnp.where(p == 0, t, 0), 0))
    out_spec = pl.BlockSpec((tb // LANE, LANE),
                            lambda p, t: (jnp.where(p == 2, t, 0), 0))

    out = pl.pallas_call(
        functools.partial(_fused_kernel, true_b=B, tb=tb),
        grid=(3, nt),
        in_specs=[x_spec,
                  const2d((n_in, h1d)), const2d((1, h1d)), const2d((1, h1d)),
                  const2d((1, h1d)),
                  const2d((h1d, h2d)), const2d((1, h2d)), const2d((1, h2d)),
                  const2d((1, h2d)),
                  const2d((h2d, nod)), const2d((1, nod))],
        out_specs=out_spec,
        out_shape=jax.ShapeDtypeStruct((b_pad // LANE, LANE), jnp.float32),
        scratch_shapes=[pltpu.VMEM((b_pad, h1d), jnp.float32),   # resident h1
                        pltpu.VMEM((b_pad, h2d), jnp.float32),   # resident h2
                        pltpu.VMEM((1, h1d), jnp.float32),       # s1
                        pltpu.VMEM((1, h1d), jnp.float32),       # q1
                        pltpu.VMEM((1, h2d), jnp.float32),       # s2
                        pltpu.VMEM((1, h2d), jnp.float32)],      # q2
        compiler_params=pltpu.CompilerParams(
            dimension_semantics=("arbitrary", "arbitrary"),
            vmem_limit_bytes=budget),
    )(x_bf, params["w1"], params["b1"], params["g1"], params["be1"],
      params["w2"], params["b2"], params["g2"], params["be2"],
      params["w3"], params["b3"])

    return out.reshape(-1)[:B].reshape(B, 1)


# ==========================================================================
# Fallback: 3 pallas_calls with bf16 HBM intermediates (large batches only).
# ==========================================================================

def _split_linear_relu_kernel(x_ref, w_ref, b_ref, h_ref, s_ref, q_ref,
                              *, true_b, tb):
    t = pl.program_id(0)

    @pl.when(t == 0)
    def _():
        s_ref[...] = jnp.zeros_like(s_ref)
        q_ref[...] = jnp.zeros_like(q_ref)

    h = jnp.dot(x_ref[...], w_ref[...],
                preferred_element_type=jnp.float32) + b_ref[...]
    h = jnp.maximum(h, 0.0)
    hb = h.astype(COMPUTE_DTYPE)              # bf16 HBM storage halves traffic
    h_ref[...] = hb

    rows = t * tb + lax.broadcasted_iota(jnp.int32, (tb, 1), 0)
    hm = jnp.where(rows < true_b, hb.astype(jnp.float32), 0.0)
    s_ref[...] += jnp.sum(hm, axis=0, keepdims=True)
    q_ref[...] += jnp.sum(hm * hm, axis=0, keepdims=True)


def _split_bn_linear_relu_kernel(h_ref, s_in_ref, q_in_ref, g_ref, be_ref,
                                 w_ref, b_ref, o_ref, s_ref, q_ref,
                                 *, true_b, tb):
    t = pl.program_id(0)

    @pl.when(t == 0)
    def _():
        s_ref[...] = jnp.zeros_like(s_ref)
        q_ref[...] = jnp.zeros_like(q_ref)

    inv_n = jnp.float32(1.0 / true_b)
    mean = s_in_ref[...] * inv_n
    var = jnp.maximum(q_in_ref[...] * inv_n - mean * mean, 0.0)
    scale = lax.rsqrt(var + BN_EPS) * g_ref[...]
    g = h_ref[...].astype(jnp.float32) * scale + (be_ref[...] - mean * scale)

    h = jnp.dot(g.astype(COMPUTE_DTYPE), w_ref[...],
                preferred_element_type=jnp.float32) + b_ref[...]
    h = jnp.maximum(h, 0.0)
    hb = h.astype(COMPUTE_DTYPE)
    o_ref[...] = hb

    rows = t * tb + lax.broadcasted_iota(jnp.int32, (tb, 1), 0)
    hm = jnp.where(rows < true_b, hb.astype(jnp.float32), 0.0)
    s_ref[...] += jnp.sum(hm, axis=0, keepdims=True)
    q_ref[...] += jnp.sum(hm * hm, axis=0, keepdims=True)


def _split_bn_linear_sigmoid_kernel(h_ref, s_in_ref, q_in_ref, g_ref, be_ref,
                                    w_ref, b_ref, o_ref, *, true_b, tb):
    inv_n = jnp.float32(1.0 / true_b)
    mean = s_in_ref[...] * inv_n
    var = jnp.maximum(q_in_ref[...] * inv_n - mean * mean, 0.0)
    scale = lax.rsqrt(var + BN_EPS) * g_ref[...]
    g = h_ref[...].astype(jnp.float32) * scale + (be_ref[...] - mean * scale)

    # TODO(synk): nn.Dropout(p=0.1) -> identity (eval semantics).
    logit = jnp.dot(g.astype(COMPUTE_DTYPE), w_ref[...],
                    preferred_element_type=jnp.float32) + b_ref[...]
    lane0 = _lane0_rows(logit, tb)
    o_ref[...] = 1.0 / (1.0 + jnp.exp(-lane0))


def _churn_forward_split(x_bf, params, B, tb, budget):
    n_in = x_bf.shape[1]
    h1d = params["w1"].shape[1]
    h2d = params["w2"].shape[1]
    nod = params["w3"].shape[1]
    nt = pl.cdiv(B, tb)
    b_pad = nt * tb

    cp_seq = pltpu.CompilerParams(dimension_semantics=("arbitrary",),
                                  vmem_limit_bytes=budget)
    cp_par = pltpu.CompilerParams(dimension_semantics=("parallel",),
                                  vmem_limit_bytes=budget)

    def row_spec(d):
        return pl.BlockSpec((tb, d), lambda t: (t, 0))

    def const2d(shape):
        return pl.BlockSpec(shape, lambda t: (0, 0))

    h1, s1, q1 = pl.pallas_call(
        functools.partial(_split_linear_relu_kernel, true_b=B, tb=tb),
        grid=(nt,),
        in_specs=[row_spec(n_in), const2d((n_in, h1d)), const2d((1, h1d))],
        out_specs=[row_spec(h1d), const2d((1, h1d)), const2d((1, h1d))],
        out_shape=[jax.ShapeDtypeStruct((B, h1d), COMPUTE_DTYPE),
                   jax.ShapeDtypeStruct((1, h1d), jnp.float32),
                   jax.ShapeDtypeStruct((1, h1d), jnp.float32)],
        compiler_params=cp_seq,
    )(x_bf, params["w1"], params["b1"])

    h2, s2, q2 = pl.pallas_call(
        functools.partial(_split_bn_linear_relu_kernel, true_b=B, tb=tb),
        grid=(nt,),
        in_specs=[row_spec(h1d), const2d((1, h1d)), const2d((1, h1d)),
                  const2d((1, h1d)), const2d((1, h1d)),
                  const2d((h1d, h2d)), const2d((1, h2d))],
        out_specs=[row_spec(h2d), const2d((1, h2d)), const2d((1, h2d))],
        out_shape=[jax.ShapeDtypeStruct((B, h2d), COMPUTE_DTYPE),
                   jax.ShapeDtypeStruct((1, h2d), jnp.float32),
                   jax.ShapeDtypeStruct((1, h2d), jnp.float32)],
        compiler_params=cp_seq,
    )(h1, s1, q1, params["g1"], params["be1"], params["w2"], params["b2"])

    out = pl.pallas_call(
        functools.partial(_split_bn_linear_sigmoid_kernel, true_b=B, tb=tb),
        grid=(nt,),
        in_specs=[row_spec(h2d), const2d((1, h2d)), const2d((1, h2d)),
                  const2d((1, h2d)), const2d((1, h2d)),
                  const2d((h2d, nod)), const2d((1, nod))],
        out_specs=pl.BlockSpec((tb // LANE, LANE), lambda t: (t, 0)),
        out_shape=jax.ShapeDtypeStruct((b_pad // LANE, LANE), jnp.float32),
        compiler_params=cp_par,
    )(h2, s2, q2, params["g2"], params["be2"], params["w3"], params["b3"])

    return out.reshape(-1)[:B].reshape(B, 1)


# ==========================================================================
# Dispatcher
# ==========================================================================

def churn_forward(x, params, *, tb=None, force_split=False):
    """Forward pass. `params` must come from prepare_params (lane-padded)."""
    B, n_in = x.shape
    assert params["n_output"] == 1, "lane-packed output assumes n_output == 1"
    assert n_in == params["w1"].shape[0]

    budget = _vmem_budget_bytes()

    # Batch tile: multiple of 1024 so the packed output block is (>=8, 128).
    if tb is None:
        tb = min(_round_up(B, 1024), 4096)
    tb = max(1024, _round_up(tb, 1024))
    nt = pl.cdiv(B, tb)
    b_pad = nt * tb

    # No host-side padded copy of x: just cast once to bf16.
    x_bf = x.astype(COMPUTE_DTYPE)

    # Fused-path capacity check (h1+h2 resident f32 scratch, double-buffered
    # x/out blocks, resident weights, f32 intermediates), with headroom.
    resident = 2 * b_pad * LANE * 4
    per_step = 2 * tb * n_in * 2 + 2 * (tb // LANE) * LANE * 4
    temps = 6 * tb * LANE * 4
    fits = resident + per_step + temps + (2 << 20) <= budget

    if force_split or not fits:
        return _churn_forward_split(x_bf, params, B, tb, budget)
    return _churn_forward_fused(x_bf, params, B, tb, budget)


# ==========================================================================
# Parameter construction
# ==========================================================================

def init_params(key, n_input_dim, n_hidden1=14, n_hidden2=7, n_output=1):
    """Logical (unpadded) params mimicking PyTorch nn.Linear default init."""
    def linear(k, fan_in, fan_out):
        kw, kb = jax.random.split(k)
        bound = 1.0 / (fan_in ** 0.5)
        w = jax.random.uniform(kw, (fan_in, fan_out), jnp.float32, -bound, bound)
        b = jax.random.uniform(kb, (fan_out,), jnp.float32, -bound, bound)
        return w, b

    k1, k2, k3 = jax.random.split(key, 3)
    w1, b1 = linear(k1, n_input_dim, n_hidden1)
    w2, b2 = linear(k2, n_hidden1, n_hidden2)
    w3, b3 = linear(k3, n_hidden2, n_output)
    return {
        "w1": w1, "b1": b1,
        "g1": jnp.ones((n_hidden1,), jnp.float32),
        "be1": jnp.zeros((n_hidden1,), jnp.float32),
        "w2": w2, "b2": b2,
        "g2": jnp.ones((n_hidden2,), jnp.float32),
        "be2": jnp.zeros((n_hidden2,), jnp.float32),
        "w3": w3, "b3": b3,
    }


def prepare_params(p):
    """Zero-pad all hidden/output feature dims to 128 lanes, cast weights to
    bf16.  Gamma/beta/bias are zero in the pad region so padded BN lanes stay
    exactly 0 and cannot leak into the next layer."""
    n_in, h1 = p["w1"].shape
    _, h2 = p["w2"].shape
    _, n_out = p["w3"].shape
    h1p = _round_up(h1, LANE)
    h2p = _round_up(h2, LANE)
    nop = _round_up(n_out, LANE)

    def pad_w(w, shape):
        out = jnp.zeros(shape, COMPUTE_DTYPE)
        return out.at[:w.shape[0], :w.shape[1]].set(w.astype(COMPUTE_DTYPE))

    def pad_row(v, n):
        return jnp.zeros((1, n), jnp.float32).at[0, :v.shape[0]].set(v)

    return {
        "w1": pad_w(p["w1"], (n_in, h1p)),
        "b1": pad_row(p["b1"], h1p), "g1": pad_row(p["g1"], h1p),
        "be1": pad_row(p["be1"], h1p),
        "w2": pad_w(p["w2"], (h1p, h2p)),
        "b2": pad_row(p["b2"], h2p), "g2": pad_row(p["g2"], h2p),
        "be2": pad_row(p["be2"], h2p),
        "w3": pad_w(p["w3"], (h2p, nop)),
        "b3": pad_row(p["b3"], nop),
        "n_output": n_out,
    }


# ==========================================================================
# Pure-JAX reference (mirrors the kernel's bf16 matmul operands; optional
# bf16 rounding of the hidden activations to mirror the split/fallback path)
# ==========================================================================

def churn_reference(x, p, *, bf16_hidden=False):
    def dot(a, w):
        return jnp.dot(a.astype(COMPUTE_DTYPE), w.astype(COMPUTE_DTYPE),
                       preferred_element_type=jnp.float32)

    def maybe_round(h):
        return h.astype(COMPUTE_DTYPE).astype(jnp.float32) if bf16_hidden else h

    def bn(h, g, b):
        mu = jnp.mean(h, axis=0, keepdims=True)
        var = jnp.maximum(jnp.mean(h * h, axis=0, keepdims=True) - mu * mu, 0.0)
        return (h - mu) * lax.rsqrt(var + BN_EPS) * g + b

    h1 = maybe_round(jnp.maximum(dot(x, p["w1"]) + p["b1"], 0.0))
    g1 = bn(h1, p["g1"], p["be1"])
    h2 = maybe_round(jnp.maximum(dot(g1, p["w2"]) + p["b2"], 0.0))
    g2 = bn(h2, p["g2"], p["be2"])
    logit = dot(g2, p["w3"]) + p["b3"]
    return 1.0 / (1.0 + jnp.exp(-logit))


if __name__ == "__main__":
    key = jax.random.PRNGKey(0)
    kx, kp = jax.random.split(key)

    B, N_IN = 2500, 16
    x = jax.random.normal(kx, (B, N_IN), jnp.float32)

    logical = init_params(kp, N_IN)        # PyTorch-shaped params
    padded = prepare_params(logical)       # lane-padded / bf16 kernel params

    # Fused path: 3 batch tiles of 1024 rows incl. a partial last tile ->
    # exercises multi-tile stat accumulation, masking, and the packed output.
    out_fused = jax.block_until_ready(churn_forward(x, padded, tb=1024))
    assert out_fused.shape == (B, 1)
    ref = churn_reference(x, logical)
    err_f = float(jnp.max(jnp.abs(out_fused - ref)))
    assert jnp.allclose(out_fused, ref, atol=2e-3, rtol=2e-3), \
        f"fused mismatch vs reference, max abs err={err_f}"

    # Fallback 3-call path (bf16 HBM intermediates), normally used only when
    # the resident activations do not fit VMEM; exercised here explicitly.
    out_split = jax.block_until_ready(
        churn_forward(x, padded, tb=1024, force_split=True))
    ref_bf = churn_reference(x, logical, bf16_hidden=True)
    err_s = float(jnp.max(jnp.abs(out_split - ref_bf)))
    assert jnp.allclose(out_split, ref_bf, atol=2e-3, rtol=2e-3), \
        f"split mismatch vs reference, max abs err={err_s}"

    print("KERNEL_OK")
</pallas_src>

<mosaic_0001>
module attributes {stable_mosaic.version = 11 : i64} {
  func.func @_fused_kernel(%arg0: i32, %arg1: i32, %arg2: memref<1024x16xbf16, #tpu.memory_space<vmem>>, %arg3: memref<16x128xbf16, #tpu.memory_space<vmem>>, %arg4: memref<1x128xf32, #tpu.memory_space<vmem>>, %arg5: memref<1x128xf32, #tpu.memory_space<vmem>>, %arg6: memref<1x128xf32, #tpu.memory_space<vmem>>, %arg7: memref<128x128xbf16, #tpu.memory_space<vmem>>, %arg8: memref<1x128xf32, #tpu.memory_space<vmem>>, %arg9: memref<1x128xf32, #tpu.memory_space<vmem>>, %arg10: memref<1x128xf32, #tpu.memory_space<vmem>>, %arg11: memref<128x128xbf16, #tpu.memory_space<vmem>>, %arg12: memref<1x128xf32, #tpu.memory_space<vmem>>, %arg13: memref<8x128xf32, #tpu.memory_space<vmem>>, %arg14: memref<3072x128xf32, #tpu.memory_space<vmem>>, %arg15: memref<3072x128xf32, #tpu.memory_space<vmem>>, %arg16: memref<1x128xf32, #tpu.memory_space<vmem>>, %arg17: memref<1x128xf32, #tpu.memory_space<vmem>>, %arg18: memref<1x128xf32, #tpu.memory_space<vmem>>, %arg19: memref<1x128xf32, #tpu.memory_space<vmem>>) attributes {dimension_semantics = [#tpu.dimension_semantics<arbitrary>, #tpu.dimension_semantics<arbitrary>], iteration_bounds = array<i64: 3, 3>, scalar_prefetch = 0 : i64, scratch_operands = 6 : i64, tpu.core_type = #tpu.core_type<tc>, window_params = [{transform_indices = @transform_0, window_bounds = array<i64: 1024, 16>}, {pipeline_mode = #tpu.pipeline_mode<synchronous>, transform_indices = @transform_1, window_bounds = array<i64: 16, 128>}, {pipeline_mode = #tpu.pipeline_mode<synchronous>, transform_indices = @transform_2, window_bounds = array<i64: 1, 128>}, {pipeline_mode = #tpu.pipeline_mode<synchronous>, transform_indices = @transform_3, window_bounds = array<i64: 1, 128>}, {pipeline_mode = #tpu.pipeline_mode<synchronous>, transform_indices = @transform_4, window_bounds = array<i64: 1, 128>}, {pipeline_mode = #tpu.pipeline_mode<synchronous>, transform_indices = @transform_5, window_bounds = array<i64: 128, 128>}, {pipeline_mode = #tpu.pipeline_mode<synchronous>, transform_indices = @transform_6, window_bounds = array<i64: 1, 128>}, {pipeline_mode = #tpu.pipeline_mode<synchronous>, transform_indices = @transform_7, window_bounds = array<i64: 1, 128>}, {pipeline_mode = #tpu.pipeline_mode<synchronous>, transform_indices = @transform_8, window_bounds = array<i64: 1, 128>}, {pipeline_mode = #tpu.pipeline_mode<synchronous>, transform_indices = @transform_9, window_bounds = array<i64: 128, 128>}, {pipeline_mode = #tpu.pipeline_mode<synchronous>, transform_indices = @transform_10, window_bounds = array<i64: 1, 128>}, {transform_indices = @transform_11, window_bounds = array<i64: 8, 128>}]} {
    %c1024_i32 = arith.constant 1024 : i32
    %0 = arith.muli %arg1, %c1024_i32 : i32
    %1 = tpu.assume_multiple %0, 1024 : i32
    %c1024_i32_0 = arith.constant 1024 : i32
    %2 = arith.muli %arg1, %c1024_i32_0 : i32
    %3 = tpu.iota {dimensions = array<i32: 0>} : vector<1024x1xi32>
    %4 = vector.broadcast %2 : i32 to vector<1024x1xi32>
    %5 = arith.addi %4, %3 : vector<1024x1xi32>
    %c2500_i32 = arith.constant 2500 : i32
    %6 = vector.broadcast %c2500_i32 : i32 to vector<1024x1xi32>
    %7 = arith.cmpi slt, %5, %6 : vector<1024x1xi32>
    %c0_i32 = arith.constant 0 : i32
    %8 = arith.cmpi eq, %arg0, %c0_i32 : i32
    %9 = arith.extui %8 : i1 to i32
    %c0_i32_1 = arith.constant 0 : i32
    %10 = arith.cmpi ne, %9, %c0_i32_1 : i32
    scf.if %10 {
      %c0_i32_5 = arith.constant 0 : i32
      %17 = arith.cmpi eq, %arg1, %c0_i32_5 : i32
      %18 = arith.extui %17 : i1 to i32
      %c0_i32_6 = arith.constant 0 : i32
      %19 = arith.cmpi ne, %18, %c0_i32_6 : i32
      scf.if %19 {
        %cst_26 = arith.constant 0.000000e+00 : f32
        %45 = vector.broadcast %cst_26 : f32 to vector<1x128xf32>
        %c0_27 = arith.constant 0 : index
        %c0_28 = arith.constant 0 : index
        %46 = vector.load %arg16[%c0_27, %c0_28] : memref<1x128xf32, #tpu.memory_space<vmem>>, vector<1x128xf32>
        tpu.vector_store %arg16[%c0_27, %c0_28], %45 {strides = array<i32>} : memref<1x128xf32, #tpu.memory_space<vmem>>, vector<1x128xf32>,
        %cst_29 = arith.constant 0.000000e+00 : f32
        %47 = vector.broadcast %cst_29 : f32 to vector<1x128xf32>
        %c0_30 = arith.constant 0 : index
        %c0_31 = arith.constant 0 : index
        %48 = vector.load %arg17[%c0_30, %c0_31] : memref<1x128xf32, #tpu.memory_space<vmem>>, vector<1x128xf32>
        tpu.vector_store %arg17[%c0_30, %c0_31], %47 {strides = array<i32>} : memref<1x128xf32, #tpu.memory_space<vmem>>, vector<1x128xf32>,
        %cst_32 = arith.constant 0.000000e+00 : f32
        %49 = vector.broadcast %cst_32 : f32 to vector<1x128xf32>
        %c0_33 = arith.constant 0 : index
        %c0_34 = arith.constant 0 : index
        %50 = vector.load %arg18[%c0_33, %c0_34] : memref<1x128xf32, #tpu.memory_space<vmem>>, vector<1x128xf32>
        tpu.vector_store %arg18[%c0_33, %c0_34], %49 {strides = array<i32>} : memref<1x128xf32, #tpu.memory_space<vmem>>, vector<1x128xf32>,
        %cst_35 = arith.constant 0.000000e+00 : f32
        %51 = vector.broadcast %cst_35 : f32 to vector<1x128xf32>
        %c0_36 = arith.constant 0 : index
        %c0_37 = arith.constant 0 : index
        %52 = vector.load %arg19[%c0_36, %c0_37] : memref<1x128xf32, #tpu.memory_space<vmem>>, vector<1x128xf32>
        tpu.vector_store %arg19[%c0_36, %c0_37], %51 {strides = array<i32>} : memref<1x128xf32, #tpu.memory_space<vmem>>, vector<1x128xf32>,
      } else {
      }
      %c0 = arith.constant 0 : index
      %c0_7 = arith.constant 0 : index
      %20 = vector.load %arg2[%c0, %c0_7] : memref<1024x16xbf16, #tpu.memory_space<vmem>>, vector<1024x16xbf16>
      %c0_8 = arith.constant 0 : index
      %c0_9 = arith.constant 0 : index
      %21 = vector.load %arg3[%c0_8, %c0_9] : memref<16x128xbf16, #tpu.memory_space<vmem>>, vector<16x128xbf16>
      %cst_10 = arith.constant dense<0.000000e+00> : vector<1024x128xf32>
      %22 = tpu.matmul %20, %21, %cst_10 {dimension_numbers = #tpu.dot_dimension_numbers<[1], [0], [0], [1], [0, 0, 1, 1], [], []>} : vector<1024x16xbf16>, vector<16x128xbf16>, vector<1024x128xf32> -> vector<1024x128xf32>
      %c0_11 = arith.constant 0 : index
      %c0_12 = arith.constant 0 : index
      %23 = vector.load %arg4[%c0_11, %c0_12] : memref<1x128xf32, #tpu.memory_space<vmem>>, vector<1x128xf32>
      %24 = vector.broadcast %23 : vector<1x128xf32> to vector<1024x128xf32>
      %25 = arith.addf %22, %24 : vector<1024x128xf32>
      %cst_13 = arith.constant 0.000000e+00 : f32
      %26 = vector.broadcast %cst_13 : f32 to vector<1024x128xf32>
      %27 = arith.maximumf %25, %26 : vector<1024x128xf32>
      %cst_14 = arith.constant 0.000000e+00 : f32
      %28 = vector.shape_cast %7 : vector<1024x1xi1> to vector<1024x1xi1>
      %29 = vector.broadcast %28 : vector<1024x1xi1> to vector<1024x128xi1>
      %30 = vector.broadcast %cst_14 : f32 to vector<1024x128xf32>
      %31 = arith.select %29, %27, %30 : vector<1024x128xi1>, vector<1024x128xf32>
      %c0_15 = arith.constant 0 : index
      %c0_16 = arith.constant 0 : index
      %32 = vector.load %arg16[%c0_15, %c0_16] : memref<1x128xf32, #tpu.memory_space<vmem>>, vector<1x128xf32>
      %cst_17 = arith.constant dense<0.000000e+00> : vector<128xf32>
      %33 = vector.multi_reduction <add>, %31, %cst_17 [0] : vector<1024x128xf32> to vector<128xf32>
      %34 = vector.shape_cast %33 : vector<128xf32> to vector<1x128xf32>
      %35 = arith.addf %32, %34 : vector<1x128xf32>
      %c0_18 = arith.constant 0 : index
      %c0_19 = arith.constant 0 : index
      %36 = vector.load %arg16[%c0_18, %c0_19] : memref<1x128xf32, #tpu.memory_space<vmem>>, vector<1x128xf32>
      tpu.vector_store %arg16[%c0_18, %c0_19], %35 {strides = array<i32>} : memref<1x128xf32, #tpu.memory_space<vmem>>, vector<1x128xf32>,
      %c0_20 = arith.constant 0 : index
      %c0_21 = arith.constant 0 : index
      %37 = vector.load %arg17[%c0_20, %c0_21] : memref<1x128xf32, #tpu.memory_space<vmem>>, vector<1x128xf32>
      %38 = arith.mulf %31, %31 : vector<1024x128xf32>
      %cst_22 = arith.constant dense<0.000000e+00> : vector<128xf32>
      %39 = vector.multi_reduction <add>, %38, %cst_22 [0] : vector<1024x128xf32> to vector<128xf32>
      %40 = vector.shape_cast %39 : vector<128xf32> to vector<1x128xf32>
      %41 = arith.addf %37, %40 : vector<1x128xf32>
      %c0_23 = arith.constant 0 : index
      %c0_24 = arith.constant 0 : index
      %42 = vector.load %arg17[%c0_23, %c0_24] : memref<1x128xf32, #tpu.memory_space<vmem>>, vector<1x128xf32>
      tpu.vector_store %arg17[%c0_23, %c0_24], %41 {strides = array<i32>} : memref<1x128xf32, #tpu.memory_space<vmem>>, vector<1x128xf32>,
      %43 = arith.index_cast %1 : i32 to index
      %c0_25 = arith.constant 0 : index
      %44 = vector.load %arg14[%43, %c0_25] : memref<3072x128xf32, #tpu.memory_space<vmem>>, vector<1024x128xf32>
      tpu.vector_store %arg14[%43, %c0_25], %27 {strides = array<i32>} : memref<3072x128xf32, #tpu.memory_space<vmem>>, vector<1024x128xf32>,
    } else {
    }
    %c1_i32 = arith.constant 1 : i32
    %11 = arith.cmpi eq, %arg0, %c1_i32 : i32
    %12 = arith.extui %11 : i1 to i32
    %cst = arith.constant 4.000000e-04 : f32
    %c0_i32_2 = arith.constant 0 : i32
    %13 = arith.cmpi ne, %12, %c0_i32_2 : i32
    scf.if %13 {
      %17 = arith.index_cast %1 : i32 to index
      %c0 = arith.constant 0 : index
      %18 = vector.load %arg14[%17, %c0] : memref<3072x128xf32, #tpu.memory_space<vmem>>, vector<1024x128xf32>
      %c0_5 = arith.constant 0 : index
      %c0_6 = arith.constant 0 : index
      %19 = vector.load %arg16[%c0_5, %c0_6] : memref<1x128xf32, #tpu.memory_space<vmem>>, vector<1x128xf32>
      %20 = vector.broadcast %cst : f32 to vector<1x128xf32>
      %21 = arith.mulf %19, %20 : vector<1x128xf32>
      %c0_7 = arith.constant 0 : index
      %c0_8 = arith.constant 0 : index
      %22 = vector.load %arg17[%c0_7, %c0_8] : memref<1x128xf32, #tpu.memory_space<vmem>>, vector<1x128xf32>
      %23 = vector.broadcast %cst : f32 to vector<1x128xf32>
      %24 = arith.mulf %22, %23 : vector<1x128xf32>
      %25 = arith.mulf %21, %21 : vector<1x128xf32>
      %26 = arith.subf %24, %25 : vector<1x128xf32>
      %cst_9 = arith.constant 0.000000e+00 : f32
      %27 = vector.broadcast %cst_9 : f32 to vector<1x128xf32>
      %28 = arith.maximumf %26, %27 : vector<1x128xf32>
      %cst_10 = arith.constant 9.99999974E-6 : f32
      %29 = vector.broadcast %cst_10 : f32 to vector<1x128xf32>
      %30 = arith.addf %28, %29 : vector<1x128xf32>
      %31 = math.rsqrt %30 : vector<1x128xf32>
      %c0_11 = arith.constant 0 : index
      %c0_12 = arith.constant 0 : index
      %32 = vector.load %arg5[%c0_11, %c0_12] : memref<1x128xf32, #tpu.memory_space<vmem>>, vector<1x128xf32>
      %33 = arith.mulf %31, %32 : vector<1x128xf32>
      %34 = vector.broadcast %33 : vector<1x128xf32> to vector<1024x128xf32>
      %35 = arith.mulf %18, %34 : vector<1024x128xf32>
      %c0_13 = arith.constant 0 : index
      %c0_14 = arith.constant 0 : index
      %36 = vector.load %arg6[%c0_13, %c0_14] : memref<1x128xf32, #tpu.memory_space<vmem>>, vector<1x128xf32>
      %37 = arith.mulf %21, %33 : vector<1x128xf32>
      %38 = arith.subf %36, %37 : vector<1x128xf32>
      %39 = vector.broadcast %38 : vector<1x128xf32> to vector<1024x128xf32>
      %40 = arith.addf %35, %39 : vector<1024x128xf32>
      %41 = arith.truncf %40 : vector<1024x128xf32> to vector<1024x128xbf16>
      %c0_15 = arith.constant 0 : index
      %c0_16 = arith.constant 0 : index
      %42 = vector.load %arg7[%c0_15, %c0_16] : memref<128x128xbf16, #tpu.memory_space<vmem>>, vector<128x128xbf16>
      %cst_17 = arith.constant dense<0.000000e+00> : vector<1024x128xf32>
      %43 = tpu.matmul %41, %42, %cst_17 {dimension_numbers = #tpu.dot_dimension_numbers<[1], [0], [0], [1], [0, 0, 1, 1], [], []>} : vector<1024x128xbf16>, vector<128x128xbf16>, vector<1024x128xf32> -> vector<1024x128xf32>
      %c0_18 = arith.constant 0 : index
      %c0_19 = arith.constant 0 : index
      %44 = vector.load %arg8[%c0_18, %c0_19] : memref<1x128xf32, #tpu.memory_space<vmem>>, vector<1x128xf32>
      %45 = vector.broadcast %44 : vector<1x128xf32> to vector<1024x128xf32>
      %46 = arith.addf %43, %45 : vector<1024x128xf32>
      %cst_20 = arith.constant 0.000000e+00 : f32
      %47 = vector.broadcast %cst_20 : f32 to vector<1024x128xf32>
      %48 = arith.maximumf %46, %47 : vector<1024x128xf32>
      %cst_21 = arith.constant 0.000000e+00 : f32
      %49 = vector.shape_cast %7 : vector<1024x1xi1> to vector<1024x1xi1>
      %50 = vector.broadcast %49 : vector<1024x1xi1> to vector<1024x128xi1>
      %51 = vector.broadcast %cst_21 : f32 to vector<1024x128xf32>
      %52 = arith.select %50, %48, %51 : vector<1024x128xi1>, vector<1024x128xf32>
      %c0_22 = arith.constant 0 : index
      %c0_23 = arith.constant 0 : index
      %53 = vector.load %arg18[%c0_22, %c0_23] : memref<1x128xf32, #tpu.memory_space<vmem>>, vector<1x128xf32>
      %cst_24 = arith.constant dense<0.000000e+00> : vector<128xf32>
      %54 = vector.multi_reduction <add>, %52, %cst_24 [0] : vector<1024x128xf32> to vector<128xf32>
      %55 = vector.shape_cast %54 : vector<128xf32> to vector<1x128xf32>
      %56 = arith.addf %53, %55 : vector<1x128xf32>
      %c0_25 = arith.constant 0 : index
      %c0_26 = arith.constant 0 : index
      %57 = vector.load %arg18[%c0_25, %c0_26] : memref<1x128xf32, #tpu.memory_space<vmem>>, vector<1x128xf32>
      tpu.vector_store %arg18[%c0_25, %c0_26], %56 {strides = array<i32>} : memref<1x128xf32, #tpu.memory_space<vmem>>, vector<1x128xf32>,
      %c0_27 = arith.constant 0 : index
      %c0_28 = arith.constant 0 : index
      %58 = vector.load %arg19[%c0_27, %c0_28] : memref<1x128xf32, #tpu.memory_space<vmem>>, vector<1x128xf32>
      %59 = arith.mulf %52, %52 : vector<1024x128xf32>
      %cst_29 = arith.constant dense<0.000000e+00> : vector<128xf32>
      %60 = vector.multi_reduction <add>, %59, %cst_29 [0] : vector<1024x128xf32> to vector<128xf32>
      %61 = vector.shape_cast %60 : vector<128xf32> to vector<1x128xf32>
      %62 = arith.addf %58, %61 : vector<1x128xf32>
      %c0_30 = arith.constant 0 : index
      %c0_31 = arith.constant 0 : index
      %63 = vector.load %arg19[%c0_30, %c0_31] : memref<1x128xf32, #tpu.memory_space<vmem>>, vector<1x128xf32>
      tpu.vector_store %arg19[%c0_30, %c0_31], %62 {strides = array<i32>} : memref<1x128xf32, #tpu.memory_space<vmem>>, vector<1x128xf32>,
      %64 = arith.index_cast %1 : i32 to index
      %c0_32 = arith.constant 0 : index
      %65 = vector.load %arg15[%64, %c0_32] : memref<3072x128xf32, #tpu.memory_space<vmem>>, vector<1024x128xf32>
      tpu.vector_store %arg15[%64, %c0_32], %48 {strides = array<i32>} : memref<3072x128xf32, #tpu.memory_space<vmem>>, vector<1024x128xf32>,
    } else {
    }
    %c2_i32 = arith.constant 2 : i32
    %14 = arith.cmpi eq, %arg0, %c2_i32 : i32
    %15 = arith.extui %14 : i1 to i32
    %cst_3 = arith.constant 4.000000e-04 : f32
    %c0_i32_4 = arith.constant 0 : i32
    %16 = arith.cmpi ne, %15, %c0_i32_4 : i32
    scf.if %16 {
      %17 = arith.index_cast %1 : i32 to index
      %c0 = arith.constant 0 : index
      %18 = vector.load %arg15[%17, %c0] : memref<3072x128xf32, #tpu.memory_space<vmem>>, vector<1024x128xf32>
      %c0_5 = arith.constant 0 : index
      %c0_6 = arith.constant 0 : index
      %19 = vector.load %arg18[%c0_5, %c0_6] : memref<1x128xf32, #tpu.memory_space<vmem>>, vector<1x128xf32>
      %20 = vector.broadcast %cst_3 : f32 to vector<1x128xf32>
      %21 = arith.mulf %19, %20 : vector<1x128xf32>
      %c0_7 = arith.constant 0 : index
      %c0_8 = arith.constant 0 : index
      %22 = vector.load %arg19[%c0_7, %c0_8] : memref<1x128xf32, #tpu.memory_space<vmem>>, vector<1x128xf32>
      %23 = vector.broadcast %cst_3 : f32 to vector<1x128xf32>
      %24 = arith.mulf %22, %23 : vector<1x128xf32>
      %25 = arith.mulf %21, %21 : vector<1x128xf32>
      %26 = arith.subf %24, %25 : vector<1x128xf32>
      %cst_9 = arith.constant 0.000000e+00 : f32
      %27 = vector.broadcast %cst_9 : f32 to vector<1x128xf32>
      %28 = arith.maximumf %26, %27 : vector<1x128xf32>
      %cst_10 = arith.constant 9.99999974E-6 : f32
      %29 = vector.broadcast %cst_10 : f32 to vector<1x128xf32>
      %30 = arith.addf %28, %29 : vector<1x128xf32>
      %31 = math.rsqrt %30 : vector<1x128xf32>
      %c0_11 = arith.constant 0 : index
      %c0_12 = arith.constant 0 : index
      %32 = vector.load %arg9[%c0_11, %c0_12] : memref<1x128xf32, #tpu.memory_space<vmem>>, vector<1x128xf32>
      %33 = arith.mulf %31, %32 : vector<1x128xf32>
      %34 = vector.broadcast %33 : vector<1x128xf32> to vector<1024x128xf32>
      %35 = arith.mulf %18, %34 : vector<1024x128xf32>
      %c0_13 = arith.constant 0 : index
      %c0_14 = arith.constant 0 : index
      %36 = vector.load %arg10[%c0_13, %c0_14] : memref<1x128xf32, #tpu.memory_space<vmem>>, vector<1x128xf32>
      %37 = arith.mulf %21, %33 : vector<1x128xf32>
      %38 = arith.subf %36, %37 : vector<1x128xf32>
      %39 = vector.broadcast %38 : vector<1x128xf32> to vector<1024x128xf32>
      %40 = arith.addf %35, %39 : vector<1024x128xf32>
      %41 = arith.truncf %40 : vector<1024x128xf32> to vector<1024x128xbf16>
      %c0_15 = arith.constant 0 : index
      %c0_16 = arith.constant 0 : index
      %42 = vector.load %arg11[%c0_15, %c0_16] : memref<128x128xbf16, #tpu.memory_space<vmem>>, vector<128x128xbf16>
      %cst_17 = arith.constant dense<0.000000e+00> : vector<1024x128xf32>
      %43 = tpu.matmul %41, %42, %cst_17 {dimension_numbers = #tpu.dot_dimension_numbers<[1], [0], [0], [1], [0, 0, 1, 1], [], []>} : vector<1024x128xbf16>, vector<128x128xbf16>, vector<1024x128xf32> -> vector<1024x128xf32>
      %c0_18 = arith.constant 0 : index
      %c0_19 = arith.constant 0 : index
      %44 = vector.load %arg12[%c0_18, %c0_19] : memref<1x128xf32, #tpu.memory_space<vmem>>, vector<1x128xf32>
      %45 = vector.broadcast %44 : vector<1x128xf32> to vector<1024x128xf32>
      %46 = arith.addf %43, %45 : vector<1024x128xf32>
      %47 = vector.extract_strided_slice %46 {offsets = [0, 0], sizes = [128, 128], strides = [1, 1]} : vector<1024x128xf32> to vector<128x128xf32>
      %48 = tpu.transpose %47, [1, 0] : vector<128x128xf32> -> vector<128x128xf32>
      %49 = vector.extract_strided_slice %48 {offsets = [0, 0], sizes = [1, 128], strides = [1, 1]} : vector<128x128xf32> to vector<1x128xf32>
      %50 = vector.extract_strided_slice %46 {offsets = [128, 0], sizes = [128, 128], strides = [1, 1]} : vector<1024x128xf32> to vector<128x128xf32>
      %51 = tpu.transpose %50, [1, 0] : vector<128x128xf32> -> vector<128x128xf32>
      %52 = vector.extract_strided_slice %51 {offsets = [0, 0], sizes = [1, 128], strides = [1, 1]} : vector<128x128xf32> to vector<1x128xf32>
      %53 = vector.extract_strided_slice %46 {offsets = [256, 0], sizes = [128, 128], strides = [1, 1]} : vector<1024x128xf32> to vector<128x128xf32>
      %54 = tpu.transpose %53, [1, 0] : vector<128x128xf32> -> vector<128x128xf32>
      %55 = vector.extract_strided_slice %54 {offsets = [0, 0], sizes = [1, 128], strides = [1, 1]} : vector<128x128xf32> to vector<1x128xf32>
      %56 = vector.extract_strided_slice %46 {offsets = [384, 0], sizes = [128, 128], strides = [1, 1]} : vector<1024x128xf32> to vector<128x128xf32>
      %57 = tpu.transpose %56, [1, 0] : vector<128x128xf32> -> vector<128x128xf32>
      %58 = vector.extract_strided_slice %57 {offsets = [0, 0], sizes = [1, 128], strides = [1, 1]} : vector<128x128xf32> to vector<1x128xf32>
      %59 = vector.extract_strided_slice %46 {offsets = [512, 0], sizes = [128, 128], strides = [1, 1]} : vector<1024x128xf32> to vector<128x128xf32>
      %60 = tpu.transpose %59, [1, 0] : vector<128x128xf32> -> vector<128x128xf32>
      %61 = vector.extract_strided_slice %60 {offsets = [0, 0], sizes = [1, 128], strides = [1, 1]} : vector<128x128xf32> to vector<1x128xf32>
      %62 = vector.extract_strided_slice %46 {offsets = [640, 0], sizes = [128, 128], strides = [1, 1]} : vector<1024x128xf32> to vector<128x128xf32>
      %63 = tpu.transpose %62, [1, 0] : vector<128x128xf32> -> vector<128x128xf32>
      %64 = vector.extract_strided_slice %63 {offsets = [0, 0], sizes = [1, 128], strides = [1, 1]} : vector<128x128xf32> to vector<1x128xf32>
      %65 = vector.extract_strided_slice %46 {offsets = [768, 0], sizes = [128, 128], strides = [1, 1]} : vector<1024x128xf32> to vector<128x128xf32>
      %66 = tpu.transpose %65, [1, 0] : vector<128x128xf32> -> vector<128x128xf32>
      %67 = vector.extract_strided_slice %66 {offsets = [0, 0], sizes = [1, 128], strides = [1, 1]} : vector<128x128xf32> to vector<1x128xf32>
      %68 = vector.extract_strided_slice %46 {offsets = [896, 0], sizes = [128, 128], strides = [1, 1]} : vector<1024x128xf32> to vector<128x128xf32>
      %69 = tpu.transpose %68, [1, 0] : vector<128x128xf32> -> vector<128x128xf32>
      %70 = vector.extract_strided_slice %69 {offsets = [0, 0], sizes = [1, 128], strides = [1, 1]} : vector<128x128xf32> to vector<1x128xf32>
      %71 = tpu.concatenate %49, %52, %55, %58, %61, %64, %67, %70 in 0 : vector<1x128xf32>, vector<1x128xf32>, vector<1x128xf32>, vector<1x128xf32>, vector<1x128xf32>, vector<1x128xf32>, vector<1x128xf32>, vector<1x128xf32> -> vector<8x128xf32>
      %cst_20 = arith.constant 0.000000e+00 : f32
      %72 = vector.broadcast %cst_20 : f32 to vector<8x128xf32>
      %73 = arith.subf %72, %71 : vector<8x128xf32>
      %74 = math.exp %73 : vector<8x128xf32>
      %cst_21 = arith.constant 1.000000e+00 : f32
      %75 = vector.broadcast %cst_21 : f32 to vector<8x128xf32>
      %76 = arith.addf %75, %74 : vector<8x128xf32>
      %cst_22 = arith.constant 1.000000e+00 : f32
      %77 = vector.broadcast %cst_22 : f32 to vector<8x128xf32>
      %78 = arith.divf %77, %76 : vector<8x128xf32>
      %c0_23 = arith.constant 0 : index
      %c0_24 = arith.constant 0 : index
      %79 = vector.load %arg13[%c0_23, %c0_24] : memref<8x128xf32, #tpu.memory_space<vmem>>, vector<8x128xf32>
      tpu.vector_store %arg13[%c0_23, %c0_24], %78 {strides = array<i32>} : memref<8x128xf32, #tpu.memory_space<vmem>>, vector<8x128xf32>,
    } else {
    }
    return
  }
  func.func @transform_0(%arg0: i32, %arg1: i32) -> (i32, i32) {
    %c0_i32 = arith.constant 0 : i32
    %0 = arith.cmpi eq, %arg0, %c0_i32 : i32
    %c0_i32_0 = arith.constant 0 : i32
    %1 = arith.select %0, %arg1, %c0_i32_0 : i32
    %c0_i32_1 = arith.constant 0 : i32
    %c0_i32_2 = arith.constant 0 : i32
    return %1, %c0_i32_1 : i32, i32
  }
  func.func @transform_1(%arg0: i32, %arg1: i32) -> (i32, i32) {
    %c0_i32 = arith.constant 0 : i32
    %c0_i32_0 = arith.constant 0 : i32
    %c0_i32_1 = arith.constant 0 : i32
    return %c0_i32, %c0_i32_0 : i32, i32
  }
  func.func @transform_2(%arg0: i32, %arg1: i32) -> (i32, i32) {
    %c0_i32 = arith.constant 0 : i32
    %c0_i32_0 = arith.constant 0 : i32
    %c0_i32_1 = arith.constant 0 : i32
    return %c0_i32, %c0_i32_0 : i32, i32
  }
  func.func @transform_3(%arg0: i32, %arg1: i32) -> (i32, i32) {
    %c0_i32 = arith.constant 0 : i32
    %c0_i32_0 = arith.constant 0 : i32
    %c0_i32_1 = arith.constant 0 : i32
    return %c0_i32, %c0_i32_0 : i32, i32
  }
  func.func @transform_4(%arg0: i32, %arg1: i32) -> (i32, i32) {
    %c0_i32 = arith.constant 0 : i32
    %c0_i32_0 = arith.constant 0 : i32
    %c0_i32_1 = arith.constant 0 : i32
    return %c0_i32, %c0_i32_0 : i32, i32
  }
  func.func @transform_5(%arg0: i32, %arg1: i32) -> (i32, i32) {
    %c0_i32 = arith.constant 0 : i32
    %c0_i32_0 = arith.constant 0 : i32
    %c0_i32_1 = arith.constant 0 : i32
    return %c0_i32, %c0_i32_0 : i32, i32
  }
  func.func @transform_6(%arg0: i32, %arg1: i32) -> (i32, i32) {
    %c0_i32 = arith.constant 0 : i32
    %c0_i32_0 = arith.constant 0 : i32
    %c0_i32_1 = arith.constant 0 : i32
    return %c0_i32, %c0_i32_0 : i32, i32
  }
  func.func @transform_7(%arg0: i32, %arg1: i32) -> (i32, i32) {
    %c0_i32 = arith.constant 0 : i32
    %c0_i32_0 = arith.constant 0 : i32
    %c0_i32_1 = arith.constant 0 : i32
    return %c0_i32, %c0_i32_0 : i32, i32
  }
  func.func @transform_8(%arg0: i32, %arg1: i32) -> (i32, i32) {
    %c0_i32 = arith.constant 0 : i32
    %c0_i32_0 = arith.constant 0 : i32
    %c0_i32_1 = arith.constant 0 : i32
    return %c0_i32, %c0_i32_0 : i32, i32
  }
  func.func @transform_9(%arg0: i32, %arg1: i32) -> (i32, i32) {
    %c0_i32 = arith.constant 0 : i32
    %c0_i32_0 = arith.constant 0 : i32
    %c0_i32_1 = arith.constant 0 : i32
    return %c0_i32, %c0_i32_0 : i32, i32
  }
  func.func @transform_10(%arg0: i32, %arg1: i32) -> (i32, i32) {
    %c0_i32 = arith.constant 0 : i32
    %c0_i32_0 = arith.constant 0 : i32
    %c0_i32_1 = arith.constant 0 : i32
    return %c0_i32, %c0_i32_0 : i32, i32
  }
  func.func @transform_11(%arg0: i32, %arg1: i32) -> (i32, i32) {
    %c2_i32 = arith.constant 2 : i32
    %0 = arith.cmpi eq, %arg0, %c2_i32 : i32
    %c0_i32 = arith.constant 0 : i32
    %1 = arith.select %0, %arg1, %c0_i32 : i32
    %c0_i32_0 = arith.constant 0 : i32
    %c0_i32_1 = arith.constant 0 : i32
    return %1, %c0_i32_0 : i32, i32
  }
}

</mosaic_0001>

<llo_original>
// kernel: tpu_custom_call.1
$region0: #{tpu_custom_call.1}
  #allocation0 [shape = 'u32[]', space=smem, size = 0x4, offset = 0x4, fixed_abs, tag = 'smem constant byte address 0x4 - core index']
  #allocation1 [shape = 'u32[144,128]{1,0:T(1,128)}', space=vmem, size = 0x12000, scoped, tag = 'internal scratch']
  #allocation2 [shape = 'f32[3072,128]{1,0:T(8,128)}', space=vmem, size = 0x180000, scoped, tag = 'scratch operand']
  #allocation3 [shape = 'f32[3072,128]{1,0:T(8,128)}', space=vmem, size = 0x180000, scoped, tag = 'scratch operand']
  #allocation4 [shape = 'f32[1,128]{1,0:T(1,128)}', space=vmem, size = 0x200, scoped, tag = 'scratch operand']
  #allocation5 [shape = 'f32[1,128]{1,0:T(1,128)}', space=vmem, size = 0x200, scoped, tag = 'scratch operand']
  #allocation6 [shape = 'f32[1,128]{1,0:T(1,128)}', space=vmem, size = 0x200, scoped, tag = 'scratch operand']
  #allocation7 [shape = 'f32[1,128]{1,0:T(1,128)}', space=vmem, size = 0x200, scoped, tag = 'scratch operand']
  %s0 = inlined_call_operand.vmem [shape: bf16[2500,16], index: 0, kind: input, shape index: {}]
  %s1 = inlined_call_operand.vmem [shape: bf16[16,128], index: 1, kind: input, shape index: {}]
  %s2 = inlined_call_operand.vmem [shape: f32[1,128], index: 2, kind: input, shape index: {}]
  %s3 = inlined_call_operand.vmem [shape: f32[1,128], index: 3, kind: input, shape index: {}]
  %s4 = inlined_call_operand.vmem [shape: f32[1,128], index: 4, kind: input, shape index: {}]
  %s5 = inlined_call_operand.vmem [shape: bf16[128,128], index: 5, kind: input, shape index: {}]
  %s6 = inlined_call_operand.vmem [shape: f32[1,128], index: 6, kind: input, shape index: {}]
  %s7 = inlined_call_operand.vmem [shape: f32[1,128], index: 7, kind: input, shape index: {}]
  %s8 = inlined_call_operand.vmem [shape: f32[1,128], index: 8, kind: input, shape index: {}]
  %s9 = inlined_call_operand.vmem [shape: bf16[128,128], index: 9, kind: input, shape index: {}]
  %s10 = inlined_call_operand.vmem [shape: f32[1,128], index: 10, kind: input, shape index: {}]
  %s11 = inlined_call_operand.hbm [shape: f32[24,128], index: 11, kind: output, shape index: {}]
  %s12 = sld [smem:[#allocation0]]
  $region93: #{tpu_custom_call.1} parent=0
    _
  %s14 = ssub.s32 1, %s12
  %s15 = scalar_select 0, %s14, %s12
  $region1: #{tpu_custom_call.1} parent=0
    #allocation8 [shape = 'u8[8192]{0}', space=vmem, size = 0x2000, scoped, tag = 'output window, operand 0']
    #allocation9 [shape = 's32[2]{0}', space=sflag, size = 0x8, scoped, tag = 'scoped memory for tpu_custom_call.1']
    %16 = vsyncpa [#allocation9], 0
    %s17 = scalar_lea.sflag [#allocation9], 1
    %18 = vsyncpa %s17, 0
    loop: start=0, step=1, limit=11
    $region2: #{tpu_custom_call.1} parent=1 // loop_pre_header
      _
    $region3: #{tpu_custom_call.1} parent=1 // loop_header
      %s20 = sphi 0, %s24
      %p21 = scmp.ge.s32.totalorder %s20, 11
      %s27 = sphi 0, %s39
      %s28 = sphi 0, %s35
      %s29 = sphi 0, %s27
      %s30 = sphi 0, %s28
      %s31 = sphi 0, %s29
      %s32 = sphi 0, %s30
      %s46 = sphi 0, %s48
      %s49 = sphi 0, %s46
      %s50 = sphi 0, %s49
      %s66 = sphi 0, %s50
      %s70 = sphi 0, %s70
      %s72 = sphi 0, %s70
      %s73 = sphi 0, %s72
      %s87 = sphi 0, %s73
      %s91 = sphi 0, %s91
      %s93 = sphi 0, %s91
      %s94 = sphi 0, %s93
      %s108 = sphi 0, %s94
      %s112 = sphi 0, %s112
      %s114 = sphi 0, %s112
      %s115 = sphi 0, %s114
      %s129 = sphi 0, %s115
      %s133 = sphi 0, %s133
      %s135 = sphi 0, %s133
      %s136 = sphi 0, %s135
      %s150 = sphi 0, %s136
      %s154 = sphi 0, %s154
      %s156 = sphi 0, %s154
      %s157 = sphi 0, %s156
      %s171 = sphi 0, %s157
      %s175 = sphi 0, %s175
      %s177 = sphi 0, %s175
      %s178 = sphi 0, %s177
      %s192 = sphi 0, %s178
      %s196 = sphi 0, %s196
      %s198 = sphi 0, %s196
      %s199 = sphi 0, %s198
      %s213 = sphi 0, %s199
      %s217 = sphi 0, %s217
      %s219 = sphi 0, %s217
      %s220 = sphi 0, %s219
      %s234 = sphi 0, %s220
      %s238 = sphi 0, %s238
      %s240 = sphi 0, %s238
      %s241 = sphi 0, %s240
      %s255 = sphi 0, %s241
      %s259 = sphi 0, %s259
      %s261 = sphi 0, %s259
      %s262 = sphi 0, %s261
      %s276 = sphi 0, %s262
      %s286 = sphi 0, %s288
      %s289 = sphi 0, %s286
      %s290 = sphi 0, %s289
      %s306 = sphi 0, %s290
    $region4: #{tpu_custom_call.1} parent=1 // loop_header_branch
      %23 = sbr.rel (%p21) target = $region8
    $region5: #{tpu_custom_call.1} parent=1 // loop_body
      %s25 = ssub.s32 %s20, 1
      %s26 = ssub.s32 %s20, 2
      %s33 = sadd.s32 1, %s28
      %p34 = scmp.ge.s32.totalorder %s33, 3
      %s35 = scalar_select %p34, 0, %s33
      %s36 = sadd.s32 1, %s27
      %s37 = scalar_select %p34, %s36, %s27
      %p38 = scmp.ge.s32.totalorder %s37, 3
      %s39 = scalar_select %p38, 0, %s37
      %p40 = scmp.eq.s32.totalorder %s27, 0
      %s41 = scalar_select %p40, %s28, 0
      %p42 = scmp.eq.s32.totalorder %s39, 0
      %s43 = scalar_select %p42, %s35, 0
      %s44 = ssub.s32 %s41, %s43
      %p45 = scmp.eq.s32.totalorder %s44, 0
      %s47 = sadd.s32 %s46, 1
      %s48 = scalar_select %p45, %s46, %s47
      %p51 = pneg %p45
      %p52 = scmp.eq.s32.totalorder %s20, 8
      %p53 = por %p51, %p52
      %p54 = scmp.ne.s32.totalorder %s46, %s49
      %p55 = scmp.eq.s32.totalorder %s20, 0
      %p56 = por %p54, %p55
      %p57 = scmp.ne.s32.totalorder %s46, %s49
      %p58 = scmp.eq.s32.totalorder %s25, 8
      %p59 = por %p57, %p58
      %p60 = scmp.ne.s32.totalorder %s49, %s50
      %p61 = scmp.eq.s32.totalorder %s25, 0
      %p62 = por %p60, %p61
      %p63 = scmp.ne.s32.totalorder %s49, %s50
      %p64 = scmp.eq.s32.totalorder %s26, 8
      %p65 = por %p63, %p64
      %p67 = scmp.ne.s32.totalorder %s50, %s66
      %p68 = scmp.eq.s32.totalorder %s26, 0
      %p69 = por %p67, %p68
      %s71 = sadd.s32 %s70, 1
      %p74 = scmp.eq.s32.totalorder %s20, 8
      %p75 = scmp.ne.s32.totalorder %s70, %s72
      %p76 = scmp.eq.s32.totalorder %s20, 0
      %p77 = por %p75, %p76
      %p78 = scmp.ne.s32.totalorder %s70, %s72
      %p79 = scmp.eq.s32.totalorder %s25, 8
      %p80 = por %p78, %p79
      %p81 = scmp.ne.s32.totalorder %s72, %s73
      %p82 = scmp.eq.s32.totalorder %s25, 0
      %p83 = por %p81, %p82
      %p84 = scmp.ne.s32.totalorder %s72, %s73
      %p85 = scmp.eq.s32.totalorder %s26, 8
      %p86 = por %p84, %p85
      %p88 = scmp.ne.s32.totalorder %s73, %s87
      %p89 = scmp.eq.s32.totalorder %s26, 0
      %p90 = por %p88, %p89
      %s92 = sadd.s32 %s91, 1
      %p95 = scmp.eq.s32.totalorder %s20, 8
      %p96 = scmp.ne.s32.totalorder %s91, %s93
      %p97 = scmp.eq.s32.totalorder %s20, 0
      %p98 = por %p96, %p97
      %p99 = scmp.ne.s32.totalorder %s91, %s93
      %p100 = scmp.eq.s32.totalorder %s25, 8
      %p101 = por %p99, %p100
      %p102 = scmp.ne.s32.totalorder %s93, %s94
      %p103 = scmp.eq.s32.totalorder %s25, 0
      %p104 = por %p102, %p103
      %p105 = scmp.ne.s32.totalorder %s93, %s94
      %p106 = scmp.eq.s32.totalorder %s26, 8
      %p107 = por %p105, %p106
      %p109 = scmp.ne.s32.totalorder %s94, %s108
      %p110 = scmp.eq.s32.totalorder %s26, 0
      %p111 = por %p109, %p110
      %s113 = sadd.s32 %s112, 1
      %p116 = scmp.eq.s32.totalorder %s20, 8
      %p117 = scmp.ne.s32.totalorder %s112, %s114
      %p118 = scmp.eq.s32.totalorder %s20, 0
      %p119 = por %p117, %p118
      %p120 = scmp.ne.s32.totalorder %s112, %s114
      %p121 = scmp.eq.s32.totalorder %s25, 8
      %p122 = por %p120, %p121
      %p123 = scmp.ne.s32.totalorder %s114, %s115
      %p124 = scmp.eq.s32.totalorder %s25, 0
      %p125 = por %p123, %p124
      %p126 = scmp.ne.s32.totalorder %s114, %s115
      %p127 = scmp.eq.s32.totalorder %s26, 8
      %p128 = por %p126, %p127
      %p130 = scmp.ne.s32.totalorder %s115, %s129
      %p131 = scmp.eq.s32.totalorder %s26, 0
      %p132 = por %p130, %p131
      %s134 = sadd.s32 %s133, 1
      %p137 = scmp.eq.s32.totalorder %s20, 8
      %p138 = scmp.ne.s32.totalorder %s133, %s135
      %p139 = scmp.eq.s32.totalorder %s20, 0
      %p140 = por %p138, %p139
      %p141 = scmp.ne.s32.totalorder %s133, %s135
      %p142 = scmp.eq.s32.totalorder %s25, 8
      %p143 = por %p141, %p142
      %p144 = scmp.ne.s32.totalorder %s135, %s136
      %p145 = scmp.eq.s32.totalorder %s25, 0
      %p146 = por %p144, %p145
      %p147 = scmp.ne.s32.totalorder %s135, %s136
      %p148 = scmp.eq.s32.totalorder %s26, 8
      %p149 = por %p147, %p148
      %p151 = scmp.ne.s32.totalorder %s136, %s150
      %p152 = scmp.eq.s32.totalorder %s26, 0
      %p153 = por %p151, %p152
      %s155 = sadd.s32 %s154, 1
      %p158 = scmp.eq.s32.totalorder %s20, 8
      %p159 = scmp.ne.s32.totalorder %s154, %s156
      %p160 = scmp.eq.s32.totalorder %s20, 0
      %p161 = por %p159, %p160
      %p162 = scmp.ne.s32.totalorder %s154, %s156
      %p163 = scmp.eq.s32.totalorder %s25, 8
      %p164 = por %p162, %p163
      %p165 = scmp.ne.s32.totalorder %s156, %s157
      %p166 = scmp.eq.s32.totalorder %s25, 0
      %p167 = por %p165, %p166
      %p168 = scmp.ne.s32.totalorder %s156, %s157
      %p169 = scmp.eq.s32.totalorder %s26, 8
      %p170 = por %p168, %p169
      %p172 = scmp.ne.s32.totalorder %s157, %s171
      %p173 = scmp.eq.s32.totalorder %s26, 0
      %p174 = por %p172, %p173
      %s176 = sadd.s32 %s175, 1
      %p179 = scmp.eq.s32.totalorder %s20, 8
      %p180 = scmp.ne.s32.totalorder %s175, %s177
      %p181 = scmp.eq.s32.totalorder %s20, 0
      %p182 = por %p180, %p181
      %p183 = scmp.ne.s32.totalorder %s175, %s177
      %p184 = scmp.eq.s32.totalorder %s25, 8
      %p185 = por %p183, %p184
      %p186 = scmp.ne.s32.totalorder %s177, %s178
      %p187 = scmp.eq.s32.totalorder %s25, 0
      %p188 = por %p186, %p187
      %p189 = scmp.ne.s32.totalorder %s177, %s178
      %p190 = scmp.eq.s32.totalorder %s26, 8
      %p191 = por %p189, %p190
      %p193 = scmp.ne.s32.totalorder %s178, %s192
      %p194 = scmp.eq.s32.totalorder %s26, 0
      %p195 = por %p193, %p194
      %s197 = sadd.s32 %s196, 1
      %p200 = scmp.eq.s32.totalorder %s20, 8
      %p201 = scmp.ne.s32.totalorder %s196, %s198
      %p202 = scmp.eq.s32.totalorder %s20, 0
      %p203 = por %p201, %p202
      %p204 = scmp.ne.s32.totalorder %s196, %s198
      %p205 = scmp.eq.s32.totalorder %s25, 8
      %p206 = por %p204, %p205
      %p207 = scmp.ne.s32.totalorder %s198, %s199
      %p208 = scmp.eq.s32.totalorder %s25, 0
      %p209 = por %p207, %p208
      %p210 = scmp.ne.s32.totalorder %s198, %s199
      %p211 = scmp.eq.s32.totalorder %s26, 8
      %p212 = por %p210, %p211
      %p214 = scmp.ne.s32.totalorder %s199, %s213
      %p215 = scmp.eq.s32.totalorder %s26, 0
      %p216 = por %p214, %p215
      %s218 = sadd.s32 %s217, 1
      %p221 = scmp.eq.s32.totalorder %s20, 8
      %p222 = scmp.ne.s32.totalorder %s217, %s219
      %p223 = scmp.eq.s32.totalorder %s20, 0
      %p224 = por %p222, %p223
      %p225 = scmp.ne.s32.totalorder %s217, %s219
      %p226 = scmp.eq.s32.totalorder %s25, 8
      %p227 = por %p225, %p226
      %p228 = scmp.ne.s32.totalorder %s219, %s220
      %p229 = scmp.eq.s32.totalorder %s25, 0
      %p230 = por %p228, %p229
      %p231 = scmp.ne.s32.totalorder %s219, %s220
      %p232 = scmp.eq.s32.totalorder %s26, 8
      %p233 = por %p231, %p232
      %p235 = scmp.ne.s32.totalorder %s220, %s234
      %p236 = scmp.eq.s32.totalorder %s26, 0
      %p237 = por %p235, %p236
      %s239 = sadd.s32 %s238, 1
      %p242 = scmp.eq.s32.totalorder %s20, 8
      %p243 = scmp.ne.s32.totalorder %s238, %s240
      %p244 = scmp.eq.s32.totalorder %s20, 0
      %p245 = por %p243, %p244
      %p246 = scmp.ne.s32.totalorder %s238, %s240
      %p247 = scmp.eq.s32.totalorder %s25, 8
      %p248 = por %p246, %p247
      %p249 = scmp.ne.s32.totalorder %s240, %s241
      %p250 = scmp.eq.s32.totalorder %s25, 0
      %p251 = por %p249, %p250
      %p252 = scmp.ne.s32.totalorder %s240, %s241
      %p253 = scmp.eq.s32.totalorder %s26, 8
      %p254 = por %p252, %p253
      %p256 = scmp.ne.s32.totalorder %s241, %s255
      %p257 = scmp.eq.s32.totalorder %s26, 0
      %p258 = por %p256, %p257
      %s260 = sadd.s32 %s259, 1
      %p263 = scmp.eq.s32.totalorder %s20, 8
      %p264 = scmp.ne.s32.totalorder %s259, %s261
      %p265 = scmp.eq.s32.totalorder %s20, 0
      %p266 = por %p264, %p265
      %p267 = scmp.ne.s32.totalorder %s259, %s261
      %p268 = scmp.eq.s32.totalorder %s25, 8
      %p269 = por %p267, %p268
      %p270 = scmp.ne.s32.totalorder %s261, %s262
      %p271 = scmp.eq.s32.totalorder %s25, 0
      %p272 = por %p270, %p271
      %p273 = scmp.ne.s32.totalorder %s261, %s262
      %p274 = scmp.eq.s32.totalorder %s26, 8
      %p275 = por %p273, %p274
      %p277 = scmp.ne.s32.totalorder %s262, %s276
      %p278 = scmp.eq.s32.totalorder %s26, 0
      %p279 = por %p277, %p278
      %p280 = scmp.eq.s32.totalorder %s27, 2
      %s281 = scalar_select %p280, %s28, 0
      %p282 = scmp.eq.s32.totalorder %s39, 2
      %s283 = scalar_select %p282, %s35, 0
      %s284 = ssub.s32 %s281, %s283
      %p285 = scmp.eq.s32.totalorder %s284, 0
      %s287 = sadd.s32 %s286, 1
      %s288 = scalar_select %p285, %s286, %s287
      %p291 = pneg %p285
      %p292 = scmp.eq.s32.totalorder %s20, 8
      %p293 = por %p291, %p292
      %p294 = scmp.ne.s32.totalorder %s286, %s289
      %p295 = scmp.eq.s32.totalorder %s20, 0
      %p296 = por %p294, %p295
      %p297 = scmp.ne.s32.totalorder %s286, %s289
      %p298 = scmp.eq.s32.totalorder %s25, 8
      %p299 = por %p297, %p298
      %p300 = scmp.ne.s32.totalorder %s289, %s290
      %p301 = scmp.eq.s32.totalorder %s25, 0
      %p302 = por %p300, %p301
      %p303 = scmp.ne.s32.totalorder %s289, %s290
      %p304 = scmp.eq.s32.totalorder %s26, 8
      %p305 = por %p303, %p304
      %p307 = scmp.ne.s32.totalorder %s290, %s306
      %p308 = scmp.eq.s32.totalorder %s26, 0
      %p309 = por %p307, %p308
      %p310 = scmp.le.s32.totalorder 1, %s20
      %p311 = scmp.lt.s32.totalorder %s20, 10
      %p312 = pnand %p310, %p311
      %p313 = pneg %p312
      // Predicated region
      $region9: #{tpu_custom_call.1} parent=5 // pred_check
        _
      $region10: #{tpu_custom_call.1} parent=5 // pred_check_branch
        %315 = sbr.rel (%p312) target = $region12
      $region11: #{tpu_custom_call.1} parent=5 // pred_region
        %s316 = ssub.s32 %s20, 1
        // Predicated region
        $region13: #{tpu_custom_call.1} parent=11 // pred_check
          %p317 = pneg %p83
        $region14: #{tpu_custom_call.1} parent=11 // pred_check_branch
          %319 = sbr.rel (%p317) target = $region16
        $region15: #{tpu_custom_call.1} parent=11 // pred_region
          _
        $region16: #{tpu_custom_call.1} parent=11 // pred_fallthru
          _
        // Predicated region
        $region17: #{tpu_custom_call.1} parent=11 // pred_check
          %p320 = pneg %p104
        $region18: #{tpu_custom_call.1} parent=11 // pred_check_branch
          %322 = sbr.rel (%p320) target = $region20
        $region19: #{tpu_custom_call.1} parent=11 // pred_region
          _
        $region20: #{tpu_custom_call.1} parent=11 // pred_fallthru
          _
        // Predicated region
        $region21: #{tpu_custom_call.1} parent=11 // pred_check
          %p323 = pneg %p125
        $region22: #{tpu_custom_call.1} parent=11 // pred_check_branch
          %325 = sbr.rel (%p323) target = $region24
        $region23: #{tpu_custom_call.1} parent=11 // pred_region
          _
        $region24: #{tpu_custom_call.1} parent=11 // pred_fallthru
          _
        // Predicated region
        $region25: #{tpu_custom_call.1} parent=11 // pred_check
          %p326 = pneg %p146
        $region26: #{tpu_custom_call.1} parent=11 // pred_check_branch
          %328 = sbr.rel (%p326) target = $region28
        $region27: #{tpu_custom_call.1} parent=11 // pred_region
          _
        $region28: #{tpu_custom_call.1} parent=11 // pred_fallthru
          _
        // Predicated region
        $region29: #{tpu_custom_call.1} parent=11 // pred_check
          %p329 = pneg %p167
        $region30: #{tpu_custom_call.1} parent=11 // pred_check_branch
          %331 = sbr.rel (%p329) target = $region32
        $region31: #{tpu_custom_call.1} parent=11 // pred_region
          _
        $region32: #{tpu_custom_call.1} parent=11 // pred_fallthru
          _
        // Predicated region
        $region33: #{tpu_custom_call.1} parent=11 // pred_check
          %p332 = pneg %p188
        $region34: #{tpu_custom_call.1} parent=11 // pred_check_branch
          %334 = sbr.rel (%p332) target = $region36
        $region35: #{tpu_custom_call.1} parent=11 // pred_region
          _
        $region36: #{tpu_custom_call.1} parent=11 // pred_fallthru
          _
        // Predicated region
        $region37: #{tpu_custom_call.1} parent=11 // pred_check
          %p335 = pneg %p209
        $region38: #{tpu_custom_call.1} parent=11 // pred_check_branch
          %337 = sbr.rel (%p335) target = $region40
        $region39: #{tpu_custom_call.1} parent=11 // pred_region
          _
        $region40: #{tpu_custom_call.1} parent=11 // pred_fallthru
          _
        // Predicated region
        $region41: #{tpu_custom_call.1} parent=11 // pred_check
          %p338 = pneg %p230
        $region42: #{tpu_custom_call.1} parent=11 // pred_check_branch
          %340 = sbr.rel (%p338) target = $region44
        $region43: #{tpu_custom_call.1} parent=11 // pred_region
          _
        $region44: #{tpu_custom_call.1} parent=11 // pred_fallthru
          _
        // Predicated region
        $region45: #{tpu_custom_call.1} parent=11 // pred_check
          %p341 = pneg %p251
        $region46: #{tpu_custom_call.1} parent=11 // pred_check_branch
          %343 = sbr.rel (%p341) target = $region48
        $region47: #{tpu_custom_call.1} parent=11 // pred_region
          _
        $region48: #{tpu_custom_call.1} parent=11 // pred_fallthru
          _
        // Predicated region
        $region49: #{tpu_custom_call.1} parent=11 // pred_check
          %p344 = pneg %p272
        $region50: #{tpu_custom_call.1} parent=11 // pred_check_branch
          %346 = sbr.rel (%p344) target = $region52
        $region51: #{tpu_custom_call.1} parent=11 // pred_region
          _
        $region52: #{tpu_custom_call.1} parent=11 // pred_fallthru
          _
      $region12: #{tpu_custom_call.1} parent=5 // pred_fallthru
        _
      %p347 = scmp.lt.s32.totalorder %s20, 9
      // Predicated region
      $region53: #{tpu_custom_call.1} parent=5 // pred_check
        %p348 = pneg %p347
      $region54: #{tpu_custom_call.1} parent=5 // pred_check_branch
        %350 = sbr.rel (%p348) target = $region56
      $region55: #{tpu_custom_call.1} parent=5 // pred_region
        // Predicated region
        $region57: #{tpu_custom_call.1} parent=55 // pred_check
          %p351 = pneg %p56
        $region58: #{tpu_custom_call.1} parent=55 // pred_check_branch
          %353 = sbr.rel (%p351) target = $region60
        $region59: #{tpu_custom_call.1} parent=55 // pred_region
          %p354 = scmp.eq.s32.totalorder %s27, 0
          %s355 = scalar_select %p354, %s28, 0
          %s356 = smul.u32 128, %s355
          %s357 = ssub.s32 313, %s356
          %p358 = scmp.lt.s32.totalorder %s357, 128
          %s359 = scalar_select %p358, %s357, 128
          %s360 = smul.u32 64, %s359
          %p361 = scmp.lt.s32.totalorder %s356, 312
          %s362 = scalar_select %p361, %s356, 312
          %s363 = smul.addr %s362, 4
          %s364 = scalar_lea.vmem %s0, %s363
          %p365 = scmp.eq.s32.totalorder %s27, 0
          %s366 = scalar_select %p365, %s28, 0
          %s367 = smul.u32 128, %s366
          %s368 = ssub.s32 313, %s367
          %p369 = scmp.lt.s32.totalorder %s368, 128
          %s370 = scalar_select %p369, %s368, 128
          %s371 = smul.u32 64, %s370
        $region60: #{tpu_custom_call.1} parent=55 // pred_fallthru
          _
      $region56: #{tpu_custom_call.1} parent=5 // pred_fallthru
        _
      %p372 = scmp.le.s32.totalorder 1, %s20
      %p373 = scmp.lt.s32.totalorder %s20, 10
      %p374 = pnand %p372, %p373
      %p375 = pneg %p374
      // Predicated region
      $region61: #{tpu_custom_call.1} parent=5 // pred_check
        _
      $region62: #{tpu_custom_call.1} parent=5 // pred_check_branch
        %377 = sbr.rel (%p374) target = $region64
      $region63: #{tpu_custom_call.1} parent=5 // pred_region
        %s378 = ssub.s32 %s20, 1
        %p379 = scmp.eq.s32.totalorder %s29, 0
        %s380 = scalar_select %p379, %s30, 0
        %s381 = smul.u32 128, %s380
        %s382 = ssub.s32 313, %s381
        %p383 = scmp.lt.s32.totalorder %s382, 128
        %s384 = scalar_select %p383, %s382, 128
        %s385 = smul.u32 64, %s384
        %p386 = scmp.lt.s32.totalorder %s381, 312
        %s387 = scalar_select %p386, %s381, 312
        %s388 = smul.addr %s387, 4
        %s389 = scalar_lea.vmem %s0, %s388
        %p390 = pneg %p62
        %p391 = pneg %p59
        %p392 = pneg %p83
        %p393 = pneg %p80
        %p394 = pneg %p104
        %p395 = pneg %p101
        %p396 = pneg %p125
        %p397 = pneg %p122
        %p398 = pneg %p146
        %p399 = pneg %p143
        %p400 = pneg %p167
        %p401 = pneg %p164
        %p402 = pneg %p188
        %p403 = pneg %p185
        %p404 = pneg %p209
        %p405 = pneg %p206
        %p406 = pneg %p230
        %p407 = pneg %p227
        %p408 = pneg %p251
        %p409 = pneg %p248
        %p410 = pneg %p272
        %p411 = pneg %p269
        %p412 = pneg %p302
        %p413 = pneg %p299
        %s414 = sand.u32 %s289, 1
        %s415 = scalar_lea.sflag [#allocation9], %s414
        %s416 = sand.u32 %s289, 1
        %s417 = smul.addr %s416, 8
        %s418 = scalar_lea.vmem [#allocation8], %s417
        %p419 = scmp.eq.s32.totalorder %s29, 0
        %s420 = scalar_select %p419, %s30, 0
        %s421 = smul.u32 128, %s420
        %s422 = ssub.s32 313, %s421
        %p423 = scmp.lt.s32.totalorder %s422, 128
        %s424 = scalar_select %p423, %s422, 128
        %s425 = smul.u32 64, %s424
        %p426 = scmp.lt.s32.totalorder %s421, 312
        %s427 = scalar_select %p426, %s421, 312
        %s428 = smul.addr %s427, 4
        %s429 = scalar_lea.vmem %s0, %s428
        %p430 = scmp.eq.s32.totalorder %s29, 0
        %s431 = scalar_select %p430, %s30, 0
        %s432 = smul.u32 128, %s431
        %s433 = ssub.s32 313, %s432
        %p434 = scmp.lt.s32.totalorder %s433, 128
        %s435 = scalar_select %p434, %s433, 128
        %s436 = smul.u32 64, %s435
        %p437 = scmp.eq.s32.totalorder %s29, 2
        %s438 = scalar_select %p437, %s30, 0
        %s440 = smul.u32 %s30, 1024
        %v441 = vlaneseq
        %v442 = vshrl.u32 %v441, 7
        %v443 = vadd.s32 %v442, 8
        %v444 = vadd.s32 %v442, 16
        %v445 = vadd.s32 %v442, 24
        %v446 = vadd.s32 %v442, 32
        %v447 = vadd.s32 %v442, 40
        %v448 = vadd.s32 %v442, 48
        %v449 = vadd.s32 %v442, 56
        %v450 = vadd.s32 %v442, 64
        %v451 = vadd.s32 %v442, 72
        %v452 = vadd.s32 %v442, 80
        %v453 = vadd.s32 %v442, 88
        %v454 = vadd.s32 %v442, 96
        %v455 = vadd.s32 %v442, 104
        %v456 = vadd.s32 %v442, 112
        %v457 = vadd.s32 %v442, 120
        %v458 = vadd.s32 %v442, 128
        %v459 = vadd.s32 %v442, 136
        %v460 = vadd.s32 %v442, 144
        %v461 = vadd.s32 %v442, 152
        %v462 = vadd.s32 %v442, 160
        %v463 = vadd.s32 %v442, 168
        %v464 = vadd.s32 %v442, 176
        %v465 = vadd.s32 %v442, 184
        %v466 = vadd.s32 %v442, 192
        %v467 = vadd.s32 %v442, 200
        %v468 = vadd.s32 %v442, 208
        %v469 = vadd.s32 %v442, 216
        %v470 = vadd.s32 %v442, 224
        %v471 = vadd.s32 %v442, 232
        %v472 = vadd.s32 %v442, 240
        %v473 = vadd.s32 %v442, 248
        %v474 = vadd.s32 %v442, 256
        %v475 = vadd.s32 %v442, 264
        %v476 = vadd.s32 %v442, 272
        %v477 = vadd.s32 %v442, 280
        %v478 = vadd.s32 %v442, 288
        %v479 = vadd.s32 %v442, 296
        %v480 = vadd.s32 %v442, 304
        %v481 = vadd.s32 %v442, 312
        %v482 = vadd.s32 %v442, 320
        %v483 = vadd.s32 %v442, 328
        %v484 = vadd.s32 %v442, 336
        %v485 = vadd.s32 %v442, 344
        %v486 = vadd.s32 %v442, 352
        %v487 = vadd.s32 %v442, 360
        %v488 = vadd.s32 %v442, 368
        %v489 = vadd.s32 %v442, 376
        %v490 = vadd.s32 %v442, 384
        %v491 = vadd.s32 %v442, 392
        %v492 = vadd.s32 %v442, 400
        %v493 = vadd.s32 %v442, 408
        %v494 = vadd.s32 %v442, 416
        %v495 = vadd.s32 %v442, 424
        %v496 = vadd.s32 %v442, 432
        %v497 = vadd.s32 %v442, 440
        %v498 = vadd.s32 %v442, 448
        %v499 = vadd.s32 %v442, 456
        %v500 = vadd.s32 %v442, 464
        %v501 = vadd.s32 %v442, 472
        %v502 = vadd.s32 %v442, 480
        %v503 = vadd.s32 %v442, 488
        %v504 = vadd.s32 %v442, 496
        %v505 = vadd.s32 %v442, 504
        %v506 = vadd.s32 %v442, 512
        %v507 = vadd.s32 %v442, 520
        %v508 = vadd.s32 %v442, 528
        %v509 = vadd.s32 %v442, 536
        %v510 = vadd.s32 %v442, 544
        %v511 = vadd.s32 %v442, 552
        %v512 = vadd.s32 %v442, 560
        %v513 = vadd.s32 %v442, 568
        %v514 = vadd.s32 %v442, 576
        %v515 = vadd.s32 %v442, 584
        %v516 = vadd.s32 %v442, 592
        %v517 = vadd.s32 %v442, 600
        %v518 = vadd.s32 %v442, 608
        %v519 = vadd.s32 %v442, 616
        %v520 = vadd.s32 %v442, 624
        %v521 = vadd.s32 %v442, 632
        %v522 = vadd.s32 %v442, 640
        %v523 = vadd.s32 %v442, 648
        %v524 = vadd.s32 %v442, 656
        %v525 = vadd.s32 %v442, 664
        %v526 = vadd.s32 %v442, 672
        %v527 = vadd.s32 %v442, 680
        %v528 = vadd.s32 %v442, 688
        %v529 = vadd.s32 %v442, 696
        %v530 = vadd.s32 %v442, 704
        %v531 = vadd.s32 %v442, 712
        %v532 = vadd.s32 %v442, 720
        %v533 = vadd.s32 %v442, 728
        %v534 = vadd.s32 %v442, 736
        %v535 = vadd.s32 %v442, 744
        %v536 = vadd.s32 %v442, 752
        %v537 = vadd.s32 %v442, 760
        %v538 = vadd.s32 %v442, 768
        %v539 = vadd.s32 %v442, 776
        %v540 = vadd.s32 %v442, 784
        %v541 = vadd.s32 %v442, 792
        %v542 = vadd.s32 %v442, 800
        %v543 = vadd.s32 %v442, 808
        %v544 = vadd.s32 %v442, 816
        %v545 = vadd.s32 %v442, 824
        %v546 = vadd.s32 %v442, 832
        %v547 = vadd.s32 %v442, 840
        %v548 = vadd.s32 %v442, 848
        %v549 = vadd.s32 %v442, 856
        %v550 = vadd.s32 %v442, 864
        %v551 = vadd.s32 %v442, 872
        %v552 = vadd.s32 %v442, 880
        %v553 = vadd.s32 %v442, 888
        %v554 = vadd.s32 %v442, 896
        %v555 = vadd.s32 %v442, 904
        %v556 = vadd.s32 %v442, 912
        %v557 = vadd.s32 %v442, 920
        %v558 = vadd.s32 %v442, 928
        %v559 = vadd.s32 %v442, 936
        %v560 = vadd.s32 %v442, 944
        %v561 = vadd.s32 %v442, 952
        %v562 = vadd.s32 %v442, 960
        %v563 = vadd.s32 %v442, 968
        %v564 = vadd.s32 %v442, 976
        %v565 = vadd.s32 %v442, 984
        %v566 = vadd.s32 %v442, 992
        %v567 = vadd.s32 %v442, 1000
        %v568 = vadd.s32 %v442, 1008
        %v569 = vadd.s32 %v442, 1016
        %v570 = vstv %s440
        %v571 = vadd.s32 %v570, %v442
        %v572 = vadd.s32 %v570, %v443
        %v573 = vadd.s32 %v570, %v444
        %v574 = vadd.s32 %v570, %v445
        %v575 = vadd.s32 %v570, %v446
        %v576 = vadd.s32 %v570, %v447
        %v577 = vadd.s32 %v570, %v448
        %v578 = vadd.s32 %v570, %v449
        %v579 = vadd.s32 %v570, %v450
        %v580 = vadd.s32 %v570, %v451
        %v581 = vadd.s32 %v570, %v452
        %v582 = vadd.s32 %v570, %v453
        %v583 = vadd.s32 %v570, %v454
        %v584 = vadd.s32 %v570, %v455
        %v585 = vadd.s32 %v570, %v456
        %v586 = vadd.s32 %v570, %v457
        %v587 = vadd.s32 %v570, %v458
        %v588 = vadd.s32 %v570, %v459
        %v589 = vadd.s32 %v570, %v460
        %v590 = vadd.s32 %v570, %v461
        %v591 = vadd.s32 %v570, %v462
        %v592 = vadd.s32 %v570, %v463
        %v593 = vadd.s32 %v570, %v464
        %v594 = vadd.s32 %v570, %v465
        %v595 = vadd.s32 %v570, %v466
        %v596 = vadd.s32 %v570, %v467
        %v597 = vadd.s32 %v570, %v468
        %v598 = vadd.s32 %v570, %v469
        %v599 = vadd.s32 %v570, %v470
        %v600 = vadd.s32 %v570, %v471
        %v601 = vadd.s32 %v570, %v472
        %v602 = vadd.s32 %v570, %v473
        %v603 = vadd.s32 %v570, %v474
        %v604 = vadd.s32 %v570, %v475
        %v605 = vadd.s32 %v570, %v476
        %v606 = vadd.s32 %v570, %v477
        %v607 = vadd.s32 %v570, %v478
        %v608 = vadd.s32 %v570, %v479
        %v609 = vadd.s32 %v570, %v480
        %v610 = vadd.s32 %v570, %v481
        %v611 = vadd.s32 %v570, %v482
        %v612 = vadd.s32 %v570, %v483
        %v613 = vadd.s32 %v570, %v484
        %v614 = vadd.s32 %v570, %v485
        %v615 = vadd.s32 %v570, %v486
        %v616 = vadd.s32 %v570, %v487
        %v617 = vadd.s32 %v570, %v488
        %v618 = vadd.s32 %v570, %v489
        %v619 = vadd.s32 %v570, %v490
        %v620 = vadd.s32 %v570, %v491
        %v621 = vadd.s32 %v570, %v492
        %v622 = vadd.s32 %v570, %v493
        %v623 = vadd.s32 %v570, %v494
        %v624 = vadd.s32 %v570, %v495
        %v625 = vadd.s32 %v570, %v496
        %v626 = vadd.s32 %v570, %v497
        %v627 = vadd.s32 %v570, %v498
        %v628 = vadd.s32 %v570, %v499
        %v629 = vadd.s32 %v570, %v500
        %v630 = vadd.s32 %v570, %v501
        %v631 = vadd.s32 %v570, %v502
        %v632 = vadd.s32 %v570, %v503
        %v633 = vadd.s32 %v570, %v504
        %v634 = vadd.s32 %v570, %v505
        %v635 = vadd.s32 %v570, %v506
        %v636 = vadd.s32 %v570, %v507
        %v637 = vadd.s32 %v570, %v508
        %v638 = vadd.s32 %v570, %v509
        %v639 = vadd.s32 %v570, %v510
        %v640 = vadd.s32 %v570, %v511
        %v641 = vadd.s32 %v570, %v512
        %v642 = vadd.s32 %v570, %v513
        %v643 = vadd.s32 %v570, %v514
        %v644 = vadd.s32 %v570, %v515
        %v645 = vadd.s32 %v570, %v516
        %v646 = vadd.s32 %v570, %v517
        %v647 = vadd.s32 %v570, %v518
        %v648 = vadd.s32 %v570, %v519
        %v649 = vadd.s32 %v570, %v520
        %v650 = vadd.s32 %v570, %v521
        %v651 = vadd.s32 %v570, %v522
        %v652 = vadd.s32 %v570, %v523
        %v653 = vadd.s32 %v570, %v524
        %v654 = vadd.s32 %v570, %v525
        %v655 = vadd.s32 %v570, %v526
        %v656 = vadd.s32 %v570, %v527
        %v657 = vadd.s32 %v570, %v528
        %v658 = vadd.s32 %v570, %v529
        %v659 = vadd.s32 %v570, %v530
        %v660 = vadd.s32 %v570, %v531
        %v661 = vadd.s32 %v570, %v532
        %v662 = vadd.s32 %v570, %v533
        %v663 = vadd.s32 %v570, %v534
        %v664 = vadd.s32 %v570, %v535
        %v665 = vadd.s32 %v570, %v536
        %v666 = vadd.s32 %v570, %v537
        %v667 = vadd.s32 %v570, %v538
        %v668 = vadd.s32 %v570, %v539
        %v669 = vadd.s32 %v570, %v540
        %v670 = vadd.s32 %v570, %v541
        %v671 = vadd.s32 %v570, %v542
        %v672 = vadd.s32 %v570, %v543
        %v673 = vadd.s32 %v570, %v544
        %v674 = vadd.s32 %v570, %v545
        %v675 = vadd.s32 %v570, %v546
        %v676 = vadd.s32 %v570, %v547
        %v677 = vadd.s32 %v570, %v548
        %v678 = vadd.s32 %v570, %v549
        %v679 = vadd.s32 %v570, %v550
        %v680 = vadd.s32 %v570, %v551
        %v681 = vadd.s32 %v570, %v552
        %v682 = vadd.s32 %v570, %v553
        %v683 = vadd.s32 %v570, %v554
        %v684 = vadd.s32 %v570, %v555
        %v685 = vadd.s32 %v570, %v556
        %v686 = vadd.s32 %v570, %v557
        %v687 = vadd.s32 %v570, %v558
        %v688 = vadd.s32 %v570, %v559
        %v689 = vadd.s32 %v570, %v560
        %v690 = vadd.s32 %v570, %v561
        %v691 = vadd.s32 %v570, %v562
        %v692 = vadd.s32 %v570, %v563
        %v693 = vadd.s32 %v570, %v564
        %v694 = vadd.s32 %v570, %v565
        %v695 = vadd.s32 %v570, %v566
        %v696 = vadd.s32 %v570, %v567
        %v697 = vadd.s32 %v570, %v568
        %v698 = vadd.s32 %v570, %v569
        %vm699 = vcmp.lt.s32.totalorder %v571, 2500
        %vm700 = vcmp.lt.s32.totalorder %v572, 2500
        %vm701 = vcmp.lt.s32.totalorder %v573, 2500
        %vm702 = vcmp.lt.s32.totalorder %v574, 2500
        %vm703 = vcmp.lt.s32.totalorder %v575, 2500
        %vm704 = vcmp.lt.s32.totalorder %v576, 2500
        %vm705 = vcmp.lt.s32.totalorder %v577, 2500
        %vm706 = vcmp.lt.s32.totalorder %v578, 2500
        %vm707 = vcmp.lt.s32.totalorder %v579, 2500
        %vm708 = vcmp.lt.s32.totalorder %v580, 2500
        %vm709 = vcmp.lt.s32.totalorder %v581, 2500
        %vm710 = vcmp.lt.s32.totalorder %v582, 2500
        %vm711 = vcmp.lt.s32.totalorder %v583, 2500
        %vm712 = vcmp.lt.s32.totalorder %v584, 2500
        %vm713 = vcmp.lt.s32.totalorder %v585, 2500
        %vm714 = vcmp.lt.s32.totalorder %v586, 2500
        %vm715 = vcmp.lt.s32.totalorder %v587, 2500
        %vm716 = vcmp.lt.s32.totalorder %v588, 2500
        %vm717 = vcmp.lt.s32.totalorder %v589, 2500
        %vm718 = vcmp.lt.s32.totalorder %v590, 2500
        %vm719 = vcmp.lt.s32.totalorder %v591, 2500
        %vm720 = vcmp.lt.s32.totalorder %v592, 2500
        %vm721 = vcmp.lt.s32.totalorder %v593, 2500
        %vm722 = vcmp.lt.s32.totalorder %v594, 2500
        %vm723 = vcmp.lt.s32.totalorder %v595, 2500
        %vm724 = vcmp.lt.s32.totalorder %v596, 2500
        %vm725 = vcmp.lt.s32.totalorder %v597, 2500
        %vm726 = vcmp.lt.s32.totalorder %v598, 2500
        %vm727 = vcmp.lt.s32.totalorder %v599, 2500
        %vm728 = vcmp.lt.s32.totalorder %v600, 2500
        %vm729 = vcmp.lt.s32.totalorder %v601, 2500
        %vm730 = vcmp.lt.s32.totalorder %v602, 2500
        %vm731 = vcmp.lt.s32.totalorder %v603, 2500
        %vm732 = vcmp.lt.s32.totalorder %v604, 2500
        %vm733 = vcmp.lt.s32.totalorder %v605, 2500
        %vm734 = vcmp.lt.s32.totalorder %v606, 2500
        %vm735 = vcmp.lt.s32.totalorder %v607, 2500
        %vm736 = vcmp.lt.s32.totalorder %v608, 2500
        %vm737 = vcmp.lt.s32.totalorder %v609, 2500
        %vm738 = vcmp.lt.s32.totalorder %v610, 2500
        %vm739 = vcmp.lt.s32.totalorder %v611, 2500
        %vm740 = vcmp.lt.s32.totalorder %v612, 2500
        %vm741 = vcmp.lt.s32.totalorder %v613, 2500
        %vm742 = vcmp.lt.s32.totalorder %v614, 2500
        %vm743 = vcmp.lt.s32.totalorder %v615, 2500
        %vm744 = vcmp.lt.s32.totalorder %v616, 2500
        %vm745 = vcmp.lt.s32.totalorder %v617, 2500
        %vm746 = vcmp.lt.s32.totalorder %v618, 2500
        %vm747 = vcmp.lt.s32.totalorder %v619, 2500
        %vm748 = vcmp.lt.s32.totalorder %v620, 2500
        %vm749 = vcmp.lt.s32.totalorder %v621, 2500
        %vm750 = vcmp.lt.s32.totalorder %v622, 2500
        %vm751 = vcmp.lt.s32.totalorder %v623, 2500
        %vm752 = vcmp.lt.s32.totalorder %v624, 2500
        %vm753 = vcmp.lt.s32.totalorder %v625, 2500
        %vm754 = vcmp.lt.s32.totalorder %v626, 2500
        %vm755 = vcmp.lt.s32.totalorder %v627, 2500
        %vm756 = vcmp.lt.s32.totalorder %v628, 2500
        %vm757 = vcmp.lt.s32.totalorder %v629, 2500
        %vm758 = vcmp.lt.s32.totalorder %v630, 2500
        %vm759 = vcmp.lt.s32.totalorder %v631, 2500
        %vm760 = vcmp.lt.s32.totalorder %v632, 2500
        %vm761 = vcmp.lt.s32.totalorder %v633, 2500
        %vm762 = vcmp.lt.s32.totalorder %v634, 2500
        %vm763 = vcmp.lt.s32.totalorder %v635, 2500
        %vm764 = vcmp.lt.s32.totalorder %v636, 2500
        %vm765 = vcmp.lt.s32.totalorder %v637, 2500
        %vm766 = vcmp.lt.s32.totalorder %v638, 2500
        %vm767 = vcmp.lt.s32.totalorder %v639, 2500
        %vm768 = vcmp.lt.s32.totalorder %v640, 2500
        %vm769 = vcmp.lt.s32.totalorder %v641, 2500
        %vm770 = vcmp.lt.s32.totalorder %v642, 2500
        %vm771 = vcmp.lt.s32.totalorder %v643, 2500
        %vm772 = vcmp.lt.s32.totalorder %v644, 2500
        %vm773 = vcmp.lt.s32.totalorder %v645, 2500
        %vm774 = vcmp.lt.s32.totalorder %v646, 2500
        %vm775 = vcmp.lt.s32.totalorder %v647, 2500
        %vm776 = vcmp.lt.s32.totalorder %v648, 2500
        %vm777 = vcmp.lt.s32.totalorder %v649, 2500
        %vm778 = vcmp.lt.s32.totalorder %v650, 2500
        %vm779 = vcmp.lt.s32.totalorder %v651, 2500
        %vm780 = vcmp.lt.s32.totalorder %v652, 2500
        %vm781 = vcmp.lt.s32.totalorder %v653, 2500
        %vm782 = vcmp.lt.s32.totalorder %v654, 2500
        %vm783 = vcmp.lt.s32.totalorder %v655, 2500
        %vm784 = vcmp.lt.s32.totalorder %v656, 2500
        %vm785 = vcmp.lt.s32.totalorder %v657, 2500
        %vm786 = vcmp.lt.s32.totalorder %v658, 2500
        %vm787 = vcmp.lt.s32.totalorder %v659, 2500
        %vm788 = vcmp.lt.s32.totalorder %v660, 2500
        %vm789 = vcmp.lt.s32.totalorder %v661, 2500
        %vm790 = vcmp.lt.s32.totalorder %v662, 2500
        %vm791 = vcmp.lt.s32.totalorder %v663, 2500
        %vm792 = vcmp.lt.s32.totalorder %v664, 2500
        %vm793 = vcmp.lt.s32.totalorder %v665, 2500
        %vm794 = vcmp.lt.s32.totalorder %v666, 2500
        %vm795 = vcmp.lt.s32.totalorder %v667, 2500
        %vm796 = vcmp.lt.s32.totalorder %v668, 2500
        %vm797 = vcmp.lt.s32.totalorder %v669, 2500
        %vm798 = vcmp.lt.s32.totalorder %v670, 2500
        %vm799 = vcmp.lt.s32.totalorder %v671, 2500
        %vm800 = vcmp.lt.s32.totalorder %v672, 2500
        %vm801 = vcmp.lt.s32.totalorder %v673, 2500
        %vm802 = vcmp.lt.s32.totalorder %v674, 2500
        %vm803 = vcmp.lt.s32.totalorder %v675, 2500
        %vm804 = vcmp.lt.s32.totalorder %v676, 2500
        %vm805 = vcmp.lt.s32.totalorder %v677, 2500
        %vm806 = vcmp.lt.s32.totalorder %v678, 2500
        %vm807 = vcmp.lt.s32.totalorder %v679, 2500
        %vm808 = vcmp.lt.s32.totalorder %v680, 2500
        %vm809 = vcmp.lt.s32.totalorder %v681, 2500
        %vm810 = vcmp.lt.s32.totalorder %v682, 2500
        %vm811 = vcmp.lt.s32.totalorder %v683, 2500
        %vm812 = vcmp.lt.s32.totalorder %v684, 2500
        %vm813 = vcmp.lt.s32.totalorder %v685, 2500
        %vm814 = vcmp.lt.s32.totalorder %v686, 2500
        %vm815 = vcmp.lt.s32.totalorder %v687, 2500
        %vm816 = vcmp.lt.s32.totalorder %v688, 2500
        %vm817 = vcmp.lt.s32.totalorder %v689, 2500
        %vm818 = vcmp.lt.s32.totalorder %v690, 2500
        %vm819 = vcmp.lt.s32.totalorder %v691, 2500
        %vm820 = vcmp.lt.s32.totalorder %v692, 2500
        %vm821 = vcmp.lt.s32.totalorder %v693, 2500
        %vm822 = vcmp.lt.s32.totalorder %v694, 2500
        %vm823 = vcmp.lt.s32.totalorder %v695, 2500
        %vm824 = vcmp.lt.s32.totalorder %v696, 2500
        %vm825 = vcmp.lt.s32.totalorder %v697, 2500
        %vm826 = vcmp.lt.s32.totalorder %v698, 2500
        %p827 = scmp.eq.s32.totalorder %s29, 0
        // Predicated region
        $region65: #{tpu_custom_call.1} parent=63 // pred_check
          %p828 = pneg %p827
        $region66: #{tpu_custom_call.1} parent=63 // pred_check_branch
          %830 = sbr.rel (%p828) target = $region68
        $region67: #{tpu_custom_call.1} parent=63 // pred_region
          %p831 = scmp.eq.s32.totalorder %s30, 0
          // Predicated region
          $region69: #{tpu_custom_call.1} parent=67 // pred_check
            %p832 = pneg %p831
          $region70: #{tpu_custom_call.1} parent=67 // pred_check_branch
            %834 = sbr.rel (%p832) target = $region72
          $region71: #{tpu_custom_call.1} parent=67 // pred_region
            %835 = vst [vmem:[#allocation4] sm:$0x1] 0.0
            %836 = vst [vmem:[#allocation5] sm:$0x1] 0.0
            %837 = vst [vmem:[#allocation6] sm:$0x1] 0.0
            %838 = vst [vmem:[#allocation7] sm:$0x1] 0.0
          $region72: #{tpu_custom_call.1} parent=67 // pred_fallthru
            _
          %v839 = vld [vmem:[%s429] sm:$0xf]
          %v840 = vld [vmem:[%s429 + $0x4] sm:$0xf]
          %v841 = vld [vmem:[%s429 + $0x8] sm:$0xf]
          %v842 = vld [vmem:[%s429 + $0xc] sm:$0xf]
          %v843 = vld [vmem:[%s429 + $0x10] sm:$0xf]
          %v844 = vld [vmem:[%s429 + $0x14] sm:$0xf]
          %v845 = vld [vmem:[%s429 + $0x18] sm:$0xf]
          %v846 = vld [vmem:[%s429 + $0x1c] sm:$0xf]
          %v847 = vld [vmem:[%s429 + $0x20] sm:$0xf]
          %v848 = vld [vmem:[%s429 + $0x24] sm:$0xf]
          %v849 = vld [vmem:[%s429 + $0x28] sm:$0xf]
          %v850 = vld [vmem:[%s429 + $0x2c] sm:$0xf]
          %v851 = vld [vmem:[%s429 + $0x30] sm:$0xf]
          %v852 = vld [vmem:[%s429 + $0x34] sm:$0xf]
          %v853 = vld [vmem:[%s429 + $0x38] sm:$0xf]
          %v854 = vld [vmem:[%s429 + $0x3c] sm:$0xf]
          %v855 = vld [vmem:[%s429 + $0x40] sm:$0xf]
          %v856 = vld [vmem:[%s429 + $0x44] sm:$0xf]
          %v857 = vld [vmem:[%s429 + $0x48] sm:$0xf]
          %v858 = vld [vmem:[%s429 + $0x4c] sm:$0xf]
          %v859 = vld [vmem:[%s429 + $0x50] sm:$0xf]
          %v860 = vld [vmem:[%s429 + $0x54] sm:$0xf]
          %v861 = vld [vmem:[%s429 + $0x58] sm:$0xf]
          %v862 = vld [vmem:[%s429 + $0x5c] sm:$0xf]
          %v863 = vld [vmem:[%s429 + $0x60] sm:$0xf]
          %v864 = vld [vmem:[%s429 + $0x64] sm:$0xf]
          %v865 = vld [vmem:[%s429 + $0x68] sm:$0xf]
          %v866 = vld [vmem:[%s429 + $0x6c] sm:$0xf]
          %v867 = vld [vmem:[%s429 + $0x70] sm:$0xf]
          %v868 = vld [vmem:[%s429 + $0x74] sm:$0xf]
          %v869 = vld [vmem:[%s429 + $0x78] sm:$0xf]
          %v870 = vld [vmem:[%s429 + $0x7c] sm:$0xf]
          %v871 = vld [vmem:[%s429 + $0x80] sm:$0xf]
          %v872 = vld [vmem:[%s429 + $0x84] sm:$0xf]
          %v873 = vld [vmem:[%s429 + $0x88] sm:$0xf]
          %v874 = vld [vmem:[%s429 + $0x8c] sm:$0xf]
          %v875 = vld [vmem:[%s429 + $0x90] sm:$0xf]
          %v876 = vld [vmem:[%s429 + $0x94] sm:$0xf]
          %v877 = vld [vmem:[%s429 + $0x98] sm:$0xf]
          %v878 = vld [vmem:[%s429 + $0x9c] sm:$0xf]
          %v879 = vld [vmem:[%s429 + $0xa0] sm:$0xf]
          %v880 = vld [vmem:[%s429 + $0xa4] sm:$0xf]
          %v881 = vld [vmem:[%s429 + $0xa8] sm:$0xf]
          %v882 = vld [vmem:[%s429 + $0xac] sm:$0xf]
          %v883 = vld [vmem:[%s429 + $0xb0] sm:$0xf]
          %v884 = vld [vmem:[%s429 + $0xb4] sm:$0xf]
          %v885 = vld [vmem:[%s429 + $0xb8] sm:$0xf]
          %v886 = vld [vmem:[%s429 + $0xbc] sm:$0xf]
          %v887 = vld [vmem:[%s429 + $0xc0] sm:$0xf]
          %v888 = vld [vmem:[%s429 + $0xc4] sm:$0xf]
          %v889 = vld [vmem:[%s429 + $0xc8] sm:$0xf]
          %v890 = vld [vmem:[%s429 + $0xcc] sm:$0xf]
          %v891 = vld [vmem:[%s429 + $0xd0] sm:$0xf]
          %v892 = vld [vmem:[%s429 + $0xd4] sm:$0xf]
          %v893 = vld [vmem:[%s429 + $0xd8] sm:$0xf]
          %v894 = vld [vmem:[%s429 + $0xdc] sm:$0xf]
          %v895 = vld [vmem:[%s429 + $0xe0] sm:$0xf]
          %v896 = vld [vmem:[%s429 + $0xe4] sm:$0xf]
          %v897 = vld [vmem:[%s429 + $0xe8] sm:$0xf]
          %v898 = vld [vmem:[%s429 + $0xec] sm:$0xf]
          %v899 = vld [vmem:[%s429 + $0xf0] sm:$0xf]
          %v900 = vld [vmem:[%s429 + $0xf4] sm:$0xf]
          %v901 = vld [vmem:[%s429 + $0xf8] sm:$0xf]
          %v902 = vld [vmem:[%s429 + $0xfc] sm:$0xf]
          %v903 = vld [vmem:[%s429 + $0x100] sm:$0xf]
          %v904 = vld [vmem:[%s429 + $0x104] sm:$0xf]
          %v905 = vld [vmem:[%s429 + $0x108] sm:$0xf]
          %v906 = vld [vmem:[%s429 + $0x10c] sm:$0xf]
          %v907 = vld [vmem:[%s429 + $0x110] sm:$0xf]
          %v908 = vld [vmem:[%s429 + $0x114] sm:$0xf]
          %v909 = vld [vmem:[%s429 + $0x118] sm:$0xf]
          %v910 = vld [vmem:[%s429 + $0x11c] sm:$0xf]
          %v911 = vld [vmem:[%s429 + $0x120] sm:$0xf]
          %v912 = vld [vmem:[%s429 + $0x124] sm:$0xf]
          %v913 = vld [vmem:[%s429 + $0x128] sm:$0xf]
          %v914 = vld [vmem:[%s429 + $0x12c] sm:$0xf]
          %v915 = vld [vmem:[%s429 + $0x130] sm:$0xf]
          %v916 = vld [vmem:[%s429 + $0x134] sm:$0xf]
          %v917 = vld [vmem:[%s429 + $0x138] sm:$0xf]
          %v918 = vld [vmem:[%s429 + $0x13c] sm:$0xf]
          %v919 = vld [vmem:[%s429 + $0x140] sm:$0xf]
          %v920 = vld [vmem:[%s429 + $0x144] sm:$0xf]
          %v921 = vld [vmem:[%s429 + $0x148] sm:$0xf]
          %v922 = vld [vmem:[%s429 + $0x14c] sm:$0xf]
          %v923 = vld [vmem:[%s429 + $0x150] sm:$0xf]
          %v924 = vld [vmem:[%s429 + $0x154] sm:$0xf]
          %v925 = vld [vmem:[%s429 + $0x158] sm:$0xf]
          %v926 = vld [vmem:[%s429 + $0x15c] sm:$0xf]
          %v927 = vld [vmem:[%s429 + $0x160] sm:$0xf]
          %v928 = vld [vmem:[%s429 + $0x164] sm:$0xf]
          %v929 = vld [vmem:[%s429 + $0x168] sm:$0xf]
          %v930 = vld [vmem:[%s429 + $0x16c] sm:$0xf]
          %v931 = vld [vmem:[%s429 + $0x170] sm:$0xf]
          %v932 = vld [vmem:[%s429 + $0x174] sm:$0xf]
          %v933 = vld [vmem:[%s429 + $0x178] sm:$0xf]
          %v934 = vld [vmem:[%s429 + $0x17c] sm:$0xf]
          %v935 = vld [vmem:[%s429 + $0x180] sm:$0xf]
          %v936 = vld [vmem:[%s429 + $0x184] sm:$0xf]
          %v937 = vld [vmem:[%s429 + $0x188] sm:$0xf]
          %v938 = vld [vmem:[%s429 + $0x18c] sm:$0xf]
          %v939 = vld [vmem:[%s429 + $0x190] sm:$0xf]
          %v940 = vld [vmem:[%s429 + $0x194] sm:$0xf]
          %v941 = vld [vmem:[%s429 + $0x198] sm:$0xf]
          %v942 = vld [vmem:[%s429 + $0x19c] sm:$0xf]
          %v943 = vld [vmem:[%s429 + $0x1a0] sm:$0xf]
          %v944 = vld [vmem:[%s429 + $0x1a4] sm:$0xf]
          %v945 = vld [vmem:[%s429 + $0x1a8] sm:$0xf]
          %v946 = vld [vmem:[%s429 + $0x1ac] sm:$0xf]
          %v947 = vld [vmem:[%s429 + $0x1b0] sm:$0xf]
          %v948 = vld [vmem:[%s429 + $0x1b4] sm:$0xf]
          %v949 = vld [vmem:[%s429 + $0x1b8] sm:$0xf]
          %v950 = vld [vmem:[%s429 + $0x1bc] sm:$0xf]
          %v951 = vld [vmem:[%s429 + $0x1c0] sm:$0xf]
          %v952 = vld [vmem:[%s429 + $0x1c4] sm:$0xf]
          %v953 = vld [vmem:[%s429 + $0x1c8] sm:$0xf]
          %v954 = vld [vmem:[%s429 + $0x1cc] sm:$0xf]
          %v955 = vld [vmem:[%s429 + $0x1d0] sm:$0xf]
          %v956 = vld [vmem:[%s429 + $0x1d4] sm:$0xf]
          %v957 = vld [vmem:[%s429 + $0x1d8] sm:$0xf]
          %v958 = vld [vmem:[%s429 + $0x1dc] sm:$0xf]
          %v959 = vld [vmem:[%s429 + $0x1e0] sm:$0xf]
          %v960 = vld [vmem:[%s429 + $0x1e4] sm:$0xf]
          %v961 = vld [vmem:[%s429 + $0x1e8] sm:$0xf]
          %v962 = vld [vmem:[%s429 + $0x1ec] sm:$0xf]
          %v963 = vld [vmem:[%s429 + $0x1f0] sm:$0xf]
          %v964 = vld [vmem:[%s429 + $0x1f4] sm:$0xf]
          %v965 = vld [vmem:[%s429 + $0x1f8] sm:$0xf]
          %v966 = vld [vmem:[%s429 + $0x1fc] sm:$0xf]
          %v967 = vld [vmem:[%s1] sm:$0xf]
          %v968 = vld [vmem:[%s1 + $0x4] sm:$0xf]
          %v969 = vld [vmem:[%s2] sm:$0x1]
          %v971 = vlaneseq
          %v972 = vshrl.u32 %v971, 7
          %v973 = vsub.s32 0, %v972
          %v974 = vrot.slane %v969, %v973
          %v1104 = vunpack.c.l.b16 %v839
          %v1105 = vunpack.c.l.b16 %v840
          %v1106 = vunpack.c.l.b16 %v841
          %v1107 = vunpack.c.l.b16 %v842
          %v1108 = vunpack.c.l.b16 %v843
          %v1109 = vunpack.c.l.b16 %v844
          %v1110 = vunpack.c.l.b16 %v845
          %v1111 = vunpack.c.l.b16 %v846
          %v1112 = vunpack.c.l.b16 %v847
          %v1113 = vunpack.c.l.b16 %v848
          %v1114 = vunpack.c.l.b16 %v849
          %v1115 = vunpack.c.l.b16 %v850
          %v1116 = vunpack.c.l.b16 %v851
          %v1117 = vunpack.c.l.b16 %v852
          %v1118 = vunpack.c.l.b16 %v853
          %v1119 = vunpack.c.l.b16 %v854
          %v1120 = vunpack.c.l.b16 %v855
          %v1121 = vunpack.c.l.b16 %v856
          %v1122 = vunpack.c.l.b16 %v857
          %v1123 = vunpack.c.l.b16 %v858
          %v1124 = vunpack.c.l.b16 %v859
          %v1125 = vunpack.c.l.b16 %v860
          %v1126 = vunpack.c.l.b16 %v861
          %v1127 = vunpack.c.l.b16 %v862
          %v1128 = vunpack.c.l.b16 %v863
          %v1129 = vunpack.c.l.b16 %v864
          %v1130 = vunpack.c.l.b16 %v865
          %v1131 = vunpack.c.l.b16 %v866
          %v1132 = vunpack.c.l.b16 %v867
          %v1133 = vunpack.c.l.b16 %v868
          %v1134 = vunpack.c.l.b16 %v869
          %v1135 = vunpack.c.l.b16 %v870
          %v1136 = vunpack.c.l.b16 %v871
          %v1137 = vunpack.c.l.b16 %v872
          %v1138 = vunpack.c.l.b16 %v873
          %v1139 = vunpack.c.l.b16 %v874
          %v1140 = vunpack.c.l.b16 %v875
          %v1141 = vunpack.c.l.b16 %v876
          %v1142 = vunpack.c.l.b16 %v877
          %v1143 = vunpack.c.l.b16 %v878
          %v1144 = vunpack.c.l.b16 %v879
          %v1145 = vunpack.c.l.b16 %v880
          %v1146 = vunpack.c.l.b16 %v881
          %v1147 = vunpack.c.l.b16 %v882
          %v1148 = vunpack.c.l.b16 %v883
          %v1149 = vunpack.c.l.b16 %v884
          %v1150 = vunpack.c.l.b16 %v885
          %v1151 = vunpack.c.l.b16 %v886
          %v1152 = vunpack.c.l.b16 %v887
          %v1153 = vunpack.c.l.b16 %v888
          %v1154 = vunpack.c.l.b16 %v889
          %v1155 = vunpack.c.l.b16 %v890
          %v1156 = vunpack.c.l.b16 %v891
          %v1157 = vunpack.c.l.b16 %v892
          %v1158 = vunpack.c.l.b16 %v893
          %v1159 = vunpack.c.l.b16 %v894
          %v1160 = vunpack.c.l.b16 %v895
          %v1161 = vunpack.c.l.b16 %v896
          %v1162 = vunpack.c.l.b16 %v897
          %v1163 = vunpack.c.l.b16 %v898
          %v1164 = vunpack.c.l.b16 %v899
          %v1165 = vunpack.c.l.b16 %v900
          %v1166 = vunpack.c.l.b16 %v901
          %v1167 = vunpack.c.l.b16 %v902
          %v1168 = vunpack.c.l.b16 %v903
          %v1169 = vunpack.c.l.b16 %v904
          %v1170 = vunpack.c.l.b16 %v905
          %v1171 = vunpack.c.l.b16 %v906
          %v1172 = vunpack.c.l.b16 %v907
          %v1173 = vunpack.c.l.b16 %v908
          %v1174 = vunpack.c.l.b16 %v909
          %v1175 = vunpack.c.l.b16 %v910
          %v1176 = vunpack.c.l.b16 %v911
          %v1177 = vunpack.c.l.b16 %v912
          %v1178 = vunpack.c.l.b16 %v913
          %v1179 = vunpack.c.l.b16 %v914
          %v1180 = vunpack.c.l.b16 %v915
          %v1181 = vunpack.c.l.b16 %v916
          %v1182 = vunpack.c.l.b16 %v917
          %v1183 = vunpack.c.l.b16 %v918
          %v1184 = vunpack.c.l.b16 %v919
          %v1185 = vunpack.c.l.b16 %v920
          %v1186 = vunpack.c.l.b16 %v921
          %v1187 = vunpack.c.l.b16 %v922
          %v1188 = vunpack.c.l.b16 %v923
          %v1189 = vunpack.c.l.b16 %v924
          %v1190 = vunpack.c.l.b16 %v925
          %v1191 = vunpack.c.l.b16 %v926
          %v1192 = vunpack.c.l.b16 %v927
          %v1193 = vunpack.c.l.b16 %v928
          %v1194 = vunpack.c.l.b16 %v929
          %v1195 = vunpack.c.l.b16 %v930
          %v1196 = vunpack.c.l.b16 %v931
          %v1197 = vunpack.c.l.b16 %v932
          %v1198 = vunpack.c.l.b16 %v933
          %v1199 = vunpack.c.l.b16 %v934
          %v1200 = vunpack.c.l.b16 %v935
          %v1201 = vunpack.c.l.b16 %v936
          %v1202 = vunpack.c.l.b16 %v937
          %v1203 = vunpack.c.l.b16 %v938
          %v1204 = vunpack.c.l.b16 %v939
          %v1205 = vunpack.c.l.b16 %v940
          %v1206 = vunpack.c.l.b16 %v941
          %v1207 = vunpack.c.l.b16 %v942
          %v1208 = vunpack.c.l.b16 %v943
          %v1209 = vunpack.c.l.b16 %v944
          %v1210 = vunpack.c.l.b16 %v945
          %v1211 = vunpack.c.l.b16 %v946
          %v1212 = vunpack.c.l.b16 %v947
          %v1213 = vunpack.c.l.b16 %v948
          %v1214 = vunpack.c.l.b16 %v949
          %v1215 = vunpack.c.l.b16 %v950
          %v1216 = vunpack.c.l.b16 %v951
          %v1217 = vunpack.c.l.b16 %v952
          %v1218 = vunpack.c.l.b16 %v953
          %v1219 = vunpack.c.l.b16 %v954
          %v1220 = vunpack.c.l.b16 %v955
          %v1221 = vunpack.c.l.b16 %v956
          %v1222 = vunpack.c.l.b16 %v957
          %v1223 = vunpack.c.l.b16 %v958
          %v1224 = vunpack.c.l.b16 %v959
          %v1225 = vunpack.c.l.b16 %v960
          %v1226 = vunpack.c.l.b16 %v961
          %v1227 = vunpack.c.l.b16 %v962
          %v1228 = vunpack.c.l.b16 %v963
          %v1229 = vunpack.c.l.b16 %v964
          %v1230 = vunpack.c.l.b16 %v965
          %v1231 = vunpack.c.l.b16 %v966
          %v1232 = vpack.c.b16 %v1105, %v1104
          %v1233 = vpack.c.b16 %v1107, %v1106
          %v1234 = vpack.c.b16 %v1109, %v1108
          %v1235 = vpack.c.b16 %v1111, %v1110
          %v1236 = vpack.c.b16 %v1113, %v1112
          %v1237 = vpack.c.b16 %v1115, %v1114
          %v1238 = vpack.c.b16 %v1117, %v1116
          %v1239 = vpack.c.b16 %v1119, %v1118
          %v1240 = vpack.c.b16 %v1121, %v1120
          %v1241 = vpack.c.b16 %v1123, %v1122
          %v1242 = vpack.c.b16 %v1125, %v1124
          %v1243 = vpack.c.b16 %v1127, %v1126
          %v1244 = vpack.c.b16 %v1129, %v1128
          %v1245 = vpack.c.b16 %v1131, %v1130
          %v1246 = vpack.c.b16 %v1133, %v1132
          %v1247 = vpack.c.b16 %v1135, %v1134
          %v1248 = vpack.c.b16 %v1137, %v1136
          %v1249 = vpack.c.b16 %v1139, %v1138
          %v1250 = vpack.c.b16 %v1141, %v1140
          %v1251 = vpack.c.b16 %v1143, %v1142
          %v1252 = vpack.c.b16 %v1145, %v1144
          %v1253 = vpack.c.b16 %v1147, %v1146
          %v1254 = vpack.c.b16 %v1149, %v1148
          %v1255 = vpack.c.b16 %v1151, %v1150
          %v1256 = vpack.c.b16 %v1153, %v1152
          %v1257 = vpack.c.b16 %v1155, %v1154
          %v1258 = vpack.c.b16 %v1157, %v1156
          %v1259 = vpack.c.b16 %v1159, %v1158
          %v1260 = vpack.c.b16 %v1161, %v1160
          %v1261 = vpack.c.b16 %v1163, %v1162
          %v1262 = vpack.c.b16 %v1165, %v1164
          %v1263 = vpack.c.b16 %v1167, %v1166
          %v1264 = vpack.c.b16 %v1169, %v1168
          %v1265 = vpack.c.b16 %v1171, %v1170
          %v1266 = vpack.c.b16 %v1173, %v1172
          %v1267 = vpack.c.b16 %v1175, %v1174
          %v1268 = vpack.c.b16 %v1177, %v1176
          %v1269 = vpack.c.b16 %v1179, %v1178
          %v1270 = vpack.c.b16 %v1181, %v1180
          %v1271 = vpack.c.b16 %v1183, %v1182
          %v1272 = vpack.c.b16 %v1185, %v1184
          %v1273 = vpack.c.b16 %v1187, %v1186
          %v1274 = vpack.c.b16 %v1189, %v1188
          %v1275 = vpack.c.b16 %v1191, %v1190
          %v1276 = vpack.c.b16 %v1193, %v1192
          %v1277 = vpack.c.b16 %v1195, %v1194
          %v1278 = vpack.c.b16 %v1197, %v1196
          %v1279 = vpack.c.b16 %v1199, %v1198
          %v1280 = vpack.c.b16 %v1201, %v1200
          %v1281 = vpack.c.b16 %v1203, %v1202
          %v1282 = vpack.c.b16 %v1205, %v1204
          %v1283 = vpack.c.b16 %v1207, %v1206
          %v1284 = vpack.c.b16 %v1209, %v1208
          %v1285 = vpack.c.b16 %v1211, %v1210
          %v1286 = vpack.c.b16 %v1213, %v1212
          %v1287 = vpack.c.b16 %v1215, %v1214
          %v1288 = vpack.c.b16 %v1217, %v1216
          %v1289 = vpack.c.b16 %v1219, %v1218
          %v1290 = vpack.c.b16 %v1221, %v1220
          %v1291 = vpack.c.b16 %v1223, %v1222
          %v1292 = vpack.c.b16 %v1225, %v1224
          %v1293 = vpack.c.b16 %v1227, %v1226
          %v1294 = vpack.c.b16 %v1229, %v1228
          %v1295 = vpack.c.b16 %v1231, %v1230
          %v1298 = vunpack.c.l.b16 %v967
          %v1299 = vunpack.c.l.b16 %v968
          %v1300 = vpack.c.b16 %v1299, %v1298
          %vm1302 = vcmask 130048
          %v1304 = vsel %vm1302, %v1232, 0
          %v1307 = vsel %vm1302, %v1233, 0
          %v1310 = vsel %vm1302, %v1234, 0
          %v1313 = vsel %vm1302, %v1235, 0
          %v1316 = vsel %vm1302, %v1236, 0
          %v1319 = vsel %vm1302, %v1237, 0
          %v1322 = vsel %vm1302, %v1238, 0
          %v1325 = vsel %vm1302, %v1239, 0
          %v1328 = vsel %vm1302, %v1240, 0
          %v1331 = vsel %vm1302, %v1241, 0
          %v1334 = vsel %vm1302, %v1242, 0
          %v1337 = vsel %vm1302, %v1243, 0
          %v1340 = vsel %vm1302, %v1244, 0
          %v1343 = vsel %vm1302, %v1245, 0
          %v1346 = vsel %vm1302, %v1246, 0
          %v1349 = vsel %vm1302, %v1247, 0
          %v1352 = vsel %vm1302, %v1248, 0
          %v1355 = vsel %vm1302, %v1249, 0
          %v1358 = vsel %vm1302, %v1250, 0
          %v1361 = vsel %vm1302, %v1251, 0
          %v1364 = vsel %vm1302, %v1252, 0
          %v1367 = vsel %vm1302, %v1253, 0
          %v1370 = vsel %vm1302, %v1254, 0
          %v1373 = vsel %vm1302, %v1255, 0
          %v1376 = vsel %vm1302, %v1256, 0
          %v1379 = vsel %vm1302, %v1257, 0
          %v1382 = vsel %vm1302, %v1258, 0
          %v1385 = vsel %vm1302, %v1259, 0
          %v1388 = vsel %vm1302, %v1260, 0
          %v1391 = vsel %vm1302, %v1261, 0
          %v1394 = vsel %vm1302, %v1262, 0
          %v1397 = vsel %vm1302, %v1263, 0
          %v1400 = vsel %vm1302, %v1264, 0
          %v1403 = vsel %vm1302, %v1265, 0
          %v1406 = vsel %vm1302, %v1266, 0
          %v1409 = vsel %vm1302, %v1267, 0
          %v1412 = vsel %vm1302, %v1268, 0
          %v1415 = vsel %vm1302, %v1269, 0
          %v1418 = vsel %vm1302, %v1270, 0
          %v1421 = vsel %vm1302, %v1271, 0
          %v1424 = vsel %vm1302, %v1272, 0
          %v1427 = vsel %vm1302, %v1273, 0
          %v1430 = vsel %vm1302, %v1274, 0
          %v1433 = vsel %vm1302, %v1275, 0
          %v1436 = vsel %vm1302, %v1276, 0
          %v1439 = vsel %vm1302, %v1277, 0
          %v1442 = vsel %vm1302, %v1278, 0
          %v1445 = vsel %vm1302, %v1279, 0
          %v1448 = vsel %vm1302, %v1280, 0
          %v1451 = vsel %vm1302, %v1281, 0
          %v1454 = vsel %vm1302, %v1282, 0
          %v1457 = vsel %vm1302, %v1283, 0
          %v1460 = vsel %vm1302, %v1284, 0
          %v1463 = vsel %vm1302, %v1285, 0
          %v1466 = vsel %vm1302, %v1286, 0
          %v1469 = vsel %vm1302, %v1287, 0
          %v1472 = vsel %vm1302, %v1288, 0
          %v1475 = vsel %vm1302, %v1289, 0
          %v1478 = vsel %vm1302, %v1290, 0
          %v1481 = vsel %vm1302, %v1291, 0
          %v1484 = vsel %vm1302, %v1292, 0
          %v1487 = vsel %vm1302, %v1293, 0
          %v1490 = vsel %vm1302, %v1294, 0
          %v1493 = vsel %vm1302, %v1295, 0
          %1495 = vmatprep.subr.bf16.mxu0 0
          %1496 = vmatpush1.bf16.msra.mxu0 %v1300
          %1497 = vmatprep.subr.bf16.mxu0 0
          %1498 = vmatpush1.bf16.msra.mxu0 0
          %1499 = vmatprep.subr.bf16.mxu0 0
          %1500 = vmatpush1.bf16.msra.mxu0 0
          %1501 = vmatprep.subr.bf16.mxu0 0
          %1502 = vmatpush1.bf16.msra.mxu0 0
          %1503 = vmatprep.subr.bf16.mxu0 0
          %1504 = vmatpush1.bf16.msra.mxu0 0
          %1505 = vmatprep.subr.bf16.mxu0 0
          %1506 = vmatpush1.bf16.msra.mxu0 0
          %1507 = vmatprep.subr.bf16.mxu0 0
          %1508 = vmatpush1.bf16.msra.mxu0 0
          %1509 = vmatprep.subr.bf16.mxu0 0
          %1510 = vmatpush1.bf16.msra.mxu0 0
          %1511 = vmatprep.subr.bf16.mxu0 0
          %1512 = vmatpush1.bf16.msra.mxu0 0
          %1513 = vmatprep.subr.bf16.mxu0 0
          %1514 = vmatpush1.bf16.msra.mxu0 0
          %1515 = vmatprep.subr.bf16.mxu0 0
          %1516 = vmatpush1.bf16.msra.mxu0 0
          %1517 = vmatprep.subr.bf16.mxu0 0
          %1518 = vmatpush1.bf16.msra.mxu0 0
          %1519 = vmatprep.subr.bf16.mxu0 0
          %1520 = vmatpush1.bf16.msra.mxu0 0
          %1521 = vmatprep.subr.bf16.mxu0 0
          %1522 = vmatpush1.bf16.msra.mxu0 0
          %1523 = vmatprep.subr.bf16.mxu0 0
          %1524 = vmatpush1.bf16.msra.mxu0 0
          %1525 = vmatprep.subr.bf16.mxu0 0
          %1526 = vmatpush1.bf16.msra.mxu0 0
          %1527 = vmatprep.mubr.bf16.mxu0 0
          %1528 = vmatmul.mubr.bf16.gmra.mrb[0].mxu0 %v1304
          %v1529 = vpop.f32.mrb[0].mxu0
          %v1530 = vadd.f32 %v974, %v1529
          %v1531 = vpop.f32.mrb[0].mxu0
          %v1532 = vpop.f32.mrb[0].mxu0
          %v1533 = vadd.f32 %v974, %v1532
          %v1534 = vpop.f32.mrb[0].mxu0
          %1535 = vmatprep.mubr.bf16.mxu0 0
          %1536 = vmatmul.mubr.bf16.gmra.mrb[0].mxu0 %v1307
          %v1537 = vpop.f32.mrb[0].mxu0
          %v1538 = vadd.f32 %v974, %v1537
          %v1539 = vpop.f32.mrb[0].mxu0
          %v1540 = vpop.f32.mrb[0].mxu0
          %v1541 = vadd.f32 %v974, %v1540
          %v1542 = vpop.f32.mrb[0].mxu0
          %1543 = vmatprep.mubr.bf16.mxu0 0
          %1544 = vmatmul.mubr.bf16.gmra.mrb[0].mxu0 %v1310
          %v1545 = vpop.f32.mrb[0].mxu0
          %v1546 = vadd.f32 %v974, %v1545
          %v1547 = vpop.f32.mrb[0].mxu0
          %v1548 = vpop.f32.mrb[0].mxu0
          %v1549 = vadd.f32 %v974, %v1548
          %v1550 = vpop.f32.mrb[0].mxu0
          %1551 = vmatprep.mubr.bf16.mxu0 0
          %1552 = vmatmul.mubr.bf16.gmra.mrb[0].mxu0 %v1313
          %v1553 = vpop.f32.mrb[0].mxu0
          %v1554 = vadd.f32 %v974, %v1553
          %v1555 = vpop.f32.mrb[0].mxu0
          %v1556 = vpop.f32.mrb[0].mxu0
          %v1557 = vadd.f32 %v974, %v1556
          %v1558 = vpop.f32.mrb[0].mxu0
          %1559 = vmatprep.mubr.bf16.mxu0 0
          %1560 = vmatmul.mubr.bf16.gmra.mrb[0].mxu0 %v1316
          %v1561 = vpop.f32.mrb[0].mxu0
          %v1562 = vadd.f32 %v974, %v1561
          %v1563 = vpop.f32.mrb[0].mxu0
          %v1564 = vpop.f32.mrb[0].mxu0
          %v1565 = vadd.f32 %v974, %v1564
          %v1566 = vpop.f32.mrb[0].mxu0
          %1567 = vmatprep.mubr.bf16.mxu0 0
          %1568 = vmatmul.mubr.bf16.gmra.mrb[0].mxu0 %v1319
          %v1569 = vpop.f32.mrb[0].mxu0
          %v1570 = vadd.f32 %v974, %v1569
          %v1571 = vpop.f32.mrb[0].mxu0
          %v1572 = vpop.f32.mrb[0].mxu0
          %v1573 = vadd.f32 %v974, %v1572
          %v1574 = vpop.f32.mrb[0].mxu0
          %1575 = vmatprep.mubr.bf16.mxu0 0
          %1576 = vmatmul.mubr.bf16.gmra.mrb[0].mxu0 %v1322
          %v1577 = vpop.f32.mrb[0].mxu0
          %v1578 = vadd.f32 %v974, %v1577
          %v1579 = vpop.f32.mrb[0].mxu0
          %v1580 = vpop.f32.mrb[0].mxu0
          %v1581 = vadd.f32 %v974, %v1580
          %v1582 = vpop.f32.mrb[0].mxu0
          %1583 = vmatprep.mubr.bf16.mxu0 0
          %1584 = vmatmul.mubr.bf16.gmra.mrb[0].mxu0 %v1325
          %v1585 = vpop.f32.mrb[0].mxu0
          %v1586 = vadd.f32 %v974, %v1585
          %v1587 = vpop.f32.mrb[0].mxu0
          %v1588 = vpop.f32.mrb[0].mxu0
          %v1589 = vadd.f32 %v974, %v1588
          %v1590 = vpop.f32.mrb[0].mxu0
          %1591 = vmatprep.mubr.bf16.mxu0 0
          %1592 = vmatmul.mubr.bf16.gmra.mrb[0].mxu0 %v1328
          %v1593 = vpop.f32.mrb[0].mxu0
          %v1594 = vadd.f32 %v974, %v1593
          %v1595 = vpop.f32.mrb[0].mxu0
          %v1596 = vpop.f32.mrb[0].mxu0
          %v1597 = vadd.f32 %v974, %v1596
          %v1598 = vpop.f32.mrb[0].mxu0
          %1599 = vmatprep.mubr.bf16.mxu0 0
          %1600 = vmatmul.mubr.bf16.gmra.mrb[0].mxu0 %v1331
          %v1601 = vpop.f32.mrb[0].mxu0
          %v1602 = vadd.f32 %v974, %v1601
          %v1603 = vpop.f32.mrb[0].mxu0
          %v1604 = vpop.f32.mrb[0].mxu0
          %v1605 = vadd.f32 %v974, %v1604
          %v1606 = vpop.f32.mrb[0].mxu0
          %1607 = vmatprep.mubr.bf16.mxu0 0
          %1608 = vmatmul.mubr.bf16.gmra.mrb[0].mxu0 %v1334
          %v1609 = vpop.f32.mrb[0].mxu0
          %v1610 = vadd.f32 %v974, %v1609
          %v1611 = vpop.f32.mrb[0].mxu0
          %v1612 = vpop.f32.mrb[0].mxu0
          %v1613 = vadd.f32 %v974, %v1612
          %v1614 = vpop.f32.mrb[0].mxu0
          %1615 = vmatprep.mubr.bf16.mxu0 0
          %1616 = vmatmul.mubr.bf16.gmra.mrb[0].mxu0 %v1337
          %v1617 = vpop.f32.mrb[0].mxu0
          %v1618 = vadd.f32 %v974, %v1617
          %v1619 = vpop.f32.mrb[0].mxu0
          %v1620 = vpop.f32.mrb[0].mxu0
          %v1621 = vadd.f32 %v974, %v1620
          %v1622 = vpop.f32.mrb[0].mxu0
          %1623 = vmatprep.mubr.bf16.mxu0 0
          %1624 = vmatmul.mubr.bf16.gmra.mrb[0].mxu0 %v1340
          %v1625 = vpop.f32.mrb[0].mxu0
          %v1626 = vadd.f32 %v974, %v1625
          %v1627 = vpop.f32.mrb[0].mxu0
          %v1628 = vpop.f32.mrb[0].mxu0
          %v1629 = vadd.f32 %v974, %v1628
          %v1630 = vpop.f32.mrb[0].mxu0
          %1631 = vmatprep.mubr.bf16.mxu0 0
          %1632 = vmatmul.mubr.bf16.gmra.mrb[0].mxu0 %v1343
          %v1633 = vpop.f32.mrb[0].mxu0
          %v1634 = vadd.f32 %v974, %v1633
          %v1635 = vpop.f32.mrb[0].mxu0
          %v1636 = vpop.f32.mrb[0].mxu0
          %v1637 = vadd.f32 %v974, %v1636
          %v1638 = vpop.f32.mrb[0].mxu0
          %1639 = vmatprep.mubr.bf16.mxu0 0
          %1640 = vmatmul.mubr.bf16.gmra.mrb[0].mxu0 %v1346
          %v1641 = vpop.f32.mrb[0].mxu0
          %v1642 = vadd.f32 %v974, %v1641
          %v1643 = vpop.f32.mrb[0].mxu0
          %v1644 = vpop.f32.mrb[0].mxu0
          %v1645 = vadd.f32 %v974, %v1644
          %v1646 = vpop.f32.mrb[0].mxu0
          %1647 = vmatprep.mubr.bf16.mxu0 0
          %1648 = vmatmul.mubr.bf16.gmra.mrb[0].mxu0 %v1349
          %v1649 = vpop.f32.mrb[0].mxu0
          %v1650 = vadd.f32 %v974, %v1649
          %v1651 = vpop.f32.mrb[0].mxu0
          %v1652 = vpop.f32.mrb[0].mxu0
          %v1653 = vadd.f32 %v974, %v1652
          %v1654 = vpop.f32.mrb[0].mxu0
          %1655 = vmatprep.mubr.bf16.mxu0 0
          %1656 = vmatmul.mubr.bf16.gmra.mrb[0].mxu0 %v1352
          %v1657 = vpop.f32.mrb[0].mxu0
          %v1658 = vadd.f32 %v974, %v1657
          %v1659 = vpop.f32.mrb[0].mxu0
          %v1660 = vpop.f32.mrb[0].mxu0
          %v1661 = vadd.f32 %v974, %v1660
          %v1662 = vpop.f32.mrb[0].mxu0
          %1663 = vmatprep.mubr.bf16.mxu0 0
          %1664 = vmatmul.mubr.bf16.gmra.mrb[0].mxu0 %v1355
          %v1665 = vpop.f32.mrb[0].mxu0
          %v1666 = vadd.f32 %v974, %v1665
          %v1667 = vpop.f32.mrb[0].mxu0
          %v1668 = vpop.f32.mrb[0].mxu0
          %v1669 = vadd.f32 %v974, %v1668
          %v1670 = vpop.f32.mrb[0].mxu0
          %1671 = vmatprep.mubr.bf16.mxu0 0
          %1672 = vmatmul.mubr.bf16.gmra.mrb[0].mxu0 %v1358
          %v1673 = vpop.f32.mrb[0].mxu0
          %v1674 = vadd.f32 %v974, %v1673
          %v1675 = vpop.f32.mrb[0].mxu0
          %v1676 = vpop.f32.mrb[0].mxu0
          %v1677 = vadd.f32 %v974, %v1676
          %v1678 = vpop.f32.mrb[0].mxu0
          %1679 = vmatprep.mubr.bf16.mxu0 0
          %1680 = vmatmul.mubr.bf16.gmra.mrb[0].mxu0 %v1361
          %v1681 = vpop.f32.mrb[0].mxu0
          %v1682 = vadd.f32 %v974, %v1681
          %v1683 = vpop.f32.mrb[0].mxu0
          %v1684 = vpop.f32.mrb[0].mxu0
          %v1685 = vadd.f32 %v974, %v1684
          %v1686 = vpop.f32.mrb[0].mxu0
          %1687 = vmatprep.mubr.bf16.mxu0 0
          %1688 = vmatmul.mubr.bf16.gmra.mrb[0].mxu0 %v1364
          %v1689 = vpop.f32.mrb[0].mxu0
          %v1690 = vadd.f32 %v974, %v1689
          %v1691 = vpop.f32.mrb[0].mxu0
          %v1692 = vpop.f32.mrb[0].mxu0
          %v1693 = vadd.f32 %v974, %v1692
          %v1694 = vpop.f32.mrb[0].mxu0
          %1695 = vmatprep.mubr.bf16.mxu0 0
          %1696 = vmatmul.mubr.bf16.gmra.mrb[0].mxu0 %v1367
          %v1697 = vpop.f32.mrb[0].mxu0
          %v1698 = vadd.f32 %v974, %v1697
          %v1699 = vpop.f32.mrb[0].mxu0
          %v1700 = vpop.f32.mrb[0].mxu0
          %v1701 = vadd.f32 %v974, %v1700
          %v1702 = vpop.f32.mrb[0].mxu0
          %1703 = vmatprep.mubr.bf16.mxu0 0
          %1704 = vmatmul.mubr.bf16.gmra.mrb[0].mxu0 %v1370
          %v1705 = vpop.f32.mrb[0].mxu0
          %v1706 = vadd.f32 %v974, %v1705
          %v1707 = vpop.f32.mrb[0].mxu0
          %v1708 = vpop.f32.mrb[0].mxu0
          %v1709 = vadd.f32 %v974, %v1708
          %v1710 = vpop.f32.mrb[0].mxu0
          %1711 = vmatprep.mubr.bf16.mxu0 0
          %1712 = vmatmul.mubr.bf16.gmra.mrb[0].mxu0 %v1373
          %v1713 = vpop.f32.mrb[0].mxu0
          %v1714 = vadd.f32 %v974, %v1713
          %v1715 = vpop.f32.mrb[0].mxu0
          %v1716 = vpop.f32.mrb[0].mxu0
          %v1717 = vadd.f32 %v974, %v1716
          %v1718 = vpop.f32.mrb[0].mxu0
          %1719 = vmatprep.mubr.bf16.mxu0 0
          %1720 = vmatmul.mubr.bf16.gmra.mrb[0].mxu0 %v1376
          %v1721 = vpop.f32.mrb[0].mxu0
          %v1722 = vadd.f32 %v974, %v1721
          %v1723 = vpop.f32.mrb[0].mxu0
          %v1724 = vpop.f32.mrb[0].mxu0
          %v1725 = vadd.f32 %v974, %v1724
          %v1726 = vpop.f32.mrb[0].mxu0
          %1727 = vmatprep.mubr.bf16.mxu0 0
          %1728 = vmatmul.mubr.bf16.gmra.mrb[0].mxu0 %v1379
          %v1729 = vpop.f32.mrb[0].mxu0
          %v1730 = vadd.f32 %v974, %v1729
          %v1731 = vpop.f32.mrb[0].mxu0
          %v1732 = vpop.f32.mrb[0].mxu0
          %v1733 = vadd.f32 %v974, %v1732
          %v1734 = vpop.f32.mrb[0].mxu0
          %1735 = vmatprep.mubr.bf16.mxu0 0
          %1736 = vmatmul.mubr.bf16.gmra.mrb[0].mxu0 %v1382
          %v1737 = vpop.f32.mrb[0].mxu0
          %v1738 = vadd.f32 %v974, %v1737
          %v1739 = vpop.f32.mrb[0].mxu0
          %v1740 = vpop.f32.mrb[0].mxu0
          %v1741 = vadd.f32 %v974, %v1740
          %v1742 = vpop.f32.mrb[0].mxu0
          %1743 = vmatprep.mubr.bf16.mxu0 0
          %1744 = vmatmul.mubr.bf16.gmra.mrb[0].mxu0 %v1385
          %v1745 = vpop.f32.mrb[0].mxu0
          %v1746 = vadd.f32 %v974, %v1745
          %v1747 = vpop.f32.mrb[0].mxu0
          %v1748 = vpop.f32.mrb[0].mxu0
          %v1749 = vadd.f32 %v974, %v1748
          %v1750 = vpop.f32.mrb[0].mxu0
          %1751 = vmatprep.mubr.bf16.mxu0 0
          %1752 = vmatmul.mubr.bf16.gmra.mrb[0].mxu0 %v1388
          %v1753 = vpop.f32.mrb[0].mxu0
          %v1754 = vadd.f32 %v974, %v1753
          %v1755 = vpop.f32.mrb[0].mxu0
          %v1756 = vpop.f32.mrb[0].mxu0
          %v1757 = vadd.f32 %v974, %v1756
          %v1758 = vpop.f32.mrb[0].mxu0
          %1759 = vmatprep.mubr.bf16.mxu0 0
          %1760 = vmatmul.mubr.bf16.gmra.mrb[0].mxu0 %v1391
          %v1761 = vpop.f32.mrb[0].mxu0
          %v1762 = vadd.f32 %v974, %v1761
          %v1763 = vpop.f32.mrb[0].mxu0
          %v1764 = vpop.f32.mrb[0].mxu0
          %v1765 = vadd.f32 %v974, %v1764
          %v1766 = vpop.f32.mrb[0].mxu0
          %1767 = vmatprep.mubr.bf16.mxu0 0
          %1768 = vmatmul.mubr.bf16.gmra.mrb[0].mxu0 %v1394
          %v1769 = vpop.f32.mrb[0].mxu0
          %v1770 = vadd.f32 %v974, %v1769
          %v1771 = vpop.f32.mrb[0].mxu0
          %v1772 = vpop.f32.mrb[0].mxu0
          %v1773 = vadd.f32 %v974, %v1772
          %v1774 = vpop.f32.mrb[0].mxu0
          %1775 = vmatprep.mubr.bf16.mxu0 0
          %1776 = vmatmul.mubr.bf16.gmra.mrb[0].mxu0 %v1397
          %v1777 = vpop.f32.mrb[0].mxu0
          %v1778 = vadd.f32 %v974, %v1777
          %v1779 = vpop.f32.mrb[0].mxu0
          %v1780 = vpop.f32.mrb[0].mxu0
          %v1781 = vadd.f32 %v974, %v1780
          %v1782 = vpop.f32.mrb[0].mxu0
          %1783 = vmatprep.mubr.bf16.mxu0 0
          %1784 = vmatmul.mubr.bf16.gmra.mrb[0].mxu0 %v1400
          %v1785 = vpop.f32.mrb[0].mxu0
          %v1786 = vadd.f32 %v974, %v1785
          %v1787 = vpop.f32.mrb[0].mxu0
          %v1788 = vpop.f32.mrb[0].mxu0
          %v1789 = vadd.f32 %v974, %v1788
          %v1790 = vpop.f32.mrb[0].mxu0
          %1791 = vmatprep.mubr.bf16.mxu0 0
          %1792 = vmatmul.mubr.bf16.gmra.mrb[0].mxu0 %v1403
          %v1793 = vpop.f32.mrb[0].mxu0
          %v1794 = vadd.f32 %v974, %v1793
          %v1795 = vpop.f32.mrb[0].mxu0
          %v1796 = vpop.f32.mrb[0].mxu0
          %v1797 = vadd.f32 %v974, %v1796
          %v1798 = vpop.f32.mrb[0].mxu0
          %1799 = vmatprep.mubr.bf16.mxu0 0
          %1800 = vmatmul.mubr.bf16.gmra.mrb[0].mxu0 %v1406
          %v1801 = vpop.f32.mrb[0].mxu0
          %v1802 = vadd.f32 %v974, %v1801
          %v1803 = vpop.f32.mrb[0].mxu0
          %v1804 = vpop.f32.mrb[0].mxu0
          %v1805 = vadd.f32 %v974, %v1804
          %v1806 = vpop.f32.mrb[0].mxu0
          %1807 = vmatprep.mubr.bf16.mxu0 0
          %1808 = vmatmul.mubr.bf16.gmra.mrb[0].mxu0 %v1409
          %v1809 = vpop.f32.mrb[0].mxu0
          %v1810 = vadd.f32 %v974, %v1809
          %v1811 = vpop.f32.mrb[0].mxu0
          %v1812 = vpop.f32.mrb[0].mxu0
          %v1813 = vadd.f32 %v974, %v1812
          %v1814 = vpop.f32.mrb[0].mxu0
          %1815 = vmatprep.mubr.bf16.mxu0 0
          %1816 = vmatmul.mubr.bf16.gmra.mrb[0].mxu0 %v1412
          %v1817 = vpop.f32.mrb[0].mxu0
          %v1818 = vadd.f32 %v974, %v1817
          %v1819 = vpop.f32.mrb[0].mxu0
          %v1820 = vpop.f32.mrb[0].mxu0
          %v1821 = vadd.f32 %v974, %v1820
          %v1822 = vpop.f32.mrb[0].mxu0
          %1823 = vmatprep.mubr.bf16.mxu0 0
          %1824 = vmatmul.mubr.bf16.gmra.mrb[0].mxu0 %v1415
          %v1825 = vpop.f32.mrb[0].mxu0
          %v1826 = vadd.f32 %v974, %v1825
          %v1827 = vpop.f32.mrb[0].mxu0
          %v1828 = vpop.f32.mrb[0].mxu0
          %v1829 = vadd.f32 %v974, %v1828
          %v1830 = vpop.f32.mrb[0].mxu0
          %1831 = vmatprep.mubr.bf16.mxu0 0
          %1832 = vmatmul.mubr.bf16.gmra.mrb[0].mxu0 %v1418
          %v1833 = vpop.f32.mrb[0].mxu0
          %v1834 = vadd.f32 %v974, %v1833
          %v1835 = vpop.f32.mrb[0].mxu0
          %v1836 = vpop.f32.mrb[0].mxu0
          %v1837 = vadd.f32 %v974, %v1836
          %v1838 = vpop.f32.mrb[0].mxu0
          %1839 = vmatprep.mubr.bf16.mxu0 0
          %1840 = vmatmul.mubr.bf16.gmra.mrb[0].mxu0 %v1421
          %v1841 = vpop.f32.mrb[0].mxu0
          %v1842 = vadd.f32 %v974, %v1841
          %v1843 = vpop.f32.mrb[0].mxu0
          %v1844 = vpop.f32.mrb[0].mxu0
          %v1845 = vadd.f32 %v974, %v1844
          %v1846 = vpop.f32.mrb[0].mxu0
          %1847 = vmatprep.mubr.bf16.mxu0 0
          %1848 = vmatmul.mubr.bf16.gmra.mrb[0].mxu0 %v1424
          %v1849 = vpop.f32.mrb[0].mxu0
          %v1850 = vadd.f32 %v974, %v1849
          %v1851 = vpop.f32.mrb[0].mxu0
          %v1852 = vpop.f32.mrb[0].mxu0
          %v1853 = vadd.f32 %v974, %v1852
          %v1854 = vpop.f32.mrb[0].mxu0
          %1855 = vmatprep.mubr.bf16.mxu0 0
          %1856 = vmatmul.mubr.bf16.gmra.mrb[0].mxu0 %v1427
          %v1857 = vpop.f32.mrb[0].mxu0
          %v1858 = vadd.f32 %v974, %v1857
          %v1859 = vpop.f32.mrb[0].mxu0
          %v1860 = vpop.f32.mrb[0].mxu0
          %v1861 = vadd.f32 %v974, %v1860
          %v1862 = vpop.f32.mrb[0].mxu0
          %1863 = vmatprep.mubr.bf16.mxu0 0
          %1864 = vmatmul.mubr.bf16.gmra.mrb[0].mxu0 %v1430
          %v1865 = vpop.f32.mrb[0].mxu0
          %v1866 = vadd.f32 %v974, %v1865
          %v1867 = vpop.f32.mrb[0].mxu0
          %v1868 = vpop.f32.mrb[0].mxu0
          %v1869 = vadd.f32 %v974, %v1868
          %v1870 = vpop.f32.mrb[0].mxu0
          %1871 = vmatprep.mubr.bf16.mxu0 0
          %1872 = vmatmul.mubr.bf16.gmra.mrb[0].mxu0 %v1433
          %v1873 = vpop.f32.mrb[0].mxu0
          %v1874 = vadd.f32 %v974, %v1873
          %v1875 = vpop.f32.mrb[0].mxu0
          %v1876 = vpop.f32.mrb[0].mxu0
          %v1877 = vadd.f32 %v974, %v1876
          %v1878 = vpop.f32.mrb[0].mxu0
          %1879 = vmatprep.mubr.bf16.mxu0 0
          %1880 = vmatmul.mubr.bf16.gmra.mrb[0].mxu0 %v1436
          %v1881 = vpop.f32.mrb[0].mxu0
          %v1882 = vadd.f32 %v974, %v1881
          %v1883 = vpop.f32.mrb[0].mxu0
          %v1884 = vpop.f32.mrb[0].mxu0
          %v1885 = vadd.f32 %v974, %v1884
          %v1886 = vpop.f32.mrb[0].mxu0
          %1887 = vmatprep.mubr.bf16.mxu0 0
          %1888 = vmatmul.mubr.bf16.gmra.mrb[0].mxu0 %v1439
          %v1889 = vpop.f32.mrb[0].mxu0
          %v1890 = vadd.f32 %v974, %v1889
          %v1891 = vpop.f32.mrb[0].mxu0
          %v1892 = vpop.f32.mrb[0].mxu0
          %v1893 = vadd.f32 %v974, %v1892
          %v1894 = vpop.f32.mrb[0].mxu0
          %1895 = vmatprep.mubr.bf16.mxu0 0
          %1896 = vmatmul.mubr.bf16.gmra.mrb[0].mxu0 %v1442
          %v1897 = vpop.f32.mrb[0].mxu0
          %v1898 = vadd.f32 %v974, %v1897
          %v1899 = vpop.f32.mrb[0].mxu0
          %v1900 = vpop.f32.mrb[0].mxu0
          %v1901 = vadd.f32 %v974, %v1900
          %v1902 = vpop.f32.mrb[0].mxu0
          %1903 = vmatprep.mubr.bf16.mxu0 0
          %1904 = vmatmul.mubr.bf16.gmra.mrb[0].mxu0 %v1445
          %v1905 = vpop.f32.mrb[0].mxu0
          %v1906 = vadd.f32 %v974, %v1905
          %v1907 = vpop.f32.mrb[0].mxu0
          %v1908 = vpop.f32.mrb[0].mxu0
          %v1909 = vadd.f32 %v974, %v1908
          %v1910 = vpop.f32.mrb[0].mxu0
          %1911 = vmatprep.mubr.bf16.mxu0 0
          %1912 = vmatmul.mubr.bf16.gmra.mrb[0].mxu0 %v1448
          %v1913 = vpop.f32.mrb[0].mxu0
          %v1914 = vadd.f32 %v974, %v1913
          %v1915 = vpop.f32.mrb[0].mxu0
          %v1916 = vpop.f32.mrb[0].mxu0
          %v1917 = vadd.f32 %v974, %v1916
          %v1918 = vpop.f32.mrb[0].mxu0
          %1919 = vmatprep.mubr.bf16.mxu0 0
          %1920 = vmatmul.mubr.bf16.gmra.mrb[0].mxu0 %v1451
          %v1921 = vpop.f32.mrb[0].mxu0
          %v1922 = vadd.f32 %v974, %v1921
          %v1923 = vpop.f32.mrb[0].mxu0
          %v1924 = vpop.f32.mrb[0].mxu0
          %v1925 = vadd.f32 %v974, %v1924
          %v1926 = vpop.f32.mrb[0].mxu0
          %1927 = vmatprep.mubr.bf16.mxu0 0
          %1928 = vmatmul.mubr.bf16.gmra.mrb[0].mxu0 %v1454
          %v1929 = vpop.f32.mrb[0].mxu0
          %v1930 = vadd.f32 %v974, %v1929
          %v1931 = vpop.f32.mrb[0].mxu0
          %v1932 = vpop.f32.mrb[0].mxu0
          %v1933 = vadd.f32 %v974, %v1932
          %v1934 = vpop.f32.mrb[0].mxu0
          %1935 = vmatprep.mubr.bf16.mxu0 0
          %1936 = vmatmul.mubr.bf16.gmra.mrb[0].mxu0 %v1457
          %v1937 = vpop.f32.mrb[0].mxu0
          %v1938 = vadd.f32 %v974, %v1937
          %v1939 = vpop.f32.mrb[0].mxu0
          %v1940 = vpop.f32.mrb[0].mxu0
          %v1941 = vadd.f32 %v974, %v1940
          %v1942 = vpop.f32.mrb[0].mxu0
          %1943 = vmatprep.mubr.bf16.mxu0 0
          %1944 = vmatmul.mubr.bf16.gmra.mrb[0].mxu0 %v1460
          %v1945 = vpop.f32.mrb[0].mxu0
          %v1946 = vadd.f32 %v974, %v1945
          %v1947 = vpop.f32.mrb[0].mxu0
          %v1948 = vpop.f32.mrb[0].mxu0
          %v1949 = vadd.f32 %v974, %v1948
          %v1950 = vpop.f32.mrb[0].mxu0
          %1951 = vmatprep.mubr.bf16.mxu0 0
          %1952 = vmatmul.mubr.bf16.gmra.mrb[0].mxu0 %v1463
          %v1953 = vpop.f32.mrb[0].mxu0
          %v1954 = vadd.f32 %v974, %v1953
          %v1955 = vpop.f32.mrb[0].mxu0
          %v1956 = vpop.f32.mrb[0].mxu0
          %v1957 = vadd.f32 %v974, %v1956
          %v1958 = vpop.f32.mrb[0].mxu0
          %1959 = vmatprep.mubr.bf16.mxu0 0
          %1960 = vmatmul.mubr.bf16.gmra.mrb[0].mxu0 %v1466
          %v1961 = vpop.f32.mrb[0].mxu0
          %v1962 = vadd.f32 %v974, %v1961
          %v1963 = vpop.f32.mrb[0].mxu0
          %v1964 = vpop.f32.mrb[0].mxu0
          %v1965 = vadd.f32 %v974, %v1964
          %v1966 = vpop.f32.mrb[0].mxu0
          %1967 = vmatprep.mubr.bf16.mxu0 0
          %1968 = vmatmul.mubr.bf16.gmra.mrb[0].mxu0 %v1469
          %v1969 = vpop.f32.mrb[0].mxu0
          %v1970 = vadd.f32 %v974, %v1969
          %v1971 = vpop.f32.mrb[0].mxu0
          %v1972 = vpop.f32.mrb[0].mxu0
          %v1973 = vadd.f32 %v974, %v1972
          %v1974 = vpop.f32.mrb[0].mxu0
          %1975 = vmatprep.mubr.bf16.mxu0 0
          %1976 = vmatmul.mubr.bf16.gmra.mrb[0].mxu0 %v1472
          %v1977 = vpop.f32.mrb[0].mxu0
          %v1978 = vadd.f32 %v974, %v1977
          %v1979 = vpop.f32.mrb[0].mxu0
          %v1980 = vpop.f32.mrb[0].mxu0
          %v1981 = vadd.f32 %v974, %v1980
          %v1982 = vpop.f32.mrb[0].mxu0
          %1983 = vmatprep.mubr.bf16.mxu0 0
          %1984 = vmatmul.mubr.bf16.gmra.mrb[0].mxu0 %v1475
          %v1985 = vpop.f32.mrb[0].mxu0
          %v1986 = vadd.f32 %v974, %v1985
          %v1987 = vpop.f32.mrb[0].mxu0
          %v1988 = vpop.f32.mrb[0].mxu0
          %v1989 = vadd.f32 %v974, %v1988
          %v1990 = vpop.f32.mrb[0].mxu0
          %1991 = vmatprep.mubr.bf16.mxu0 0
          %1992 = vmatmul.mubr.bf16.gmra.mrb[0].mxu0 %v1478
          %v1993 = vpop.f32.mrb[0].mxu0
          %v1994 = vadd.f32 %v974, %v1993
          %v1995 = vpop.f32.mrb[0].mxu0
          %v1996 = vpop.f32.mrb[0].mxu0
          %v1997 = vadd.f32 %v974, %v1996
          %v1998 = vpop.f32.mrb[0].mxu0
          %1999 = vmatprep.mubr.bf16.mxu0 0
          %2000 = vmatmul.mubr.bf16.gmra.mrb[0].mxu0 %v1481
          %v2001 = vpop.f32.mrb[0].mxu0
          %v2002 = vadd.f32 %v974, %v2001
          %v2003 = vpop.f32.mrb[0].mxu0
          %v2004 = vpop.f32.mrb[0].mxu0
          %v2005 = vadd.f32 %v974, %v2004
          %v2006 = vpop.f32.mrb[0].mxu0
          %2007 = vmatprep.mubr.bf16.mxu0 0
          %2008 = vmatmul.mubr.bf16.gmra.mrb[0].mxu0 %v1484
          %v2009 = vpop.f32.mrb[0].mxu0
          %v2010 = vadd.f32 %v974, %v2009
          %v2011 = vpop.f32.mrb[0].mxu0
          %v2012 = vpop.f32.mrb[0].mxu0
          %v2013 = vadd.f32 %v974, %v2012
          %v2014 = vpop.f32.mrb[0].mxu0
          %2015 = vmatprep.mubr.bf16.mxu0 0
          %2016 = vmatmul.mubr.bf16.gmra.mrb[0].mxu0 %v1487
          %v2017 = vpop.f32.mrb[0].mxu0
          %v2018 = vadd.f32 %v974, %v2017
          %v2019 = vpop.f32.mrb[0].mxu0
          %v2020 = vpop.f32.mrb[0].mxu0
          %v2021 = vadd.f32 %v974, %v2020
          %v2022 = vpop.f32.mrb[0].mxu0
          %2023 = vmatprep.mubr.bf16.mxu0 0
          %2024 = vmatmul.mubr.bf16.gmra.mrb[0].mxu0 %v1490
          %v2025 = vpop.f32.mrb[0].mxu0
          %v2026 = vadd.f32 %v974, %v2025
          %v2027 = vpop.f32.mrb[0].mxu0
          %v2028 = vpop.f32.mrb[0].mxu0
          %v2029 = vadd.f32 %v974, %v2028
          %v2030 = vpop.f32.mrb[0].mxu0
          %2031 = vmatprep.mubr.bf16.mxu0 0
          %2032 = vmatmul.mubr.bf16.gmra.mrb[0].mxu0 %v1493
          %v2033 = vpop.f32.mrb[0].mxu0
          %v2034 = vadd.f32 %v974, %v2033
          %v2035 = vpop.f32.mrb[0].mxu0
          %v2036 = vpop.f32.mrb[0].mxu0
          %v2037 = vadd.f32 %v974, %v2036
          %v2038 = vpop.f32.mrb[0].mxu0
          %2039 = vdwg.mxu0
          %v2040 = vmax.f32 %v1530, 0.0
          %v2041 = vmax.f32 %v1533, 0.0
          %v2042 = vmax.f32 %v1538, 0.0
          %v2043 = vmax.f32 %v1541, 0.0
          %v2044 = vmax.f32 %v1546, 0.0
          %v2045 = vmax.f32 %v1549, 0.0
          %v2046 = vmax.f32 %v1554, 0.0
          %v2047 = vmax.f32 %v1557, 0.0
          %v2048 = vmax.f32 %v1562, 0.0
          %v2049 = vmax.f32 %v1565, 0.0
          %v2050 = vmax.f32 %v1570, 0.0
          %v2051 = vmax.f32 %v1573, 0.0
          %v2052 = vmax.f32 %v1578, 0.0
          %v2053 = vmax.f32 %v1581, 0.0
          %v2054 = vmax.f32 %v1586, 0.0
          %v2055 = vmax.f32 %v1589, 0.0
          %v2056 = vmax.f32 %v1594, 0.0
          %v2057 = vmax.f32 %v1597, 0.0
          %v2058 = vmax.f32 %v1602, 0.0
          %v2059 = vmax.f32 %v1605, 0.0
          %v2060 = vmax.f32 %v1610, 0.0
          %v2061 = vmax.f32 %v1613, 0.0
          %v2062 = vmax.f32 %v1618, 0.0
          %v2063 = vmax.f32 %v1621, 0.0
          %v2064 = vmax.f32 %v1626, 0.0
          %v2065 = vmax.f32 %v1629, 0.0
          %v2066 = vmax.f32 %v1634, 0.0
          %v2067 = vmax.f32 %v1637, 0.0
          %v2068 = vmax.f32 %v1642, 0.0
          %v2069 = vmax.f32 %v1645, 0.0
          %v2070 = vmax.f32 %v1650, 0.0
          %v2071 = vmax.f32 %v1653, 0.0
          %v2072 = vmax.f32 %v1658, 0.0
          %v2073 = vmax.f32 %v1661, 0.0
          %v2074 = vmax.f32 %v1666, 0.0
          %v2075 = vmax.f32 %v1669, 0.0
          %v2076 = vmax.f32 %v1674, 0.0
          %v2077 = vmax.f32 %v1677, 0.0
          %v2078 = vmax.f32 %v1682, 0.0
          %v2079 = vmax.f32 %v1685, 0.0
          %v2080 = vmax.f32 %v1690, 0.0
          %v2081 = vmax.f32 %v1693, 0.0
          %v2082 = vmax.f32 %v1698, 0.0
          %v2083 = vmax.f32 %v1701, 0.0
          %v2084 = vmax.f32 %v1706, 0.0
          %v2085 = vmax.f32 %v1709, 0.0
          %v2086 = vmax.f32 %v1714, 0.0
          %v2087 = vmax.f32 %v1717, 0.0
          %v2088 = vmax.f32 %v1722, 0.0
          %v2089 = vmax.f32 %v1725, 0.0
          %v2090 = vmax.f32 %v1730, 0.0
          %v2091 = vmax.f32 %v1733, 0.0
          %v2092 = vmax.f32 %v1738, 0.0
          %v2093 = vmax.f32 %v1741, 0.0
          %v2094 = vmax.f32 %v1746, 0.0
          %v2095 = vmax.f32 %v1749, 0.0
          %v2096 = vmax.f32 %v1754, 0.0
          %v2097 = vmax.f32 %v1757, 0.0
          %v2098 = vmax.f32 %v1762, 0.0
          %v2099 = vmax.f32 %v1765, 0.0
          %v2100 = vmax.f32 %v1770, 0.0
          %v2101 = vmax.f32 %v1773, 0.0
          %v2102 = vmax.f32 %v1778, 0.0
          %v2103 = vmax.f32 %v1781, 0.0
          %v2104 = vmax.f32 %v1786, 0.0
          %v2105 = vmax.f32 %v1789, 0.0
          %v2106 = vmax.f32 %v1794, 0.0
          %v2107 = vmax.f32 %v1797, 0.0
          %v2108 = vmax.f32 %v1802, 0.0
          %v2109 = vmax.f32 %v1805, 0.0
          %v2110 = vmax.f32 %v1810, 0.0
          %v2111 = vmax.f32 %v1813, 0.0
          %v2112 = vmax.f32 %v1818, 0.0
          %v2113 = vmax.f32 %v1821, 0.0
          %v2114 = vmax.f32 %v1826, 0.0
          %v2115 = vmax.f32 %v1829, 0.0
          %v2116 = vmax.f32 %v1834, 0.0
          %v2117 = vmax.f32 %v1837, 0.0
          %v2118 = vmax.f32 %v1842, 0.0
          %v2119 = vmax.f32 %v1845, 0.0
          %v2120 = vmax.f32 %v1850, 0.0
          %v2121 = vmax.f32 %v1853, 0.0
          %v2122 = vmax.f32 %v1858, 0.0
          %v2123 = vmax.f32 %v1861, 0.0
          %v2124 = vmax.f32 %v1866, 0.0
          %v2125 = vmax.f32 %v1869, 0.0
          %v2126 = vmax.f32 %v1874, 0.0
          %v2127 = vmax.f32 %v1877, 0.0
          %v2128 = vmax.f32 %v1882, 0.0
          %v2129 = vmax.f32 %v1885, 0.0
          %v2130 = vmax.f32 %v1890, 0.0
          %v2131 = vmax.f32 %v1893, 0.0
          %v2132 = vmax.f32 %v1898, 0.0
          %v2133 = vmax.f32 %v1901, 0.0
          %v2134 = vmax.f32 %v1906, 0.0
          %v2135 = vmax.f32 %v1909, 0.0
          %v2136 = vmax.f32 %v1914, 0.0
          %v2137 = vmax.f32 %v1917, 0.0
          %v2138 = vmax.f32 %v1922, 0.0
          %v2139 = vmax.f32 %v1925, 0.0
          %v2140 = vmax.f32 %v1930, 0.0
          %v2141 = vmax.f32 %v1933, 0.0
          %v2142 = vmax.f32 %v1938, 0.0
          %v2143 = vmax.f32 %v1941, 0.0
          %v2144 = vmax.f32 %v1946, 0.0
          %v2145 = vmax.f32 %v1949, 0.0
          %v2146 = vmax.f32 %v1954, 0.0
          %v2147 = vmax.f32 %v1957, 0.0
          %v2148 = vmax.f32 %v1962, 0.0
          %v2149 = vmax.f32 %v1965, 0.0
          %v2150 = vmax.f32 %v1970, 0.0
          %v2151 = vmax.f32 %v1973, 0.0
          %v2152 = vmax.f32 %v1978, 0.0
          %v2153 = vmax.f32 %v1981, 0.0
          %v2154 = vmax.f32 %v1986, 0.0
          %v2155 = vmax.f32 %v1989, 0.0
          %v2156 = vmax.f32 %v1994, 0.0
          %v2157 = vmax.f32 %v1997, 0.0
          %v2158 = vmax.f32 %v2002, 0.0
          %v2159 = vmax.f32 %v2005, 0.0
          %v2160 = vmax.f32 %v2010, 0.0
          %v2161 = vmax.f32 %v2013, 0.0
          %v2162 = vmax.f32 %v2018, 0.0
          %v2163 = vmax.f32 %v2021, 0.0
          %v2164 = vmax.f32 %v2026, 0.0
          %v2165 = vmax.f32 %v2029, 0.0
          %v2166 = vmax.f32 %v2034, 0.0
          %v2167 = vmax.f32 %v2037, 0.0
          %v2168 = vsel %vm699, 1, 0
          %v2169 = vsel %vm700, 1, 0
          %v2170 = vsel %vm701, 1, 0
          %v2171 = vsel %vm702, 1, 0
          %v2172 = vsel %vm703, 1, 0
          %v2173 = vsel %vm704, 1, 0
          %v2174 = vsel %vm705, 1, 0
          %v2175 = vsel %vm706, 1, 0
          %v2176 = vsel %vm707, 1, 0
          %v2177 = vsel %vm708, 1, 0
          %v2178 = vsel %vm709, 1, 0
          %v2179 = vsel %vm710, 1, 0
          %v2180 = vsel %vm711, 1, 0
          %v2181 = vsel %vm712, 1, 0
          %v2182 = vsel %vm713, 1, 0
          %v2183 = vsel %vm714, 1, 0
          %v2184 = vsel %vm715, 1, 0
          %v2185 = vsel %vm716, 1, 0
          %v2186 = vsel %vm717, 1, 0
          %v2187 = vsel %vm718, 1, 0
          %v2188 = vsel %vm719, 1, 0
          %v2189 = vsel %vm720, 1, 0
          %v2190 = vsel %vm721, 1, 0
          %v2191 = vsel %vm722, 1, 0
          %v2192 = vsel %vm723, 1, 0
          %v2193 = vsel %vm724, 1, 0
          %v2194 = vsel %vm725, 1, 0
          %v2195 = vsel %vm726, 1, 0
          %v2196 = vsel %vm727, 1, 0
          %v2197 = vsel %vm728, 1, 0
          %v2198 = vsel %vm729, 1, 0
          %v2199 = vsel %vm730, 1, 0
          %v2200 = vsel %vm731, 1, 0
          %v2201 = vsel %vm732, 1, 0
          %v2202 = vsel %vm733, 1, 0
          %v2203 = vsel %vm734, 1, 0
          %v2204 = vsel %vm735, 1, 0
          %v2205 = vsel %vm736, 1, 0
          %v2206 = vsel %vm737, 1, 0
          %v2207 = vsel %vm738, 1, 0
          %v2208 = vsel %vm739, 1, 0
          %v2209 = vsel %vm740, 1, 0
          %v2210 = vsel %vm741, 1, 0
          %v2211 = vsel %vm742, 1, 0
          %v2212 = vsel %vm743, 1, 0
          %v2213 = vsel %vm744, 1, 0
          %v2214 = vsel %vm745, 1, 0
          %v2215 = vsel %vm746, 1, 0
          %v2216 = vsel %vm747, 1, 0
          %v2217 = vsel %vm748, 1, 0
          %v2218 = vsel %vm749, 1, 0
          %v2219 = vsel %vm750, 1, 0
          %v2220 = vsel %vm751, 1, 0
          %v2221 = vsel %vm752, 1, 0
          %v2222 = vsel %vm753, 1, 0
          %v2223 = vsel %vm754, 1, 0
          %v2224 = vsel %vm755, 1, 0
          %v2225 = vsel %vm756, 1, 0
          %v2226 = vsel %vm757, 1, 0
          %v2227 = vsel %vm758, 1, 0
          %v2228 = vsel %vm759, 1, 0
          %v2229 = vsel %vm760, 1, 0
          %v2230 = vsel %vm761, 1, 0
          %v2231 = vsel %vm762, 1, 0
          %v2232 = vsel %vm763, 1, 0
          %v2233 = vsel %vm764, 1, 0
          %v2234 = vsel %vm765, 1, 0
          %v2235 = vsel %vm766, 1, 0
          %v2236 = vsel %vm767, 1, 0
          %v2237 = vsel %vm768, 1, 0
          %v2238 = vsel %vm769, 1, 0
          %v2239 = vsel %vm770, 1, 0
          %v2240 = vsel %vm771, 1, 0
          %v2241 = vsel %vm772, 1, 0
          %v2242 = vsel %vm773, 1, 0
          %v2243 = vsel %vm774, 1, 0
          %v2244 = vsel %vm775, 1, 0
          %v2245 = vsel %vm776, 1, 0
          %v2246 = vsel %vm777, 1, 0
          %v2247 = vsel %vm778, 1, 0
          %v2248 = vsel %vm779, 1, 0
          %v2249 = vsel %vm780, 1, 0
          %v2250 = vsel %vm781, 1, 0
          %v2251 = vsel %vm782, 1, 0
          %v2252 = vsel %vm783, 1, 0
          %v2253 = vsel %vm784, 1, 0
          %v2254 = vsel %vm785, 1, 0
          %v2255 = vsel %vm786, 1, 0
          %v2256 = vsel %vm787, 1, 0
          %v2257 = vsel %vm788, 1, 0
          %v2258 = vsel %vm789, 1, 0
          %v2259 = vsel %vm790, 1, 0
          %v2260 = vsel %vm791, 1, 0
          %v2261 = vsel %vm792, 1, 0
          %v2262 = vsel %vm793, 1, 0
          %v2263 = vsel %vm794, 1, 0
          %v2264 = vsel %vm795, 1, 0
          %v2265 = vsel %vm796, 1, 0
          %v2266 = vsel %vm797, 1, 0
          %v2267 = vsel %vm798, 1, 0
          %v2268 = vsel %vm799, 1, 0
          %v2269 = vsel %vm800, 1, 0
          %v2270 = vsel %vm801, 1, 0
          %v2271 = vsel %vm802, 1, 0
          %v2272 = vsel %vm803, 1, 0
          %v2273 = vsel %vm804, 1, 0
          %v2274 = vsel %vm805, 1, 0
          %v2275 = vsel %vm806, 1, 0
          %v2276 = vsel %vm807, 1, 0
          %v2277 = vsel %vm808, 1, 0
          %v2278 = vsel %vm809, 1, 0
          %v2279 = vsel %vm810, 1, 0
          %v2280 = vsel %vm811, 1, 0
          %v2281 = vsel %vm812, 1, 0
          %v2282 = vsel %vm813, 1, 0
          %v2283 = vsel %vm814, 1, 0
          %v2284 = vsel %vm815, 1, 0
          %v2285 = vsel %vm816, 1, 0
          %v2286 = vsel %vm817, 1, 0
          %v2287 = vsel %vm818, 1, 0
          %v2288 = vsel %vm819, 1, 0
          %v2289 = vsel %vm820, 1, 0
          %v2290 = vsel %vm821, 1, 0
          %v2291 = vsel %vm822, 1, 0
          %v2292 = vsel %vm823, 1, 0
          %v2293 = vsel %vm824, 1, 0
          %v2294 = vsel %vm825, 1, 0
          %v2295 = vsel %vm826, 1, 0
          %vm2296 = vcmp.eq.s32.totalorder %v2168, 1
          %vm2297 = vcmp.eq.s32.totalorder %v2169, 1
          %vm2298 = vcmp.eq.s32.totalorder %v2170, 1
          %vm2299 = vcmp.eq.s32.totalorder %v2171, 1
          %vm2300 = vcmp.eq.s32.totalorder %v2172, 1
          %vm2301 = vcmp.eq.s32.totalorder %v2173, 1
          %vm2302 = vcmp.eq.s32.totalorder %v2174, 1
          %vm2303 = vcmp.eq.s32.totalorder %v2175, 1
          %vm2304 = vcmp.eq.s32.totalorder %v2176, 1
          %vm2305 = vcmp.eq.s32.totalorder %v2177, 1
          %vm2306 = vcmp.eq.s32.totalorder %v2178, 1
          %vm2307 = vcmp.eq.s32.totalorder %v2179, 1
          %vm2308 = vcmp.eq.s32.totalorder %v2180, 1
          %vm2309 = vcmp.eq.s32.totalorder %v2181, 1
          %vm2310 = vcmp.eq.s32.totalorder %v2182, 1
          %vm2311 = vcmp.eq.s32.totalorder %v2183, 1
          %vm2312 = vcmp.eq.s32.totalorder %v2184, 1
          %vm2313 = vcmp.eq.s32.totalorder %v2185, 1
          %vm2314 = vcmp.eq.s32.totalorder %v2186, 1
          %vm2315 = vcmp.eq.s32.totalorder %v2187, 1
          %vm2316 = vcmp.eq.s32.totalorder %v2188, 1
          %vm2317 = vcmp.eq.s32.totalorder %v2189, 1
          %vm2318 = vcmp.eq.s32.totalorder %v2190, 1
          %vm2319 = vcmp.eq.s32.totalorder %v2191, 1
          %vm2320 = vcmp.eq.s32.totalorder %v2192, 1
          %vm2321 = vcmp.eq.s32.totalorder %v2193, 1
          %vm2322 = vcmp.eq.s32.totalorder %v2194, 1
          %vm2323 = vcmp.eq.s32.totalorder %v2195, 1
          %vm2324 = vcmp.eq.s32.totalorder %v2196, 1
          %vm2325 = vcmp.eq.s32.totalorder %v2197, 1
          %vm2326 = vcmp.eq.s32.totalorder %v2198, 1
          %vm2327 = vcmp.eq.s32.totalorder %v2199, 1
          %vm2328 = vcmp.eq.s32.totalorder %v2200, 1
          %vm2329 = vcmp.eq.s32.totalorder %v2201, 1
          %vm2330 = vcmp.eq.s32.totalorder %v2202, 1
          %vm2331 = vcmp.eq.s32.totalorder %v2203, 1
          %vm2332 = vcmp.eq.s32.totalorder %v2204, 1
          %vm2333 = vcmp.eq.s32.totalorder %v2205, 1
          %vm2334 = vcmp.eq.s32.totalorder %v2206, 1
          %vm2335 = vcmp.eq.s32.totalorder %v2207, 1
          %vm2336 = vcmp.eq.s32.totalorder %v2208, 1
          %vm2337 = vcmp.eq.s32.totalorder %v2209, 1
          %vm2338 = vcmp.eq.s32.totalorder %v2210, 1
          %vm2339 = vcmp.eq.s32.totalorder %v2211, 1
          %vm2340 = vcmp.eq.s32.totalorder %v2212, 1
          %vm2341 = vcmp.eq.s32.totalorder %v2213, 1
          %vm2342 = vcmp.eq.s32.totalorder %v2214, 1
          %vm2343 = vcmp.eq.s32.totalorder %v2215, 1
          %vm2344 = vcmp.eq.s32.totalorder %v2216, 1
          %vm2345 = vcmp.eq.s32.totalorder %v2217, 1
          %vm2346 = vcmp.eq.s32.totalorder %v2218, 1
          %vm2347 = vcmp.eq.s32.totalorder %v2219, 1
          %vm2348 = vcmp.eq.s32.totalorder %v2220, 1
          %vm2349 = vcmp.eq.s32.totalorder %v2221, 1
          %vm2350 = vcmp.eq.s32.totalorder %v2222, 1
          %vm2351 = vcmp.eq.s32.totalorder %v2223, 1
          %vm2352 = vcmp.eq.s32.totalorder %v2224, 1
          %vm2353 = vcmp.eq.s32.totalorder %v2225, 1
          %vm2354 = vcmp.eq.s32.totalorder %v2226, 1
          %vm2355 = vcmp.eq.s32.totalorder %v2227, 1
          %vm2356 = vcmp.eq.s32.totalorder %v2228, 1
          %vm2357 = vcmp.eq.s32.totalorder %v2229, 1
          %vm2358 = vcmp.eq.s32.totalorder %v2230, 1
          %vm2359 = vcmp.eq.s32.totalorder %v2231, 1
          %vm2360 = vcmp.eq.s32.totalorder %v2232, 1
          %vm2361 = vcmp.eq.s32.totalorder %v2233, 1
          %vm2362 = vcmp.eq.s32.totalorder %v2234, 1
          %vm2363 = vcmp.eq.s32.totalorder %v2235, 1
          %vm2364 = vcmp.eq.s32.totalorder %v2236, 1
          %vm2365 = vcmp.eq.s32.totalorder %v2237, 1
          %vm2366 = vcmp.eq.s32.totalorder %v2238, 1
          %vm2367 = vcmp.eq.s32.totalorder %v2239, 1
          %vm2368 = vcmp.eq.s32.totalorder %v2240, 1
          %vm2369 = vcmp.eq.s32.totalorder %v2241, 1
          %vm2370 = vcmp.eq.s32.totalorder %v2242, 1
          %vm2371 = vcmp.eq.s32.totalorder %v2243, 1
          %vm2372 = vcmp.eq.s32.totalorder %v2244, 1
          %vm2373 = vcmp.eq.s32.totalorder %v2245, 1
          %vm2374 = vcmp.eq.s32.totalorder %v2246, 1
          %vm2375 = vcmp.eq.s32.totalorder %v2247, 1
          %vm2376 = vcmp.eq.s32.totalorder %v2248, 1
          %vm2377 = vcmp.eq.s32.totalorder %v2249, 1
          %vm2378 = vcmp.eq.s32.totalorder %v2250, 1
          %vm2379 = vcmp.eq.s32.totalorder %v2251, 1
          %vm2380 = vcmp.eq.s32.totalorder %v2252, 1
          %vm2381 = vcmp.eq.s32.totalorder %v2253, 1
          %vm2382 = vcmp.eq.s32.totalorder %v2254, 1
          %vm2383 = vcmp.eq.s32.totalorder %v2255, 1
          %vm2384 = vcmp.eq.s32.totalorder %v2256, 1
          %vm2385 = vcmp.eq.s32.totalorder %v2257, 1
          %vm2386 = vcmp.eq.s32.totalorder %v2258, 1
          %vm2387 = vcmp.eq.s32.totalorder %v2259, 1
          %vm2388 = vcmp.eq.s32.totalorder %v2260, 1
          %vm2389 = vcmp.eq.s32.totalorder %v2261, 1
          %vm2390 = vcmp.eq.s32.totalorder %v2262, 1
          %vm2391 = vcmp.eq.s32.totalorder %v2263, 1
          %vm2392 = vcmp.eq.s32.totalorder %v2264, 1
          %vm2393 = vcmp.eq.s32.totalorder %v2265, 1
          %vm2394 = vcmp.eq.s32.totalorder %v2266, 1
          %vm2395 = vcmp.eq.s32.totalorder %v2267, 1
          %vm2396 = vcmp.eq.s32.totalorder %v2268, 1
          %vm2397 = vcmp.eq.s32.totalorder %v2269, 1
          %vm2398 = vcmp.eq.s32.totalorder %v2270, 1
          %vm2399 = vcmp.eq.s32.totalorder %v2271, 1
          %vm2400 = vcmp.eq.s32.totalorder %v2272, 1
          %vm2401 = vcmp.eq.s32.totalorder %v2273, 1
          %vm2402 = vcmp.eq.s32.totalorder %v2274, 1
          %vm2403 = vcmp.eq.s32.totalorder %v2275, 1
          %vm2404 = vcmp.eq.s32.totalorder %v2276, 1
          %vm2405 = vcmp.eq.s32.totalorder %v2277, 1
          %vm2406 = vcmp.eq.s32.totalorder %v2278, 1
          %vm2407 = vcmp.eq.s32.totalorder %v2279, 1
          %vm2408 = vcmp.eq.s32.totalorder %v2280, 1
          %vm2409 = vcmp.eq.s32.totalorder %v2281, 1
          %vm2410 = vcmp.eq.s32.totalorder %v2282, 1
          %vm2411 = vcmp.eq.s32.totalorder %v2283, 1
          %vm2412 = vcmp.eq.s32.totalorder %v2284, 1
          %vm2413 = vcmp.eq.s32.totalorder %v2285, 1
          %vm2414 = vcmp.eq.s32.totalorder %v2286, 1
          %vm2415 = vcmp.eq.s32.totalorder %v2287, 1
          %vm2416 = vcmp.eq.s32.totalorder %v2288, 1
          %vm2417 = vcmp.eq.s32.totalorder %v2289, 1
          %vm2418 = vcmp.eq.s32.totalorder %v2290, 1
          %vm2419 = vcmp.eq.s32.totalorder %v2291, 1
          %vm2420 = vcmp.eq.s32.totalorder %v2292, 1
          %vm2421 = vcmp.eq.s32.totalorder %v2293, 1
          %vm2422 = vcmp.eq.s32.totalorder %v2294, 1
          %vm2423 = vcmp.eq.s32.totalorder %v2295, 1
          %v2424 = vsel %vm2296, %v2040, 0.0
          %v2425 = vsel %vm2297, %v2041, 0.0
          %v2426 = vsel %vm2298, %v2042, 0.0
          %v2427 = vsel %vm2299, %v2043, 0.0
          %v2428 = vsel %vm2300, %v2044, 0.0
          %v2429 = vsel %vm2301, %v2045, 0.0
          %v2430 = vsel %vm2302, %v2046, 0.0
          %v2431 = vsel %vm2303, %v2047, 0.0
          %v2432 = vsel %vm2304, %v2048, 0.0
          %v2433 = vsel %vm2305, %v2049, 0.0
          %v2434 = vsel %vm2306, %v2050, 0.0
          %v2435 = vsel %vm2307, %v2051, 0.0
          %v2436 = vsel %vm2308, %v2052, 0.0
          %v2437 = vsel %vm2309, %v2053, 0.0
          %v2438 = vsel %vm2310, %v2054, 0.0
          %v2439 = vsel %vm2311, %v2055, 0.0
          %v2440 = vsel %vm2312, %v2056, 0.0
          %v2441 = vsel %vm2313, %v2057, 0.0
          %v2442 = vsel %vm2314, %v2058, 0.0
          %v2443 = vsel %vm2315, %v2059, 0.0
          %v2444 = vsel %vm2316, %v2060, 0.0
          %v2445 = vsel %vm2317, %v2061, 0.0
          %v2446 = vsel %vm2318, %v2062, 0.0
          %v2447 = vsel %vm2319, %v2063, 0.0
          %v2448 = vsel %vm2320, %v2064, 0.0
          %v2449 = vsel %vm2321, %v2065, 0.0
          %v2450 = vsel %vm2322, %v2066, 0.0
          %v2451 = vsel %vm2323, %v2067, 0.0
          %v2452 = vsel %vm2324, %v2068, 0.0
          %v2453 = vsel %vm2325, %v2069, 0.0
          %v2454 = vsel %vm2326, %v2070, 0.0
          %v2455 = vsel %vm2327, %v2071, 0.0
          %v2456 = vsel %vm2328, %v2072, 0.0
          %v2457 = vsel %vm2329, %v2073, 0.0
          %v2458 = vsel %vm2330, %v2074, 0.0
          %v2459 = vsel %vm2331, %v2075, 0.0
          %v2460 = vsel %vm2332, %v2076, 0.0
          %v2461 = vsel %vm2333, %v2077, 0.0
          %v2462 = vsel %vm2334, %v2078, 0.0
          %v2463 = vsel %vm2335, %v2079, 0.0
          %v2464 = vsel %vm2336, %v2080, 0.0
          %v2465 = vsel %vm2337, %v2081, 0.0
          %v2466 = vsel %vm2338, %v2082, 0.0
          %v2467 = vsel %vm2339, %v2083, 0.0
          %v2468 = vsel %vm2340, %v2084, 0.0
          %v2469 = vsel %vm2341, %v2085, 0.0
          %v2470 = vsel %vm2342, %v2086, 0.0
          %v2471 = vsel %vm2343, %v2087, 0.0
          %v2472 = vsel %vm2344, %v2088, 0.0
          %v2473 = vsel %vm2345, %v2089, 0.0
          %v2474 = vsel %vm2346, %v2090, 0.0
          %v2475 = vsel %vm2347, %v2091, 0.0
          %v2476 = vsel %vm2348, %v2092, 0.0
          %v2477 = vsel %vm2349, %v2093, 0.0
          %v2478 = vsel %vm2350, %v2094, 0.0
          %v2479 = vsel %vm2351, %v2095, 0.0
          %v2480 = vsel %vm2352, %v2096, 0.0
          %v2481 = vsel %vm2353, %v2097, 0.0
          %v2482 = vsel %vm2354, %v2098, 0.0
          %v2483 = vsel %vm2355, %v2099, 0.0
          %v2484 = vsel %vm2356, %v2100, 0.0
          %v2485 = vsel %vm2357, %v2101, 0.0
          %v2486 = vsel %vm2358, %v2102, 0.0
          %v2487 = vsel %vm2359, %v2103, 0.0
          %v2488 = vsel %vm2360, %v2104, 0.0
          %v2489 = vsel %vm2361, %v2105, 0.0
          %v2490 = vsel %vm2362, %v2106, 0.0
          %v2491 = vsel %vm2363, %v2107, 0.0
          %v2492 = vsel %vm2364, %v2108, 0.0
          %v2493 = vsel %vm2365, %v2109, 0.0
          %v2494 = vsel %vm2366, %v2110, 0.0
          %v2495 = vsel %vm2367, %v2111, 0.0
          %v2496 = vsel %vm2368, %v2112, 0.0
          %v2497 = vsel %vm2369, %v2113, 0.0
          %v2498 = vsel %vm2370, %v2114, 0.0
          %v2499 = vsel %vm2371, %v2115, 0.0
          %v2500 = vsel %vm2372, %v2116, 0.0
          %v2501 = vsel %vm2373, %v2117, 0.0
          %v2502 = vsel %vm2374, %v2118, 0.0
          %v2503 = vsel %vm2375, %v2119, 0.0
          %v2504 = vsel %vm2376, %v2120, 0.0
          %v2505 = vsel %vm2377, %v2121, 0.0
          %v2506 = vsel %vm2378, %v2122, 0.0
          %v2507 = vsel %vm2379, %v2123, 0.0
          %v2508 = vsel %vm2380, %v2124, 0.0
          %v2509 = vsel %vm2381, %v2125, 0.0
          %v2510 = vsel %vm2382, %v2126, 0.0
          %v2511 = vsel %vm2383, %v2127, 0.0
          %v2512 = vsel %vm2384, %v2128, 0.0
          %v2513 = vsel %vm2385, %v2129, 0.0
          %v2514 = vsel %vm2386, %v2130, 0.0
          %v2515 = vsel %vm2387, %v2131, 0.0
          %v2516 = vsel %vm2388, %v2132, 0.0
          %v2517 = vsel %vm2389, %v2133, 0.0
          %v2518 = vsel %vm2390, %v2134, 0.0
          %v2519 = vsel %vm2391, %v2135, 0.0
          %v2520 = vsel %vm2392, %v2136, 0.0
          %v2521 = vsel %vm2393, %v2137, 0.0
          %v2522 = vsel %vm2394, %v2138, 0.0
          %v2523 = vsel %vm2395, %v2139, 0.0
          %v2524 = vsel %vm2396, %v2140, 0.0
          %v2525 = vsel %vm2397, %v2141, 0.0
          %v2526 = vsel %vm2398, %v2142, 0.0
          %v2527 = vsel %vm2399, %v2143, 0.0
          %v2528 = vsel %vm2400, %v2144, 0.0
          %v2529 = vsel %vm2401, %v2145, 0.0
          %v2530 = vsel %vm2402, %v2146, 0.0
          %v2531 = vsel %vm2403, %v2147, 0.0
          %v2532 = vsel %vm2404, %v2148, 0.0
          %v2533 = vsel %vm2405, %v2149, 0.0
          %v2534 = vsel %vm2406, %v2150, 0.0
          %v2535 = vsel %vm2407, %v2151, 0.0
          %v2536 = vsel %vm2408, %v2152, 0.0
          %v2537 = vsel %vm2409, %v2153, 0.0
          %v2538 = vsel %vm2410, %v2154, 0.0
          %v2539 = vsel %vm2411, %v2155, 0.0
          %v2540 = vsel %vm2412, %v2156, 0.0
          %v2541 = vsel %vm2413, %v2157, 0.0
          %v2542 = vsel %vm2414, %v2158, 0.0
          %v2543 = vsel %vm2415, %v2159, 0.0
          %v2544 = vsel %vm2416, %v2160, 0.0
          %v2545 = vsel %vm2417, %v2161, 0.0
          %v2546 = vsel %vm2418, %v2162, 0.0
          %v2547 = vsel %vm2419, %v2163, 0.0
          %v2548 = vsel %vm2420, %v2164, 0.0
          %v2549 = vsel %vm2421, %v2165, 0.0
          %v2550 = vsel %vm2422, %v2166, 0.0
          %v2551 = vsel %vm2423, %v2167, 0.0
          %v2552 = vld [vmem:[#allocation4] sm:$0x1]
          %v2553 = vadd.f32 %v2424, %v2425
          %v2554 = vadd.f32 %v2553, %v2426
          %v2555 = vadd.f32 %v2554, %v2427
          %v2556 = vadd.f32 %v2555, %v2428
          %v2557 = vadd.f32 %v2556, %v2429
          %v2558 = vadd.f32 %v2557, %v2430
          %v2559 = vadd.f32 %v2558, %v2431
          %v2560 = vadd.f32 %v2559, %v2432
          %v2561 = vadd.f32 %v2560, %v2433
          %v2562 = vadd.f32 %v2561, %v2434
          %v2563 = vadd.f32 %v2562, %v2435
          %v2564 = vadd.f32 %v2563, %v2436
          %v2565 = vadd.f32 %v2564, %v2437
          %v2566 = vadd.f32 %v2565, %v2438
          %v2567 = vadd.f32 %v2566, %v2439
          %v2568 = vadd.f32 %v2567, %v2440
          %v2569 = vadd.f32 %v2568, %v2441
          %v2570 = vadd.f32 %v2569, %v2442
          %v2571 = vadd.f32 %v2570, %v2443
          %v2572 = vadd.f32 %v2571, %v2444
          %v2573 = vadd.f32 %v2572, %v2445
          %v2574 = vadd.f32 %v2573, %v2446
          %v2575 = vadd.f32 %v2574, %v2447
          %v2576 = vadd.f32 %v2575, %v2448
          %v2577 = vadd.f32 %v2576, %v2449
          %v2578 = vadd.f32 %v2577, %v2450
          %v2579 = vadd.f32 %v2578, %v2451
          %v2580 = vadd.f32 %v2579, %v2452
          %v2581 = vadd.f32 %v2580, %v2453
          %v2582 = vadd.f32 %v2581, %v2454
          %v2583 = vadd.f32 %v2582, %v2455
          %v2584 = vadd.f32 %v2583, %v2456
          %v2585 = vadd.f32 %v2584, %v2457
          %v2586 = vadd.f32 %v2585, %v2458
          %v2587 = vadd.f32 %v2586, %v2459
          %v2588 = vadd.f32 %v2587, %v2460
          %v2589 = vadd.f32 %v2588, %v2461
          %v2590 = vadd.f32 %v2589, %v2462
          %v2591 = vadd.f32 %v2590, %v2463
          %v2592 = vadd.f32 %v2591, %v2464
          %v2593 = vadd.f32 %v2592, %v2465
          %v2594 = vadd.f32 %v2593, %v2466
          %v2595 = vadd.f32 %v2594, %v2467
          %v2596 = vadd.f32 %v2595, %v2468
          %v2597 = vadd.f32 %v2596, %v2469
          %v2598 = vadd.f32 %v2597, %v2470
          %v2599 = vadd.f32 %v2598, %v2471
          %v2600 = vadd.f32 %v2599, %v2472
          %v2601 = vadd.f32 %v2600, %v2473
          %v2602 = vadd.f32 %v2601, %v2474
          %v2603 = vadd.f32 %v2602, %v2475
          %v2604 = vadd.f32 %v2603, %v2476
          %v2605 = vadd.f32 %v2604, %v2477
          %v2606 = vadd.f32 %v2605, %v2478
          %v2607 = vadd.f32 %v2606, %v2479
          %v2608 = vadd.f32 %v2607, %v2480
          %v2609 = vadd.f32 %v2608, %v2481
          %v2610 = vadd.f32 %v2609, %v2482
          %v2611 = vadd.f32 %v2610, %v2483
          %v2612 = vadd.f32 %v2611, %v2484
          %v2613 = vadd.f32 %v2612, %v2485
          %v2614 = vadd.f32 %v2613, %v2486
          %v2615 = vadd.f32 %v2614, %v2487
          %v2616 = vadd.f32 %v2615, %v2488
          %v2617 = vadd.f32 %v2616, %v2489
          %v2618 = vadd.f32 %v2617, %v2490
          %v2619 = vadd.f32 %v2618, %v2491
          %v2620 = vadd.f32 %v2619, %v2492
          %v2621 = vadd.f32 %v2620, %v2493
          %v2622 = vadd.f32 %v2621, %v2494
          %v2623 = vadd.f32 %v2622, %v2495
          %v2624 = vadd.f32 %v2623, %v2496
          %v2625 = vadd.f32 %v2624, %v2497
          %v2626 = vadd.f32 %v2625, %v2498
          %v2627 = vadd.f32 %v2626, %v2499
          %v2628 = vadd.f32 %v2627, %v2500
          %v2629 = vadd.f32 %v2628, %v2501
          %v2630 = vadd.f32 %v2629, %v2502
          %v2631 = vadd.f32 %v2630, %v2503
          %v2632 = vadd.f32 %v2631, %v2504
          %v2633 = vadd.f32 %v2632, %v2505
          %v2634 = vadd.f32 %v2633, %v2506
          %v2635 = vadd.f32 %v2634, %v2507
          %v2636 = vadd.f32 %v2635, %v2508
          %v2637 = vadd.f32 %v2636, %v2509
          %v2638 = vadd.f32 %v2637, %v2510
          %v2639 = vadd.f32 %v2638, %v2511
          %v2640 = vadd.f32 %v2639, %v2512
          %v2641 = vadd.f32 %v2640, %v2513
          %v2642 = vadd.f32 %v2641, %v2514
          %v2643 = vadd.f32 %v2642, %v2515
          %v2644 = vadd.f32 %v2643, %v2516
          %v2645 = vadd.f32 %v2644, %v2517
          %v2646 = vadd.f32 %v2645, %v2518
          %v2647 = vadd.f32 %v2646, %v2519
          %v2648 = vadd.f32 %v2647, %v2520
          %v2649 = vadd.f32 %v2648, %v2521
          %v2650 = vadd.f32 %v2649, %v2522
          %v2651 = vadd.f32 %v2650, %v2523
          %v2652 = vadd.f32 %v2651, %v2524
          %v2653 = vadd.f32 %v2652, %v2525
          %v2654 = vadd.f32 %v2653, %v2526
          %v2655 = vadd.f32 %v2654, %v2527
          %v2656 = vadd.f32 %v2655, %v2528
          %v2657 = vadd.f32 %v2656, %v2529
          %v2658 = vadd.f32 %v2657, %v2530
          %v2659 = vadd.f32 %v2658, %v2531
          %v2660 = vadd.f32 %v2659, %v2532
          %v2661 = vadd.f32 %v2660, %v2533
          %v2662 = vadd.f32 %v2661, %v2534
          %v2663 = vadd.f32 %v2662, %v2535
          %v2664 = vadd.f32 %v2663, %v2536
          %v2665 = vadd.f32 %v2664, %v2537
          %v2666 = vadd.f32 %v2665, %v2538
          %v2667 = vadd.f32 %v2666, %v2539
          %v2668 = vadd.f32 %v2667, %v2540
          %v2669 = vadd.f32 %v2668, %v2541
          %v2670 = vadd.f32 %v2669, %v2542
          %v2671 = vadd.f32 %v2670, %v2543
          %v2672 = vadd.f32 %v2671, %v2544
          %v2673 = vadd.f32 %v2672, %v2545
          %v2674 = vadd.f32 %v2673, %v2546
          %v2675 = vadd.f32 %v2674, %v2547
          %v2676 = vadd.f32 %v2675, %v2548
          %v2677 = vadd.f32 %v2676, %v2549
          %v2678 = vadd.f32 %v2677, %v2550
          %v2679 = vadd.f32 %v2678, %v2551
          %v2680 = vrot.slane %v2679, 4
          %v2681 = vadd.f32 %v2679, %v2680
          %v2682 = vrot.slane %v2681, 2
          %v2683 = vadd.f32 %v2681, %v2682
          %v2684 = vrot.slane %v2683, 1
          %v2685 = vadd.f32 %v2683, %v2684
          %v2686 = vadd.f32 %v2552, %v2685
          %2687 = vst [vmem:[#allocation4] sm:$0x1] %v2686
          %v2688 = vld [vmem:[#allocation5] sm:$0x1]
          %v2689 = vmul.f32 %v2424, %v2424
          %v2690 = vmul.f32 %v2425, %v2425
          %v2691 = vmul.f32 %v2426, %v2426
          %v2692 = vmul.f32 %v2427, %v2427
          %v2693 = vmul.f32 %v2428, %v2428
          %v2694 = vmul.f32 %v2429, %v2429
          %v2695 = vmul.f32 %v2430, %v2430
          %v2696 = vmul.f32 %v2431, %v2431
          %v2697 = vmul.f32 %v2432, %v2432
          %v2698 = vmul.f32 %v2433, %v2433
          %v2699 = vmul.f32 %v2434, %v2434
          %v2700 = vmul.f32 %v2435, %v2435
          %v2701 = vmul.f32 %v2436, %v2436
          %v2702 = vmul.f32 %v2437, %v2437
          %v2703 = vmul.f32 %v2438, %v2438
          %v2704 = vmul.f32 %v2439, %v2439
          %v2705 = vmul.f32 %v2440, %v2440
          %v2706 = vmul.f32 %v2441, %v2441
          %v2707 = vmul.f32 %v2442, %v2442
          %v2708 = vmul.f32 %v2443, %v2443
          %v2709 = vmul.f32 %v2444, %v2444
          %v2710 = vmul.f32 %v2445, %v2445
          %v2711 = vmul.f32 %v2446, %v2446
          %v2712 = vmul.f32 %v2447, %v2447
          %v2713 = vmul.f32 %v2448, %v2448
          %v2714 = vmul.f32 %v2449, %v2449
          %v2715 = vmul.f32 %v2450, %v2450
          %v2716 = vmul.f32 %v2451, %v2451
          %v2717 = vmul.f32 %v2452, %v2452
          %v2718 = vmul.f32 %v2453, %v2453
          %v2719 = vmul.f32 %v2454, %v2454
          %v2720 = vmul.f32 %v2455, %v2455
          %v2721 = vmul.f32 %v2456, %v2456
          %v2722 = vmul.f32 %v2457, %v2457
          %v2723 = vmul.f32 %v2458, %v2458
          %v2724 = vmul.f32 %v2459, %v2459
          %v2725 = vmul.f32 %v2460, %v2460
          %v2726 = vmul.f32 %v2461, %v2461
          %v2727 = vmul.f32 %v2462, %v2462
          %v2728 = vmul.f32 %v2463, %v2463
          %v2729 = vmul.f32 %v2464, %v2464
          %v2730 = vmul.f32 %v2465, %v2465
          %v2731 = vmul.f32 %v2466, %v2466
          %v2732 = vmul.f32 %v2467, %v2467
          %v2733 = vmul.f32 %v2468, %v2468
          %v2734 = vmul.f32 %v2469, %v2469
          %v2735 = vmul.f32 %v2470, %v2470
          %v2736 = vmul.f32 %v2471, %v2471
          %v2737 = vmul.f32 %v2472, %v2472
          %v2738 = vmul.f32 %v2473, %v2473
          %v2739 = vmul.f32 %v2474, %v2474
          %v2740 = vmul.f32 %v2475, %v2475
          %v2741 = vmul.f32 %v2476, %v2476
          %v2742 = vmul.f32 %v2477, %v2477
          %v2743 = vmul.f32 %v2478, %v2478
          %v2744 = vmul.f32 %v2479, %v2479
          %v2745 = vmul.f32 %v2480, %v2480
          %v2746 = vmul.f32 %v2481, %v2481
          %v2747 = vmul.f32 %v2482, %v2482
          %v2748 = vmul.f32 %v2483, %v2483
          %v2749 = vmul.f32 %v2484, %v2484
          %v2750 = vmul.f32 %v2485, %v2485
          %v2751 = vmul.f32 %v2486, %v2486
          %v2752 = vmul.f32 %v2487, %v2487
          %v2753 = vmul.f32 %v2488, %v2488
          %v2754 = vmul.f32 %v2489, %v2489
          %v2755 = vmul.f32 %v2490, %v2490
          %v2756 = vmul.f32 %v2491, %v2491
          %v2757 = vmul.f32 %v2492, %v2492
          %v2758 = vmul.f32 %v2493, %v2493
          %v2759 = vmul.f32 %v2494, %v2494
          %v2760 = vmul.f32 %v2495, %v2495
          %v2761 = vmul.f32 %v2496, %v2496
          %v2762 = vmul.f32 %v2497, %v2497
          %v2763 = vmul.f32 %v2498, %v2498
          %v2764 = vmul.f32 %v2499, %v2499
          %v2765 = vmul.f32 %v2500, %v2500
          %v2766 = vmul.f32 %v2501, %v2501
          %v2767 = vmul.f32 %v2502, %v2502
          %v2768 = vmul.f32 %v2503, %v2503
          %v2769 = vmul.f32 %v2504, %v2504
          %v2770 = vmul.f32 %v2505, %v2505
          %v2771 = vmul.f32 %v2506, %v2506
          %v2772 = vmul.f32 %v2507, %v2507
          %v2773 = vmul.f32 %v2508, %v2508
          %v2774 = vmul.f32 %v2509, %v2509
          %v2775 = vmul.f32 %v2510, %v2510
          %v2776 = vmul.f32 %v2511, %v2511
          %v2777 = vmul.f32 %v2512, %v2512
          %v2778 = vmul.f32 %v2513, %v2513
          %v2779 = vmul.f32 %v2514, %v2514
          %v2780 = vmul.f32 %v2515, %v2515
          %v2781 = vmul.f32 %v2516, %v2516
          %v2782 = vmul.f32 %v2517, %v2517
          %v2783 = vmul.f32 %v2518, %v2518
          %v2784 = vmul.f32 %v2519, %v2519
          %v2785 = vmul.f32 %v2520, %v2520
          %v2786 = vmul.f32 %v2521, %v2521
          %v2787 = vmul.f32 %v2522, %v2522
          %v2788 = vmul.f32 %v2523, %v2523
          %v2789 = vmul.f32 %v2524, %v2524
          %v2790 = vmul.f32 %v2525, %v2525
          %v2791 = vmul.f32 %v2526, %v2526
          %v2792 = vmul.f32 %v2527, %v2527
          %v2793 = vmul.f32 %v2528, %v2528
          %v2794 = vmul.f32 %v2529, %v2529
          %v2795 = vmul.f32 %v2530, %v2530
          %v2796 = vmul.f32 %v2531, %v2531
          %v2797 = vmul.f32 %v2532, %v2532
          %v2798 = vmul.f32 %v2533, %v2533
          %v2799 = vmul.f32 %v2534, %v2534
          %v2800 = vmul.f32 %v2535, %v2535
          %v2801 = vmul.f32 %v2536, %v2536
          %v2802 = vmul.f32 %v2537, %v2537
          %v2803 = vmul.f32 %v2538, %v2538
          %v2804 = vmul.f32 %v2539, %v2539
          %v2805 = vmul.f32 %v2540, %v2540
          %v2806 = vmul.f32 %v2541, %v2541
          %v2807 = vmul.f32 %v2542, %v2542
          %v2808 = vmul.f32 %v2543, %v2543
          %v2809 = vmul.f32 %v2544, %v2544
          %v2810 = vmul.f32 %v2545, %v2545
          %v2811 = vmul.f32 %v2546, %v2546
          %v2812 = vmul.f32 %v2547, %v2547
          %v2813 = vmul.f32 %v2548, %v2548
          %v2814 = vmul.f32 %v2549, %v2549
          %v2815 = vmul.f32 %v2550, %v2550
          %v2816 = vmul.f32 %v2551, %v2551
          %v2817 = vadd.f32 %v2689, %v2690
          %v2818 = vadd.f32 %v2817, %v2691
          %v2819 = vadd.f32 %v2818, %v2692
          %v2820 = vadd.f32 %v2819, %v2693
          %v2821 = vadd.f32 %v2820, %v2694
          %v2822 = vadd.f32 %v2821, %v2695
          %v2823 = vadd.f32 %v2822, %v2696
          %v2824 = vadd.f32 %v2823, %v2697
          %v2825 = vadd.f32 %v2824, %v2698
          %v2826 = vadd.f32 %v2825, %v2699
          %v2827 = vadd.f32 %v2826, %v2700
          %v2828 = vadd.f32 %v2827, %v2701
          %v2829 = vadd.f32 %v2828, %v2702
          %v2830 = vadd.f32 %v2829, %v2703
          %v2831 = vadd.f32 %v2830, %v2704
          %v2832 = vadd.f32 %v2831, %v2705
          %v2833 = vadd.f32 %v2832, %v2706
          %v2834 = vadd.f32 %v2833, %v2707
          %v2835 = vadd.f32 %v2834, %v2708
          %v2836 = vadd.f32 %v2835, %v2709
          %v2837 = vadd.f32 %v2836, %v2710
          %v2838 = vadd.f32 %v2837, %v2711
          %v2839 = vadd.f32 %v2838, %v2712
          %v2840 = vadd.f32 %v2839, %v2713
          %v2841 = vadd.f32 %v2840, %v2714
          %v2842 = vadd.f32 %v2841, %v2715
          %v2843 = vadd.f32 %v2842, %v2716
          %v2844 = vadd.f32 %v2843, %v2717
          %v2845 = vadd.f32 %v2844, %v2718
          %v2846 = vadd.f32 %v2845, %v2719
          %v2847 = vadd.f32 %v2846, %v2720
          %v2848 = vadd.f32 %v2847, %v2721
          %v2849 = vadd.f32 %v2848, %v2722
          %v2850 = vadd.f32 %v2849, %v2723
          %v2851 = vadd.f32 %v2850, %v2724
          %v2852 = vadd.f32 %v2851, %v2725
          %v2853 = vadd.f32 %v2852, %v2726
          %v2854 = vadd.f32 %v2853, %v2727
          %v2855 = vadd.f32 %v2854, %v2728
          %v2856 = vadd.f32 %v2855, %v2729
          %v2857 = vadd.f32 %v2856, %v2730
          %v2858 = vadd.f32 %v2857, %v2731
          %v2859 = vadd.f32 %v2858, %v2732
          %v2860 = vadd.f32 %v2859, %v2733
          %v2861 = vadd.f32 %v2860, %v2734
          %v2862 = vadd.f32 %v2861, %v2735
          %v2863 = vadd.f32 %v2862, %v2736
          %v2864 = vadd.f32 %v2863, %v2737
          %v2865 = vadd.f32 %v2864, %v2738
          %v2866 = vadd.f32 %v2865, %v2739
          %v2867 = vadd.f32 %v2866, %v2740
          %v2868 = vadd.f32 %v2867, %v2741
          %v2869 = vadd.f32 %v2868, %v2742
          %v2870 = vadd.f32 %v2869, %v2743
          %v2871 = vadd.f32 %v2870, %v2744
          %v2872 = vadd.f32 %v2871, %v2745
          %v2873 = vadd.f32 %v2872, %v2746
          %v2874 = vadd.f32 %v2873, %v2747
          %v2875 = vadd.f32 %v2874, %v2748
          %v2876 = vadd.f32 %v2875, %v2749
          %v2877 = vadd.f32 %v2876, %v2750
          %v2878 = vadd.f32 %v2877, %v2751
          %v2879 = vadd.f32 %v2878, %v2752
          %v2880 = vadd.f32 %v2879, %v2753
          %v2881 = vadd.f32 %v2880, %v2754
          %v2882 = vadd.f32 %v2881, %v2755
          %v2883 = vadd.f32 %v2882, %v2756
          %v2884 = vadd.f32 %v2883, %v2757
          %v2885 = vadd.f32 %v2884, %v2758
          %v2886 = vadd.f32 %v2885, %v2759
          %v2887 = vadd.f32 %v2886, %v2760
          %v2888 = vadd.f32 %v2887, %v2761
          %v2889 = vadd.f32 %v2888, %v2762
          %v2890 = vadd.f32 %v2889, %v2763
          %v2891 = vadd.f32 %v2890, %v2764
          %v2892 = vadd.f32 %v2891, %v2765
          %v2893 = vadd.f32 %v2892, %v2766
          %v2894 = vadd.f32 %v2893, %v2767
          %v2895 = vadd.f32 %v2894, %v2768
          %v2896 = vadd.f32 %v2895, %v2769
          %v2897 = vadd.f32 %v2896, %v2770
          %v2898 = vadd.f32 %v2897, %v2771
          %v2899 = vadd.f32 %v2898, %v2772
          %v2900 = vadd.f32 %v2899, %v2773
          %v2901 = vadd.f32 %v2900, %v2774
          %v2902 = vadd.f32 %v2901, %v2775
          %v2903 = vadd.f32 %v2902, %v2776
          %v2904 = vadd.f32 %v2903, %v2777
          %v2905 = vadd.f32 %v2904, %v2778
          %v2906 = vadd.f32 %v2905, %v2779
          %v2907 = vadd.f32 %v2906, %v2780
          %v2908 = vadd.f32 %v2907, %v2781
          %v2909 = vadd.f32 %v2908, %v2782
          %v2910 = vadd.f32 %v2909, %v2783
          %v2911 = vadd.f32 %v2910, %v2784
          %v2912 = vadd.f32 %v2911, %v2785
          %v2913 = vadd.f32 %v2912, %v2786
          %v2914 = vadd.f32 %v2913, %v2787
          %v2915 = vadd.f32 %v2914, %v2788
          %v2916 = vadd.f32 %v2915, %v2789
          %v2917 = vadd.f32 %v2916, %v2790
          %v2918 = vadd.f32 %v2917, %v2791
          %v2919 = vadd.f32 %v2918, %v2792
          %v2920 = vadd.f32 %v2919, %v2793
          %v2921 = vadd.f32 %v2920, %v2794
          %v2922 = vadd.f32 %v2921, %v2795
          %v2923 = vadd.f32 %v2922, %v2796
          %v2924 = vadd.f32 %v2923, %v2797
          %v2925 = vadd.f32 %v2924, %v2798
          %v2926 = vadd.f32 %v2925, %v2799
          %v2927 = vadd.f32 %v2926, %v2800
          %v2928 = vadd.f32 %v2927, %v2801
          %v2929 = vadd.f32 %v2928, %v2802
          %v2930 = vadd.f32 %v2929, %v2803
          %v2931 = vadd.f32 %v2930, %v2804
          %v2932 = vadd.f32 %v2931, %v2805
          %v2933 = vadd.f32 %v2932, %v2806
          %v2934 = vadd.f32 %v2933, %v2807
          %v2935 = vadd.f32 %v2934, %v2808
          %v2936 = vadd.f32 %v2935, %v2809
          %v2937 = vadd.f32 %v2936, %v2810
          %v2938 = vadd.f32 %v2937, %v2811
          %v2939 = vadd.f32 %v2938, %v2812
          %v2940 = vadd.f32 %v2939, %v2813
          %v2941 = vadd.f32 %v2940, %v2814
          %v2942 = vadd.f32 %v2941, %v2815
          %v2943 = vadd.f32 %v2942, %v2816
          %v2944 = vrot.slane %v2943, 4
          %v2945 = vadd.f32 %v2943, %v2944
          %v2946 = vrot.slane %v2945, 2
          %v2947 = vadd.f32 %v2945, %v2946
          %v2948 = vrot.slane %v2947, 1
          %v2949 = vadd.f32 %v2947, %v2948
          %v2950 = vadd.f32 %v2688, %v2949
          %2951 = vst [vmem:[#allocation5] sm:$0x1] %v2950
          %s2952 = scalar_lea.vmem [#allocation2], %s440
          %2953 = vst [vmem:[%s2952] sm:$0xff] %v2040
          %2954 = vst [vmem:[%s2952 + $0x8] sm:$0xff] %v2041
          %2955 = vst [vmem:[%s2952 + $0x10] sm:$0xff] %v2042
          %2956 = vst [vmem:[%s2952 + $0x18] sm:$0xff] %v2043
          %2957 = vst [vmem:[%s2952 + $0x20] sm:$0xff] %v2044
          %2958 = vst [vmem:[%s2952 + $0x28] sm:$0xff] %v2045
          %2959 = vst [vmem:[%s2952 + $0x30] sm:$0xff] %v2046
          %2960 = vst [vmem:[%s2952 + $0x38] sm:$0xff] %v2047
          %2961 = vst [vmem:[%s2952 + $0x40] sm:$0xff] %v2048
          %2962 = vst [vmem:[%s2952 + $0x48] sm:$0xff] %v2049
          %2963 = vst [vmem:[%s2952 + $0x50] sm:$0xff] %v2050
          %2964 = vst [vmem:[%s2952 + $0x58] sm:$0xff] %v2051
          %2965 = vst [vmem:[%s2952 + $0x60] sm:$0xff] %v2052
          %2966 = vst [vmem:[%s2952 + $0x68] sm:$0xff] %v2053
          %2967 = vst [vmem:[%s2952 + $0x70] sm:$0xff] %v2054
          %2968 = vst [vmem:[%s2952 + $0x78] sm:$0xff] %v2055
          %2969 = vst [vmem:[%s2952 + $0x80] sm:$0xff] %v2056
          %2970 = vst [vmem:[%s2952 + $0x88] sm:$0xff] %v2057
          %2971 = vst [vmem:[%s2952 + $0x90] sm:$0xff] %v2058
          %2972 = vst [vmem:[%s2952 + $0x98] sm:$0xff] %v2059
          %2973 = vst [vmem:[%s2952 + $0xa0] sm:$0xff] %v2060
          %2974 = vst [vmem:[%s2952 + $0xa8] sm:$0xff] %v2061
          %2975 = vst [vmem:[%s2952 + $0xb0] sm:$0xff] %v2062
          %2976 = vst [vmem:[%s2952 + $0xb8] sm:$0xff] %v2063
          %2977 = vst [vmem:[%s2952 + $0xc0] sm:$0xff] %v2064
          %2978 = vst [vmem:[%s2952 + $0xc8] sm:$0xff] %v2065
          %2979 = vst [vmem:[%s2952 + $0xd0] sm:$0xff] %v2066
          %2980 = vst [vmem:[%s2952 + $0xd8] sm:$0xff] %v2067
          %2981 = vst [vmem:[%s2952 + $0xe0] sm:$0xff] %v2068
          %2982 = vst [vmem:[%s2952 + $0xe8] sm:$0xff] %v2069
          %2983 = vst [vmem:[%s2952 + $0xf0] sm:$0xff] %v2070
          %2984 = vst [vmem:[%s2952 + $0xf8] sm:$0xff] %v2071
          %2985 = vst [vmem:[%s2952 + $0x100] sm:$0xff] %v2072
          %2986 = vst [vmem:[%s2952 + $0x108] sm:$0xff] %v2073
          %2987 = vst [vmem:[%s2952 + $0x110] sm:$0xff] %v2074
          %2988 = vst [vmem:[%s2952 + $0x118] sm:$0xff] %v2075
          %2989 = vst [vmem:[%s2952 + $0x120] sm:$0xff] %v2076
          %2990 = vst [vmem:[%s2952 + $0x128] sm:$0xff] %v2077
          %2991 = vst [vmem:[%s2952 + $0x130] sm:$0xff] %v2078
          %2992 = vst [vmem:[%s2952 + $0x138] sm:$0xff] %v2079
          %2993 = vst [vmem:[%s2952 + $0x140] sm:$0xff] %v2080
          %2994 = vst [vmem:[%s2952 + $0x148] sm:$0xff] %v2081
          %2995 = vst [vmem:[%s2952 + $0x150] sm:$0xff] %v2082
          %2996 = vst [vmem:[%s2952 + $0x158] sm:$0xff] %v2083
          %2997 = vst [vmem:[%s2952 + $0x160] sm:$0xff] %v2084
          %2998 = vst [vmem:[%s2952 + $0x168] sm:$0xff] %v2085
          %2999 = vst [vmem:[%s2952 + $0x170] sm:$0xff] %v2086
          %3000 = vst [vmem:[%s2952 + $0x178] sm:$0xff] %v2087
          %3001 = vst [vmem:[%s2952 + $0x180] sm:$0xff] %v2088
          %3002 = vst [vmem:[%s2952 + $0x188] sm:$0xff] %v2089
          %3003 = vst [vmem:[%s2952 + $0x190] sm:$0xff] %v2090
          %3004 = vst [vmem:[%s2952 + $0x198] sm:$0xff] %v2091
          %3005 = vst [vmem:[%s2952 + $0x1a0] sm:$0xff] %v2092
          %3006 = vst [vmem:[%s2952 + $0x1a8] sm:$0xff] %v2093
          %3007 = vst [vmem:[%s2952 + $0x1b0] sm:$0xff] %v2094
          %3008 = vst [vmem:[%s2952 + $0x1b8] sm:$0xff] %v2095
          %3009 = vst [vmem:[%s2952 + $0x1c0] sm:$0xff] %v2096
          %3010 = vst [vmem:[%s2952 + $0x1c8] sm:$0xff] %v2097
          %3011 = vst [vmem:[%s2952 + $0x1d0] sm:$0xff] %v2098
          %3012 = vst [vmem:[%s2952 + $0x1d8] sm:$0xff] %v2099
          %3013 = vst [vmem:[%s2952 + $0x1e0] sm:$0xff] %v2100
          %3014 = vst [vmem:[%s2952 + $0x1e8] sm:$0xff] %v2101
          %3015 = vst [vmem:[%s2952 + $0x1f0] sm:$0xff] %v2102
          %3016 = vst [vmem:[%s2952 + $0x1f8] sm:$0xff] %v2103
          %3017 = vst [vmem:[%s2952 + $0x200] sm:$0xff] %v2104
          %3018 = vst [vmem:[%s2952 + $0x208] sm:$0xff] %v2105
          %3019 = vst [vmem:[%s2952 + $0x210] sm:$0xff] %v2106
          %3020 = vst [vmem:[%s2952 + $0x218] sm:$0xff] %v2107
          %3021 = vst [vmem:[%s2952 + $0x220] sm:$0xff] %v2108
          %3022 = vst [vmem:[%s2952 + $0x228] sm:$0xff] %v2109
          %3023 = vst [vmem:[%s2952 + $0x230] sm:$0xff] %v2110
          %3024 = vst [vmem:[%s2952 + $0x238] sm:$0xff] %v2111
          %3025 = vst [vmem:[%s2952 + $0x240] sm:$0xff] %v2112
          %3026 = vst [vmem:[%s2952 + $0x248] sm:$0xff] %v2113
          %3027 = vst [vmem:[%s2952 + $0x250] sm:$0xff] %v2114
          %3028 = vst [vmem:[%s2952 + $0x258] sm:$0xff] %v2115
          %3029 = vst [vmem:[%s2952 + $0x260] sm:$0xff] %v2116
          %3030 = vst [vmem:[%s2952 + $0x268] sm:$0xff] %v2117
          %3031 = vst [vmem:[%s2952 + $0x270] sm:$0xff] %v2118
          %3032 = vst [vmem:[%s2952 + $0x278] sm:$0xff] %v2119
          %3033 = vst [vmem:[%s2952 + $0x280] sm:$0xff] %v2120
          %3034 = vst [vmem:[%s2952 + $0x288] sm:$0xff] %v2121
          %3035 = vst [vmem:[%s2952 + $0x290] sm:$0xff] %v2122
          %3036 = vst [vmem:[%s2952 + $0x298] sm:$0xff] %v2123
          %3037 = vst [vmem:[%s2952 + $0x2a0] sm:$0xff] %v2124
          %3038 = vst [vmem:[%s2952 + $0x2a8] sm:$0xff] %v2125
          %3039 = vst [vmem:[%s2952 + $0x2b0] sm:$0xff] %v2126
          %3040 = vst [vmem:[%s2952 + $0x2b8] sm:$0xff] %v2127
          %3041 = vst [vmem:[%s2952 + $0x2c0] sm:$0xff] %v2128
          %3042 = vst [vmem:[%s2952 + $0x2c8] sm:$0xff] %v2129
          %3043 = vst [vmem:[%s2952 + $0x2d0] sm:$0xff] %v2130
          %3044 = vst [vmem:[%s2952 + $0x2d8] sm:$0xff] %v2131
          %3045 = vst [vmem:[%s2952 + $0x2e0] sm:$0xff] %v2132
          %3046 = vst [vmem:[%s2952 + $0x2e8] sm:$0xff] %v2133
          %3047 = vst [vmem:[%s2952 + $0x2f0] sm:$0xff] %v2134
          %3048 = vst [vmem:[%s2952 + $0x2f8] sm:$0xff] %v2135
          %3049 = vst [vmem:[%s2952 + $0x300] sm:$0xff] %v2136
          %3050 = vst [vmem:[%s2952 + $0x308] sm:$0xff] %v2137
          %3051 = vst [vmem:[%s2952 + $0x310] sm:$0xff] %v2138
          %3052 = vst [vmem:[%s2952 + $0x318] sm:$0xff] %v2139
          %3053 = vst [vmem:[%s2952 + $0x320] sm:$0xff] %v2140
          %3054 = vst [vmem:[%s2952 + $0x328] sm:$0xff] %v2141
          %3055 = vst [vmem:[%s2952 + $0x330] sm:$0xff] %v2142
          %3056 = vst [vmem:[%s2952 + $0x338] sm:$0xff] %v2143
          %3057 = vst [vmem:[%s2952 + $0x340] sm:$0xff] %v2144
          %3058 = vst [vmem:[%s2952 + $0x348] sm:$0xff] %v2145
          %3059 = vst [vmem:[%s2952 + $0x350] sm:$0xff] %v2146
          %3060 = vst [vmem:[%s2952 + $0x358] sm:$0xff] %v2147
          %3061 = vst [vmem:[%s2952 + $0x360] sm:$0xff] %v2148
          %3062 = vst [vmem:[%s2952 + $0x368] sm:$0xff] %v2149
          %3063 = vst [vmem:[%s2952 + $0x370] sm:$0xff] %v2150
          %3064 = vst [vmem:[%s2952 + $0x378] sm:$0xff] %v2151
          %3065 = vst [vmem:[%s2952 + $0x380] sm:$0xff] %v2152
          %3066 = vst [vmem:[%s2952 + $0x388] sm:$0xff] %v2153
          %3067 = vst [vmem:[%s2952 + $0x390] sm:$0xff] %v2154
          %3068 = vst [vmem:[%s2952 + $0x398] sm:$0xff] %v2155
          %3069 = vst [vmem:[%s2952 + $0x3a0] sm:$0xff] %v2156
          %3070 = vst [vmem:[%s2952 + $0x3a8] sm:$0xff] %v2157
          %3071 = vst [vmem:[%s2952 + $0x3b0] sm:$0xff] %v2158
          %3072 = vst [vmem:[%s2952 + $0x3b8] sm:$0xff] %v2159
          %3073 = vst [vmem:[%s2952 + $0x3c0] sm:$0xff] %v2160
          %3074 = vst [vmem:[%s2952 + $0x3c8] sm:$0xff] %v2161
          %3075 = vst [vmem:[%s2952 + $0x3d0] sm:$0xff] %v2162
          %3076 = vst [vmem:[%s2952 + $0x3d8] sm:$0xff] %v2163
          %3077 = vst [vmem:[%s2952 + $0x3e0] sm:$0xff] %v2164
          %3078 = vst [vmem:[%s2952 + $0x3e8] sm:$0xff] %v2165
          %3079 = vst [vmem:[%s2952 + $0x3f0] sm:$0xff] %v2166
          %3080 = vst [vmem:[%s2952 + $0x3f8] sm:$0xff] %v2167
        $region68: #{tpu_custom_call.1} parent=63 // pred_fallthru
          _
        %p3081 = scmp.eq.s32.totalorder %s29, 1
        // Predicated region
        $region73: #{tpu_custom_call.1} parent=63 // pred_check
          %p3082 = pneg %p3081
        $region74: #{tpu_custom_call.1} parent=63 // pred_check_branch
          %3084 = sbr.rel (%p3082) target = $region76
        $region75: #{tpu_custom_call.1} parent=63 // pred_region
          %s3085 = scalar_lea.vmem [#allocation2], %s440
          %v3086 = vld [vmem:[%s3085] sm:$0xff]
          %v3087 = vld [vmem:[%s3085 + $0x8] sm:$0xff]
          %v3088 = vld [vmem:[%s3085 + $0x10] sm:$0xff]
          %v3089 = vld [vmem:[%s3085 + $0x18] sm:$0xff]
          %v3090 = vld [vmem:[%s3085 + $0x20] sm:$0xff]
          %v3091 = vld [vmem:[%s3085 + $0x28] sm:$0xff]
          %v3092 = vld [vmem:[%s3085 + $0x30] sm:$0xff]
          %v3093 = vld [vmem:[%s3085 + $0x38] sm:$0xff]
          %v3094 = vld [vmem:[%s3085 + $0x40] sm:$0xff]
          %v3095 = vld [vmem:[%s3085 + $0x48] sm:$0xff]
          %v3096 = vld [vmem:[%s3085 + $0x50] sm:$0xff]
          %v3097 = vld [vmem:[%s3085 + $0x58] sm:$0xff]
          %v3098 = vld [vmem:[%s3085 + $0x60] sm:$0xff]
          %v3099 = vld [vmem:[%s3085 + $0x68] sm:$0xff]
          %v3100 = vld [vmem:[%s3085 + $0x70] sm:$0xff]
          %v3101 = vld [vmem:[%s3085 + $0x78] sm:$0xff]
          %v3102 = vld [vmem:[%s3085 + $0x80] sm:$0xff]
          %v3103 = vld [vmem:[%s3085 + $0x88] sm:$0xff]
          %v3104 = vld [vmem:[%s3085 + $0x90] sm:$0xff]
          %v3105 = vld [vmem:[%s3085 + $0x98] sm:$0xff]
          %v3106 = vld [vmem:[%s3085 + $0xa0] sm:$0xff]
          %v3107 = vld [vmem:[%s3085 + $0xa8] sm:$0xff]
          %v3108 = vld [vmem:[%s3085 + $0xb0] sm:$0xff]
          %v3109 = vld [vmem:[%s3085 + $0xb8] sm:$0xff]
          %v3110 = vld [vmem:[%s3085 + $0xc0] sm:$0xff]
          %v3111 = vld [vmem:[%s3085 + $0xc8] sm:$0xff]
          %v3112 = vld [vmem:[%s3085 + $0xd0] sm:$0xff]
          %v3113 = vld [vmem:[%s3085 + $0xd8] sm:$0xff]
          %v3114 = vld [vmem:[%s3085 + $0xe0] sm:$0xff]
          %v3115 = vld [vmem:[%s3085 + $0xe8] sm:$0xff]
          %v3116 = vld [vmem:[%s3085 + $0xf0] sm:$0xff]
          %v3117 = vld [vmem:[%s3085 + $0xf8] sm:$0xff]
          %v3118 = vld [vmem:[%s3085 + $0x100] sm:$0xff]
          %v3119 = vld [vmem:[%s3085 + $0x108] sm:$0xff]
          %v3120 = vld [vmem:[%s3085 + $0x110] sm:$0xff]
          %v3121 = vld [vmem:[%s3085 + $0x118] sm:$0xff]
          %v3122 = vld [vmem:[%s3085 + $0x120] sm:$0xff]
          %v3123 = vld [vmem:[%s3085 + $0x128] sm:$0xff]
          %v3124 = vld [vmem:[%s3085 + $0x130] sm:$0xff]
          %v3125 = vld [vmem:[%s3085 + $0x138] sm:$0xff]
          %v3126 = vld [vmem:[%s3085 + $0x140] sm:$0xff]
          %v3127 = vld [vmem:[%s3085 + $0x148] sm:$0xff]
          %v3128 = vld [vmem:[%s3085 + $0x150] sm:$0xff]
          %v3129 = vld [vmem:[%s3085 + $0x158] sm:$0xff]
          %v3130 = vld [vmem:[%s3085 + $0x160] sm:$0xff]
          %v3131 = vld [vmem:[%s3085 + $0x168] sm:$0xff]
          %v3132 = vld [vmem:[%s3085 + $0x170] sm:$0xff]
          %v3133 = vld [vmem:[%s3085 + $0x178] sm:$0xff]
          %v3134 = vld [vmem:[%s3085 + $0x180] sm:$0xff]
          %v3135 = vld [vmem:[%s3085 + $0x188] sm:$0xff]
          %v3136 = vld [vmem:[%s3085 + $0x190] sm:$0xff]
          %v3137 = vld [vmem:[%s3085 + $0x198] sm:$0xff]
          %v3138 = vld [vmem:[%s3085 + $0x1a0] sm:$0xff]
          %v3139 = vld [vmem:[%s3085 + $0x1a8] sm:$0xff]
          %v3140 = vld [vmem:[%s3085 + $0x1b0] sm:$0xff]
          %v3141 = vld [vmem:[%s3085 + $0x1b8] sm:$0xff]
          %v3142 = vld [vmem:[%s3085 + $0x1c0] sm:$0xff]
          %v3143 = vld [vmem:[%s3085 + $0x1c8] sm:$0xff]
          %v3144 = vld [vmem:[%s3085 + $0x1d0] sm:$0xff]
          %v3145 = vld [vmem:[%s3085 + $0x1d8] sm:$0xff]
          %v3146 = vld [vmem:[%s3085 + $0x1e0] sm:$0xff]
          %v3147 = vld [vmem:[%s3085 + $0x1e8] sm:$0xff]
          %v3148 = vld [vmem:[%s3085 + $0x1f0] sm:$0xff]
          %v3149 = vld [vmem:[%s3085 + $0x1f8] sm:$0xff]
          %v3150 = vld [vmem:[%s3085 + $0x200] sm:$0xff]
          %v3151 = vld [vmem:[%s3085 + $0x208] sm:$0xff]
          %v3152 = vld [vmem:[%s3085 + $0x210] sm:$0xff]
          %v3153 = vld [vmem:[%s3085 + $0x218] sm:$0xff]
          %v3154 = vld [vmem:[%s3085 + $0x220] sm:$0xff]
          %v3155 = vld [vmem:[%s3085 + $0x228] sm:$0xff]
          %v3156 = vld [vmem:[%s3085 + $0x230] sm:$0xff]
          %v3157 = vld [vmem:[%s3085 + $0x238] sm:$0xff]
          %v3158 = vld [vmem:[%s3085 + $0x240] sm:$0xff]
          %v3159 = vld [vmem:[%s3085 + $0x248] sm:$0xff]
          %v3160 = vld [vmem:[%s3085 + $0x250] sm:$0xff]
          %v3161 = vld [vmem:[%s3085 + $0x258] sm:$0xff]
          %v3162 = vld [vmem:[%s3085 + $0x260] sm:$0xff]
          %v3163 = vld [vmem:[%s3085 + $0x268] sm:$0xff]
          %v3164 = vld [vmem:[%s3085 + $0x270] sm:$0xff]
          %v3165 = vld [vmem:[%s3085 + $0x278] sm:$0xff]
          %v3166 = vld [vmem:[%s3085 + $0x280] sm:$0xff]
          %v3167 = vld [vmem:[%s3085 + $0x288] sm:$0xff]
          %v3168 = vld [vmem:[%s3085 + $0x290] sm:$0xff]
          %v3169 = vld [vmem:[%s3085 + $0x298] sm:$0xff]
          %v3170 = vld [vmem:[%s3085 + $0x2a0] sm:$0xff]
          %v3171 = vld [vmem:[%s3085 + $0x2a8] sm:$0xff]
          %v3172 = vld [vmem:[%s3085 + $0x2b0] sm:$0xff]
          %v3173 = vld [vmem:[%s3085 + $0x2b8] sm:$0xff]
          %v3174 = vld [vmem:[%s3085 + $0x2c0] sm:$0xff]
          %v3175 = vld [vmem:[%s3085 + $0x2c8] sm:$0xff]
          %v3176 = vld [vmem:[%s3085 + $0x2d0] sm:$0xff]
          %v3177 = vld [vmem:[%s3085 + $0x2d8] sm:$0xff]
          %v3178 = vld [vmem:[%s3085 + $0x2e0] sm:$0xff]
          %v3179 = vld [vmem:[%s3085 + $0x2e8] sm:$0xff]
          %v3180 = vld [vmem:[%s3085 + $0x2f0] sm:$0xff]
          %v3181 = vld [vmem:[%s3085 + $0x2f8] sm:$0xff]
          %v3182 = vld [vmem:[%s3085 + $0x300] sm:$0xff]
          %v3183 = vld [vmem:[%s3085 + $0x308] sm:$0xff]
          %v3184 = vld [vmem:[%s3085 + $0x310] sm:$0xff]
          %v3185 = vld [vmem:[%s3085 + $0x318] sm:$0xff]
          %v3186 = vld [vmem:[%s3085 + $0x320] sm:$0xff]
          %v3187 = vld [vmem:[%s3085 + $0x328] sm:$0xff]
          %v3188 = vld [vmem:[%s3085 + $0x330] sm:$0xff]
          %v3189 = vld [vmem:[%s3085 + $0x338] sm:$0xff]
          %v3190 = vld [vmem:[%s3085 + $0x340] sm:$0xff]
          %v3191 = vld [vmem:[%s3085 + $0x348] sm:$0xff]
          %v3192 = vld [vmem:[%s3085 + $0x350] sm:$0xff]
          %v3193 = vld [vmem:[%s3085 + $0x358] sm:$0xff]
          %v3194 = vld [vmem:[%s3085 + $0x360] sm:$0xff]
          %v3195 = vld [vmem:[%s3085 + $0x368] sm:$0xff]
          %v3196 = vld [vmem:[%s3085 + $0x370] sm:$0xff]
          %v3197 = vld [vmem:[%s3085 + $0x378] sm:$0xff]
          %v3198 = vld [vmem:[%s3085 + $0x380] sm:$0xff]
          %v3199 = vld [vmem:[%s3085 + $0x388] sm:$0xff]
          %v3200 = vld [vmem:[%s3085 + $0x390] sm:$0xff]
          %v3201 = vld [vmem:[%s3085 + $0x398] sm:$0xff]
          %v3202 = vld [vmem:[%s3085 + $0x3a0] sm:$0xff]
          %v3203 = vld [vmem:[%s3085 + $0x3a8] sm:$0xff]
          %v3204 = vld [vmem:[%s3085 + $0x3b0] sm:$0xff]
          %v3205 = vld [vmem:[%s3085 + $0x3b8] sm:$0xff]
          %v3206 = vld [vmem:[%s3085 + $0x3c0] sm:$0xff]
          %v3207 = vld [vmem:[%s3085 + $0x3c8] sm:$0xff]
          %v3208 = vld [vmem:[%s3085 + $0x3d0] sm:$0xff]
          %v3209 = vld [vmem:[%s3085 + $0x3d8] sm:$0xff]
          %v3210 = vld [vmem:[%s3085 + $0x3e0] sm:$0xff]
          %v3211 = vld [vmem:[%s3085 + $0x3e8] sm:$0xff]
          %v3212 = vld [vmem:[%s3085 + $0x3f0] sm:$0xff]
          %v3213 = vld [vmem:[%s3085 + $0x3f8] sm:$0xff]
          %v3214 = vld [vmem:[#allocation4] sm:$0x1]
          %v3215 = vmul.f32 %v3214, 0.0004
          %v3216 = vld [vmem:[#allocation5] sm:$0x1]
          %v3217 = vmul.f32 %v3216, 0.0004
          %v3218 = vmul.f32 %v3215, %v3215
          %v3219 = vsub.f32 %v3217, %v3218
          %v3220 = vmax.f32 %v3219, 0.0
          %v3221 = vadd.f32 %v3220, 1e-05
          %v3222 = vrsqrt.pop %v3221
          %v3223 = vld [vmem:[%s3] sm:$0x1]
          %v3224 = vmul.f32 %v3222, %v3223
          %v3226 = vlaneseq
          %v3227 = vshrl.u32 %v3226, 7
          %v3228 = vsub.s32 0, %v3227
          %v3229 = vrot.slane %v3224, %v3228
          %v3231 = vmul.f32 %v3086, %v3229
          %v3232 = vmul.f32 %v3087, %v3229
          %v3233 = vmul.f32 %v3088, %v3229
          %v3234 = vmul.f32 %v3089, %v3229
          %v3235 = vmul.f32 %v3090, %v3229
          %v3236 = vmul.f32 %v3091, %v3229
          %v3237 = vmul.f32 %v3092, %v3229
          %v3238 = vmul.f32 %v3093, %v3229
          %v3239 = vmul.f32 %v3094, %v3229
          %v3240 = vmul.f32 %v3095, %v3229
          %v3241 = vmul.f32 %v3096, %v3229
          %v3242 = vmul.f32 %v3097, %v3229
          %v3243 = vmul.f32 %v3098, %v3229
          %v3244 = vmul.f32 %v3099, %v3229
          %v3245 = vmul.f32 %v3100, %v3229
          %v3246 = vmul.f32 %v3101, %v3229
          %v3247 = vmul.f32 %v3102, %v3229
          %v3248 = vmul.f32 %v3103, %v3229
          %v3249 = vmul.f32 %v3104, %v3229
          %v3250 = vmul.f32 %v3105, %v3229
          %v3251 = vmul.f32 %v3106, %v3229
          %v3252 = vmul.f32 %v3107, %v3229
          %v3253 = vmul.f32 %v3108, %v3229
          %v3254 = vmul.f32 %v3109, %v3229
          %v3255 = vmul.f32 %v3110, %v3229
          %v3256 = vmul.f32 %v3111, %v3229
          %v3257 = vmul.f32 %v3112, %v3229
          %v3258 = vmul.f32 %v3113, %v3229
          %v3259 = vmul.f32 %v3114, %v3229
          %v3260 = vmul.f32 %v3115, %v3229
          %v3261 = vmul.f32 %v3116, %v3229
          %v3262 = vmul.f32 %v3117, %v3229
          %v3263 = vmul.f32 %v3118, %v3229
          %v3264 = vmul.f32 %v3119, %v3229
          %v3265 = vmul.f32 %v3120, %v3229
          %v3266 = vmul.f32 %v3121, %v3229
          %v3267 = vmul.f32 %v3122, %v3229
          %v3268 = vmul.f32 %v3123, %v3229
          %v3269 = vmul.f32 %v3124, %v3229
          %v3270 = vmul.f32 %v3125, %v3229
          %v3271 = vmul.f32 %v3126, %v3229
          %v3272 = vmul.f32 %v3127, %v3229
          %v3273 = vmul.f32 %v3128, %v3229
          %v3274 = vmul.f32 %v3129, %v3229
          %v3275 = vmul.f32 %v3130, %v3229
          %v3276 = vmul.f32 %v3131, %v3229
          %v3277 = vmul.f32 %v3132, %v3229
          %v3278 = vmul.f32 %v3133, %v3229
          %v3279 = vmul.f32 %v3134, %v3229
          %v3280 = vmul.f32 %v3135, %v3229
          %v3281 = vmul.f32 %v3136, %v3229
          %v3282 = vmul.f32 %v3137, %v3229
          %v3283 = vmul.f32 %v3138, %v3229
          %v3284 = vmul.f32 %v3139, %v3229
          %v3285 = vmul.f32 %v3140, %v3229
          %v3286 = vmul.f32 %v3141, %v3229
          %v3287 = vmul.f32 %v3142, %v3229
          %v3288 = vmul.f32 %v3143, %v3229
          %v3289 = vmul.f32 %v3144, %v3229
          %v3290 = vmul.f32 %v3145, %v3229
          %v3291 = vmul.f32 %v3146, %v3229
          %v3292 = vmul.f32 %v3147, %v3229
          %v3293 = vmul.f32 %v3148, %v3229
          %v3294 = vmul.f32 %v3149, %v3229
          %v3295 = vmul.f32 %v3150, %v3229
          %v3296 = vmul.f32 %v3151, %v3229
          %v3297 = vmul.f32 %v3152, %v3229
          %v3298 = vmul.f32 %v3153, %v3229
          %v3299 = vmul.f32 %v3154, %v3229
          %v3300 = vmul.f32 %v3155, %v3229
          %v3301 = vmul.f32 %v3156, %v3229
          %v3302 = vmul.f32 %v3157, %v3229
          %v3303 = vmul.f32 %v3158, %v3229
          %v3304 = vmul.f32 %v3159, %v3229
          %v3305 = vmul.f32 %v3160, %v3229
          %v3306 = vmul.f32 %v3161, %v3229
          %v3307 = vmul.f32 %v3162, %v3229
          %v3308 = vmul.f32 %v3163, %v3229
          %v3309 = vmul.f32 %v3164, %v3229
          %v3310 = vmul.f32 %v3165, %v3229
          %v3311 = vmul.f32 %v3166, %v3229
          %v3312 = vmul.f32 %v3167, %v3229
          %v3313 = vmul.f32 %v3168, %v3229
          %v3314 = vmul.f32 %v3169, %v3229
          %v3315 = vmul.f32 %v3170, %v3229
          %v3316 = vmul.f32 %v3171, %v3229
          %v3317 = vmul.f32 %v3172, %v3229
          %v3318 = vmul.f32 %v3173, %v3229
          %v3319 = vmul.f32 %v3174, %v3229
          %v3320 = vmul.f32 %v3175, %v3229
          %v3321 = vmul.f32 %v3176, %v3229
          %v3322 = vmul.f32 %v3177, %v3229
          %v3323 = vmul.f32 %v3178, %v3229
          %v3324 = vmul.f32 %v3179, %v3229
          %v3325 = vmul.f32 %v3180, %v3229
          %v3326 = vmul.f32 %v3181, %v3229
          %v3327 = vmul.f32 %v3182, %v3229
          %v3328 = vmul.f32 %v3183, %v3229
          %v3329 = vmul.f32 %v3184, %v3229
          %v3330 = vmul.f32 %v3185, %v3229
          %v3331 = vmul.f32 %v3186, %v3229
          %v3332 = vmul.f32 %v3187, %v3229
          %v3333 = vmul.f32 %v3188, %v3229
          %v3334 = vmul.f32 %v3189, %v3229
          %v3335 = vmul.f32 %v3190, %v3229
          %v3336 = vmul.f32 %v3191, %v3229
          %v3337 = vmul.f32 %v3192, %v3229
          %v3338 = vmul.f32 %v3193, %v3229
          %v3339 = vmul.f32 %v3194, %v3229
          %v3340 = vmul.f32 %v3195, %v3229
          %v3341 = vmul.f32 %v3196, %v3229
          %v3342 = vmul.f32 %v3197, %v3229
          %v3343 = vmul.f32 %v3198, %v3229
          %v3344 = vmul.f32 %v3199, %v3229
          %v3345 = vmul.f32 %v3200, %v3229
          %v3346 = vmul.f32 %v3201, %v3229
          %v3347 = vmul.f32 %v3202, %v3229
          %v3348 = vmul.f32 %v3203, %v3229
          %v3349 = vmul.f32 %v3204, %v3229
          %v3350 = vmul.f32 %v3205, %v3229
          %v3351 = vmul.f32 %v3206, %v3229
          %v3352 = vmul.f32 %v3207, %v3229
          %v3353 = vmul.f32 %v3208, %v3229
          %v3354 = vmul.f32 %v3209, %v3229
          %v3355 = vmul.f32 %v3210, %v3229
          %v3356 = vmul.f32 %v3211, %v3229
          %v3357 = vmul.f32 %v3212, %v3229
          %v3358 = vmul.f32 %v3213, %v3229
          %v3359 = vld [vmem:[%s4] sm:$0x1]
          %v3360 = vmul.f32 %v3215, %v3224
          %v3361 = vsub.f32 %v3359, %v3360
          %v3363 = vlaneseq
          %v3364 = vshrl.u32 %v3363, 7
          %v3365 = vsub.s32 0, %v3364
          %v3366 = vrot.slane %v3361, %v3365
          %v3368 = vadd.f32 %v3231, %v3366
          %v3369 = vadd.f32 %v3232, %v3366
          %v3370 = vadd.f32 %v3233, %v3366
          %v3371 = vadd.f32 %v3234, %v3366
          %v3372 = vadd.f32 %v3235, %v3366
          %v3373 = vadd.f32 %v3236, %v3366
          %v3374 = vadd.f32 %v3237, %v3366
          %v3375 = vadd.f32 %v3238, %v3366
          %v3376 = vadd.f32 %v3239, %v3366
          %v3377 = vadd.f32 %v3240, %v3366
          %v3378 = vadd.f32 %v3241, %v3366
          %v3379 = vadd.f32 %v3242, %v3366
          %v3380 = vadd.f32 %v3243, %v3366
          %v3381 = vadd.f32 %v3244, %v3366
          %v3382 = vadd.f32 %v3245, %v3366
          %v3383 = vadd.f32 %v3246, %v3366
          %v3384 = vadd.f32 %v3247, %v3366
          %v3385 = vadd.f32 %v3248, %v3366
          %v3386 = vadd.f32 %v3249, %v3366
          %v3387 = vadd.f32 %v3250, %v3366
          %v3388 = vadd.f32 %v3251, %v3366
          %v3389 = vadd.f32 %v3252, %v3366
          %v3390 = vadd.f32 %v3253, %v3366
          %v3391 = vadd.f32 %v3254, %v3366
          %v3392 = vadd.f32 %v3255, %v3366
          %v3393 = vadd.f32 %v3256, %v3366
          %v3394 = vadd.f32 %v3257, %v3366
          %v3395 = vadd.f32 %v3258, %v3366
          %v3396 = vadd.f32 %v3259, %v3366
          %v3397 = vadd.f32 %v3260, %v3366
          %v3398 = vadd.f32 %v3261, %v3366
          %v3399 = vadd.f32 %v3262, %v3366
          %v3400 = vadd.f32 %v3263, %v3366
          %v3401 = vadd.f32 %v3264, %v3366
          %v3402 = vadd.f32 %v3265, %v3366
          %v3403 = vadd.f32 %v3266, %v3366
          %v3404 = vadd.f32 %v3267, %v3366
          %v3405 = vadd.f32 %v3268, %v3366
          %v3406 = vadd.f32 %v3269, %v3366
          %v3407 = vadd.f32 %v3270, %v3366
          %v3408 = vadd.f32 %v3271, %v3366
          %v3409 = vadd.f32 %v3272, %v3366
          %v3410 = vadd.f32 %v3273, %v3366
          %v3411 = vadd.f32 %v3274, %v3366
          %v3412 = vadd.f32 %v3275, %v3366
          %v3413 = vadd.f32 %v3276, %v3366
          %v3414 = vadd.f32 %v3277, %v3366
          %v3415 = vadd.f32 %v3278, %v3366
          %v3416 = vadd.f32 %v3279, %v3366
          %v3417 = vadd.f32 %v3280, %v3366
          %v3418 = vadd.f32 %v3281, %v3366
          %v3419 = vadd.f32 %v3282, %v3366
          %v3420 = vadd.f32 %v3283, %v3366
          %v3421 = vadd.f32 %v3284, %v3366
          %v3422 = vadd.f32 %v3285, %v3366
          %v3423 = vadd.f32 %v3286, %v3366
          %v3424 = vadd.f32 %v3287, %v3366
          %v3425 = vadd.f32 %v3288, %v3366
          %v3426 = vadd.f32 %v3289, %v3366
          %v3427 = vadd.f32 %v3290, %v3366
          %v3428 = vadd.f32 %v3291, %v3366
          %v3429 = vadd.f32 %v3292, %v3366
          %v3430 = vadd.f32 %v3293, %v3366
          %v3431 = vadd.f32 %v3294, %v3366
          %v3432 = vadd.f32 %v3295, %v3366
          %v3433 = vadd.f32 %v3296, %v3366
          %v3434 = vadd.f32 %v3297, %v3366
          %v3435 = vadd.f32 %v3298, %v3366
          %v3436 = vadd.f32 %v3299, %v3366
          %v3437 = vadd.f32 %v3300, %v3366
          %v3438 = vadd.f32 %v3301, %v3366
          %v3439 = vadd.f32 %v3302, %v3366
          %v3440 = vadd.f32 %v3303, %v3366
          %v3441 = vadd.f32 %v3304, %v3366
          %v3442 = vadd.f32 %v3305, %v3366
          %v3443 = vadd.f32 %v3306, %v3366
          %v3444 = vadd.f32 %v3307, %v3366
          %v3445 = vadd.f32 %v3308, %v3366
          %v3446 = vadd.f32 %v3309, %v3366
          %v3447 = vadd.f32 %v3310, %v3366
          %v3448 = vadd.f32 %v3311, %v3366
          %v3449 = vadd.f32 %v3312, %v3366
          %v3450 = vadd.f32 %v3313, %v3366
          %v3451 = vadd.f32 %v3314, %v3366
          %v3452 = vadd.f32 %v3315, %v3366
          %v3453 = vadd.f32 %v3316, %v3366
          %v3454 = vadd.f32 %v3317, %v3366
          %v3455 = vadd.f32 %v3318, %v3366
          %v3456 = vadd.f32 %v3319, %v3366
          %v3457 = vadd.f32 %v3320, %v3366
          %v3458 = vadd.f32 %v3321, %v3366
          %v3459 = vadd.f32 %v3322, %v3366
          %v3460 = vadd.f32 %v3323, %v3366
          %v3461 = vadd.f32 %v3324, %v3366
          %v3462 = vadd.f32 %v3325, %v3366
          %v3463 = vadd.f32 %v3326, %v3366
          %v3464 = vadd.f32 %v3327, %v3366
          %v3465 = vadd.f32 %v3328, %v3366
          %v3466 = vadd.f32 %v3329, %v3366
          %v3467 = vadd.f32 %v3330, %v3366
          %v3468 = vadd.f32 %v3331, %v3366
          %v3469 = vadd.f32 %v3332, %v3366
          %v3470 = vadd.f32 %v3333, %v3366
          %v3471 = vadd.f32 %v3334, %v3366
          %v3472 = vadd.f32 %v3335, %v3366
          %v3473 = vadd.f32 %v3336, %v3366
          %v3474 = vadd.f32 %v3337, %v3366
          %v3475 = vadd.f32 %v3338, %v3366
          %v3476 = vadd.f32 %v3339, %v3366
          %v3477 = vadd.f32 %v3340, %v3366
          %v3478 = vadd.f32 %v3341, %v3366
          %v3479 = vadd.f32 %v3342, %v3366
          %v3480 = vadd.f32 %v3343, %v3366
          %v3481 = vadd.f32 %v3344, %v3366
          %v3482 = vadd.f32 %v3345, %v3366
          %v3483 = vadd.f32 %v3346, %v3366
          %v3484 = vadd.f32 %v3347, %v3366
          %v3485 = vadd.f32 %v3348, %v3366
          %v3486 = vadd.f32 %v3349, %v3366
          %v3487 = vadd.f32 %v3350, %v3366
          %v3488 = vadd.f32 %v3351, %v3366
          %v3489 = vadd.f32 %v3352, %v3366
          %v3490 = vadd.f32 %v3353, %v3366
          %v3491 = vadd.f32 %v3354, %v3366
          %v3492 = vadd.f32 %v3355, %v3366
          %v3493 = vadd.f32 %v3356, %v3366
          %v3494 = vadd.f32 %v3357, %v3366
          %v3495 = vadd.f32 %v3358, %v3366
          %v3496 = vpack.c.bf16 %v3369, %v3368
          %v3497 = vpack.c.bf16 %v3371, %v3370
          %v3498 = vpack.c.bf16 %v3373, %v3372
          %v3499 = vpack.c.bf16 %v3375, %v3374
          %v3500 = vpack.c.bf16 %v3377, %v3376
          %v3501 = vpack.c.bf16 %v3379, %v3378
          %v3502 = vpack.c.bf16 %v3381, %v3380
          %v3503 = vpack.c.bf16 %v3383, %v3382
          %v3504 = vpack.c.bf16 %v3385, %v3384
          %v3505 = vpack.c.bf16 %v3387, %v3386
          %v3506 = vpack.c.bf16 %v3389, %v3388
          %v3507 = vpack.c.bf16 %v3391, %v3390
          %v3508 = vpack.c.bf16 %v3393, %v3392
          %v3509 = vpack.c.bf16 %v3395, %v3394
          %v3510 = vpack.c.bf16 %v3397, %v3396
          %v3511 = vpack.c.bf16 %v3399, %v3398
          %v3512 = vpack.c.bf16 %v3401, %v3400
          %v3513 = vpack.c.bf16 %v3403, %v3402
          %v3514 = vpack.c.bf16 %v3405, %v3404
          %v3515 = vpack.c.bf16 %v3407, %v3406
          %v3516 = vpack.c.bf16 %v3409, %v3408
          %v3517 = vpack.c.bf16 %v3411, %v3410
          %v3518 = vpack.c.bf16 %v3413, %v3412
          %v3519 = vpack.c.bf16 %v3415, %v3414
          %v3520 = vpack.c.bf16 %v3417, %v3416
          %v3521 = vpack.c.bf16 %v3419, %v3418
          %v3522 = vpack.c.bf16 %v3421, %v3420
          %v3523 = vpack.c.bf16 %v3423, %v3422
          %v3524 = vpack.c.bf16 %v3425, %v3424
          %v3525 = vpack.c.bf16 %v3427, %v3426
          %v3526 = vpack.c.bf16 %v3429, %v3428
          %v3527 = vpack.c.bf16 %v3431, %v3430
          %v3528 = vpack.c.bf16 %v3433, %v3432
          %v3529 = vpack.c.bf16 %v3435, %v3434
          %v3530 = vpack.c.bf16 %v3437, %v3436
          %v3531 = vpack.c.bf16 %v3439, %v3438
          %v3532 = vpack.c.bf16 %v3441, %v3440
          %v3533 = vpack.c.bf16 %v3443, %v3442
          %v3534 = vpack.c.bf16 %v3445, %v3444
          %v3535 = vpack.c.bf16 %v3447, %v3446
          %v3536 = vpack.c.bf16 %v3449, %v3448
          %v3537 = vpack.c.bf16 %v3451, %v3450
          %v3538 = vpack.c.bf16 %v3453, %v3452
          %v3539 = vpack.c.bf16 %v3455, %v3454
          %v3540 = vpack.c.bf16 %v3457, %v3456
          %v3541 = vpack.c.bf16 %v3459, %v3458
          %v3542 = vpack.c.bf16 %v3461, %v3460
          %v3543 = vpack.c.bf16 %v3463, %v3462
          %v3544 = vpack.c.bf16 %v3465, %v3464
          %v3545 = vpack.c.bf16 %v3467, %v3466
          %v3546 = vpack.c.bf16 %v3469, %v3468
          %v3547 = vpack.c.bf16 %v3471, %v3470
          %v3548 = vpack.c.bf16 %v3473, %v3472
          %v3549 = vpack.c.bf16 %v3475, %v3474
          %v3550 = vpack.c.bf16 %v3477, %v3476
          %v3551 = vpack.c.bf16 %v3479, %v3478
          %v3552 = vpack.c.bf16 %v3481, %v3480
          %v3553 = vpack.c.bf16 %v3483, %v3482
          %v3554 = vpack.c.bf16 %v3485, %v3484
          %v3555 = vpack.c.bf16 %v3487, %v3486
          %v3556 = vpack.c.bf16 %v3489, %v3488
          %v3557 = vpack.c.bf16 %v3491, %v3490
          %v3558 = vpack.c.bf16 %v3493, %v3492
          %v3559 = vpack.c.bf16 %v3495, %v3494
          %v3560 = vld [vmem:[%s5] sm:$0xf]
          %v3561 = vld [vmem:[%s5 + $0x4] sm:$0xf]
          %v3562 = vld [vmem:[%s5 + $0x8] sm:$0xf]
          %v3563 = vld [vmem:[%s5 + $0xc] sm:$0xf]
          %v3564 = vld [vmem:[%s5 + $0x10] sm:$0xf]
          %v3565 = vld [vmem:[%s5 + $0x14] sm:$0xf]
          %v3566 = vld [vmem:[%s5 + $0x18] sm:$0xf]
          %v3567 = vld [vmem:[%s5 + $0x1c] sm:$0xf]
          %v3568 = vld [vmem:[%s5 + $0x20] sm:$0xf]
          %v3569 = vld [vmem:[%s5 + $0x24] sm:$0xf]
          %v3570 = vld [vmem:[%s5 + $0x28] sm:$0xf]
          %v3571 = vld [vmem:[%s5 + $0x2c] sm:$0xf]
          %v3572 = vld [vmem:[%s5 + $0x30] sm:$0xf]
          %v3573 = vld [vmem:[%s5 + $0x34] sm:$0xf]
          %v3574 = vld [vmem:[%s5 + $0x38] sm:$0xf]
          %v3575 = vld [vmem:[%s5 + $0x3c] sm:$0xf]
          %v3576 = vld [vmem:[%s6] sm:$0x1]
          %v3578 = vlaneseq
          %v3579 = vshrl.u32 %v3578, 7
          %v3580 = vsub.s32 0, %v3579
          %v3581 = vrot.slane %v3576, %v3580
          %v3599 = vunpack.c.l.b16 %v3560
          %v3600 = vunpack.c.l.b16 %v3561
          %v3601 = vunpack.c.l.b16 %v3562
          %v3602 = vunpack.c.l.b16 %v3563
          %v3603 = vunpack.c.l.b16 %v3564
          %v3604 = vunpack.c.l.b16 %v3565
          %v3605 = vunpack.c.l.b16 %v3566
          %v3606 = vunpack.c.l.b16 %v3567
          %v3607 = vunpack.c.l.b16 %v3568
          %v3608 = vunpack.c.l.b16 %v3569
          %v3609 = vunpack.c.l.b16 %v3570
          %v3610 = vunpack.c.l.b16 %v3571
          %v3611 = vunpack.c.l.b16 %v3572
          %v3612 = vunpack.c.l.b16 %v3573
          %v3613 = vunpack.c.l.b16 %v3574
          %v3614 = vunpack.c.l.b16 %v3575
          %v3615 = vpack.c.b16 %v3600, %v3599
          %v3616 = vpack.c.b16 %v3602, %v3601
          %v3617 = vpack.c.b16 %v3604, %v3603
          %v3618 = vpack.c.b16 %v3606, %v3605
          %v3619 = vpack.c.b16 %v3608, %v3607
          %v3620 = vpack.c.b16 %v3610, %v3609
          %v3621 = vpack.c.b16 %v3612, %v3611
          %v3622 = vpack.c.b16 %v3614, %v3613
          %3631 = vmatprep.subr.bf16.mxu0 0
          %3632 = vmatpush1.bf16.msra.mxu0 %v3615
          %3633 = vmatprep.subr.bf16.mxu0 0
          %3634 = vmatpush1.bf16.msra.mxu0 %v3616
          %3635 = vmatprep.subr.bf16.mxu0 0
          %3636 = vmatpush1.bf16.msra.mxu0 %v3617
          %3637 = vmatprep.subr.bf16.mxu0 0
          %3638 = vmatpush1.bf16.msra.mxu0 %v3618
          %3639 = vmatprep.subr.bf16.mxu0 0
          %3640 = vmatpush1.bf16.msra.mxu0 %v3619
          %3641 = vmatprep.subr.bf16.mxu0 0
          %3642 = vmatpush1.bf16.msra.mxu0 %v3620
          %3643 = vmatprep.subr.bf16.mxu0 0
          %3644 = vmatpush1.bf16.msra.mxu0 %v3621
          %3645 = vmatprep.subr.bf16.mxu0 0
          %3646 = vmatpush1.bf16.msra.mxu0 %v3622
          %3647 = vmatprep.subr.bf16.mxu0 0
          %3648 = vmatpush1.bf16.msra.mxu0 0
          %3649 = vmatprep.subr.bf16.mxu0 0
          %3650 = vmatpush1.bf16.msra.mxu0 0
          %3651 = vmatprep.subr.bf16.mxu0 0
          %3652 = vmatpush1.bf16.msra.mxu0 0
          %3653 = vmatprep.subr.bf16.mxu0 0
          %3654 = vmatpush1.bf16.msra.mxu0 0
          %3655 = vmatprep.subr.bf16.mxu0 0
          %3656 = vmatpush1.bf16.msra.mxu0 0
          %3657 = vmatprep.subr.bf16.mxu0 0
          %3658 = vmatpush1.bf16.msra.mxu0 0
          %3659 = vmatprep.subr.bf16.mxu0 0
          %3660 = vmatpush1.bf16.msra.mxu0 0
          %3661 = vmatprep.subr.bf16.mxu0 0
          %3662 = vmatpush1.bf16.msra.mxu0 0
          %3663 = vmatprep.mubr.bf16.mxu0 0
          %3664 = vmatmul.mubr.bf16.gmra.mrb[0].mxu0 %v3496
          %v3665 = vpop.f32.mrb[0].mxu0
          %v3666 = vadd.f32 %v3581, %v3665
          %v3667 = vpop.f32.mrb[0].mxu0
          %v3668 = vpop.f32.mrb[0].mxu0
          %v3669 = vadd.f32 %v3581, %v3668
          %v3670 = vpop.f32.mrb[0].mxu0
          %3671 = vmatprep.mubr.bf16.mxu0 0
          %3672 = vmatmul.mubr.bf16.gmra.mrb[0].mxu0 %v3497
          %v3673 = vpop.f32.mrb[0].mxu0
          %v3674 = vadd.f32 %v3581, %v3673
          %v3675 = vpop.f32.mrb[0].mxu0
          %v3676 = vpop.f32.mrb[0].mxu0
          %v3677 = vadd.f32 %v3581, %v3676
          %v3678 = vpop.f32.mrb[0].mxu0
          %3679 = vmatprep.mubr.bf16.mxu0 0
          %3680 = vmatmul.mubr.bf16.gmra.mrb[0].mxu0 %v3498
          %v3681 = vpop.f32.mrb[0].mxu0
          %v3682 = vadd.f32 %v3581, %v3681
          %v3683 = vpop.f32.mrb[0].mxu0
          %v3684 = vpop.f32.mrb[0].mxu0
          %v3685 = vadd.f32 %v3581, %v3684
          %v3686 = vpop.f32.mrb[0].mxu0
          %3687 = vmatprep.mubr.bf16.mxu0 0
          %3688 = vmatmul.mubr.bf16.gmra.mrb[0].mxu0 %v3499
          %v3689 = vpop.f32.mrb[0].mxu0
          %v3690 = vadd.f32 %v3581, %v3689
          %v3691 = vpop.f32.mrb[0].mxu0
          %v3692 = vpop.f32.mrb[0].mxu0
          %v3693 = vadd.f32 %v3581, %v3692
          %v3694 = vpop.f32.mrb[0].mxu0
          %3695 = vmatprep.mubr.bf16.mxu0 0
          %3696 = vmatmul.mubr.bf16.gmra.mrb[0].mxu0 %v3500
          %v3697 = vpop.f32.mrb[0].mxu0
          %v3698 = vadd.f32 %v3581, %v3697
          %v3699 = vpop.f32.mrb[0].mxu0
          %v3700 = vpop.f32.mrb[0].mxu0
          %v3701 = vadd.f32 %v3581, %v3700
          %v3702 = vpop.f32.mrb[0].mxu0
          %3703 = vmatprep.mubr.bf16.mxu0 0
          %3704 = vmatmul.mubr.bf16.gmra.mrb[0].mxu0 %v3501
          %v3705 = vpop.f32.mrb[0].mxu0
          %v3706 = vadd.f32 %v3581, %v3705
          %v3707 = vpop.f32.mrb[0].mxu0
          %v3708 = vpop.f32.mrb[0].mxu0
          %v3709 = vadd.f32 %v3581, %v3708
          %v3710 = vpop.f32.mrb[0].mxu0
          %3711 = vmatprep.mubr.bf16.mxu0 0
          %3712 = vmatmul.mubr.bf16.gmra.mrb[0].mxu0 %v3502
          %v3713 = vpop.f32.mrb[0].mxu0
          %v3714 = vadd.f32 %v3581, %v3713
          %v3715 = vpop.f32.mrb[0].mxu0
          %v3716 = vpop.f32.mrb[0].mxu0
          %v3717 = vadd.f32 %v3581, %v3716
          %v3718 = vpop.f32.mrb[0].mxu0
          %3719 = vmatprep.mubr.bf16.mxu0 0
          %3720 = vmatmul.mubr.bf16.gmra.mrb[0].mxu0 %v3503
          %v3721 = vpop.f32.mrb[0].mxu0
          %v3722 = vadd.f32 %v3581, %v3721
          %v3723 = vpop.f32.mrb[0].mxu0
          %v3724 = vpop.f32.mrb[0].mxu0
          %v3725 = vadd.f32 %v3581, %v3724
          %v3726 = vpop.f32.mrb[0].mxu0
          %3727 = vmatprep.mubr.bf16.mxu0 0
          %3728 = vmatmul.mubr.bf16.gmra.mrb[0].mxu0 %v3504
          %v3729 = vpop.f32.mrb[0].mxu0
          %v3730 = vadd.f32 %v3581, %v3729
          %v3731 = vpop.f32.mrb[0].mxu0
          %v3732 = vpop.f32.mrb[0].mxu0
          %v3733 = vadd.f32 %v3581, %v3732
          %v3734 = vpop.f32.mrb[0].mxu0
          %3735 = vmatprep.mubr.bf16.mxu0 0
          %3736 = vmatmul.mubr.bf16.gmra.mrb[0].mxu0 %v3505
          %v3737 = vpop.f32.mrb[0].mxu0
          %v3738 = vadd.f32 %v3581, %v3737
          %v3739 = vpop.f32.mrb[0].mxu0
          %v3740 = vpop.f32.mrb[0].mxu0
          %v3741 = vadd.f32 %v3581, %v3740
          %v3742 = vpop.f32.mrb[0].mxu0
          %3743 = vmatprep.mubr.bf16.mxu0 0
          %3744 = vmatmul.mubr.bf16.gmra.mrb[0].mxu0 %v3506
          %v3745 = vpop.f32.mrb[0].mxu0
          %v3746 = vadd.f32 %v3581, %v3745
          %v3747 = vpop.f32.mrb[0].mxu0
          %v3748 = vpop.f32.mrb[0].mxu0
          %v3749 = vadd.f32 %v3581, %v3748
          %v3750 = vpop.f32.mrb[0].mxu0
          %3751 = vmatprep.mubr.bf16.mxu0 0
          %3752 = vmatmul.mubr.bf16.gmra.mrb[0].mxu0 %v3507
          %v3753 = vpop.f32.mrb[0].mxu0
          %v3754 = vadd.f32 %v3581, %v3753
          %v3755 = vpop.f32.mrb[0].mxu0
          %v3756 = vpop.f32.mrb[0].mxu0
          %v3757 = vadd.f32 %v3581, %v3756
          %v3758 = vpop.f32.mrb[0].mxu0
          %3759 = vmatprep.mubr.bf16.mxu0 0
          %3760 = vmatmul.mubr.bf16.gmra.mrb[0].mxu0 %v3508
          %v3761 = vpop.f32.mrb[0].mxu0
          %v3762 = vadd.f32 %v3581, %v3761
          %v3763 = vpop.f32.mrb[0].mxu0
          %v3764 = vpop.f32.mrb[0].mxu0
          %v3765 = vadd.f32 %v3581, %v3764
          %v3766 = vpop.f32.mrb[0].mxu0
          %3767 = vmatprep.mubr.bf16.mxu0 0
          %3768 = vmatmul.mubr.bf16.gmra.mrb[0].mxu0 %v3509
          %v3769 = vpop.f32.mrb[0].mxu0
          %v3770 = vadd.f32 %v3581, %v3769
          %v3771 = vpop.f32.mrb[0].mxu0
          %v3772 = vpop.f32.mrb[0].mxu0
          %v3773 = vadd.f32 %v3581, %v3772
          %v3774 = vpop.f32.mrb[0].mxu0
          %3775 = vmatprep.mubr.bf16.mxu0 0
          %3776 = vmatmul.mubr.bf16.gmra.mrb[0].mxu0 %v3510
          %v3777 = vpop.f32.mrb[0].mxu0
          %v3778 = vadd.f32 %v3581, %v3777
          %v3779 = vpop.f32.mrb[0].mxu0
          %v3780 = vpop.f32.mrb[0].mxu0
          %v3781 = vadd.f32 %v3581, %v3780
          %v3782 = vpop.f32.mrb[0].mxu0
          %3783 = vmatprep.mubr.bf16.mxu0 0
          %3784 = vmatmul.mubr.bf16.gmra.mrb[0].mxu0 %v3511
          %v3785 = vpop.f32.mrb[0].mxu0
          %v3786 = vadd.f32 %v3581, %v3785
          %v3787 = vpop.f32.mrb[0].mxu0
          %v3788 = vpop.f32.mrb[0].mxu0
          %v3789 = vadd.f32 %v3581, %v3788
          %v3790 = vpop.f32.mrb[0].mxu0
          %3791 = vmatprep.mubr.bf16.mxu0 0
          %3792 = vmatmul.mubr.bf16.gmra.mrb[0].mxu0 %v3512
          %v3793 = vpop.f32.mrb[0].mxu0
          %v3794 = vadd.f32 %v3581, %v3793
          %v3795 = vpop.f32.mrb[0].mxu0
          %v3796 = vpop.f32.mrb[0].mxu0
          %v3797 = vadd.f32 %v3581, %v3796
          %v3798 = vpop.f32.mrb[0].mxu0
          %3799 = vmatprep.mubr.bf16.mxu0 0
          %3800 = vmatmul.mubr.bf16.gmra.mrb[0].mxu0 %v3513
          %v3801 = vpop.f32.mrb[0].mxu0
          %v3802 = vadd.f32 %v3581, %v3801
          %v3803 = vpop.f32.mrb[0].mxu0
          %v3804 = vpop.f32.mrb[0].mxu0
          %v3805 = vadd.f32 %v3581, %v3804
          %v3806 = vpop.f32.mrb[0].mxu0
          %3807 = vmatprep.mubr.bf16.mxu0 0
          %3808 = vmatmul.mubr.bf16.gmra.mrb[0].mxu0 %v3514
          %v3809 = vpop.f32.mrb[0].mxu0
          %v3810 = vadd.f32 %v3581, %v3809
          %v3811 = vpop.f32.mrb[0].mxu0
          %v3812 = vpop.f32.mrb[0].mxu0
          %v3813 = vadd.f32 %v3581, %v3812
          %v3814 = vpop.f32.mrb[0].mxu0
          %3815 = vmatprep.mubr.bf16.mxu0 0
          %3816 = vmatmul.mubr.bf16.gmra.mrb[0].mxu0 %v3515
          %v3817 = vpop.f32.mrb[0].mxu0
          %v3818 = vadd.f32 %v3581, %v3817
          %v3819 = vpop.f32.mrb[0].mxu0
          %v3820 = vpop.f32.mrb[0].mxu0
          %v3821 = vadd.f32 %v3581, %v3820
          %v3822 = vpop.f32.mrb[0].mxu0
          %3823 = vmatprep.mubr.bf16.mxu0 0
          %3824 = vmatmul.mubr.bf16.gmra.mrb[0].mxu0 %v3516
          %v3825 = vpop.f32.mrb[0].mxu0
          %v3826 = vadd.f32 %v3581, %v3825
          %v3827 = vpop.f32.mrb[0].mxu0
          %v3828 = vpop.f32.mrb[0].mxu0
          %v3829 = vadd.f32 %v3581, %v3828
          %v3830 = vpop.f32.mrb[0].mxu0
          %3831 = vmatprep.mubr.bf16.mxu0 0
          %3832 = vmatmul.mubr.bf16.gmra.mrb[0].mxu0 %v3517
          %v3833 = vpop.f32.mrb[0].mxu0
          %v3834 = vadd.f32 %v3581, %v3833
          %v3835 = vpop.f32.mrb[0].mxu0
          %v3836 = vpop.f32.mrb[0].mxu0
          %v3837 = vadd.f32 %v3581, %v3836
          %v3838 = vpop.f32.mrb[0].mxu0
          %3839 = vmatprep.mubr.bf16.mxu0 0
          %3840 = vmatmul.mubr.bf16.gmra.mrb[0].mxu0 %v3518
          %v3841 = vpop.f32.mrb[0].mxu0
          %v3842 = vadd.f32 %v3581, %v3841
          %v3843 = vpop.f32.mrb[0].mxu0
          %v3844 = vpop.f32.mrb[0].mxu0
          %v3845 = vadd.f32 %v3581, %v3844
          %v3846 = vpop.f32.mrb[0].mxu0
          %3847 = vmatprep.mubr.bf16.mxu0 0
          %3848 = vmatmul.mubr.bf16.gmra.mrb[0].mxu0 %v3519
          %v3849 = vpop.f32.mrb[0].mxu0
          %v3850 = vadd.f32 %v3581, %v3849
          %v3851 = vpop.f32.mrb[0].mxu0
          %v3852 = vpop.f32.mrb[0].mxu0
          %v3853 = vadd.f32 %v3581, %v3852
          %v3854 = vpop.f32.mrb[0].mxu0
          %3855 = vmatprep.mubr.bf16.mxu0 0
          %3856 = vmatmul.mubr.bf16.gmra.mrb[0].mxu0 %v3520
          %v3857 = vpop.f32.mrb[0].mxu0
          %v3858 = vadd.f32 %v3581, %v3857
          %v3859 = vpop.f32.mrb[0].mxu0
          %v3860 = vpop.f32.mrb[0].mxu0
          %v3861 = vadd.f32 %v3581, %v3860
          %v3862 = vpop.f32.mrb[0].mxu0
          %3863 = vmatprep.mubr.bf16.mxu0 0
          %3864 = vmatmul.mubr.bf16.gmra.mrb[0].mxu0 %v3521
          %v3865 = vpop.f32.mrb[0].mxu0
          %v3866 = vadd.f32 %v3581, %v3865
          %v3867 = vpop.f32.mrb[0].mxu0
          %v3868 = vpop.f32.mrb[0].mxu0
          %v3869 = vadd.f32 %v3581, %v3868
          %v3870 = vpop.f32.mrb[0].mxu0
          %3871 = vmatprep.mubr.bf16.mxu0 0
          %3872 = vmatmul.mubr.bf16.gmra.mrb[0].mxu0 %v3522
          %v3873 = vpop.f32.mrb[0].mxu0
          %v3874 = vadd.f32 %v3581, %v3873
          %v3875 = vpop.f32.mrb[0].mxu0
          %v3876 = vpop.f32.mrb[0].mxu0
          %v3877 = vadd.f32 %v3581, %v3876
          %v3878 = vpop.f32.mrb[0].mxu0
          %3879 = vmatprep.mubr.bf16.mxu0 0
          %3880 = vmatmul.mubr.bf16.gmra.mrb[0].mxu0 %v3523
          %v3881 = vpop.f32.mrb[0].mxu0
          %v3882 = vadd.f32 %v3581, %v3881
          %v3883 = vpop.f32.mrb[0].mxu0
          %v3884 = vpop.f32.mrb[0].mxu0
          %v3885 = vadd.f32 %v3581, %v3884
          %v3886 = vpop.f32.mrb[0].mxu0
          %3887 = vmatprep.mubr.bf16.mxu0 0
          %3888 = vmatmul.mubr.bf16.gmra.mrb[0].mxu0 %v3524
          %v3889 = vpop.f32.mrb[0].mxu0
          %v3890 = vadd.f32 %v3581, %v3889
          %v3891 = vpop.f32.mrb[0].mxu0
          %v3892 = vpop.f32.mrb[0].mxu0
          %v3893 = vadd.f32 %v3581, %v3892
          %v3894 = vpop.f32.mrb[0].mxu0
          %3895 = vmatprep.mubr.bf16.mxu0 0
          %3896 = vmatmul.mubr.bf16.gmra.mrb[0].mxu0 %v3525
          %v3897 = vpop.f32.mrb[0].mxu0
          %v3898 = vadd.f32 %v3581, %v3897
          %v3899 = vpop.f32.mrb[0].mxu0
          %v3900 = vpop.f32.mrb[0].mxu0
          %v3901 = vadd.f32 %v3581, %v3900
          %v3902 = vpop.f32.mrb[0].mxu0
          %3903 = vmatprep.mubr.bf16.mxu0 0
          %3904 = vmatmul.mubr.bf16.gmra.mrb[0].mxu0 %v3526
          %v3905 = vpop.f32.mrb[0].mxu0
          %v3906 = vadd.f32 %v3581, %v3905
          %v3907 = vpop.f32.mrb[0].mxu0
          %v3908 = vpop.f32.mrb[0].mxu0
          %v3909 = vadd.f32 %v3581, %v3908
          %v3910 = vpop.f32.mrb[0].mxu0
          %3911 = vmatprep.mubr.bf16.mxu0 0
          %3912 = vmatmul.mubr.bf16.gmra.mrb[0].mxu0 %v3527
          %v3913 = vpop.f32.mrb[0].mxu0
          %v3914 = vadd.f32 %v3581, %v3913
          %v3915 = vpop.f32.mrb[0].mxu0
          %v3916 = vpop.f32.mrb[0].mxu0
          %v3917 = vadd.f32 %v3581, %v3916
          %v3918 = vpop.f32.mrb[0].mxu0
          %3919 = vmatprep.mubr.bf16.mxu0 0
          %3920 = vmatmul.mubr.bf16.gmra.mrb[0].mxu0 %v3528
          %v3921 = vpop.f32.mrb[0].mxu0
          %v3922 = vadd.f32 %v3581, %v3921
          %v3923 = vpop.f32.mrb[0].mxu0
          %v3924 = vpop.f32.mrb[0].mxu0
          %v3925 = vadd.f32 %v3581, %v3924
          %v3926 = vpop.f32.mrb[0].mxu0
          %3927 = vmatprep.mubr.bf16.mxu0 0
          %3928 = vmatmul.mubr.bf16.gmra.mrb[0].mxu0 %v3529
          %v3929 = vpop.f32.mrb[0].mxu0
          %v3930 = vadd.f32 %v3581, %v3929
          %v3931 = vpop.f32.mrb[0].mxu0
          %v3932 = vpop.f32.mrb[0].mxu0
          %v3933 = vadd.f32 %v3581, %v3932
          %v3934 = vpop.f32.mrb[0].mxu0
          %3935 = vmatprep.mubr.bf16.mxu0 0
          %3936 = vmatmul.mubr.bf16.gmra.mrb[0].mxu0 %v3530
          %v3937 = vpop.f32.mrb[0].mxu0
          %v3938 = vadd.f32 %v3581, %v3937
          %v3939 = vpop.f32.mrb[0].mxu0
          %v3940 = vpop.f32.mrb[0].mxu0
          %v3941 = vadd.f32 %v3581, %v3940
          %v3942 = vpop.f32.mrb[0].mxu0
          %3943 = vmatprep.mubr.bf16.mxu0 0
          %3944 = vmatmul.mubr.bf16.gmra.mrb[0].mxu0 %v3531
          %v3945 = vpop.f32.mrb[0].mxu0
          %v3946 = vadd.f32 %v3581, %v3945
          %v3947 = vpop.f32.mrb[0].mxu0
          %v3948 = vpop.f32.mrb[0].mxu0
          %v3949 = vadd.f32 %v3581, %v3948
          %v3950 = vpop.f32.mrb[0].mxu0
          %3951 = vmatprep.mubr.bf16.mxu0 0
          %3952 = vmatmul.mubr.bf16.gmra.mrb[0].mxu0 %v3532
          %v3953 = vpop.f32.mrb[0].mxu0
          %v3954 = vadd.f32 %v3581, %v3953
          %v3955 = vpop.f32.mrb[0].mxu0
          %v3956 = vpop.f32.mrb[0].mxu0
          %v3957 = vadd.f32 %v3581, %v3956
          %v3958 = vpop.f32.mrb[0].mxu0
          %3959 = vmatprep.mubr.bf16.mxu0 0
          %3960 = vmatmul.mubr.bf16.gmra.mrb[0].mxu0 %v3533
          %v3961 = vpop.f32.mrb[0].mxu0
          %v3962 = vadd.f32 %v3581, %v3961
          %v3963 = vpop.f32.mrb[0].mxu0
          %v3964 = vpop.f32.mrb[0].mxu0
          %v3965 = vadd.f32 %v3581, %v3964
          %v3966 = vpop.f32.mrb[0].mxu0
          %3967 = vmatprep.mubr.bf16.mxu0 0
          %3968 = vmatmul.mubr.bf16.gmra.mrb[0].mxu0 %v3534
          %v3969 = vpop.f32.mrb[0].mxu0
          %v3970 = vadd.f32 %v3581, %v3969
          %v3971 = vpop.f32.mrb[0].mxu0
          %v3972 = vpop.f32.mrb[0].mxu0
          %v3973 = vadd.f32 %v3581, %v3972
          %v3974 = vpop.f32.mrb[0].mxu0
          %3975 = vmatprep.mubr.bf16.mxu0 0
          %3976 = vmatmul.mubr.bf16.gmra.mrb[0].mxu0 %v3535
          %v3977 = vpop.f32.mrb[0].mxu0
          %v3978 = vadd.f32 %v3581, %v3977
          %v3979 = vpop.f32.mrb[0].mxu0
          %v3980 = vpop.f32.mrb[0].mxu0
          %v3981 = vadd.f32 %v3581, %v3980
          %v3982 = vpop.f32.mrb[0].mxu0
          %3983 = vmatprep.mubr.bf16.mxu0 0
          %3984 = vmatmul.mubr.bf16.gmra.mrb[0].mxu0 %v3536
          %v3985 = vpop.f32.mrb[0].mxu0
          %v3986 = vadd.f32 %v3581, %v3985
          %v3987 = vpop.f32.mrb[0].mxu0
          %v3988 = vpop.f32.mrb[0].mxu0
          %v3989 = vadd.f32 %v3581, %v3988
          %v3990 = vpop.f32.mrb[0].mxu0
          %3991 = vmatprep.mubr.bf16.mxu0 0
          %3992 = vmatmul.mubr.bf16.gmra.mrb[0].mxu0 %v3537
          %v3993 = vpop.f32.mrb[0].mxu0
          %v3994 = vadd.f32 %v3581, %v3993
          %v3995 = vpop.f32.mrb[0].mxu0
          %v3996 = vpop.f32.mrb[0].mxu0
          %v3997 = vadd.f32 %v3581, %v3996
          %v3998 = vpop.f32.mrb[0].mxu0
          %3999 = vmatprep.mubr.bf16.mxu0 0
          %4000 = vmatmul.mubr.bf16.gmra.mrb[0].mxu0 %v3538
          %v4001 = vpop.f32.mrb[0].mxu0
          %v4002 = vadd.f32 %v3581, %v4001
          %v4003 = vpop.f32.mrb[0].mxu0
          %v4004 = vpop.f32.mrb[0].mxu0
          %v4005 = vadd.f32 %v3581, %v4004
          %v4006 = vpop.f32.mrb[0].mxu0
          %4007 = vmatprep.mubr.bf16.mxu0 0
          %4008 = vmatmul.mubr.bf16.gmra.mrb[0].mxu0 %v3539
          %v4009 = vpop.f32.mrb[0].mxu0
          %v4010 = vadd.f32 %v3581, %v4009
          %v4011 = vpop.f32.mrb[0].mxu0
          %v4012 = vpop.f32.mrb[0].mxu0
          %v4013 = vadd.f32 %v3581, %v4012
          %v4014 = vpop.f32.mrb[0].mxu0
          %4015 = vmatprep.mubr.bf16.mxu0 0
          %4016 = vmatmul.mubr.bf16.gmra.mrb[0].mxu0 %v3540
          %v4017 = vpop.f32.mrb[0].mxu0
          %v4018 = vadd.f32 %v3581, %v4017
          %v4019 = vpop.f32.mrb[0].mxu0
          %v4020 = vpop.f32.mrb[0].mxu0
          %v4021 = vadd.f32 %v3581, %v4020
          %v4022 = vpop.f32.mrb[0].mxu0
          %4023 = vmatprep.mubr.bf16.mxu0 0
          %4024 = vmatmul.mubr.bf16.gmra.mrb[0].mxu0 %v3541
          %v4025 = vpop.f32.mrb[0].mxu0
          %v4026 = vadd.f32 %v3581, %v4025
          %v4027 = vpop.f32.mrb[0].mxu0
          %v4028 = vpop.f32.mrb[0].mxu0
          %v4029 = vadd.f32 %v3581, %v4028
          %v4030 = vpop.f32.mrb[0].mxu0
          %4031 = vmatprep.mubr.bf16.mxu0 0
          %4032 = vmatmul.mubr.bf16.gmra.mrb[0].mxu0 %v3542
          %v4033 = vpop.f32.mrb[0].mxu0
          %v4034 = vadd.f32 %v3581, %v4033
          %v4035 = vpop.f32.mrb[0].mxu0
          %v4036 = vpop.f32.mrb[0].mxu0
          %v4037 = vadd.f32 %v3581, %v4036
          %v4038 = vpop.f32.mrb[0].mxu0
          %4039 = vmatprep.mubr.bf16.mxu0 0
          %4040 = vmatmul.mubr.bf16.gmra.mrb[0].mxu0 %v3543
          %v4041 = vpop.f32.mrb[0].mxu0
          %v4042 = vadd.f32 %v3581, %v4041
          %v4043 = vpop.f32.mrb[0].mxu0
          %v4044 = vpop.f32.mrb[0].mxu0
          %v4045 = vadd.f32 %v3581, %v4044
          %v4046 = vpop.f32.mrb[0].mxu0
          %4047 = vmatprep.mubr.bf16.mxu0 0
          %4048 = vmatmul.mubr.bf16.gmra.mrb[0].mxu0 %v3544
          %v4049 = vpop.f32.mrb[0].mxu0
          %v4050 = vadd.f32 %v3581, %v4049
          %v4051 = vpop.f32.mrb[0].mxu0
          %v4052 = vpop.f32.mrb[0].mxu0
          %v4053 = vadd.f32 %v3581, %v4052
          %v4054 = vpop.f32.mrb[0].mxu0
          %4055 = vmatprep.mubr.bf16.mxu0 0
          %4056 = vmatmul.mubr.bf16.gmra.mrb[0].mxu0 %v3545
          %v4057 = vpop.f32.mrb[0].mxu0
          %v4058 = vadd.f32 %v3581, %v4057
          %v4059 = vpop.f32.mrb[0].mxu0
          %v4060 = vpop.f32.mrb[0].mxu0
          %v4061 = vadd.f32 %v3581, %v4060
          %v4062 = vpop.f32.mrb[0].mxu0
          %4063 = vmatprep.mubr.bf16.mxu0 0
          %4064 = vmatmul.mubr.bf16.gmra.mrb[0].mxu0 %v3546
          %v4065 = vpop.f32.mrb[0].mxu0
          %v4066 = vadd.f32 %v3581, %v4065
          %v4067 = vpop.f32.mrb[0].mxu0
          %v4068 = vpop.f32.mrb[0].mxu0
          %v4069 = vadd.f32 %v3581, %v4068
          %v4070 = vpop.f32.mrb[0].mxu0
          %4071 = vmatprep.mubr.bf16.mxu0 0
          %4072 = vmatmul.mubr.bf16.gmra.mrb[0].mxu0 %v3547
          %v4073 = vpop.f32.mrb[0].mxu0
          %v4074 = vadd.f32 %v3581, %v4073
          %v4075 = vpop.f32.mrb[0].mxu0
          %v4076 = vpop.f32.mrb[0].mxu0
          %v4077 = vadd.f32 %v3581, %v4076
          %v4078 = vpop.f32.mrb[0].mxu0
          %4079 = vmatprep.mubr.bf16.mxu0 0
          %4080 = vmatmul.mubr.bf16.gmra.mrb[0].mxu0 %v3548
          %v4081 = vpop.f32.mrb[0].mxu0
          %v4082 = vadd.f32 %v3581, %v4081
          %v4083 = vpop.f32.mrb[0].mxu0
          %v4084 = vpop.f32.mrb[0].mxu0
          %v4085 = vadd.f32 %v3581, %v4084
          %v4086 = vpop.f32.mrb[0].mxu0
          %4087 = vmatprep.mubr.bf16.mxu0 0
          %4088 = vmatmul.mubr.bf16.gmra.mrb[0].mxu0 %v3549
          %v4089 = vpop.f32.mrb[0].mxu0
          %v4090 = vadd.f32 %v3581, %v4089
          %v4091 = vpop.f32.mrb[0].mxu0
          %v4092 = vpop.f32.mrb[0].mxu0
          %v4093 = vadd.f32 %v3581, %v4092
          %v4094 = vpop.f32.mrb[0].mxu0
          %4095 = vmatprep.mubr.bf16.mxu0 0
          %4096 = vmatmul.mubr.bf16.gmra.mrb[0].mxu0 %v3550
          %v4097 = vpop.f32.mrb[0].mxu0
          %v4098 = vadd.f32 %v3581, %v4097
          %v4099 = vpop.f32.mrb[0].mxu0
          %v4100 = vpop.f32.mrb[0].mxu0
          %v4101 = vadd.f32 %v3581, %v4100
          %v4102 = vpop.f32.mrb[0].mxu0
          %4103 = vmatprep.mubr.bf16.mxu0 0
          %4104 = vmatmul.mubr.bf16.gmra.mrb[0].mxu0 %v3551
          %v4105 = vpop.f32.mrb[0].mxu0
          %v4106 = vadd.f32 %v3581, %v4105
          %v4107 = vpop.f32.mrb[0].mxu0
          %v4108 = vpop.f32.mrb[0].mxu0
          %v4109 = vadd.f32 %v3581, %v4108
          %v4110 = vpop.f32.mrb[0].mxu0
          %4111 = vmatprep.mubr.bf16.mxu0 0
          %4112 = vmatmul.mubr.bf16.gmra.mrb[0].mxu0 %v3552
          %v4113 = vpop.f32.mrb[0].mxu0
          %v4114 = vadd.f32 %v3581, %v4113
          %v4115 = vpop.f32.mrb[0].mxu0
          %v4116 = vpop.f32.mrb[0].mxu0
          %v4117 = vadd.f32 %v3581, %v4116
          %v4118 = vpop.f32.mrb[0].mxu0
          %4119 = vmatprep.mubr.bf16.mxu0 0
          %4120 = vmatmul.mubr.bf16.gmra.mrb[0].mxu0 %v3553
          %v4121 = vpop.f32.mrb[0].mxu0
          %v4122 = vadd.f32 %v3581, %v4121
          %v4123 = vpop.f32.mrb[0].mxu0
          %v4124 = vpop.f32.mrb[0].mxu0
          %v4125 = vadd.f32 %v3581, %v4124
          %v4126 = vpop.f32.mrb[0].mxu0
          %4127 = vmatprep.mubr.bf16.mxu0 0
          %4128 = vmatmul.mubr.bf16.gmra.mrb[0].mxu0 %v3554
          %v4129 = vpop.f32.mrb[0].mxu0
          %v4130 = vadd.f32 %v3581, %v4129
          %v4131 = vpop.f32.mrb[0].mxu0
          %v4132 = vpop.f32.mrb[0].mxu0
          %v4133 = vadd.f32 %v3581, %v4132
          %v4134 = vpop.f32.mrb[0].mxu0
          %4135 = vmatprep.mubr.bf16.mxu0 0
          %4136 = vmatmul.mubr.bf16.gmra.mrb[0].mxu0 %v3555
          %v4137 = vpop.f32.mrb[0].mxu0
          %v4138 = vadd.f32 %v3581, %v4137
          %v4139 = vpop.f32.mrb[0].mxu0
          %v4140 = vpop.f32.mrb[0].mxu0
          %v4141 = vadd.f32 %v3581, %v4140
          %v4142 = vpop.f32.mrb[0].mxu0
          %4143 = vmatprep.mubr.bf16.mxu0 0
          %4144 = vmatmul.mubr.bf16.gmra.mrb[0].mxu0 %v3556
          %v4145 = vpop.f32.mrb[0].mxu0
          %v4146 = vadd.f32 %v3581, %v4145
          %v4147 = vpop.f32.mrb[0].mxu0
          %v4148 = vpop.f32.mrb[0].mxu0
          %v4149 = vadd.f32 %v3581, %v4148
          %v4150 = vpop.f32.mrb[0].mxu0
          %4151 = vmatprep.mubr.bf16.mxu0 0
          %4152 = vmatmul.mubr.bf16.gmra.mrb[0].mxu0 %v3557
          %v4153 = vpop.f32.mrb[0].mxu0
          %v4154 = vadd.f32 %v3581, %v4153
          %v4155 = vpop.f32.mrb[0].mxu0
          %v4156 = vpop.f32.mrb[0].mxu0
          %v4157 = vadd.f32 %v3581, %v4156
          %v4158 = vpop.f32.mrb[0].mxu0
          %4159 = vmatprep.mubr.bf16.mxu0 0
          %4160 = vmatmul.mubr.bf16.gmra.mrb[0].mxu0 %v3558
          %v4161 = vpop.f32.mrb[0].mxu0
          %v4162 = vadd.f32 %v3581, %v4161
          %v4163 = vpop.f32.mrb[0].mxu0
          %v4164 = vpop.f32.mrb[0].mxu0
          %v4165 = vadd.f32 %v3581, %v4164
          %v4166 = vpop.f32.mrb[0].mxu0
          %4167 = vmatprep.mubr.bf16.mxu0 0
          %4168 = vmatmul.mubr.bf16.gmra.mrb[0].mxu0 %v3559
          %v4169 = vpop.f32.mrb[0].mxu0
          %v4170 = vadd.f32 %v3581, %v4169
          %v4171 = vpop.f32.mrb[0].mxu0
          %v4172 = vpop.f32.mrb[0].mxu0
          %v4173 = vadd.f32 %v3581, %v4172
          %v4174 = vpop.f32.mrb[0].mxu0
          %4175 = vdwg.mxu0
          %v4176 = vmax.f32 %v3666, 0.0
          %v4177 = vmax.f32 %v3669, 0.0
          %v4178 = vmax.f32 %v3674, 0.0
          %v4179 = vmax.f32 %v3677, 0.0
          %v4180 = vmax.f32 %v3682, 0.0
          %v4181 = vmax.f32 %v3685, 0.0
          %v4182 = vmax.f32 %v3690, 0.0
          %v4183 = vmax.f32 %v3693, 0.0
          %v4184 = vmax.f32 %v3698, 0.0
          %v4185 = vmax.f32 %v3701, 0.0
          %v4186 = vmax.f32 %v3706, 0.0
          %v4187 = vmax.f32 %v3709, 0.0
          %v4188 = vmax.f32 %v3714, 0.0
          %v4189 = vmax.f32 %v3717, 0.0
          %v4190 = vmax.f32 %v3722, 0.0
          %v4191 = vmax.f32 %v3725, 0.0
          %v4192 = vmax.f32 %v3730, 0.0
          %v4193 = vmax.f32 %v3733, 0.0
          %v4194 = vmax.f32 %v3738, 0.0
          %v4195 = vmax.f32 %v3741, 0.0
          %v4196 = vmax.f32 %v3746, 0.0
          %v4197 = vmax.f32 %v3749, 0.0
          %v4198 = vmax.f32 %v3754, 0.0
          %v4199 = vmax.f32 %v3757, 0.0
          %v4200 = vmax.f32 %v3762, 0.0
          %v4201 = vmax.f32 %v3765, 0.0
          %v4202 = vmax.f32 %v3770, 0.0
          %v4203 = vmax.f32 %v3773, 0.0
          %v4204 = vmax.f32 %v3778, 0.0
          %v4205 = vmax.f32 %v3781, 0.0
          %v4206 = vmax.f32 %v3786, 0.0
          %v4207 = vmax.f32 %v3789, 0.0
          %v4208 = vmax.f32 %v3794, 0.0
          %v4209 = vmax.f32 %v3797, 0.0
          %v4210 = vmax.f32 %v3802, 0.0
          %v4211 = vmax.f32 %v3805, 0.0
          %v4212 = vmax.f32 %v3810, 0.0
          %v4213 = vmax.f32 %v3813, 0.0
          %v4214 = vmax.f32 %v3818, 0.0
          %v4215 = vmax.f32 %v3821, 0.0
          %v4216 = vmax.f32 %v3826, 0.0
          %v4217 = vmax.f32 %v3829, 0.0
          %v4218 = vmax.f32 %v3834, 0.0
          %v4219 = vmax.f32 %v3837, 0.0
          %v4220 = vmax.f32 %v3842, 0.0
          %v4221 = vmax.f32 %v3845, 0.0
          %v4222 = vmax.f32 %v3850, 0.0
          %v4223 = vmax.f32 %v3853, 0.0
          %v4224 = vmax.f32 %v3858, 0.0
          %v4225 = vmax.f32 %v3861, 0.0
          %v4226 = vmax.f32 %v3866, 0.0
          %v4227 = vmax.f32 %v3869, 0.0
          %v4228 = vmax.f32 %v3874, 0.0
          %v4229 = vmax.f32 %v3877, 0.0
          %v4230 = vmax.f32 %v3882, 0.0
          %v4231 = vmax.f32 %v3885, 0.0
          %v4232 = vmax.f32 %v3890, 0.0
          %v4233 = vmax.f32 %v3893, 0.0
          %v4234 = vmax.f32 %v3898, 0.0
          %v4235 = vmax.f32 %v3901, 0.0
          %v4236 = vmax.f32 %v3906, 0.0
          %v4237 = vmax.f32 %v3909, 0.0
          %v4238 = vmax.f32 %v3914, 0.0
          %v4239 = vmax.f32 %v3917, 0.0
          %v4240 = vmax.f32 %v3922, 0.0
          %v4241 = vmax.f32 %v3925, 0.0
          %v4242 = vmax.f32 %v3930, 0.0
          %v4243 = vmax.f32 %v3933, 0.0
          %v4244 = vmax.f32 %v3938, 0.0
          %v4245 = vmax.f32 %v3941, 0.0
          %v4246 = vmax.f32 %v3946, 0.0
          %v4247 = vmax.f32 %v3949, 0.0
          %v4248 = vmax.f32 %v3954, 0.0
          %v4249 = vmax.f32 %v3957, 0.0
          %v4250 = vmax.f32 %v3962, 0.0
          %v4251 = vmax.f32 %v3965, 0.0
          %v4252 = vmax.f32 %v3970, 0.0
          %v4253 = vmax.f32 %v3973, 0.0
          %v4254 = vmax.f32 %v3978, 0.0
          %v4255 = vmax.f32 %v3981, 0.0
          %v4256 = vmax.f32 %v3986, 0.0
          %v4257 = vmax.f32 %v3989, 0.0
          %v4258 = vmax.f32 %v3994, 0.0
          %v4259 = vmax.f32 %v3997, 0.0
          %v4260 = vmax.f32 %v4002, 0.0
          %v4261 = vmax.f32 %v4005, 0.0
          %v4262 = vmax.f32 %v4010, 0.0
          %v4263 = vmax.f32 %v4013, 0.0
          %v4264 = vmax.f32 %v4018, 0.0
          %v4265 = vmax.f32 %v4021, 0.0
          %v4266 = vmax.f32 %v4026, 0.0
          %v4267 = vmax.f32 %v4029, 0.0
          %v4268 = vmax.f32 %v4034, 0.0
          %v4269 = vmax.f32 %v4037, 0.0
          %v4270 = vmax.f32 %v4042, 0.0
          %v4271 = vmax.f32 %v4045, 0.0
          %v4272 = vmax.f32 %v4050, 0.0
          %v4273 = vmax.f32 %v4053, 0.0
          %v4274 = vmax.f32 %v4058, 0.0
          %v4275 = vmax.f32 %v4061, 0.0
          %v4276 = vmax.f32 %v4066, 0.0
          %v4277 = vmax.f32 %v4069, 0.0
          %v4278 = vmax.f32 %v4074, 0.0
          %v4279 = vmax.f32 %v4077, 0.0
          %v4280 = vmax.f32 %v4082, 0.0
          %v4281 = vmax.f32 %v4085, 0.0
          %v4282 = vmax.f32 %v4090, 0.0
          %v4283 = vmax.f32 %v4093, 0.0
          %v4284 = vmax.f32 %v4098, 0.0
          %v4285 = vmax.f32 %v4101, 0.0
          %v4286 = vmax.f32 %v4106, 0.0
          %v4287 = vmax.f32 %v4109, 0.0
          %v4288 = vmax.f32 %v4114, 0.0
          %v4289 = vmax.f32 %v4117, 0.0
          %v4290 = vmax.f32 %v4122, 0.0
          %v4291 = vmax.f32 %v4125, 0.0
          %v4292 = vmax.f32 %v4130, 0.0
          %v4293 = vmax.f32 %v4133, 0.0
          %v4294 = vmax.f32 %v4138, 0.0
          %v4295 = vmax.f32 %v4141, 0.0
          %v4296 = vmax.f32 %v4146, 0.0
          %v4297 = vmax.f32 %v4149, 0.0
          %v4298 = vmax.f32 %v4154, 0.0
          %v4299 = vmax.f32 %v4157, 0.0
          %v4300 = vmax.f32 %v4162, 0.0
          %v4301 = vmax.f32 %v4165, 0.0
          %v4302 = vmax.f32 %v4170, 0.0
          %v4303 = vmax.f32 %v4173, 0.0
          %v4304 = vsel %vm699, 1, 0
          %v4305 = vsel %vm700, 1, 0
          %v4306 = vsel %vm701, 1, 0
          %v4307 = vsel %vm702, 1, 0
          %v4308 = vsel %vm703, 1, 0
          %v4309 = vsel %vm704, 1, 0
          %v4310 = vsel %vm705, 1, 0
          %v4311 = vsel %vm706, 1, 0
          %v4312 = vsel %vm707, 1, 0
          %v4313 = vsel %vm708, 1, 0
          %v4314 = vsel %vm709, 1, 0
          %v4315 = vsel %vm710, 1, 0
          %v4316 = vsel %vm711, 1, 0
          %v4317 = vsel %vm712, 1, 0
          %v4318 = vsel %vm713, 1, 0
          %v4319 = vsel %vm714, 1, 0
          %v4320 = vsel %vm715, 1, 0
          %v4321 = vsel %vm716, 1, 0
          %v4322 = vsel %vm717, 1, 0
          %v4323 = vsel %vm718, 1, 0
          %v4324 = vsel %vm719, 1, 0
          %v4325 = vsel %vm720, 1, 0
          %v4326 = vsel %vm721, 1, 0
          %v4327 = vsel %vm722, 1, 0
          %v4328 = vsel %vm723, 1, 0
          %v4329 = vsel %vm724, 1, 0
          %v4330 = vsel %vm725, 1, 0
          %v4331 = vsel %vm726, 1, 0
          %v4332 = vsel %vm727, 1, 0
          %v4333 = vsel %vm728, 1, 0
          %v4334 = vsel %vm729, 1, 0
          %v4335 = vsel %vm730, 1, 0
          %v4336 = vsel %vm731, 1, 0
          %v4337 = vsel %vm732, 1, 0
          %v4338 = vsel %vm733, 1, 0
          %v4339 = vsel %vm734, 1, 0
          %v4340 = vsel %vm735, 1, 0
          %v4341 = vsel %vm736, 1, 0
          %v4342 = vsel %vm737, 1, 0
          %v4343 = vsel %vm738, 1, 0
          %v4344 = vsel %vm739, 1, 0
          %v4345 = vsel %vm740, 1, 0
          %v4346 = vsel %vm741, 1, 0
          %v4347 = vsel %vm742, 1, 0
          %v4348 = vsel %vm743, 1, 0
          %v4349 = vsel %vm744, 1, 0
          %v4350 = vsel %vm745, 1, 0
          %v4351 = vsel %vm746, 1, 0
          %v4352 = vsel %vm747, 1, 0
          %v4353 = vsel %vm748, 1, 0
          %v4354 = vsel %vm749, 1, 0
          %v4355 = vsel %vm750, 1, 0
          %v4356 = vsel %vm751, 1, 0
          %v4357 = vsel %vm752, 1, 0
          %v4358 = vsel %vm753, 1, 0
          %v4359 = vsel %vm754, 1, 0
          %v4360 = vsel %vm755, 1, 0
          %v4361 = vsel %vm756, 1, 0
          %v4362 = vsel %vm757, 1, 0
          %v4363 = vsel %vm758, 1, 0
          %v4364 = vsel %vm759, 1, 0
          %v4365 = vsel %vm760, 1, 0
          %v4366 = vsel %vm761, 1, 0
          %v4367 = vsel %vm762, 1, 0
          %v4368 = vsel %vm763, 1, 0
          %v4369 = vsel %vm764, 1, 0
          %v4370 = vsel %vm765, 1, 0
          %v4371 = vsel %vm766, 1, 0
          %v4372 = vsel %vm767, 1, 0
          %v4373 = vsel %vm768, 1, 0
          %v4374 = vsel %vm769, 1, 0
          %v4375 = vsel %vm770, 1, 0
          %v4376 = vsel %vm771, 1, 0
          %v4377 = vsel %vm772, 1, 0
          %v4378 = vsel %vm773, 1, 0
          %v4379 = vsel %vm774, 1, 0
          %v4380 = vsel %vm775, 1, 0
          %v4381 = vsel %vm776, 1, 0
          %v4382 = vsel %vm777, 1, 0
          %v4383 = vsel %vm778, 1, 0
          %v4384 = vsel %vm779, 1, 0
          %v4385 = vsel %vm780, 1, 0
          %v4386 = vsel %vm781, 1, 0
          %v4387 = vsel %vm782, 1, 0
          %v4388 = vsel %vm783, 1, 0
          %v4389 = vsel %vm784, 1, 0
          %v4390 = vsel %vm785, 1, 0
          %v4391 = vsel %vm786, 1, 0
          %v4392 = vsel %vm787, 1, 0
          %v4393 = vsel %vm788, 1, 0
          %v4394 = vsel %vm789, 1, 0
          %v4395 = vsel %vm790, 1, 0
          %v4396 = vsel %vm791, 1, 0
          %v4397 = vsel %vm792, 1, 0
          %v4398 = vsel %vm793, 1, 0
          %v4399 = vsel %vm794, 1, 0
          %v4400 = vsel %vm795, 1, 0
          %v4401 = vsel %vm796, 1, 0
          %v4402 = vsel %vm797, 1, 0
          %v4403 = vsel %vm798, 1, 0
          %v4404 = vsel %vm799, 1, 0
          %v4405 = vsel %vm800, 1, 0
          %v4406 = vsel %vm801, 1, 0
          %v4407 = vsel %vm802, 1, 0
          %v4408 = vsel %vm803, 1, 0
          %v4409 = vsel %vm804, 1, 0
          %v4410 = vsel %vm805, 1, 0
          %v4411 = vsel %vm806, 1, 0
          %v4412 = vsel %vm807, 1, 0
          %v4413 = vsel %vm808, 1, 0
          %v4414 = vsel %vm809, 1, 0
          %v4415 = vsel %vm810, 1, 0
          %v4416 = vsel %vm811, 1, 0
          %v4417 = vsel %vm812, 1, 0
          %v4418 = vsel %vm813, 1, 0
          %v4419 = vsel %vm814, 1, 0
          %v4420 = vsel %vm815, 1, 0
          %v4421 = vsel %vm816, 1, 0
          %v4422 = vsel %vm817, 1, 0
          %v4423 = vsel %vm818, 1, 0
          %v4424 = vsel %vm819, 1, 0
          %v4425 = vsel %vm820, 1, 0
          %v4426 = vsel %vm821, 1, 0
          %v4427 = vsel %vm822, 1, 0
          %v4428 = vsel %vm823, 1, 0
          %v4429 = vsel %vm824, 1, 0
          %v4430 = vsel %vm825, 1, 0
          %v4431 = vsel %vm826, 1, 0
          %vm4432 = vcmp.eq.s32.totalorder %v4304, 1
          %vm4433 = vcmp.eq.s32.totalorder %v4305, 1
          %vm4434 = vcmp.eq.s32.totalorder %v4306, 1
          %vm4435 = vcmp.eq.s32.totalorder %v4307, 1
          %vm4436 = vcmp.eq.s32.totalorder %v4308, 1
          %vm4437 = vcmp.eq.s32.totalorder %v4309, 1
          %vm4438 = vcmp.eq.s32.totalorder %v4310, 1
          %vm4439 = vcmp.eq.s32.totalorder %v4311, 1
          %vm4440 = vcmp.eq.s32.totalorder %v4312, 1
          %vm4441 = vcmp.eq.s32.totalorder %v4313, 1
          %vm4442 = vcmp.eq.s32.totalorder %v4314, 1
          %vm4443 = vcmp.eq.s32.totalorder %v4315, 1
          %vm4444 = vcmp.eq.s32.totalorder %v4316, 1
          %vm4445 = vcmp.eq.s32.totalorder %v4317, 1
          %vm4446 = vcmp.eq.s32.totalorder %v4318, 1
          %vm4447 = vcmp.eq.s32.totalorder %v4319, 1
          %vm4448 = vcmp.eq.s32.totalorder %v4320, 1
          %vm4449 = vcmp.eq.s32.totalorder %v4321, 1
          %vm4450 = vcmp.eq.s32.totalorder %v4322, 1
          %vm4451 = vcmp.eq.s32.totalorder %v4323, 1
          %vm4452 = vcmp.eq.s32.totalorder %v4324, 1
          %vm4453 = vcmp.eq.s32.totalorder %v4325, 1
          %vm4454 = vcmp.eq.s32.totalorder %v4326, 1
          %vm4455 = vcmp.eq.s32.totalorder %v4327, 1
          %vm4456 = vcmp.eq.s32.totalorder %v4328, 1
          %vm4457 = vcmp.eq.s32.totalorder %v4329, 1
          %vm4458 = vcmp.eq.s32.totalorder %v4330, 1
          %vm4459 = vcmp.eq.s32.totalorder %v4331, 1
          %vm4460 = vcmp.eq.s32.totalorder %v4332, 1
          %vm4461 = vcmp.eq.s32.totalorder %v4333, 1
          %vm4462 = vcmp.eq.s32.totalorder %v4334, 1
          %vm4463 = vcmp.eq.s32.totalorder %v4335, 1
          %vm4464 = vcmp.eq.s32.totalorder %v4336, 1
          %vm4465 = vcmp.eq.s32.totalorder %v4337, 1
          %vm4466 = vcmp.eq.s32.totalorder %v4338, 1
          %vm4467 = vcmp.eq.s32.totalorder %v4339, 1
          %vm4468 = vcmp.eq.s32.totalorder %v4340, 1
          %vm4469 = vcmp.eq.s32.totalorder %v4341, 1
          %vm4470 = vcmp.eq.s32.totalorder %v4342, 1
          %vm4471 = vcmp.eq.s32.totalorder %v4343, 1
          %vm4472 = vcmp.eq.s32.totalorder %v4344, 1
          %vm4473 = vcmp.eq.s32.totalorder %v4345, 1
          %vm4474 = vcmp.eq.s32.totalorder %v4346, 1
          %vm4475 = vcmp.eq.s32.totalorder %v4347, 1
          %vm4476 = vcmp.eq.s32.totalorder %v4348, 1
          %vm4477 = vcmp.eq.s32.totalorder %v4349, 1
          %vm4478 = vcmp.eq.s32.totalorder %v4350, 1
          %vm4479 = vcmp.eq.s32.totalorder %v4351, 1
          %vm4480 = vcmp.eq.s32.totalorder %v4352, 1
          %vm4481 = vcmp.eq.s32.totalorder %v4353, 1
          %vm4482 = vcmp.eq.s32.totalorder %v4354, 1
          %vm4483 = vcmp.eq.s32.totalorder %v4355, 1
          %vm4484 = vcmp.eq.s32.totalorder %v4356, 1
          %vm4485 = vcmp.eq.s32.totalorder %v4357, 1
          %vm4486 = vcmp.eq.s32.totalorder %v4358, 1
          %vm4487 = vcmp.eq.s32.totalorder %v4359, 1
          %vm4488 = vcmp.eq.s32.totalorder %v4360, 1
          %vm4489 = vcmp.eq.s32.totalorder %v4361, 1
          %vm4490 = vcmp.eq.s32.totalorder %v4362, 1
          %vm4491 = vcmp.eq.s32.totalorder %v4363, 1
          %vm4492 = vcmp.eq.s32.totalorder %v4364, 1
          %vm4493 = vcmp.eq.s32.totalorder %v4365, 1
          %vm4494 = vcmp.eq.s32.totalorder %v4366, 1
          %vm4495 = vcmp.eq.s32.totalorder %v4367, 1
          %vm4496 = vcmp.eq.s32.totalorder %v4368, 1
          %vm4497 = vcmp.eq.s32.totalorder %v4369, 1
          %vm4498 = vcmp.eq.s32.totalorder %v4370, 1
          %vm4499 = vcmp.eq.s32.totalorder %v4371, 1
          %vm4500 = vcmp.eq.s32.totalorder %v4372, 1
          %vm4501 = vcmp.eq.s32.totalorder %v4373, 1
          %vm4502 = vcmp.eq.s32.totalorder %v4374, 1
          %vm4503 = vcmp.eq.s32.totalorder %v4375, 1
          %vm4504 = vcmp.eq.s32.totalorder %v4376, 1
          %vm4505 = vcmp.eq.s32.totalorder %v4377, 1
          %vm4506 = vcmp.eq.s32.totalorder %v4378, 1
          %vm4507 = vcmp.eq.s32.totalorder %v4379, 1
          %vm4508 = vcmp.eq.s32.totalorder %v4380, 1
          %vm4509 = vcmp.eq.s32.totalorder %v4381, 1
          %vm4510 = vcmp.eq.s32.totalorder %v4382, 1
          %vm4511 = vcmp.eq.s32.totalorder %v4383, 1
          %vm4512 = vcmp.eq.s32.totalorder %v4384, 1
          %vm4513 = vcmp.eq.s32.totalorder %v4385, 1
          %vm4514 = vcmp.eq.s32.totalorder %v4386, 1
          %vm4515 = vcmp.eq.s32.totalorder %v4387, 1
          %vm4516 = vcmp.eq.s32.totalorder %v4388, 1
          %vm4517 = vcmp.eq.s32.totalorder %v4389, 1
          %vm4518 = vcmp.eq.s32.totalorder %v4390, 1
          %vm4519 = vcmp.eq.s32.totalorder %v4391, 1
          %vm4520 = vcmp.eq.s32.totalorder %v4392, 1
          %vm4521 = vcmp.eq.s32.totalorder %v4393, 1
          %vm4522 = vcmp.eq.s32.totalorder %v4394, 1
          %vm4523 = vcmp.eq.s32.totalorder %v4395, 1
          %vm4524 = vcmp.eq.s32.totalorder %v4396, 1
          %vm4525 = vcmp.eq.s32.totalorder %v4397, 1
          %vm4526 = vcmp.eq.s32.totalorder %v4398, 1
          %vm4527 = vcmp.eq.s32.totalorder %v4399, 1
          %vm4528 = vcmp.eq.s32.totalorder %v4400, 1
          %vm4529 = vcmp.eq.s32.totalorder %v4401, 1
          %vm4530 = vcmp.eq.s32.totalorder %v4402, 1
          %vm4531 = vcmp.eq.s32.totalorder %v4403, 1
          %vm4532 = vcmp.eq.s32.totalorder %v4404, 1
          %vm4533 = vcmp.eq.s32.totalorder %v4405, 1
          %vm4534 = vcmp.eq.s32.totalorder %v4406, 1
          %vm4535 = vcmp.eq.s32.totalorder %v4407, 1
          %vm4536 = vcmp.eq.s32.totalorder %v4408, 1
          %vm4537 = vcmp.eq.s32.totalorder %v4409, 1
          %vm4538 = vcmp.eq.s32.totalorder %v4410, 1
          %vm4539 = vcmp.eq.s32.totalorder %v4411, 1
          %vm4540 = vcmp.eq.s32.totalorder %v4412, 1
          %vm4541 = vcmp.eq.s32.totalorder %v4413, 1
          %vm4542 = vcmp.eq.s32.totalorder %v4414, 1
          %vm4543 = vcmp.eq.s32.totalorder %v4415, 1
          %vm4544 = vcmp.eq.s32.totalorder %v4416, 1
          %vm4545 = vcmp.eq.s32.totalorder %v4417, 1
          %vm4546 = vcmp.eq.s32.totalorder %v4418, 1
          %vm4547 = vcmp.eq.s32.totalorder %v4419, 1
          %vm4548 = vcmp.eq.s32.totalorder %v4420, 1
          %vm4549 = vcmp.eq.s32.totalorder %v4421, 1
          %vm4550 = vcmp.eq.s32.totalorder %v4422, 1
          %vm4551 = vcmp.eq.s32.totalorder %v4423, 1
          %vm4552 = vcmp.eq.s32.totalorder %v4424, 1
          %vm4553 = vcmp.eq.s32.totalorder %v4425, 1
          %vm4554 = vcmp.eq.s32.totalorder %v4426, 1
          %vm4555 = vcmp.eq.s32.totalorder %v4427, 1
          %vm4556 = vcmp.eq.s32.totalorder %v4428, 1
          %vm4557 = vcmp.eq.s32.totalorder %v4429, 1
          %vm4558 = vcmp.eq.s32.totalorder %v4430, 1
          %vm4559 = vcmp.eq.s32.totalorder %v4431, 1
          %v4560 = vsel %vm4432, %v4176, 0.0
          %v4561 = vsel %vm4433, %v4177, 0.0
          %v4562 = vsel %vm4434, %v4178, 0.0
          %v4563 = vsel %vm4435, %v4179, 0.0
          %v4564 = vsel %vm4436, %v4180, 0.0
          %v4565 = vsel %vm4437, %v4181, 0.0
          %v4566 = vsel %vm4438, %v4182, 0.0
          %v4567 = vsel %vm4439, %v4183, 0.0
          %v4568 = vsel %vm4440, %v4184, 0.0
          %v4569 = vsel %vm4441, %v4185, 0.0
          %v4570 = vsel %vm4442, %v4186, 0.0
          %v4571 = vsel %vm4443, %v4187, 0.0
          %v4572 = vsel %vm4444, %v4188, 0.0
          %v4573 = vsel %vm4445, %v4189, 0.0
          %v4574 = vsel %vm4446, %v4190, 0.0
          %v4575 = vsel %vm4447, %v4191, 0.0
          %v4576 = vsel %vm4448, %v4192, 0.0
          %v4577 = vsel %vm4449, %v4193, 0.0
          %v4578 = vsel %vm4450, %v4194, 0.0
          %v4579 = vsel %vm4451, %v4195, 0.0
          %v4580 = vsel %vm4452, %v4196, 0.0
          %v4581 = vsel %vm4453, %v4197, 0.0
          %v4582 = vsel %vm4454, %v4198, 0.0
          %v4583 = vsel %vm4455, %v4199, 0.0
          %v4584 = vsel %vm4456, %v4200, 0.0
          %v4585 = vsel %vm4457, %v4201, 0.0
          %v4586 = vsel %vm4458, %v4202, 0.0
          %v4587 = vsel %vm4459, %v4203, 0.0
          %v4588 = vsel %vm4460, %v4204, 0.0
          %v4589 = vsel %vm4461, %v4205, 0.0
          %v4590 = vsel %vm4462, %v4206, 0.0
          %v4591 = vsel %vm4463, %v4207, 0.0
          %v4592 = vsel %vm4464, %v4208, 0.0
          %v4593 = vsel %vm4465, %v4209, 0.0
          %v4594 = vsel %vm4466, %v4210, 0.0
          %v4595 = vsel %vm4467, %v4211, 0.0
          %v4596 = vsel %vm4468, %v4212, 0.0
          %v4597 = vsel %vm4469, %v4213, 0.0
          %v4598 = vsel %vm4470, %v4214, 0.0
          %v4599 = vsel %vm4471, %v4215, 0.0
          %v4600 = vsel %vm4472, %v4216, 0.0
          %v4601 = vsel %vm4473, %v4217, 0.0
          %v4602 = vsel %vm4474, %v4218, 0.0
          %v4603 = vsel %vm4475, %v4219, 0.0
          %v4604 = vsel %vm4476, %v4220, 0.0
          %v4605 = vsel %vm4477, %v4221, 0.0
          %v4606 = vsel %vm4478, %v4222, 0.0
          %v4607 = vsel %vm4479, %v4223, 0.0
          %v4608 = vsel %vm4480, %v4224, 0.0
          %v4609 = vsel %vm4481, %v4225, 0.0
          %v4610 = vsel %vm4482, %v4226, 0.0
          %v4611 = vsel %vm4483, %v4227, 0.0
          %v4612 = vsel %vm4484, %v4228, 0.0
          %v4613 = vsel %vm4485, %v4229, 0.0
          %v4614 = vsel %vm4486, %v4230, 0.0
          %v4615 = vsel %vm4487, %v4231, 0.0
          %v4616 = vsel %vm4488, %v4232, 0.0
          %v4617 = vsel %vm4489, %v4233, 0.0
          %v4618 = vsel %vm4490, %v4234, 0.0
          %v4619 = vsel %vm4491, %v4235, 0.0
          %v4620 = vsel %vm4492, %v4236, 0.0
          %v4621 = vsel %vm4493, %v4237, 0.0
          %v4622 = vsel %vm4494, %v4238, 0.0
          %v4623 = vsel %vm4495, %v4239, 0.0
          %v4624 = vsel %vm4496, %v4240, 0.0
          %v4625 = vsel %vm4497, %v4241, 0.0
          %v4626 = vsel %vm4498, %v4242, 0.0
          %v4627 = vsel %vm4499, %v4243, 0.0
          %v4628 = vsel %vm4500, %v4244, 0.0
          %v4629 = vsel %vm4501, %v4245, 0.0
          %v4630 = vsel %vm4502, %v4246, 0.0
          %v4631 = vsel %vm4503, %v4247, 0.0
          %v4632 = vsel %vm4504, %v4248, 0.0
          %v4633 = vsel %vm4505, %v4249, 0.0
          %v4634 = vsel %vm4506, %v4250, 0.0
          %v4635 = vsel %vm4507, %v4251, 0.0
          %v4636 = vsel %vm4508, %v4252, 0.0
          %v4637 = vsel %vm4509, %v4253, 0.0
          %v4638 = vsel %vm4510, %v4254, 0.0
          %v4639 = vsel %vm4511, %v4255, 0.0
          %v4640 = vsel %vm4512, %v4256, 0.0
          %v4641 = vsel %vm4513, %v4257, 0.0
          %v4642 = vsel %vm4514, %v4258, 0.0
          %v4643 = vsel %vm4515, %v4259, 0.0
          %v4644 = vsel %vm4516, %v4260, 0.0
          %v4645 = vsel %vm4517, %v4261, 0.0
          %v4646 = vsel %vm4518, %v4262, 0.0
          %v4647 = vsel %vm4519, %v4263, 0.0
          %v4648 = vsel %vm4520, %v4264, 0.0
          %v4649 = vsel %vm4521, %v4265, 0.0
          %v4650 = vsel %vm4522, %v4266, 0.0
          %v4651 = vsel %vm4523, %v4267, 0.0
          %v4652 = vsel %vm4524, %v4268, 0.0
          %v4653 = vsel %vm4525, %v4269, 0.0
          %v4654 = vsel %vm4526, %v4270, 0.0
          %v4655 = vsel %vm4527, %v4271, 0.0
          %v4656 = vsel %vm4528, %v4272, 0.0
          %v4657 = vsel %vm4529, %v4273, 0.0
          %v4658 = vsel %vm4530, %v4274, 0.0
          %v4659 = vsel %vm4531, %v4275, 0.0
          %v4660 = vsel %vm4532, %v4276, 0.0
          %v4661 = vsel %vm4533, %v4277, 0.0
          %v4662 = vsel %vm4534, %v4278, 0.0
          %v4663 = vsel %vm4535, %v4279, 0.0
          %v4664 = vsel %vm4536, %v4280, 0.0
          %v4665 = vsel %vm4537, %v4281, 0.0
          %v4666 = vsel %vm4538, %v4282, 0.0
          %v4667 = vsel %vm4539, %v4283, 0.0
          %v4668 = vsel %vm4540, %v4284, 0.0
          %v4669 = vsel %vm4541, %v4285, 0.0
          %v4670 = vsel %vm4542, %v4286, 0.0
          %v4671 = vsel %vm4543, %v4287, 0.0
          %v4672 = vsel %vm4544, %v4288, 0.0
          %v4673 = vsel %vm4545, %v4289, 0.0
          %v4674 = vsel %vm4546, %v4290, 0.0
          %v4675 = vsel %vm4547, %v4291, 0.0
          %v4676 = vsel %vm4548, %v4292, 0.0
          %v4677 = vsel %vm4549, %v4293, 0.0
          %v4678 = vsel %vm4550, %v4294, 0.0
          %v4679 = vsel %vm4551, %v4295, 0.0
          %v4680 = vsel %vm4552, %v4296, 0.0
          %v4681 = vsel %vm4553, %v4297, 0.0
          %v4682 = vsel %vm4554, %v4298, 0.0
          %v4683 = vsel %vm4555, %v4299, 0.0
          %v4684 = vsel %vm4556, %v4300, 0.0
          %v4685 = vsel %vm4557, %v4301, 0.0
          %v4686 = vsel %vm4558, %v4302, 0.0
          %v4687 = vsel %vm4559, %v4303, 0.0
          %v4688 = vld [vmem:[#allocation6] sm:$0x1]
          %v4689 = vadd.f32 %v4560, %v4561
          %v4690 = vadd.f32 %v4689, %v4562
          %v4691 = vadd.f32 %v4690, %v4563
          %v4692 = vadd.f32 %v4691, %v4564
          %v4693 = vadd.f32 %v4692, %v4565
          %v4694 = vadd.f32 %v4693, %v4566
          %v4695 = vadd.f32 %v4694, %v4567
          %v4696 = vadd.f32 %v4695, %v4568
          %v4697 = vadd.f32 %v4696, %v4569
          %v4698 = vadd.f32 %v4697, %v4570
          %v4699 = vadd.f32 %v4698, %v4571
          %v4700 = vadd.f32 %v4699, %v4572
          %v4701 = vadd.f32 %v4700, %v4573
          %v4702 = vadd.f32 %v4701, %v4574
          %v4703 = vadd.f32 %v4702, %v4575
          %v4704 = vadd.f32 %v4703, %v4576
          %v4705 = vadd.f32 %v4704, %v4577
          %v4706 = vadd.f32 %v4705, %v4578
          %v4707 = vadd.f32 %v4706, %v4579
          %v4708 = vadd.f32 %v4707, %v4580
          %v4709 = vadd.f32 %v4708, %v4581
          %v4710 = vadd.f32 %v4709, %v4582
          %v4711 = vadd.f32 %v4710, %v4583
          %v4712 = vadd.f32 %v4711, %v4584
          %v4713 = vadd.f32 %v4712, %v4585
          %v4714 = vadd.f32 %v4713, %v4586
          %v4715 = vadd.f32 %v4714, %v4587
          %v4716 = vadd.f32 %v4715, %v4588
          %v4717 = vadd.f32 %v4716, %v4589
          %v4718 = vadd.f32 %v4717, %v4590
          %v4719 = vadd.f32 %v4718, %v4591
          %v4720 = vadd.f32 %v4719, %v4592
          %v4721 = vadd.f32 %v4720, %v4593
          %v4722 = vadd.f32 %v4721, %v4594
          %v4723 = vadd.f32 %v4722, %v4595
          %v4724 = vadd.f32 %v4723, %v4596
          %v4725 = vadd.f32 %v4724, %v4597
          %v4726 = vadd.f32 %v4725, %v4598
          %v4727 = vadd.f32 %v4726, %v4599
          %v4728 = vadd.f32 %v4727, %v4600
          %v4729 = vadd.f32 %v4728, %v4601
          %v4730 = vadd.f32 %v4729, %v4602
          %v4731 = vadd.f32 %v4730, %v4603
          %v4732 = vadd.f32 %v4731, %v4604
          %v4733 = vadd.f32 %v4732, %v4605
          %v4734 = vadd.f32 %v4733, %v4606
          %v4735 = vadd.f32 %v4734, %v4607
          %v4736 = vadd.f32 %v4735, %v4608
          %v4737 = vadd.f32 %v4736, %v4609
          %v4738 = vadd.f32 %v4737, %v4610
          %v4739 = vadd.f32 %v4738, %v4611
          %v4740 = vadd.f32 %v4739, %v4612
          %v4741 = vadd.f32 %v4740, %v4613
          %v4742 = vadd.f32 %v4741, %v4614
          %v4743 = vadd.f32 %v4742, %v4615
          %v4744 = vadd.f32 %v4743, %v4616
          %v4745 = vadd.f32 %v4744, %v4617
          %v4746 = vadd.f32 %v4745, %v4618
          %v4747 = vadd.f32 %v4746, %v4619
          %v4748 = vadd.f32 %v4747, %v4620
          %v4749 = vadd.f32 %v4748, %v4621
          %v4750 = vadd.f32 %v4749, %v4622
          %v4751 = vadd.f32 %v4750, %v4623
          %v4752 = vadd.f32 %v4751, %v4624
          %v4753 = vadd.f32 %v4752, %v4625
          %v4754 = vadd.f32 %v4753, %v4626
          %v4755 = vadd.f32 %v4754, %v4627
          %v4756 = vadd.f32 %v4755, %v4628
          %v4757 = vadd.f32 %v4756, %v4629
          %v4758 = vadd.f32 %v4757, %v4630
          %v4759 = vadd.f32 %v4758, %v4631
          %v4760 = vadd.f32 %v4759, %v4632
          %v4761 = vadd.f32 %v4760, %v4633
          %v4762 = vadd.f32 %v4761, %v4634
          %v4763 = vadd.f32 %v4762, %v4635
          %v4764 = vadd.f32 %v4763, %v4636
          %v4765 = vadd.f32 %v4764, %v4637
          %v4766 = vadd.f32 %v4765, %v4638
          %v4767 = vadd.f32 %v4766, %v4639
          %v4768 = vadd.f32 %v4767, %v4640
          %v4769 = vadd.f32 %v4768, %v4641
          %v4770 = vadd.f32 %v4769, %v4642
          %v4771 = vadd.f32 %v4770, %v4643
          %v4772 = vadd.f32 %v4771, %v4644
          %v4773 = vadd.f32 %v4772, %v4645
          %v4774 = vadd.f32 %v4773, %v4646
          %v4775 = vadd.f32 %v4774, %v4647
          %v4776 = vadd.f32 %v4775, %v4648
          %v4777 = vadd.f32 %v4776, %v4649
          %v4778 = vadd.f32 %v4777, %v4650
          %v4779 = vadd.f32 %v4778, %v4651
          %v4780 = vadd.f32 %v4779, %v4652
          %v4781 = vadd.f32 %v4780, %v4653
          %v4782 = vadd.f32 %v4781, %v4654
          %v4783 = vadd.f32 %v4782, %v4655
          %v4784 = vadd.f32 %v4783, %v4656
          %v4785 = vadd.f32 %v4784, %v4657
          %v4786 = vadd.f32 %v4785, %v4658
          %v4787 = vadd.f32 %v4786, %v4659
          %v4788 = vadd.f32 %v4787, %v4660
          %v4789 = vadd.f32 %v4788, %v4661
          %v4790 = vadd.f32 %v4789, %v4662
          %v4791 = vadd.f32 %v4790, %v4663
          %v4792 = vadd.f32 %v4791, %v4664
          %v4793 = vadd.f32 %v4792, %v4665
          %v4794 = vadd.f32 %v4793, %v4666
          %v4795 = vadd.f32 %v4794, %v4667
          %v4796 = vadd.f32 %v4795, %v4668
          %v4797 = vadd.f32 %v4796, %v4669
          %v4798 = vadd.f32 %v4797, %v4670
          %v4799 = vadd.f32 %v4798, %v4671
          %v4800 = vadd.f32 %v4799, %v4672
          %v4801 = vadd.f32 %v4800, %v4673
          %v4802 = vadd.f32 %v4801, %v4674
          %v4803 = vadd.f32 %v4802, %v4675
          %v4804 = vadd.f32 %v4803, %v4676
          %v4805 = vadd.f32 %v4804, %v4677
          %v4806 = vadd.f32 %v4805, %v4678
          %v4807 = vadd.f32 %v4806, %v4679
          %v4808 = vadd.f32 %v4807, %v4680
          %v4809 = vadd.f32 %v4808, %v4681
          %v4810 = vadd.f32 %v4809, %v4682
          %v4811 = vadd.f32 %v4810, %v4683
          %v4812 = vadd.f32 %v4811, %v4684
          %v4813 = vadd.f32 %v4812, %v4685
          %v4814 = vadd.f32 %v4813, %v4686
          %v4815 = vadd.f32 %v4814, %v4687
          %v4816 = vrot.slane %v4815, 4
          %v4817 = vadd.f32 %v4815, %v4816
          %v4818 = vrot.slane %v4817, 2
          %v4819 = vadd.f32 %v4817, %v4818
          %v4820 = vrot.slane %v4819, 1
          %v4821 = vadd.f32 %v4819, %v4820
          %v4822 = vadd.f32 %v4688, %v4821
          %4823 = vst [vmem:[#allocation6] sm:$0x1] %v4822
          %v4824 = vld [vmem:[#allocation7] sm:$0x1]
          %v4825 = vmul.f32 %v4560, %v4560
          %v4826 = vmul.f32 %v4561, %v4561
          %v4827 = vmul.f32 %v4562, %v4562
          %v4828 = vmul.f32 %v4563, %v4563
          %v4829 = vmul.f32 %v4564, %v4564
          %v4830 = vmul.f32 %v4565, %v4565
          %v4831 = vmul.f32 %v4566, %v4566
          %v4832 = vmul.f32 %v4567, %v4567
          %v4833 = vmul.f32 %v4568, %v4568
          %v4834 = vmul.f32 %v4569, %v4569
          %v4835 = vmul.f32 %v4570, %v4570
          %v4836 = vmul.f32 %v4571, %v4571
          %v4837 = vmul.f32 %v4572, %v4572
          %v4838 = vmul.f32 %v4573, %v4573
          %v4839 = vmul.f32 %v4574, %v4574
          %v4840 = vmul.f32 %v4575, %v4575
          %v4841 = vmul.f32 %v4576, %v4576
          %v4842 = vmul.f32 %v4577, %v4577
          %v4843 = vmul.f32 %v4578, %v4578
          %v4844 = vmul.f32 %v4579, %v4579
          %v4845 = vmul.f32 %v4580, %v4580
          %v4846 = vmul.f32 %v4581, %v4581
          %v4847 = vmul.f32 %v4582, %v4582
          %v4848 = vmul.f32 %v4583, %v4583
          %v4849 = vmul.f32 %v4584, %v4584
          %v4850 = vmul.f32 %v4585, %v4585
          %v4851 = vmul.f32 %v4586, %v4586
          %v4852 = vmul.f32 %v4587, %v4587
          %v4853 = vmul.f32 %v4588, %v4588
          %v4854 = vmul.f32 %v4589, %v4589
          %v4855 = vmul.f32 %v4590, %v4590
          %v4856 = vmul.f32 %v4591, %v4591
          %v4857 = vmul.f32 %v4592, %v4592
          %v4858 = vmul.f32 %v4593, %v4593
          %v4859 = vmul.f32 %v4594, %v4594
          %v4860 = vmul.f32 %v4595, %v4595
          %v4861 = vmul.f32 %v4596, %v4596
          %v4862 = vmul.f32 %v4597, %v4597
          %v4863 = vmul.f32 %v4598, %v4598
          %v4864 = vmul.f32 %v4599, %v4599
          %v4865 = vmul.f32 %v4600, %v4600
          %v4866 = vmul.f32 %v4601, %v4601
          %v4867 = vmul.f32 %v4602, %v4602
          %v4868 = vmul.f32 %v4603, %v4603
          %v4869 = vmul.f32 %v4604, %v4604
          %v4870 = vmul.f32 %v4605, %v4605
          %v4871 = vmul.f32 %v4606, %v4606
          %v4872 = vmul.f32 %v4607, %v4607
          %v4873 = vmul.f32 %v4608, %v4608
          %v4874 = vmul.f32 %v4609, %v4609
          %v4875 = vmul.f32 %v4610, %v4610
          %v4876 = vmul.f32 %v4611, %v4611
          %v4877 = vmul.f32 %v4612, %v4612
          %v4878 = vmul.f32 %v4613, %v4613
          %v4879 = vmul.f32 %v4614, %v4614
          %v4880 = vmul.f32 %v4615, %v4615
          %v4881 = vmul.f32 %v4616, %v4616
          %v4882 = vmul.f32 %v4617, %v4617
          %v4883 = vmul.f32 %v4618, %v4618
          %v4884 = vmul.f32 %v4619, %v4619
          %v4885 = vmul.f32 %v4620, %v4620
          %v4886 = vmul.f32 %v4621, %v4621
          %v4887 = vmul.f32 %v4622, %v4622
          %v4888 = vmul.f32 %v4623, %v4623
          %v4889 = vmul.f32 %v4624, %v4624
          %v4890 = vmul.f32 %v4625, %v4625
          %v4891 = vmul.f32 %v4626, %v4626
          %v4892 = vmul.f32 %v4627, %v4627
          %v4893 = vmul.f32 %v4628, %v4628
          %v4894 = vmul.f32 %v4629, %v4629
          %v4895 = vmul.f32 %v4630, %v4630
          %v4896 = vmul.f32 %v4631, %v4631
          %v4897 = vmul.f32 %v4632, %v4632
          %v4898 = vmul.f32 %v4633, %v4633
          %v4899 = vmul.f32 %v4634, %v4634
          %v4900 = vmul.f32 %v4635, %v4635
          %v4901 = vmul.f32 %v4636, %v4636
          %v4902 = vmul.f32 %v4637, %v4637
          %v4903 = vmul.f32 %v4638, %v4638
          %v4904 = vmul.f32 %v4639, %v4639
          %v4905 = vmul.f32 %v4640, %v4640
          %v4906 = vmul.f32 %v4641, %v4641
          %v4907 = vmul.f32 %v4642, %v4642
          %v4908 = vmul.f32 %v4643, %v4643
          %v4909 = vmul.f32 %v4644, %v4644
          %v4910 = vmul.f32 %v4645, %v4645
          %v4911 = vmul.f32 %v4646, %v4646
          %v4912 = vmul.f32 %v4647, %v4647
          %v4913 = vmul.f32 %v4648, %v4648
          %v4914 = vmul.f32 %v4649, %v4649
          %v4915 = vmul.f32 %v4650, %v4650
          %v4916 = vmul.f32 %v4651, %v4651
          %v4917 = vmul.f32 %v4652, %v4652
          %v4918 = vmul.f32 %v4653, %v4653
          %v4919 = vmul.f32 %v4654, %v4654
          %v4920 = vmul.f32 %v4655, %v4655
          %v4921 = vmul.f32 %v4656, %v4656
          %v4922 = vmul.f32 %v4657, %v4657
          %v4923 = vmul.f32 %v4658, %v4658
          %v4924 = vmul.f32 %v4659, %v4659
          %v4925 = vmul.f32 %v4660, %v4660
          %v4926 = vmul.f32 %v4661, %v4661
          %v4927 = vmul.f32 %v4662, %v4662
          %v4928 = vmul.f32 %v4663, %v4663
          %v4929 = vmul.f32 %v4664, %v4664
          %v4930 = vmul.f32 %v4665, %v4665
          %v4931 = vmul.f32 %v4666, %v4666
          %v4932 = vmul.f32 %v4667, %v4667
          %v4933 = vmul.f32 %v4668, %v4668
          %v4934 = vmul.f32 %v4669, %v4669
          %v4935 = vmul.f32 %v4670, %v4670
          %v4936 = vmul.f32 %v4671, %v4671
          %v4937 = vmul.f32 %v4672, %v4672
          %v4938 = vmul.f32 %v4673, %v4673
          %v4939 = vmul.f32 %v4674, %v4674
          %v4940 = vmul.f32 %v4675, %v4675
          %v4941 = vmul.f32 %v4676, %v4676
          %v4942 = vmul.f32 %v4677, %v4677
          %v4943 = vmul.f32 %v4678, %v4678
          %v4944 = vmul.f32 %v4679, %v4679
          %v4945 = vmul.f32 %v4680, %v4680
          %v4946 = vmul.f32 %v4681, %v4681
          %v4947 = vmul.f32 %v4682, %v4682
          %v4948 = vmul.f32 %v4683, %v4683
          %v4949 = vmul.f32 %v4684, %v4684
          %v4950 = vmul.f32 %v4685, %v4685
          %v4951 = vmul.f32 %v4686, %v4686
          %v4952 = vmul.f32 %v4687, %v4687
          %v4953 = vadd.f32 %v4825, %v4826
          %v4954 = vadd.f32 %v4953, %v4827
          %v4955 = vadd.f32 %v4954, %v4828
          %v4956 = vadd.f32 %v4955, %v4829
          %v4957 = vadd.f32 %v4956, %v4830
          %v4958 = vadd.f32 %v4957, %v4831
          %v4959 = vadd.f32 %v4958, %v4832
          %v4960 = vadd.f32 %v4959, %v4833
          %v4961 = vadd.f32 %v4960, %v4834
          %v4962 = vadd.f32 %v4961, %v4835
          %v4963 = vadd.f32 %v4962, %v4836
          %v4964 = vadd.f32 %v4963, %v4837
          %v4965 = vadd.f32 %v4964, %v4838
          %v4966 = vadd.f32 %v4965, %v4839
          %v4967 = vadd.f32 %v4966, %v4840
          %v4968 = vadd.f32 %v4967, %v4841
          %v4969 = vadd.f32 %v4968, %v4842
          %v4970 = vadd.f32 %v4969, %v4843
          %v4971 = vadd.f32 %v4970, %v4844
          %v4972 = vadd.f32 %v4971, %v4845
          %v4973 = vadd.f32 %v4972, %v4846
          %v4974 = vadd.f32 %v4973, %v4847
          %v4975 = vadd.f32 %v4974, %v4848
          %v4976 = vadd.f32 %v4975, %v4849
          %v4977 = vadd.f32 %v4976, %v4850
          %v4978 = vadd.f32 %v4977, %v4851
          %v4979 = vadd.f32 %v4978, %v4852
          %v4980 = vadd.f32 %v4979, %v4853
          %v4981 = vadd.f32 %v4980, %v4854
          %v4982 = vadd.f32 %v4981, %v4855
          %v4983 = vadd.f32 %v4982, %v4856
          %v4984 = vadd.f32 %v4983, %v4857
          %v4985 = vadd.f32 %v4984, %v4858
          %v4986 = vadd.f32 %v4985, %v4859
          %v4987 = vadd.f32 %v4986, %v4860
          %v4988 = vadd.f32 %v4987, %v4861
          %v4989 = vadd.f32 %v4988, %v4862
          %v4990 = vadd.f32 %v4989, %v4863
          %v4991 = vadd.f32 %v4990, %v4864
          %v4992 = vadd.f32 %v4991, %v4865
          %v4993 = vadd.f32 %v4992, %v4866
          %v4994 = vadd.f32 %v4993, %v4867
          %v4995 = vadd.f32 %v4994, %v4868
          %v4996 = vadd.f32 %v4995, %v4869
          %v4997 = vadd.f32 %v4996, %v4870
          %v4998 = vadd.f32 %v4997, %v4871
          %v4999 = vadd.f32 %v4998, %v4872
          %v5000 = vadd.f32 %v4999, %v4873
          %v5001 = vadd.f32 %v5000, %v4874
          %v5002 = vadd.f32 %v5001, %v4875
          %v5003 = vadd.f32 %v5002, %v4876
          %v5004 = vadd.f32 %v5003, %v4877
          %v5005 = vadd.f32 %v5004, %v4878
          %v5006 = vadd.f32 %v5005, %v4879
          %v5007 = vadd.f32 %v5006, %v4880
          %v5008 = vadd.f32 %v5007, %v4881
          %v5009 = vadd.f32 %v5008, %v4882
          %v5010 = vadd.f32 %v5009, %v4883
          %v5011 = vadd.f32 %v5010, %v4884
          %v5012 = vadd.f32 %v5011, %v4885
          %v5013 = vadd.f32 %v5012, %v4886
          %v5014 = vadd.f32 %v5013, %v4887
          %v5015 = vadd.f32 %v5014, %v4888
          %v5016 = vadd.f32 %v5015, %v4889
          %v5017 = vadd.f32 %v5016, %v4890
          %v5018 = vadd.f32 %v5017, %v4891
          %v5019 = vadd.f32 %v5018, %v4892
          %v5020 = vadd.f32 %v5019, %v4893
          %v5021 = vadd.f32 %v5020, %v4894
          %v5022 = vadd.f32 %v5021, %v4895
          %v5023 = vadd.f32 %v5022, %v4896
          %v5024 = vadd.f32 %v5023, %v4897
          %v5025 = vadd.f32 %v5024, %v4898
          %v5026 = vadd.f32 %v5025, %v4899
          %v5027 = vadd.f32 %v5026, %v4900
          %v5028 = vadd.f32 %v5027, %v4901
          %v5029 = vadd.f32 %v5028, %v4902
          %v5030 = vadd.f32 %v5029, %v4903
          %v5031 = vadd.f32 %v5030, %v4904
          %v5032 = vadd.f32 %v5031, %v4905
          %v5033 = vadd.f32 %v5032, %v4906
          %v5034 = vadd.f32 %v5033, %v4907
          %v5035 = vadd.f32 %v5034, %v4908
          %v5036 = vadd.f32 %v5035, %v4909
          %v5037 = vadd.f32 %v5036, %v4910
          %v5038 = vadd.f32 %v5037, %v4911
          %v5039 = vadd.f32 %v5038, %v4912
          %v5040 = vadd.f32 %v5039, %v4913
          %v5041 = vadd.f32 %v5040, %v4914
          %v5042 = vadd.f32 %v5041, %v4915
          %v5043 = vadd.f32 %v5042, %v4916
          %v5044 = vadd.f32 %v5043, %v4917
          %v5045 = vadd.f32 %v5044, %v4918
          %v5046 = vadd.f32 %v5045, %v4919
          %v5047 = vadd.f32 %v5046, %v4920
          %v5048 = vadd.f32 %v5047, %v4921
          %v5049 = vadd.f32 %v5048, %v4922
          %v5050 = vadd.f32 %v5049, %v4923
          %v5051 = vadd.f32 %v5050, %v4924
          %v5052 = vadd.f32 %v5051, %v4925
          %v5053 = vadd.f32 %v5052, %v4926
          %v5054 = vadd.f32 %v5053, %v4927
          %v5055 = vadd.f32 %v5054, %v4928
          %v5056 = vadd.f32 %v5055, %v4929
          %v5057 = vadd.f32 %v5056, %v4930
          %v5058 = vadd.f32 %v5057, %v4931
          %v5059 = vadd.f32 %v5058, %v4932
          %v5060 = vadd.f32 %v5059, %v4933
          %v5061 = vadd.f32 %v5060, %v4934
          %v5062 = vadd.f32 %v5061, %v4935
          %v5063 = vadd.f32 %v5062, %v4936
          %v5064 = vadd.f32 %v5063, %v4937
          %v5065 = vadd.f32 %v5064, %v4938
          %v5066 = vadd.f32 %v5065, %v4939
          %v5067 = vadd.f32 %v5066, %v4940
          %v5068 = vadd.f32 %v5067, %v4941
          %v5069 = vadd.f32 %v5068, %v4942
          %v5070 = vadd.f32 %v5069, %v4943
          %v5071 = vadd.f32 %v5070, %v4944
          %v5072 = vadd.f32 %v5071, %v4945
          %v5073 = vadd.f32 %v5072, %v4946
          %v5074 = vadd.f32 %v5073, %v4947
          %v5075 = vadd.f32 %v5074, %v4948
          %v5076 = vadd.f32 %v5075, %v4949
          %v5077 = vadd.f32 %v5076, %v4950
          %v5078 = vadd.f32 %v5077, %v4951
          %v5079 = vadd.f32 %v5078, %v4952
          %v5080 = vrot.slane %v5079, 4
          %v5081 = vadd.f32 %v5079, %v5080
          %v5082 = vrot.slane %v5081, 2
          %v5083 = vadd.f32 %v5081, %v5082
          %v5084 = vrot.slane %v5083, 1
          %v5085 = vadd.f32 %v5083, %v5084
          %v5086 = vadd.f32 %v4824, %v5085
          %5087 = vst [vmem:[#allocation7] sm:$0x1] %v5086
          %s5088 = scalar_lea.vmem [#allocation3], %s440
          %5089 = vst [vmem:[%s5088] sm:$0xff] %v4176
          %5090 = vst [vmem:[%s5088 + $0x8] sm:$0xff] %v4177
          %5091 = vst [vmem:[%s5088 + $0x10] sm:$0xff] %v4178
          %5092 = vst [vmem:[%s5088 + $0x18] sm:$0xff] %v4179
          %5093 = vst [vmem:[%s5088 + $0x20] sm:$0xff] %v4180
          %5094 = vst [vmem:[%s5088 + $0x28] sm:$0xff] %v4181
          %5095 = vst [vmem:[%s5088 + $0x30] sm:$0xff] %v4182
          %5096 = vst [vmem:[%s5088 + $0x38] sm:$0xff] %v4183
          %5097 = vst [vmem:[%s5088 + $0x40] sm:$0xff] %v4184
          %5098 = vst [vmem:[%s5088 + $0x48] sm:$0xff] %v4185
          %5099 = vst [vmem:[%s5088 + $0x50] sm:$0xff] %v4186
          %5100 = vst [vmem:[%s5088 + $0x58] sm:$0xff] %v4187
          %5101 = vst [vmem:[%s5088 + $0x60] sm:$0xff] %v4188
          %5102 = vst [vmem:[%s5088 + $0x68] sm:$0xff] %v4189
          %5103 = vst [vmem:[%s5088 + $0x70] sm:$0xff] %v4190
          %5104 = vst [vmem:[%s5088 + $0x78] sm:$0xff] %v4191
          %5105 = vst [vmem:[%s5088 + $0x80] sm:$0xff] %v4192
          %5106 = vst [vmem:[%s5088 + $0x88] sm:$0xff] %v4193
          %5107 = vst [vmem:[%s5088 + $0x90] sm:$0xff] %v4194
          %5108 = vst [vmem:[%s5088 + $0x98] sm:$0xff] %v4195
          %5109 = vst [vmem:[%s5088 + $0xa0] sm:$0xff] %v4196
          %5110 = vst [vmem:[%s5088 + $0xa8] sm:$0xff] %v4197
          %5111 = vst [vmem:[%s5088 + $0xb0] sm:$0xff] %v4198
          %5112 = vst [vmem:[%s5088 + $0xb8] sm:$0xff] %v4199
          %5113 = vst [vmem:[%s5088 + $0xc0] sm:$0xff] %v4200
          %5114 = vst [vmem:[%s5088 + $0xc8] sm:$0xff] %v4201
          %5115 = vst [vmem:[%s5088 + $0xd0] sm:$0xff] %v4202
          %5116 = vst [vmem:[%s5088 + $0xd8] sm:$0xff] %v4203
          %5117 = vst [vmem:[%s5088 + $0xe0] sm:$0xff] %v4204
          %5118 = vst [vmem:[%s5088 + $0xe8] sm:$0xff] %v4205
          %5119 = vst [vmem:[%s5088 + $0xf0] sm:$0xff] %v4206
          %5120 = vst [vmem:[%s5088 + $0xf8] sm:$0xff] %v4207
          %5121 = vst [vmem:[%s5088 + $0x100] sm:$0xff] %v4208
          %5122 = vst [vmem:[%s5088 + $0x108] sm:$0xff] %v4209
          %5123 = vst [vmem:[%s5088 + $0x110] sm:$0xff] %v4210
          %5124 = vst [vmem:[%s5088 + $0x118] sm:$0xff] %v4211
          %5125 = vst [vmem:[%s5088 + $0x120] sm:$0xff] %v4212
          %5126 = vst [vmem:[%s5088 + $0x128] sm:$0xff] %v4213
          %5127 = vst [vmem:[%s5088 + $0x130] sm:$0xff] %v4214
          %5128 = vst [vmem:[%s5088 + $0x138] sm:$0xff] %v4215
          %5129 = vst [vmem:[%s5088 + $0x140] sm:$0xff] %v4216
          %5130 = vst [vmem:[%s5088 + $0x148] sm:$0xff] %v4217
          %5131 = vst [vmem:[%s5088 + $0x150] sm:$0xff] %v4218
          %5132 = vst [vmem:[%s5088 + $0x158] sm:$0xff] %v4219
          %5133 = vst [vmem:[%s5088 + $0x160] sm:$0xff] %v4220
          %5134 = vst [vmem:[%s5088 + $0x168] sm:$0xff] %v4221
          %5135 = vst [vmem:[%s5088 + $0x170] sm:$0xff] %v4222
          %5136 = vst [vmem:[%s5088 + $0x178] sm:$0xff] %v4223
          %5137 = vst [vmem:[%s5088 + $0x180] sm:$0xff] %v4224
          %5138 = vst [vmem:[%s5088 + $0x188] sm:$0xff] %v4225
          %5139 = vst [vmem:[%s5088 + $0x190] sm:$0xff] %v4226
          %5140 = vst [vmem:[%s5088 + $0x198] sm:$0xff] %v4227
          %5141 = vst [vmem:[%s5088 + $0x1a0] sm:$0xff] %v4228
          %5142 = vst [vmem:[%s5088 + $0x1a8] sm:$0xff] %v4229
          %5143 = vst [vmem:[%s5088 + $0x1b0] sm:$0xff] %v4230
          %5144 = vst [vmem:[%s5088 + $0x1b8] sm:$0xff] %v4231
          %5145 = vst [vmem:[%s5088 + $0x1c0] sm:$0xff] %v4232
          %5146 = vst [vmem:[%s5088 + $0x1c8] sm:$0xff] %v4233
          %5147 = vst [vmem:[%s5088 + $0x1d0] sm:$0xff] %v4234
          %5148 = vst [vmem:[%s5088 + $0x1d8] sm:$0xff] %v4235
          %5149 = vst [vmem:[%s5088 + $0x1e0] sm:$0xff] %v4236
          %5150 = vst [vmem:[%s5088 + $0x1e8] sm:$0xff] %v4237
          %5151 = vst [vmem:[%s5088 + $0x1f0] sm:$0xff] %v4238
          %5152 = vst [vmem:[%s5088 + $0x1f8] sm:$0xff] %v4239
          %5153 = vst [vmem:[%s5088 + $0x200] sm:$0xff] %v4240
          %5154 = vst [vmem:[%s5088 + $0x208] sm:$0xff] %v4241
          %5155 = vst [vmem:[%s5088 + $0x210] sm:$0xff] %v4242
          %5156 = vst [vmem:[%s5088 + $0x218] sm:$0xff] %v4243
          %5157 = vst [vmem:[%s5088 + $0x220] sm:$0xff] %v4244
          %5158 = vst [vmem:[%s5088 + $0x228] sm:$0xff] %v4245
          %5159 = vst [vmem:[%s5088 + $0x230] sm:$0xff] %v4246
          %5160 = vst [vmem:[%s5088 + $0x238] sm:$0xff] %v4247
          %5161 = vst [vmem:[%s5088 + $0x240] sm:$0xff] %v4248
          %5162 = vst [vmem:[%s5088 + $0x248] sm:$0xff] %v4249
          %5163 = vst [vmem:[%s5088 + $0x250] sm:$0xff] %v4250
          %5164 = vst [vmem:[%s5088 + $0x258] sm:$0xff] %v4251
          %5165 = vst [vmem:[%s5088 + $0x260] sm:$0xff] %v4252
          %5166 = vst [vmem:[%s5088 + $0x268] sm:$0xff] %v4253
          %5167 = vst [vmem:[%s5088 + $0x270] sm:$0xff] %v4254
          %5168 = vst [vmem:[%s5088 + $0x278] sm:$0xff] %v4255
          %5169 = vst [vmem:[%s5088 + $0x280] sm:$0xff] %v4256
          %5170 = vst [vmem:[%s5088 + $0x288] sm:$0xff] %v4257
          %5171 = vst [vmem:[%s5088 + $0x290] sm:$0xff] %v4258
          %5172 = vst [vmem:[%s5088 + $0x298] sm:$0xff] %v4259
          %5173 = vst [vmem:[%s5088 + $0x2a0] sm:$0xff] %v4260
          %5174 = vst [vmem:[%s5088 + $0x2a8] sm:$0xff] %v4261
          %5175 = vst [vmem:[%s5088 + $0x2b0] sm:$0xff] %v4262
          %5176 = vst [vmem:[%s5088 + $0x2b8] sm:$0xff] %v4263
          %5177 = vst [vmem:[%s5088 + $0x2c0] sm:$0xff] %v4264
          %5178 = vst [vmem:[%s5088 + $0x2c8] sm:$0xff] %v4265
          %5179 = vst [vmem:[%s5088 + $0x2d0] sm:$0xff] %v4266
          %5180 = vst [vmem:[%s5088 + $0x2d8] sm:$0xff] %v4267
          %5181 = vst [vmem:[%s5088 + $0x2e0] sm:$0xff] %v4268
          %5182 = vst [vmem:[%s5088 + $0x2e8] sm:$0xff] %v4269
          %5183 = vst [vmem:[%s5088 + $0x2f0] sm:$0xff] %v4270
          %5184 = vst [vmem:[%s5088 + $0x2f8] sm:$0xff] %v4271
          %5185 = vst [vmem:[%s5088 + $0x300] sm:$0xff] %v4272
          %5186 = vst [vmem:[%s5088 + $0x308] sm:$0xff] %v4273
          %5187 = vst [vmem:[%s5088 + $0x310] sm:$0xff] %v4274
          %5188 = vst [vmem:[%s5088 + $0x318] sm:$0xff] %v4275
          %5189 = vst [vmem:[%s5088 + $0x320] sm:$0xff] %v4276
          %5190 = vst [vmem:[%s5088 + $0x328] sm:$0xff] %v4277
          %5191 = vst [vmem:[%s5088 + $0x330] sm:$0xff] %v4278
          %5192 = vst [vmem:[%s5088 + $0x338] sm:$0xff] %v4279
          %5193 = vst [vmem:[%s5088 + $0x340] sm:$0xff] %v4280
          %5194 = vst [vmem:[%s5088 + $0x348] sm:$0xff] %v4281
          %5195 = vst [vmem:[%s5088 + $0x350] sm:$0xff] %v4282
          %5196 = vst [vmem:[%s5088 + $0x358] sm:$0xff] %v4283
          %5197 = vst [vmem:[%s5088 + $0x360] sm:$0xff] %v4284
          %5198 = vst [vmem:[%s5088 + $0x368] sm:$0xff] %v4285
          %5199 = vst [vmem:[%s5088 + $0x370] sm:$0xff] %v4286
          %5200 = vst [vmem:[%s5088 + $0x378] sm:$0xff] %v4287
          %5201 = vst [vmem:[%s5088 + $0x380] sm:$0xff] %v4288
          %5202 = vst [vmem:[%s5088 + $0x388] sm:$0xff] %v4289
          %5203 = vst [vmem:[%s5088 + $0x390] sm:$0xff] %v4290
          %5204 = vst [vmem:[%s5088 + $0x398] sm:$0xff] %v4291
          %5205 = vst [vmem:[%s5088 + $0x3a0] sm:$0xff] %v4292
          %5206 = vst [vmem:[%s5088 + $0x3a8] sm:$0xff] %v4293
          %5207 = vst [vmem:[%s5088 + $0x3b0] sm:$0xff] %v4294
          %5208 = vst [vmem:[%s5088 + $0x3b8] sm:$0xff] %v4295
          %5209 = vst [vmem:[%s5088 + $0x3c0] sm:$0xff] %v4296
          %5210 = vst [vmem:[%s5088 + $0x3c8] sm:$0xff] %v4297
          %5211 = vst [vmem:[%s5088 + $0x3d0] sm:$0xff] %v4298
          %5212 = vst [vmem:[%s5088 + $0x3d8] sm:$0xff] %v4299
          %5213 = vst [vmem:[%s5088 + $0x3e0] sm:$0xff] %v4300
          %5214 = vst [vmem:[%s5088 + $0x3e8] sm:$0xff] %v4301
          %5215 = vst [vmem:[%s5088 + $0x3f0] sm:$0xff] %v4302
          %5216 = vst [vmem:[%s5088 + $0x3f8] sm:$0xff] %v4303
        $region76: #{tpu_custom_call.1} parent=63 // pred_fallthru
          _
        %p5217 = scmp.eq.s32.totalorder %s29, 2
        // Predicated region
        $region77: #{tpu_custom_call.1} parent=63 // pred_check
          %p5218 = pneg %p5217
        $region78: #{tpu_custom_call.1} parent=63 // pred_check_branch
          %5220 = sbr.rel (%p5218) target = $region80
        $region79: #{tpu_custom_call.1} parent=63 // pred_region
          %s5221 = scalar_lea.vmem [#allocation3], %s440
          %v5222 = vld [vmem:[%s5221] sm:$0xff]
          %v5223 = vld [vmem:[%s5221 + $0x8] sm:$0xff]
          %v5224 = vld [vmem:[%s5221 + $0x10] sm:$0xff]
          %v5225 = vld [vmem:[%s5221 + $0x18] sm:$0xff]
          %v5226 = vld [vmem:[%s5221 + $0x20] sm:$0xff]
          %v5227 = vld [vmem:[%s5221 + $0x28] sm:$0xff]
          %v5228 = vld [vmem:[%s5221 + $0x30] sm:$0xff]
          %v5229 = vld [vmem:[%s5221 + $0x38] sm:$0xff]
          %v5230 = vld [vmem:[%s5221 + $0x40] sm:$0xff]
          %v5231 = vld [vmem:[%s5221 + $0x48] sm:$0xff]
          %v5232 = vld [vmem:[%s5221 + $0x50] sm:$0xff]
          %v5233 = vld [vmem:[%s5221 + $0x58] sm:$0xff]
          %v5234 = vld [vmem:[%s5221 + $0x60] sm:$0xff]
          %v5235 = vld [vmem:[%s5221 + $0x68] sm:$0xff]
          %v5236 = vld [vmem:[%s5221 + $0x70] sm:$0xff]
          %v5237 = vld [vmem:[%s5221 + $0x78] sm:$0xff]
          %v5238 = vld [vmem:[%s5221 + $0x80] sm:$0xff]
          %v5239 = vld [vmem:[%s5221 + $0x88] sm:$0xff]
          %v5240 = vld [vmem:[%s5221 + $0x90] sm:$0xff]
          %v5241 = vld [vmem:[%s5221 + $0x98] sm:$0xff]
          %v5242 = vld [vmem:[%s5221 + $0xa0] sm:$0xff]
          %v5243 = vld [vmem:[%s5221 + $0xa8] sm:$0xff]
          %v5244 = vld [vmem:[%s5221 + $0xb0] sm:$0xff]
          %v5245 = vld [vmem:[%s5221 + $0xb8] sm:$0xff]
          %v5246 = vld [vmem:[%s5221 + $0xc0] sm:$0xff]
          %v5247 = vld [vmem:[%s5221 + $0xc8] sm:$0xff]
          %v5248 = vld [vmem:[%s5221 + $0xd0] sm:$0xff]
          %v5249 = vld [vmem:[%s5221 + $0xd8] sm:$0xff]
          %v5250 = vld [vmem:[%s5221 + $0xe0] sm:$0xff]
          %v5251 = vld [vmem:[%s5221 + $0xe8] sm:$0xff]
          %v5252 = vld [vmem:[%s5221 + $0xf0] sm:$0xff]
          %v5253 = vld [vmem:[%s5221 + $0xf8] sm:$0xff]
          %v5254 = vld [vmem:[%s5221 + $0x100] sm:$0xff]
          %v5255 = vld [vmem:[%s5221 + $0x108] sm:$0xff]
          %v5256 = vld [vmem:[%s5221 + $0x110] sm:$0xff]
          %v5257 = vld [vmem:[%s5221 + $0x118] sm:$0xff]
          %v5258 = vld [vmem:[%s5221 + $0x120] sm:$0xff]
          %v5259 = vld [vmem:[%s5221 + $0x128] sm:$0xff]
          %v5260 = vld [vmem:[%s5221 + $0x130] sm:$0xff]
          %v5261 = vld [vmem:[%s5221 + $0x138] sm:$0xff]
          %v5262 = vld [vmem:[%s5221 + $0x140] sm:$0xff]
          %v5263 = vld [vmem:[%s5221 + $0x148] sm:$0xff]
          %v5264 = vld [vmem:[%s5221 + $0x150] sm:$0xff]
          %v5265 = vld [vmem:[%s5221 + $0x158] sm:$0xff]
          %v5266 = vld [vmem:[%s5221 + $0x160] sm:$0xff]
          %v5267 = vld [vmem:[%s5221 + $0x168] sm:$0xff]
          %v5268 = vld [vmem:[%s5221 + $0x170] sm:$0xff]
          %v5269 = vld [vmem:[%s5221 + $0x178] sm:$0xff]
          %v5270 = vld [vmem:[%s5221 + $0x180] sm:$0xff]
          %v5271 = vld [vmem:[%s5221 + $0x188] sm:$0xff]
          %v5272 = vld [vmem:[%s5221 + $0x190] sm:$0xff]
          %v5273 = vld [vmem:[%s5221 + $0x198] sm:$0xff]
          %v5274 = vld [vmem:[%s5221 + $0x1a0] sm:$0xff]
          %v5275 = vld [vmem:[%s5221 + $0x1a8] sm:$0xff]
          %v5276 = vld [vmem:[%s5221 + $0x1b0] sm:$0xff]
          %v5277 = vld [vmem:[%s5221 + $0x1b8] sm:$0xff]
          %v5278 = vld [vmem:[%s5221 + $0x1c0] sm:$0xff]
          %v5279 = vld [vmem:[%s5221 + $0x1c8] sm:$0xff]
          %v5280 = vld [vmem:[%s5221 + $0x1d0] sm:$0xff]
          %v5281 = vld [vmem:[%s5221 + $0x1d8] sm:$0xff]
          %v5282 = vld [vmem:[%s5221 + $0x1e0] sm:$0xff]
          %v5283 = vld [vmem:[%s5221 + $0x1e8] sm:$0xff]
          %v5284 = vld [vmem:[%s5221 + $0x1f0] sm:$0xff]
          %v5285 = vld [vmem:[%s5221 + $0x1f8] sm:$0xff]
          %v5286 = vld [vmem:[%s5221 + $0x200] sm:$0xff]
          %v5287 = vld [vmem:[%s5221 + $0x208] sm:$0xff]
          %v5288 = vld [vmem:[%s5221 + $0x210] sm:$0xff]
          %v5289 = vld [vmem:[%s5221 + $0x218] sm:$0xff]
          %v5290 = vld [vmem:[%s5221 + $0x220] sm:$0xff]
          %v5291 = vld [vmem:[%s5221 + $0x228] sm:$0xff]
          %v5292 = vld [vmem:[%s5221 + $0x230] sm:$0xff]
          %v5293 = vld [vmem:[%s5221 + $0x238] sm:$0xff]
          %v5294 = vld [vmem:[%s5221 + $0x240] sm:$0xff]
          %v5295 = vld [vmem:[%s5221 + $0x248] sm:$0xff]
          %v5296 = vld [vmem:[%s5221 + $0x250] sm:$0xff]
          %v5297 = vld [vmem:[%s5221 + $0x258] sm:$0xff]
          %v5298 = vld [vmem:[%s5221 + $0x260] sm:$0xff]
          %v5299 = vld [vmem:[%s5221 + $0x268] sm:$0xff]
          %v5300 = vld [vmem:[%s5221 + $0x270] sm:$0xff]
          %v5301 = vld [vmem:[%s5221 + $0x278] sm:$0xff]
          %v5302 = vld [vmem:[%s5221 + $0x280] sm:$0xff]
          %v5303 = vld [vmem:[%s5221 + $0x288] sm:$0xff]
          %v5304 = vld [vmem:[%s5221 + $0x290] sm:$0xff]
          %v5305 = vld [vmem:[%s5221 + $0x298] sm:$0xff]
          %v5306 = vld [vmem:[%s5221 + $0x2a0] sm:$0xff]
          %v5307 = vld [vmem:[%s5221 + $0x2a8] sm:$0xff]
          %v5308 = vld [vmem:[%s5221 + $0x2b0] sm:$0xff]
          %v5309 = vld [vmem:[%s5221 + $0x2b8] sm:$0xff]
          %v5310 = vld [vmem:[%s5221 + $0x2c0] sm:$0xff]
          %v5311 = vld [vmem:[%s5221 + $0x2c8] sm:$0xff]
          %v5312 = vld [vmem:[%s5221 + $0x2d0] sm:$0xff]
          %v5313 = vld [vmem:[%s5221 + $0x2d8] sm:$0xff]
          %v5314 = vld [vmem:[%s5221 + $0x2e0] sm:$0xff]
          %v5315 = vld [vmem:[%s5221 + $0x2e8] sm:$0xff]
          %v5316 = vld [vmem:[%s5221 + $0x2f0] sm:$0xff]
          %v5317 = vld [vmem:[%s5221 + $0x2f8] sm:$0xff]
          %v5318 = vld [vmem:[%s5221 + $0x300] sm:$0xff]
          %v5319 = vld [vmem:[%s5221 + $0x308] sm:$0xff]
          %v5320 = vld [vmem:[%s5221 + $0x310] sm:$0xff]
          %v5321 = vld [vmem:[%s5221 + $0x318] sm:$0xff]
          %v5322 = vld [vmem:[%s5221 + $0x320] sm:$0xff]
          %v5323 = vld [vmem:[%s5221 + $0x328] sm:$0xff]
          %v5324 = vld [vmem:[%s5221 + $0x330] sm:$0xff]
          %v5325 = vld [vmem:[%s5221 + $0x338] sm:$0xff]
          %v5326 = vld [vmem:[%s5221 + $0x340] sm:$0xff]
          %v5327 = vld [vmem:[%s5221 + $0x348] sm:$0xff]
          %v5328 = vld [vmem:[%s5221 + $0x350] sm:$0xff]
          %v5329 = vld [vmem:[%s5221 + $0x358] sm:$0xff]
          %v5330 = vld [vmem:[%s5221 + $0x360] sm:$0xff]
          %v5331 = vld [vmem:[%s5221 + $0x368] sm:$0xff]
          %v5332 = vld [vmem:[%s5221 + $0x370] sm:$0xff]
          %v5333 = vld [vmem:[%s5221 + $0x378] sm:$0xff]
          %v5334 = vld [vmem:[%s5221 + $0x380] sm:$0xff]
          %v5335 = vld [vmem:[%s5221 + $0x388] sm:$0xff]
          %v5336 = vld [vmem:[%s5221 + $0x390] sm:$0xff]
          %v5337 = vld [vmem:[%s5221 + $0x398] sm:$0xff]
          %v5338 = vld [vmem:[%s5221 + $0x3a0] sm:$0xff]
          %v5339 = vld [vmem:[%s5221 + $0x3a8] sm:$0xff]
          %v5340 = vld [vmem:[%s5221 + $0x3b0] sm:$0xff]
          %v5341 = vld [vmem:[%s5221 + $0x3b8] sm:$0xff]
          %v5342 = vld [vmem:[%s5221 + $0x3c0] sm:$0xff]
          %v5343 = vld [vmem:[%s5221 + $0x3c8] sm:$0xff]
          %v5344 = vld [vmem:[%s5221 + $0x3d0] sm:$0xff]
          %v5345 = vld [vmem:[%s5221 + $0x3d8] sm:$0xff]
          %v5346 = vld [vmem:[%s5221 + $0x3e0] sm:$0xff]
          %v5347 = vld [vmem:[%s5221 + $0x3e8] sm:$0xff]
          %v5348 = vld [vmem:[%s5221 + $0x3f0] sm:$0xff]
          %v5349 = vld [vmem:[%s5221 + $0x3f8] sm:$0xff]
          %v5350 = vld [vmem:[#allocation6] sm:$0x1]
          %v5351 = vmul.f32 %v5350, 0.0004
          %v5352 = vld [vmem:[#allocation7] sm:$0x1]
          %v5353 = vmul.f32 %v5352, 0.0004
          %v5354 = vmul.f32 %v5351, %v5351
          %v5355 = vsub.f32 %v5353, %v5354
          %v5356 = vmax.f32 %v5355, 0.0
          %v5357 = vadd.f32 %v5356, 1e-05
          %v5358 = vrsqrt.pop %v5357
          %v5359 = vld [vmem:[%s7] sm:$0x1]
          %v5360 = vmul.f32 %v5358, %v5359
          %v5362 = vlaneseq
          %v5363 = vshrl.u32 %v5362, 7
          %v5364 = vsub.s32 0, %v5363
          %v5365 = vrot.slane %v5360, %v5364
          %v5367 = vmul.f32 %v5222, %v5365
          %v5368 = vmul.f32 %v5223, %v5365
          %v5369 = vmul.f32 %v5224, %v5365
          %v5370 = vmul.f32 %v5225, %v5365
          %v5371 = vmul.f32 %v5226, %v5365
          %v5372 = vmul.f32 %v5227, %v5365
          %v5373 = vmul.f32 %v5228, %v5365
          %v5374 = vmul.f32 %v5229, %v5365
          %v5375 = vmul.f32 %v5230, %v5365
          %v5376 = vmul.f32 %v5231, %v5365
          %v5377 = vmul.f32 %v5232, %v5365
          %v5378 = vmul.f32 %v5233, %v5365
          %v5379 = vmul.f32 %v5234, %v5365
          %v5380 = vmul.f32 %v5235, %v5365
          %v5381 = vmul.f32 %v5236, %v5365
          %v5382 = vmul.f32 %v5237, %v5365
          %v5383 = vmul.f32 %v5238, %v5365
          %v5384 = vmul.f32 %v5239, %v5365
          %v5385 = vmul.f32 %v5240, %v5365
          %v5386 = vmul.f32 %v5241, %v5365
          %v5387 = vmul.f32 %v5242, %v5365
          %v5388 = vmul.f32 %v5243, %v5365
          %v5389 = vmul.f32 %v5244, %v5365
          %v5390 = vmul.f32 %v5245, %v5365
          %v5391 = vmul.f32 %v5246, %v5365
          %v5392 = vmul.f32 %v5247, %v5365
          %v5393 = vmul.f32 %v5248, %v5365
          %v5394 = vmul.f32 %v5249, %v5365
          %v5395 = vmul.f32 %v5250, %v5365
          %v5396 = vmul.f32 %v5251, %v5365
          %v5397 = vmul.f32 %v5252, %v5365
          %v5398 = vmul.f32 %v5253, %v5365
          %v5399 = vmul.f32 %v5254, %v5365
          %v5400 = vmul.f32 %v5255, %v5365
          %v5401 = vmul.f32 %v5256, %v5365
          %v5402 = vmul.f32 %v5257, %v5365
          %v5403 = vmul.f32 %v5258, %v5365
          %v5404 = vmul.f32 %v5259, %v5365
          %v5405 = vmul.f32 %v5260, %v5365
          %v5406 = vmul.f32 %v5261, %v5365
          %v5407 = vmul.f32 %v5262, %v5365
          %v5408 = vmul.f32 %v5263, %v5365
          %v5409 = vmul.f32 %v5264, %v5365
          %v5410 = vmul.f32 %v5265, %v5365
          %v5411 = vmul.f32 %v5266, %v5365
          %v5412 = vmul.f32 %v5267, %v5365
          %v5413 = vmul.f32 %v5268, %v5365
          %v5414 = vmul.f32 %v5269, %v5365
          %v5415 = vmul.f32 %v5270, %v5365
          %v5416 = vmul.f32 %v5271, %v5365
          %v5417 = vmul.f32 %v5272, %v5365
          %v5418 = vmul.f32 %v5273, %v5365
          %v5419 = vmul.f32 %v5274, %v5365
          %v5420 = vmul.f32 %v5275, %v5365
          %v5421 = vmul.f32 %v5276, %v5365
          %v5422 = vmul.f32 %v5277, %v5365
          %v5423 = vmul.f32 %v5278, %v5365
          %v5424 = vmul.f32 %v5279, %v5365
          %v5425 = vmul.f32 %v5280, %v5365
          %v5426 = vmul.f32 %v5281, %v5365
          %v5427 = vmul.f32 %v5282, %v5365
          %v5428 = vmul.f32 %v5283, %v5365
          %v5429 = vmul.f32 %v5284, %v5365
          %v5430 = vmul.f32 %v5285, %v5365
          %v5431 = vmul.f32 %v5286, %v5365
          %v5432 = vmul.f32 %v5287, %v5365
          %v5433 = vmul.f32 %v5288, %v5365
          %v5434 = vmul.f32 %v5289, %v5365
          %v5435 = vmul.f32 %v5290, %v5365
          %v5436 = vmul.f32 %v5291, %v5365
          %v5437 = vmul.f32 %v5292, %v5365
          %v5438 = vmul.f32 %v5293, %v5365
          %v5439 = vmul.f32 %v5294, %v5365
          %v5440 = vmul.f32 %v5295, %v5365
          %v5441 = vmul.f32 %v5296, %v5365
          %v5442 = vmul.f32 %v5297, %v5365
          %v5443 = vmul.f32 %v5298, %v5365
          %v5444 = vmul.f32 %v5299, %v5365
          %v5445 = vmul.f32 %v5300, %v5365
          %v5446 = vmul.f32 %v5301, %v5365
          %v5447 = vmul.f32 %v5302, %v5365
          %v5448 = vmul.f32 %v5303, %v5365
          %v5449 = vmul.f32 %v5304, %v5365
          %v5450 = vmul.f32 %v5305, %v5365
          %v5451 = vmul.f32 %v5306, %v5365
          %v5452 = vmul.f32 %v5307, %v5365
          %v5453 = vmul.f32 %v5308, %v5365
          %v5454 = vmul.f32 %v5309, %v5365
          %v5455 = vmul.f32 %v5310, %v5365
          %v5456 = vmul.f32 %v5311, %v5365
          %v5457 = vmul.f32 %v5312, %v5365
          %v5458 = vmul.f32 %v5313, %v5365
          %v5459 = vmul.f32 %v5314, %v5365
          %v5460 = vmul.f32 %v5315, %v5365
          %v5461 = vmul.f32 %v5316, %v5365
          %v5462 = vmul.f32 %v5317, %v5365
          %v5463 = vmul.f32 %v5318, %v5365
          %v5464 = vmul.f32 %v5319, %v5365
          %v5465 = vmul.f32 %v5320, %v5365
          %v5466 = vmul.f32 %v5321, %v5365
          %v5467 = vmul.f32 %v5322, %v5365
          %v5468 = vmul.f32 %v5323, %v5365
          %v5469 = vmul.f32 %v5324, %v5365
          %v5470 = vmul.f32 %v5325, %v5365
          %v5471 = vmul.f32 %v5326, %v5365
          %v5472 = vmul.f32 %v5327, %v5365
          %v5473 = vmul.f32 %v5328, %v5365
          %v5474 = vmul.f32 %v5329, %v5365
          %v5475 = vmul.f32 %v5330, %v5365
          %v5476 = vmul.f32 %v5331, %v5365
          %v5477 = vmul.f32 %v5332, %v5365
          %v5478 = vmul.f32 %v5333, %v5365
          %v5479 = vmul.f32 %v5334, %v5365
          %v5480 = vmul.f32 %v5335, %v5365
          %v5481 = vmul.f32 %v5336, %v5365
          %v5482 = vmul.f32 %v5337, %v5365
          %v5483 = vmul.f32 %v5338, %v5365
          %v5484 = vmul.f32 %v5339, %v5365
          %v5485 = vmul.f32 %v5340, %v5365
          %v5486 = vmul.f32 %v5341, %v5365
          %v5487 = vmul.f32 %v5342, %v5365
          %v5488 = vmul.f32 %v5343, %v5365
          %v5489 = vmul.f32 %v5344, %v5365
          %v5490 = vmul.f32 %v5345, %v5365
          %v5491 = vmul.f32 %v5346, %v5365
          %v5492 = vmul.f32 %v5347, %v5365
          %v5493 = vmul.f32 %v5348, %v5365
          %v5494 = vmul.f32 %v5349, %v5365
          %v5495 = vld [vmem:[%s8] sm:$0x1]
          %v5496 = vmul.f32 %v5351, %v5360
          %v5497 = vsub.f32 %v5495, %v5496
          %v5499 = vlaneseq
          %v5500 = vshrl.u32 %v5499, 7
          %v5501 = vsub.s32 0, %v5500
          %v5502 = vrot.slane %v5497, %v5501
          %v5504 = vadd.f32 %v5367, %v5502
          %v5505 = vadd.f32 %v5368, %v5502
          %v5506 = vadd.f32 %v5369, %v5502
          %v5507 = vadd.f32 %v5370, %v5502
          %v5508 = vadd.f32 %v5371, %v5502
          %v5509 = vadd.f32 %v5372, %v5502
          %v5510 = vadd.f32 %v5373, %v5502
          %v5511 = vadd.f32 %v5374, %v5502
          %v5512 = vadd.f32 %v5375, %v5502
          %v5513 = vadd.f32 %v5376, %v5502
          %v5514 = vadd.f32 %v5377, %v5502
          %v5515 = vadd.f32 %v5378, %v5502
          %v5516 = vadd.f32 %v5379, %v5502
          %v5517 = vadd.f32 %v5380, %v5502
          %v5518 = vadd.f32 %v5381, %v5502
          %v5519 = vadd.f32 %v5382, %v5502
          %v5520 = vadd.f32 %v5383, %v5502
          %v5521 = vadd.f32 %v5384, %v5502
          %v5522 = vadd.f32 %v5385, %v5502
          %v5523 = vadd.f32 %v5386, %v5502
          %v5524 = vadd.f32 %v5387, %v5502
          %v5525 = vadd.f32 %v5388, %v5502
          %v5526 = vadd.f32 %v5389, %v5502
          %v5527 = vadd.f32 %v5390, %v5502
          %v5528 = vadd.f32 %v5391, %v5502
          %v5529 = vadd.f32 %v5392, %v5502
          %v5530 = vadd.f32 %v5393, %v5502
          %v5531 = vadd.f32 %v5394, %v5502
          %v5532 = vadd.f32 %v5395, %v5502
          %v5533 = vadd.f32 %v5396, %v5502
          %v5534 = vadd.f32 %v5397, %v5502
          %v5535 = vadd.f32 %v5398, %v5502
          %v5536 = vadd.f32 %v5399, %v5502
          %v5537 = vadd.f32 %v5400, %v5502
          %v5538 = vadd.f32 %v5401, %v5502
          %v5539 = vadd.f32 %v5402, %v5502
          %v5540 = vadd.f32 %v5403, %v5502
          %v5541 = vadd.f32 %v5404, %v5502
          %v5542 = vadd.f32 %v5405, %v5502
          %v5543 = vadd.f32 %v5406, %v5502
          %v5544 = vadd.f32 %v5407, %v5502
          %v5545 = vadd.f32 %v5408, %v5502
          %v5546 = vadd.f32 %v5409, %v5502
          %v5547 = vadd.f32 %v5410, %v5502
          %v5548 = vadd.f32 %v5411, %v5502
          %v5549 = vadd.f32 %v5412, %v5502
          %v5550 = vadd.f32 %v5413, %v5502
          %v5551 = vadd.f32 %v5414, %v5502
          %v5552 = vadd.f32 %v5415, %v5502
          %v5553 = vadd.f32 %v5416, %v5502
          %v5554 = vadd.f32 %v5417, %v5502
          %v5555 = vadd.f32 %v5418, %v5502
          %v5556 = vadd.f32 %v5419, %v5502
          %v5557 = vadd.f32 %v5420, %v5502
          %v5558 = vadd.f32 %v5421, %v5502
          %v5559 = vadd.f32 %v5422, %v5502
          %v5560 = vadd.f32 %v5423, %v5502
          %v5561 = vadd.f32 %v5424, %v5502
          %v5562 = vadd.f32 %v5425, %v5502
          %v5563 = vadd.f32 %v5426, %v5502
          %v5564 = vadd.f32 %v5427, %v5502
          %v5565 = vadd.f32 %v5428, %v5502
          %v5566 = vadd.f32 %v5429, %v5502
          %v5567 = vadd.f32 %v5430, %v5502
          %v5568 = vadd.f32 %v5431, %v5502
          %v5569 = vadd.f32 %v5432, %v5502
          %v5570 = vadd.f32 %v5433, %v5502
          %v5571 = vadd.f32 %v5434, %v5502
          %v5572 = vadd.f32 %v5435, %v5502
          %v5573 = vadd.f32 %v5436, %v5502
          %v5574 = vadd.f32 %v5437, %v5502
          %v5575 = vadd.f32 %v5438, %v5502
          %v5576 = vadd.f32 %v5439, %v5502
          %v5577 = vadd.f32 %v5440, %v5502
          %v5578 = vadd.f32 %v5441, %v5502
          %v5579 = vadd.f32 %v5442, %v5502
          %v5580 = vadd.f32 %v5443, %v5502
          %v5581 = vadd.f32 %v5444, %v5502
          %v5582 = vadd.f32 %v5445, %v5502
          %v5583 = vadd.f32 %v5446, %v5502
          %v5584 = vadd.f32 %v5447, %v5502
          %v5585 = vadd.f32 %v5448, %v5502
          %v5586 = vadd.f32 %v5449, %v5502
          %v5587 = vadd.f32 %v5450, %v5502
          %v5588 = vadd.f32 %v5451, %v5502
          %v5589 = vadd.f32 %v5452, %v5502
          %v5590 = vadd.f32 %v5453, %v5502
          %v5591 = vadd.f32 %v5454, %v5502
          %v5592 = vadd.f32 %v5455, %v5502
          %v5593 = vadd.f32 %v5456, %v5502
          %v5594 = vadd.f32 %v5457, %v5502
          %v5595 = vadd.f32 %v5458, %v5502
          %v5596 = vadd.f32 %v5459, %v5502
          %v5597 = vadd.f32 %v5460, %v5502
          %v5598 = vadd.f32 %v5461, %v5502
          %v5599 = vadd.f32 %v5462, %v5502
          %v5600 = vadd.f32 %v5463, %v5502
          %v5601 = vadd.f32 %v5464, %v5502
          %v5602 = vadd.f32 %v5465, %v5502
          %v5603 = vadd.f32 %v5466, %v5502
          %v5604 = vadd.f32 %v5467, %v5502
          %v5605 = vadd.f32 %v5468, %v5502
          %v5606 = vadd.f32 %v5469, %v5502
          %v5607 = vadd.f32 %v5470, %v5502
          %v5608 = vadd.f32 %v5471, %v5502
          %v5609 = vadd.f32 %v5472, %v5502
          %v5610 = vadd.f32 %v5473, %v5502
          %v5611 = vadd.f32 %v5474, %v5502
          %v5612 = vadd.f32 %v5475, %v5502
          %v5613 = vadd.f32 %v5476, %v5502
          %v5614 = vadd.f32 %v5477, %v5502
          %v5615 = vadd.f32 %v5478, %v5502
          %v5616 = vadd.f32 %v5479, %v5502
          %v5617 = vadd.f32 %v5480, %v5502
          %v5618 = vadd.f32 %v5481, %v5502
          %v5619 = vadd.f32 %v5482, %v5502
          %v5620 = vadd.f32 %v5483, %v5502
          %v5621 = vadd.f32 %v5484, %v5502
          %v5622 = vadd.f32 %v5485, %v5502
          %v5623 = vadd.f32 %v5486, %v5502
          %v5624 = vadd.f32 %v5487, %v5502
          %v5625 = vadd.f32 %v5488, %v5502
          %v5626 = vadd.f32 %v5489, %v5502
          %v5627 = vadd.f32 %v5490, %v5502
          %v5628 = vadd.f32 %v5491, %v5502
          %v5629 = vadd.f32 %v5492, %v5502
          %v5630 = vadd.f32 %v5493, %v5502
          %v5631 = vadd.f32 %v5494, %v5502
          %v5632 = vpack.c.bf16 %v5505, %v5504
          %v5633 = vpack.c.bf16 %v5507, %v5506
          %v5634 = vpack.c.bf16 %v5509, %v5508
          %v5635 = vpack.c.bf16 %v5511, %v5510
          %v5636 = vpack.c.bf16 %v5513, %v5512
          %v5637 = vpack.c.bf16 %v5515, %v5514
          %v5638 = vpack.c.bf16 %v5517, %v5516
          %v5639 = vpack.c.bf16 %v5519, %v5518
          %v5640 = vpack.c.bf16 %v5521, %v5520
          %v5641 = vpack.c.bf16 %v5523, %v5522
          %v5642 = vpack.c.bf16 %v5525, %v5524
          %v5643 = vpack.c.bf16 %v5527, %v5526
          %v5644 = vpack.c.bf16 %v5529, %v5528
          %v5645 = vpack.c.bf16 %v5531, %v5530
          %v5646 = vpack.c.bf16 %v5533, %v5532
          %v5647 = vpack.c.bf16 %v5535, %v5534
          %v5648 = vpack.c.bf16 %v5537, %v5536
          %v5649 = vpack.c.bf16 %v5539, %v5538
          %v5650 = vpack.c.bf16 %v5541, %v5540
          %v5651 = vpack.c.bf16 %v5543, %v5542
          %v5652 = vpack.c.bf16 %v5545, %v5544
          %v5653 = vpack.c.bf16 %v5547, %v5546
          %v5654 = vpack.c.bf16 %v5549, %v5548
          %v5655 = vpack.c.bf16 %v5551, %v5550
          %v5656 = vpack.c.bf16 %v5553, %v5552
          %v5657 = vpack.c.bf16 %v5555, %v5554
          %v5658 = vpack.c.bf16 %v5557, %v5556
          %v5659 = vpack.c.bf16 %v5559, %v5558
          %v5660 = vpack.c.bf16 %v5561, %v5560
          %v5661 = vpack.c.bf16 %v5563, %v5562
          %v5662 = vpack.c.bf16 %v5565, %v5564
          %v5663 = vpack.c.bf16 %v5567, %v5566
          %v5664 = vpack.c.bf16 %v5569, %v5568
          %v5665 = vpack.c.bf16 %v5571, %v5570
          %v5666 = vpack.c.bf16 %v5573, %v5572
          %v5667 = vpack.c.bf16 %v5575, %v5574
          %v5668 = vpack.c.bf16 %v5577, %v5576
          %v5669 = vpack.c.bf16 %v5579, %v5578
          %v5670 = vpack.c.bf16 %v5581, %v5580
          %v5671 = vpack.c.bf16 %v5583, %v5582
          %v5672 = vpack.c.bf16 %v5585, %v5584
          %v5673 = vpack.c.bf16 %v5587, %v5586
          %v5674 = vpack.c.bf16 %v5589, %v5588
          %v5675 = vpack.c.bf16 %v5591, %v5590
          %v5676 = vpack.c.bf16 %v5593, %v5592
          %v5677 = vpack.c.bf16 %v5595, %v5594
          %v5678 = vpack.c.bf16 %v5597, %v5596
          %v5679 = vpack.c.bf16 %v5599, %v5598
          %v5680 = vpack.c.bf16 %v5601, %v5600
          %v5681 = vpack.c.bf16 %v5603, %v5602
          %v5682 = vpack.c.bf16 %v5605, %v5604
          %v5683 = vpack.c.bf16 %v5607, %v5606
          %v5684 = vpack.c.bf16 %v5609, %v5608
          %v5685 = vpack.c.bf16 %v5611, %v5610
          %v5686 = vpack.c.bf16 %v5613, %v5612
          %v5687 = vpack.c.bf16 %v5615, %v5614
          %v5688 = vpack.c.bf16 %v5617, %v5616
          %v5689 = vpack.c.bf16 %v5619, %v5618
          %v5690 = vpack.c.bf16 %v5621, %v5620
          %v5691 = vpack.c.bf16 %v5623, %v5622
          %v5692 = vpack.c.bf16 %v5625, %v5624
          %v5693 = vpack.c.bf16 %v5627, %v5626
          %v5694 = vpack.c.bf16 %v5629, %v5628
          %v5695 = vpack.c.bf16 %v5631, %v5630
          %v5696 = vld [vmem:[%s9] sm:$0xf]
          %v5697 = vld [vmem:[%s9 + $0x4] sm:$0xf]
          %v5698 = vld [vmem:[%s9 + $0x8] sm:$0xf]
          %v5699 = vld [vmem:[%s9 + $0xc] sm:$0xf]
          %v5700 = vld [vmem:[%s9 + $0x10] sm:$0xf]
          %v5701 = vld [vmem:[%s9 + $0x14] sm:$0xf]
          %v5702 = vld [vmem:[%s9 + $0x18] sm:$0xf]
          %v5703 = vld [vmem:[%s9 + $0x1c] sm:$0xf]
          %v5704 = vld [vmem:[%s9 + $0x20] sm:$0xf]
          %v5705 = vld [vmem:[%s9 + $0x24] sm:$0xf]
          %v5706 = vld [vmem:[%s9 + $0x28] sm:$0xf]
          %v5707 = vld [vmem:[%s9 + $0x2c] sm:$0xf]
          %v5708 = vld [vmem:[%s9 + $0x30] sm:$0xf]
          %v5709 = vld [vmem:[%s9 + $0x34] sm:$0xf]
          %v5710 = vld [vmem:[%s9 + $0x38] sm:$0xf]
          %v5711 = vld [vmem:[%s9 + $0x3c] sm:$0xf]
          %v5712 = vld [vmem:[%s10] sm:$0x1]
          %v5714 = vlaneseq
          %v5715 = vshrl.u32 %v5714, 7
          %v5716 = vsub.s32 0, %v5715
          %v5717 = vrot.slane %v5712, %v5716
          %v5735 = vunpack.c.l.b16 %v5696
          %v5736 = vunpack.c.l.b16 %v5697
          %v5737 = vunpack.c.l.b16 %v5698
          %v5738 = vunpack.c.l.b16 %v5699
          %v5739 = vunpack.c.l.b16 %v5700
          %v5740 = vunpack.c.l.b16 %v5701
          %v5741 = vunpack.c.l.b16 %v5702
          %v5742 = vunpack.c.l.b16 %v5703
          %v5743 = vunpack.c.l.b16 %v5704
          %v5744 = vunpack.c.l.b16 %v5705
          %v5745 = vunpack.c.l.b16 %v5706
          %v5746 = vunpack.c.l.b16 %v5707
          %v5747 = vunpack.c.l.b16 %v5708
          %v5748 = vunpack.c.l.b16 %v5709
          %v5749 = vunpack.c.l.b16 %v5710
          %v5750 = vunpack.c.l.b16 %v5711
          %v5751 = vpack.c.b16 %v5736, %v5735
          %v5752 = vpack.c.b16 %v5738, %v5737
          %v5753 = vpack.c.b16 %v5740, %v5739
          %v5754 = vpack.c.b16 %v5742, %v5741
          %v5755 = vpack.c.b16 %v5744, %v5743
          %v5756 = vpack.c.b16 %v5746, %v5745
          %v5757 = vpack.c.b16 %v5748, %v5747
          %v5758 = vpack.c.b16 %v5750, %v5749
          %5767 = vmatprep.subr.bf16.mxu0 0
          %5768 = vmatpush1.bf16.msra.mxu0 %v5751
          %5769 = vmatprep.subr.bf16.mxu0 0
          %5770 = vmatpush1.bf16.msra.mxu0 %v5752
          %5771 = vmatprep.subr.bf16.mxu0 0
          %5772 = vmatpush1.bf16.msra.mxu0 %v5753
          %5773 = vmatprep.subr.bf16.mxu0 0
          %5774 = vmatpush1.bf16.msra.mxu0 %v5754
          %5775 = vmatprep.subr.bf16.mxu0 0
          %5776 = vmatpush1.bf16.msra.mxu0 %v5755
          %5777 = vmatprep.subr.bf16.mxu0 0
          %5778 = vmatpush1.bf16.msra.mxu0 %v5756
          %5779 = vmatprep.subr.bf16.mxu0 0
          %5780 = vmatpush1.bf16.msra.mxu0 %v5757
          %5781 = vmatprep.subr.bf16.mxu0 0
          %5782 = vmatpush1.bf16.msra.mxu0 %v5758
          %5783 = vmatprep.subr.bf16.mxu0 0
          %5784 = vmatpush1.bf16.msra.mxu0 0
          %5785 = vmatprep.subr.bf16.mxu0 0
          %5786 = vmatpush1.bf16.msra.mxu0 0
          %5787 = vmatprep.subr.bf16.mxu0 0
          %5788 = vmatpush1.bf16.msra.mxu0 0
          %5789 = vmatprep.subr.bf16.mxu0 0
          %5790 = vmatpush1.bf16.msra.mxu0 0
          %5791 = vmatprep.subr.bf16.mxu0 0
          %5792 = vmatpush1.bf16.msra.mxu0 0
          %5793 = vmatprep.subr.bf16.mxu0 0
          %5794 = vmatpush1.bf16.msra.mxu0 0
          %5795 = vmatprep.subr.bf16.mxu0 0
          %5796 = vmatpush1.bf16.msra.mxu0 0
          %5797 = vmatprep.subr.bf16.mxu0 0
          %5798 = vmatpush1.bf16.msra.mxu0 0
          %5799 = vmatprep.mubr.bf16.mxu0 0
          %5800 = vmatmul.mubr.bf16.gmra.mrb[0].mxu0 %v5632
          %v5801 = vpop.f32.mrb[0].mxu0
          %v5802 = vadd.f32 %v5717, %v5801
          %v5803 = vpop.f32.mrb[0].mxu0
          %v5804 = vpop.f32.mrb[0].mxu0
          %v5805 = vadd.f32 %v5717, %v5804
          %v5806 = vpop.f32.mrb[0].mxu0
          %5807 = vmatprep.mubr.bf16.mxu0 0
          %5808 = vmatmul.mubr.bf16.gmra.mrb[0].mxu0 %v5633
          %v5809 = vpop.f32.mrb[0].mxu0
          %v5810 = vadd.f32 %v5717, %v5809
          %v5811 = vpop.f32.mrb[0].mxu0
          %v5812 = vpop.f32.mrb[0].mxu0
          %v5813 = vadd.f32 %v5717, %v5812
          %v5814 = vpop.f32.mrb[0].mxu0
          %5815 = vmatprep.mubr.bf16.mxu0 0
          %5816 = vmatmul.mubr.bf16.gmra.mrb[0].mxu0 %v5634
          %v5817 = vpop.f32.mrb[0].mxu0
          %v5818 = vadd.f32 %v5717, %v5817
          %v5819 = vpop.f32.mrb[0].mxu0
          %v5820 = vpop.f32.mrb[0].mxu0
          %v5821 = vadd.f32 %v5717, %v5820
          %v5822 = vpop.f32.mrb[0].mxu0
          %5823 = vmatprep.mubr.bf16.mxu0 0
          %5824 = vmatmul.mubr.bf16.gmra.mrb[0].mxu0 %v5635
          %v5825 = vpop.f32.mrb[0].mxu0
          %v5826 = vadd.f32 %v5717, %v5825
          %v5827 = vpop.f32.mrb[0].mxu0
          %v5828 = vpop.f32.mrb[0].mxu0
          %v5829 = vadd.f32 %v5717, %v5828
          %v5830 = vpop.f32.mrb[0].mxu0
          %5831 = vmatprep.mubr.bf16.mxu0 0
          %5832 = vmatmul.mubr.bf16.gmra.mrb[0].mxu0 %v5636
          %v5833 = vpop.f32.mrb[0].mxu0
          %v5834 = vadd.f32 %v5717, %v5833
          %v5835 = vpop.f32.mrb[0].mxu0
          %v5836 = vpop.f32.mrb[0].mxu0
          %v5837 = vadd.f32 %v5717, %v5836
          %v5838 = vpop.f32.mrb[0].mxu0
          %5839 = vmatprep.mubr.bf16.mxu0 0
          %5840 = vmatmul.mubr.bf16.gmra.mrb[0].mxu0 %v5637
          %v5841 = vpop.f32.mrb[0].mxu0
          %v5842 = vadd.f32 %v5717, %v5841
          %v5843 = vpop.f32.mrb[0].mxu0
          %v5844 = vpop.f32.mrb[0].mxu0
          %v5845 = vadd.f32 %v5717, %v5844
          %v5846 = vpop.f32.mrb[0].mxu0
          %5847 = vmatprep.mubr.bf16.mxu0 0
          %5848 = vmatmul.mubr.bf16.gmra.mrb[0].mxu0 %v5638
          %v5849 = vpop.f32.mrb[0].mxu0
          %v5850 = vadd.f32 %v5717, %v5849
          %v5851 = vpop.f32.mrb[0].mxu0
          %v5852 = vpop.f32.mrb[0].mxu0
          %v5853 = vadd.f32 %v5717, %v5852
          %v5854 = vpop.f32.mrb[0].mxu0
          %5855 = vmatprep.mubr.bf16.mxu0 0
          %5856 = vmatmul.mubr.bf16.gmra.mrb[0].mxu0 %v5639
          %v5857 = vpop.f32.mrb[0].mxu0
          %v5858 = vadd.f32 %v5717, %v5857
          %v5859 = vpop.f32.mrb[0].mxu0
          %v5860 = vpop.f32.mrb[0].mxu0
          %v5861 = vadd.f32 %v5717, %v5860
          %v5862 = vpop.f32.mrb[0].mxu0
          %5863 = vmatprep.mubr.bf16.mxu0 0
          %5864 = vmatmul.mubr.bf16.gmra.mrb[0].mxu0 %v5640
          %v5865 = vpop.f32.mrb[0].mxu0
          %v5866 = vadd.f32 %v5717, %v5865
          %v5867 = vpop.f32.mrb[0].mxu0
          %v5868 = vpop.f32.mrb[0].mxu0
          %v5869 = vadd.f32 %v5717, %v5868
          %v5870 = vpop.f32.mrb[0].mxu0
          %5871 = vmatprep.mubr.bf16.mxu0 0
          %5872 = vmatmul.mubr.bf16.gmra.mrb[0].mxu0 %v5641
          %v5873 = vpop.f32.mrb[0].mxu0
          %v5874 = vadd.f32 %v5717, %v5873
          %v5875 = vpop.f32.mrb[0].mxu0
          %v5876 = vpop.f32.mrb[0].mxu0
          %v5877 = vadd.f32 %v5717, %v5876
          %v5878 = vpop.f32.mrb[0].mxu0
          %5879 = vmatprep.mubr.bf16.mxu0 0
          %5880 = vmatmul.mubr.bf16.gmra.mrb[0].mxu0 %v5642
          %v5881 = vpop.f32.mrb[0].mxu0
          %v5882 = vadd.f32 %v5717, %v5881
          %v5883 = vpop.f32.mrb[0].mxu0
          %v5884 = vpop.f32.mrb[0].mxu0
          %v5885 = vadd.f32 %v5717, %v5884
          %v5886 = vpop.f32.mrb[0].mxu0
          %5887 = vmatprep.mubr.bf16.mxu0 0
          %5888 = vmatmul.mubr.bf16.gmra.mrb[0].mxu0 %v5643
          %v5889 = vpop.f32.mrb[0].mxu0
          %v5890 = vadd.f32 %v5717, %v5889
          %v5891 = vpop.f32.mrb[0].mxu0
          %v5892 = vpop.f32.mrb[0].mxu0
          %v5893 = vadd.f32 %v5717, %v5892
          %v5894 = vpop.f32.mrb[0].mxu0
          %5895 = vmatprep.mubr.bf16.mxu0 0
          %5896 = vmatmul.mubr.bf16.gmra.mrb[0].mxu0 %v5644
          %v5897 = vpop.f32.mrb[0].mxu0
          %v5898 = vadd.f32 %v5717, %v5897
          %v5899 = vpop.f32.mrb[0].mxu0
          %v5900 = vpop.f32.mrb[0].mxu0
          %v5901 = vadd.f32 %v5717, %v5900
          %v5902 = vpop.f32.mrb[0].mxu0
          %5903 = vmatprep.mubr.bf16.mxu0 0
          %5904 = vmatmul.mubr.bf16.gmra.mrb[0].mxu0 %v5645
          %v5905 = vpop.f32.mrb[0].mxu0
          %v5906 = vadd.f32 %v5717, %v5905
          %v5907 = vpop.f32.mrb[0].mxu0
          %v5908 = vpop.f32.mrb[0].mxu0
          %v5909 = vadd.f32 %v5717, %v5908
          %v5910 = vpop.f32.mrb[0].mxu0
          %5911 = vmatprep.mubr.bf16.mxu0 0
          %5912 = vmatmul.mubr.bf16.gmra.mrb[0].mxu0 %v5646
          %v5913 = vpop.f32.mrb[0].mxu0
          %v5914 = vadd.f32 %v5717, %v5913
          %v5915 = vpop.f32.mrb[0].mxu0
          %v5916 = vpop.f32.mrb[0].mxu0
          %v5917 = vadd.f32 %v5717, %v5916
          %v5918 = vpop.f32.mrb[0].mxu0
          %5919 = vmatprep.mubr.bf16.mxu0 0
          %5920 = vmatmul.mubr.bf16.gmra.mrb[0].mxu0 %v5647
          %v5921 = vpop.f32.mrb[0].mxu0
          %v5922 = vadd.f32 %v5717, %v5921
          %v5923 = vpop.f32.mrb[0].mxu0
          %v5924 = vpop.f32.mrb[0].mxu0
          %v5925 = vadd.f32 %v5717, %v5924
          %v5926 = vpop.f32.mrb[0].mxu0
          %5927 = vmatprep.mubr.bf16.mxu0 0
          %5928 = vmatmul.mubr.bf16.gmra.mrb[0].mxu0 %v5648
          %v5929 = vpop.f32.mrb[0].mxu0
          %v5930 = vadd.f32 %v5717, %v5929
          %v5931 = vpop.f32.mrb[0].mxu0
          %v5932 = vpop.f32.mrb[0].mxu0
          %v5933 = vadd.f32 %v5717, %v5932
          %v5934 = vpop.f32.mrb[0].mxu0
          %5935 = vmatprep.mubr.bf16.mxu0 0
          %5936 = vmatmul.mubr.bf16.gmra.mrb[0].mxu0 %v5649
          %v5937 = vpop.f32.mrb[0].mxu0
          %v5938 = vadd.f32 %v5717, %v5937
          %v5939 = vpop.f32.mrb[0].mxu0
          %v5940 = vpop.f32.mrb[0].mxu0
          %v5941 = vadd.f32 %v5717, %v5940
          %v5942 = vpop.f32.mrb[0].mxu0
          %5943 = vmatprep.mubr.bf16.mxu0 0
          %5944 = vmatmul.mubr.bf16.gmra.mrb[0].mxu0 %v5650
          %v5945 = vpop.f32.mrb[0].mxu0
          %v5946 = vadd.f32 %v5717, %v5945
          %v5947 = vpop.f32.mrb[0].mxu0
          %v5948 = vpop.f32.mrb[0].mxu0
          %v5949 = vadd.f32 %v5717, %v5948
          %v5950 = vpop.f32.mrb[0].mxu0
          %5951 = vmatprep.mubr.bf16.mxu0 0
          %5952 = vmatmul.mubr.bf16.gmra.mrb[0].mxu0 %v5651
          %v5953 = vpop.f32.mrb[0].mxu0
          %v5954 = vadd.f32 %v5717, %v5953
          %v5955 = vpop.f32.mrb[0].mxu0
          %v5956 = vpop.f32.mrb[0].mxu0
          %v5957 = vadd.f32 %v5717, %v5956
          %v5958 = vpop.f32.mrb[0].mxu0
          %5959 = vmatprep.mubr.bf16.mxu0 0
          %5960 = vmatmul.mubr.bf16.gmra.mrb[0].mxu0 %v5652
          %v5961 = vpop.f32.mrb[0].mxu0
          %v5962 = vadd.f32 %v5717, %v5961
          %v5963 = vpop.f32.mrb[0].mxu0
          %v5964 = vpop.f32.mrb[0].mxu0
          %v5965 = vadd.f32 %v5717, %v5964
          %v5966 = vpop.f32.mrb[0].mxu0
          %5967 = vmatprep.mubr.bf16.mxu0 0
          %5968 = vmatmul.mubr.bf16.gmra.mrb[0].mxu0 %v5653
          %v5969 = vpop.f32.mrb[0].mxu0
          %v5970 = vadd.f32 %v5717, %v5969
          %v5971 = vpop.f32.mrb[0].mxu0
          %v5972 = vpop.f32.mrb[0].mxu0
          %v5973 = vadd.f32 %v5717, %v5972
          %v5974 = vpop.f32.mrb[0].mxu0
          %5975 = vmatprep.mubr.bf16.mxu0 0
          %5976 = vmatmul.mubr.bf16.gmra.mrb[0].mxu0 %v5654
          %v5977 = vpop.f32.mrb[0].mxu0
          %v5978 = vadd.f32 %v5717, %v5977
          %v5979 = vpop.f32.mrb[0].mxu0
          %v5980 = vpop.f32.mrb[0].mxu0
          %v5981 = vadd.f32 %v5717, %v5980
          %v5982 = vpop.f32.mrb[0].mxu0
          %5983 = vmatprep.mubr.bf16.mxu0 0
          %5984 = vmatmul.mubr.bf16.gmra.mrb[0].mxu0 %v5655
          %v5985 = vpop.f32.mrb[0].mxu0
          %v5986 = vadd.f32 %v5717, %v5985
          %v5987 = vpop.f32.mrb[0].mxu0
          %v5988 = vpop.f32.mrb[0].mxu0
          %v5989 = vadd.f32 %v5717, %v5988
          %v5990 = vpop.f32.mrb[0].mxu0
          %5991 = vmatprep.mubr.bf16.mxu0 0
          %5992 = vmatmul.mubr.bf16.gmra.mrb[0].mxu0 %v5656
          %v5993 = vpop.f32.mrb[0].mxu0
          %v5994 = vadd.f32 %v5717, %v5993
          %v5995 = vpop.f32.mrb[0].mxu0
          %v5996 = vpop.f32.mrb[0].mxu0
          %v5997 = vadd.f32 %v5717, %v5996
          %v5998 = vpop.f32.mrb[0].mxu0
          %5999 = vmatprep.mubr.bf16.mxu0 0
          %6000 = vmatmul.mubr.bf16.gmra.mrb[0].mxu0 %v5657
          %v6001 = vpop.f32.mrb[0].mxu0
          %v6002 = vadd.f32 %v5717, %v6001
          %v6003 = vpop.f32.mrb[0].mxu0
          %v6004 = vpop.f32.mrb[0].mxu0
          %v6005 = vadd.f32 %v5717, %v6004
          %v6006 = vpop.f32.mrb[0].mxu0
          %6007 = vmatprep.mubr.bf16.mxu0 0
          %6008 = vmatmul.mubr.bf16.gmra.mrb[0].mxu0 %v5658
          %v6009 = vpop.f32.mrb[0].mxu0
          %v6010 = vadd.f32 %v5717, %v6009
          %v6011 = vpop.f32.mrb[0].mxu0
          %v6012 = vpop.f32.mrb[0].mxu0
          %v6013 = vadd.f32 %v5717, %v6012
          %v6014 = vpop.f32.mrb[0].mxu0
          %6015 = vmatprep.mubr.bf16.mxu0 0
          %6016 = vmatmul.mubr.bf16.gmra.mrb[0].mxu0 %v5659
          %v6017 = vpop.f32.mrb[0].mxu0
          %v6018 = vadd.f32 %v5717, %v6017
          %v6019 = vpop.f32.mrb[0].mxu0
          %v6020 = vpop.f32.mrb[0].mxu0
          %v6021 = vadd.f32 %v5717, %v6020
          %v6022 = vpop.f32.mrb[0].mxu0
          %6023 = vmatprep.mubr.bf16.mxu0 0
          %6024 = vmatmul.mubr.bf16.gmra.mrb[0].mxu0 %v5660
          %v6025 = vpop.f32.mrb[0].mxu0
          %v6026 = vadd.f32 %v5717, %v6025
          %v6027 = vpop.f32.mrb[0].mxu0
          %v6028 = vpop.f32.mrb[0].mxu0
          %v6029 = vadd.f32 %v5717, %v6028
          %v6030 = vpop.f32.mrb[0].mxu0
          %6031 = vmatprep.mubr.bf16.mxu0 0
          %6032 = vmatmul.mubr.bf16.gmra.mrb[0].mxu0 %v5661
          %v6033 = vpop.f32.mrb[0].mxu0
          %v6034 = vadd.f32 %v5717, %v6033
          %v6035 = vpop.f32.mrb[0].mxu0
          %v6036 = vpop.f32.mrb[0].mxu0
          %v6037 = vadd.f32 %v5717, %v6036
          %v6038 = vpop.f32.mrb[0].mxu0
          %6039 = vmatprep.mubr.bf16.mxu0 0
          %6040 = vmatmul.mubr.bf16.gmra.mrb[0].mxu0 %v5662
          %v6041 = vpop.f32.mrb[0].mxu0
          %v6042 = vadd.f32 %v5717, %v6041
          %v6043 = vpop.f32.mrb[0].mxu0
          %v6044 = vpop.f32.mrb[0].mxu0
          %v6045 = vadd.f32 %v5717, %v6044
          %v6046 = vpop.f32.mrb[0].mxu0
          %6047 = vmatprep.mubr.bf16.mxu0 0
          %6048 = vmatmul.mubr.bf16.gmra.mrb[0].mxu0 %v5663
          %v6049 = vpop.f32.mrb[0].mxu0
          %v6050 = vadd.f32 %v5717, %v6049
          %v6051 = vpop.f32.mrb[0].mxu0
          %v6052 = vpop.f32.mrb[0].mxu0
          %v6053 = vadd.f32 %v5717, %v6052
          %v6054 = vpop.f32.mrb[0].mxu0
          %6055 = vmatprep.mubr.bf16.mxu0 0
          %6056 = vmatmul.mubr.bf16.gmra.mrb[0].mxu0 %v5664
          %v6057 = vpop.f32.mrb[0].mxu0
          %v6058 = vadd.f32 %v5717, %v6057
          %v6059 = vpop.f32.mrb[0].mxu0
          %v6060 = vpop.f32.mrb[0].mxu0
          %v6061 = vadd.f32 %v5717, %v6060
          %v6062 = vpop.f32.mrb[0].mxu0
          %6063 = vmatprep.mubr.bf16.mxu0 0
          %6064 = vmatmul.mubr.bf16.gmra.mrb[0].mxu0 %v5665
          %v6065 = vpop.f32.mrb[0].mxu0
          %v6066 = vadd.f32 %v5717, %v6065
          %v6067 = vpop.f32.mrb[0].mxu0
          %v6068 = vpop.f32.mrb[0].mxu0
          %v6069 = vadd.f32 %v5717, %v6068
          %v6070 = vpop.f32.mrb[0].mxu0
          %6071 = vmatprep.mubr.bf16.mxu0 0
          %6072 = vmatmul.mubr.bf16.gmra.mrb[0].mxu0 %v5666
          %v6073 = vpop.f32.mrb[0].mxu0
          %v6074 = vadd.f32 %v5717, %v6073
          %v6075 = vpop.f32.mrb[0].mxu0
          %v6076 = vpop.f32.mrb[0].mxu0
          %v6077 = vadd.f32 %v5717, %v6076
          %v6078 = vpop.f32.mrb[0].mxu0
          %6079 = vmatprep.mubr.bf16.mxu0 0
          %6080 = vmatmul.mubr.bf16.gmra.mrb[0].mxu0 %v5667
          %v6081 = vpop.f32.mrb[0].mxu0
          %v6082 = vadd.f32 %v5717, %v6081
          %v6083 = vpop.f32.mrb[0].mxu0
          %v6084 = vpop.f32.mrb[0].mxu0
          %v6085 = vadd.f32 %v5717, %v6084
          %v6086 = vpop.f32.mrb[0].mxu0
          %6087 = vmatprep.mubr.bf16.mxu0 0
          %6088 = vmatmul.mubr.bf16.gmra.mrb[0].mxu0 %v5668
          %v6089 = vpop.f32.mrb[0].mxu0
          %v6090 = vadd.f32 %v5717, %v6089
          %v6091 = vpop.f32.mrb[0].mxu0
          %v6092 = vpop.f32.mrb[0].mxu0
          %v6093 = vadd.f32 %v5717, %v6092
          %v6094 = vpop.f32.mrb[0].mxu0
          %6095 = vmatprep.mubr.bf16.mxu0 0
          %6096 = vmatmul.mubr.bf16.gmra.mrb[0].mxu0 %v5669
          %v6097 = vpop.f32.mrb[0].mxu0
          %v6098 = vadd.f32 %v5717, %v6097
          %v6099 = vpop.f32.mrb[0].mxu0
          %v6100 = vpop.f32.mrb[0].mxu0
          %v6101 = vadd.f32 %v5717, %v6100
          %v6102 = vpop.f32.mrb[0].mxu0
          %6103 = vmatprep.mubr.bf16.mxu0 0
          %6104 = vmatmul.mubr.bf16.gmra.mrb[0].mxu0 %v5670
          %v6105 = vpop.f32.mrb[0].mxu0
          %v6106 = vadd.f32 %v5717, %v6105
          %v6107 = vpop.f32.mrb[0].mxu0
          %v6108 = vpop.f32.mrb[0].mxu0
          %v6109 = vadd.f32 %v5717, %v6108
          %v6110 = vpop.f32.mrb[0].mxu0
          %6111 = vmatprep.mubr.bf16.mxu0 0
          %6112 = vmatmul.mubr.bf16.gmra.mrb[0].mxu0 %v5671
          %v6113 = vpop.f32.mrb[0].mxu0
          %v6114 = vadd.f32 %v5717, %v6113
          %v6115 = vpop.f32.mrb[0].mxu0
          %v6116 = vpop.f32.mrb[0].mxu0
          %v6117 = vadd.f32 %v5717, %v6116
          %v6118 = vpop.f32.mrb[0].mxu0
          %6119 = vmatprep.mubr.bf16.mxu0 0
          %6120 = vmatmul.mubr.bf16.gmra.mrb[0].mxu0 %v5672
          %v6121 = vpop.f32.mrb[0].mxu0
          %v6122 = vadd.f32 %v5717, %v6121
          %v6123 = vpop.f32.mrb[0].mxu0
          %v6124 = vpop.f32.mrb[0].mxu0
          %v6125 = vadd.f32 %v5717, %v6124
          %v6126 = vpop.f32.mrb[0].mxu0
          %6127 = vmatprep.mubr.bf16.mxu0 0
          %6128 = vmatmul.mubr.bf16.gmra.mrb[0].mxu0 %v5673
          %v6129 = vpop.f32.mrb[0].mxu0
          %v6130 = vadd.f32 %v5717, %v6129
          %v6131 = vpop.f32.mrb[0].mxu0
          %v6132 = vpop.f32.mrb[0].mxu0
          %v6133 = vadd.f32 %v5717, %v6132
          %v6134 = vpop.f32.mrb[0].mxu0
          %6135 = vmatprep.mubr.bf16.mxu0 0
          %6136 = vmatmul.mubr.bf16.gmra.mrb[0].mxu0 %v5674
          %v6137 = vpop.f32.mrb[0].mxu0
          %v6138 = vadd.f32 %v5717, %v6137
          %v6139 = vpop.f32.mrb[0].mxu0
          %v6140 = vpop.f32.mrb[0].mxu0
          %v6141 = vadd.f32 %v5717, %v6140
          %v6142 = vpop.f32.mrb[0].mxu0
          %6143 = vmatprep.mubr.bf16.mxu0 0
          %6144 = vmatmul.mubr.bf16.gmra.mrb[0].mxu0 %v5675
          %v6145 = vpop.f32.mrb[0].mxu0
          %v6146 = vadd.f32 %v5717, %v6145
          %v6147 = vpop.f32.mrb[0].mxu0
          %v6148 = vpop.f32.mrb[0].mxu0
          %v6149 = vadd.f32 %v5717, %v6148
          %v6150 = vpop.f32.mrb[0].mxu0
          %6151 = vmatprep.mubr.bf16.mxu0 0
          %6152 = vmatmul.mubr.bf16.gmra.mrb[0].mxu0 %v5676
          %v6153 = vpop.f32.mrb[0].mxu0
          %v6154 = vadd.f32 %v5717, %v6153
          %v6155 = vpop.f32.mrb[0].mxu0
          %v6156 = vpop.f32.mrb[0].mxu0
          %v6157 = vadd.f32 %v5717, %v6156
          %v6158 = vpop.f32.mrb[0].mxu0
          %6159 = vmatprep.mubr.bf16.mxu0 0
          %6160 = vmatmul.mubr.bf16.gmra.mrb[0].mxu0 %v5677
          %v6161 = vpop.f32.mrb[0].mxu0
          %v6162 = vadd.f32 %v5717, %v6161
          %v6163 = vpop.f32.mrb[0].mxu0
          %v6164 = vpop.f32.mrb[0].mxu0
          %v6165 = vadd.f32 %v5717, %v6164
          %v6166 = vpop.f32.mrb[0].mxu0
          %6167 = vmatprep.mubr.bf16.mxu0 0
          %6168 = vmatmul.mubr.bf16.gmra.mrb[0].mxu0 %v5678
          %v6169 = vpop.f32.mrb[0].mxu0
          %v6170 = vadd.f32 %v5717, %v6169
          %v6171 = vpop.f32.mrb[0].mxu0
          %v6172 = vpop.f32.mrb[0].mxu0
          %v6173 = vadd.f32 %v5717, %v6172
          %v6174 = vpop.f32.mrb[0].mxu0
          %6175 = vmatprep.mubr.bf16.mxu0 0
          %6176 = vmatmul.mubr.bf16.gmra.mrb[0].mxu0 %v5679
          %v6177 = vpop.f32.mrb[0].mxu0
          %v6178 = vadd.f32 %v5717, %v6177
          %v6179 = vpop.f32.mrb[0].mxu0
          %v6180 = vpop.f32.mrb[0].mxu0
          %v6181 = vadd.f32 %v5717, %v6180
          %v6182 = vpop.f32.mrb[0].mxu0
          %6183 = vmatprep.mubr.bf16.mxu0 0
          %6184 = vmatmul.mubr.bf16.gmra.mrb[0].mxu0 %v5680
          %v6185 = vpop.f32.mrb[0].mxu0
          %v6186 = vadd.f32 %v5717, %v6185
          %v6187 = vpop.f32.mrb[0].mxu0
          %v6188 = vpop.f32.mrb[0].mxu0
          %v6189 = vadd.f32 %v5717, %v6188
          %v6190 = vpop.f32.mrb[0].mxu0
          %6191 = vmatprep.mubr.bf16.mxu0 0
          %6192 = vmatmul.mubr.bf16.gmra.mrb[0].mxu0 %v5681
          %v6193 = vpop.f32.mrb[0].mxu0
          %v6194 = vadd.f32 %v5717, %v6193
          %v6195 = vpop.f32.mrb[0].mxu0
          %v6196 = vpop.f32.mrb[0].mxu0
          %v6197 = vadd.f32 %v5717, %v6196
          %v6198 = vpop.f32.mrb[0].mxu0
          %6199 = vmatprep.mubr.bf16.mxu0 0
          %6200 = vmatmul.mubr.bf16.gmra.mrb[0].mxu0 %v5682
          %v6201 = vpop.f32.mrb[0].mxu0
          %v6202 = vadd.f32 %v5717, %v6201
          %v6203 = vpop.f32.mrb[0].mxu0
          %v6204 = vpop.f32.mrb[0].mxu0
          %v6205 = vadd.f32 %v5717, %v6204
          %v6206 = vpop.f32.mrb[0].mxu0
          %6207 = vmatprep.mubr.bf16.mxu0 0
          %6208 = vmatmul.mubr.bf16.gmra.mrb[0].mxu0 %v5683
          %v6209 = vpop.f32.mrb[0].mxu0
          %v6210 = vadd.f32 %v5717, %v6209
          %v6211 = vpop.f32.mrb[0].mxu0
          %v6212 = vpop.f32.mrb[0].mxu0
          %v6213 = vadd.f32 %v5717, %v6212
          %v6214 = vpop.f32.mrb[0].mxu0
          %6215 = vmatprep.mubr.bf16.mxu0 0
          %6216 = vmatmul.mubr.bf16.gmra.mrb[0].mxu0 %v5684
          %v6217 = vpop.f32.mrb[0].mxu0
          %v6218 = vadd.f32 %v5717, %v6217
          %v6219 = vpop.f32.mrb[0].mxu0
          %v6220 = vpop.f32.mrb[0].mxu0
          %v6221 = vadd.f32 %v5717, %v6220
          %v6222 = vpop.f32.mrb[0].mxu0
          %6223 = vmatprep.mubr.bf16.mxu0 0
          %6224 = vmatmul.mubr.bf16.gmra.mrb[0].mxu0 %v5685
          %v6225 = vpop.f32.mrb[0].mxu0
          %v6226 = vadd.f32 %v5717, %v6225
          %v6227 = vpop.f32.mrb[0].mxu0
          %v6228 = vpop.f32.mrb[0].mxu0
          %v6229 = vadd.f32 %v5717, %v6228
          %v6230 = vpop.f32.mrb[0].mxu0
          %6231 = vmatprep.mubr.bf16.mxu0 0
          %6232 = vmatmul.mubr.bf16.gmra.mrb[0].mxu0 %v5686
          %v6233 = vpop.f32.mrb[0].mxu0
          %v6234 = vadd.f32 %v5717, %v6233
          %v6235 = vpop.f32.mrb[0].mxu0
          %v6236 = vpop.f32.mrb[0].mxu0
          %v6237 = vadd.f32 %v5717, %v6236
          %v6238 = vpop.f32.mrb[0].mxu0
          %6239 = vmatprep.mubr.bf16.mxu0 0
          %6240 = vmatmul.mubr.bf16.gmra.mrb[0].mxu0 %v5687
          %v6241 = vpop.f32.mrb[0].mxu0
          %v6242 = vadd.f32 %v5717, %v6241
          %v6243 = vpop.f32.mrb[0].mxu0
          %v6244 = vpop.f32.mrb[0].mxu0
          %v6245 = vadd.f32 %v5717, %v6244
          %v6246 = vpop.f32.mrb[0].mxu0
          %6247 = vmatprep.mubr.bf16.mxu0 0
          %6248 = vmatmul.mubr.bf16.gmra.mrb[0].mxu0 %v5688
          %v6249 = vpop.f32.mrb[0].mxu0
          %v6250 = vadd.f32 %v5717, %v6249
          %v6251 = vpop.f32.mrb[0].mxu0
          %v6252 = vpop.f32.mrb[0].mxu0
          %v6253 = vadd.f32 %v5717, %v6252
          %v6254 = vpop.f32.mrb[0].mxu0
          %6255 = vmatprep.mubr.bf16.mxu0 0
          %6256 = vmatmul.mubr.bf16.gmra.mrb[0].mxu0 %v5689
          %v6257 = vpop.f32.mrb[0].mxu0
          %v6258 = vadd.f32 %v5717, %v6257
          %v6259 = vpop.f32.mrb[0].mxu0
          %v6260 = vpop.f32.mrb[0].mxu0
          %v6261 = vadd.f32 %v5717, %v6260
          %v6262 = vpop.f32.mrb[0].mxu0
          %6263 = vmatprep.mubr.bf16.mxu0 0
          %6264 = vmatmul.mubr.bf16.gmra.mrb[0].mxu0 %v5690
          %v6265 = vpop.f32.mrb[0].mxu0
          %v6266 = vadd.f32 %v5717, %v6265
          %v6267 = vpop.f32.mrb[0].mxu0
          %v6268 = vpop.f32.mrb[0].mxu0
          %v6269 = vadd.f32 %v5717, %v6268
          %v6270 = vpop.f32.mrb[0].mxu0
          %6271 = vmatprep.mubr.bf16.mxu0 0
          %6272 = vmatmul.mubr.bf16.gmra.mrb[0].mxu0 %v5691
          %v6273 = vpop.f32.mrb[0].mxu0
          %v6274 = vadd.f32 %v5717, %v6273
          %v6275 = vpop.f32.mrb[0].mxu0
          %v6276 = vpop.f32.mrb[0].mxu0
          %v6277 = vadd.f32 %v5717, %v6276
          %v6278 = vpop.f32.mrb[0].mxu0
          %6279 = vmatprep.mubr.bf16.mxu0 0
          %6280 = vmatmul.mubr.bf16.gmra.mrb[0].mxu0 %v5692
          %v6281 = vpop.f32.mrb[0].mxu0
          %v6282 = vadd.f32 %v5717, %v6281
          %v6283 = vpop.f32.mrb[0].mxu0
          %v6284 = vpop.f32.mrb[0].mxu0
          %v6285 = vadd.f32 %v5717, %v6284
          %v6286 = vpop.f32.mrb[0].mxu0
          %6287 = vmatprep.mubr.bf16.mxu0 0
          %6288 = vmatmul.mubr.bf16.gmra.mrb[0].mxu0 %v5693
          %v6289 = vpop.f32.mrb[0].mxu0
          %v6290 = vadd.f32 %v5717, %v6289
          %v6291 = vpop.f32.mrb[0].mxu0
          %v6292 = vpop.f32.mrb[0].mxu0
          %v6293 = vadd.f32 %v5717, %v6292
          %v6294 = vpop.f32.mrb[0].mxu0
          %6295 = vmatprep.mubr.bf16.mxu0 0
          %6296 = vmatmul.mubr.bf16.gmra.mrb[0].mxu0 %v5694
          %v6297 = vpop.f32.mrb[0].mxu0
          %v6298 = vadd.f32 %v5717, %v6297
          %v6299 = vpop.f32.mrb[0].mxu0
          %v6300 = vpop.f32.mrb[0].mxu0
          %v6301 = vadd.f32 %v5717, %v6300
          %v6302 = vpop.f32.mrb[0].mxu0
          %6303 = vmatprep.mubr.bf16.mxu0 0
          %6304 = vmatmul.mubr.bf16.gmra.mrb[0].mxu0 %v5695
          %v6305 = vpop.f32.mrb[0].mxu0
          %v6306 = vadd.f32 %v5717, %v6305
          %v6307 = vpop.f32.mrb[0].mxu0
          %v6308 = vpop.f32.mrb[0].mxu0
          %v6309 = vadd.f32 %v5717, %v6308
          %v6310 = vpop.f32.mrb[0].mxu0
          %6311 = vdwg.mxu0
          %6312 = vxpose.xlu0.b32.start [1/16] %v5802, 128
          %6313 = vxpose.xlu0.b32.cont [2/16] %v5805, 128
          %6314 = vxpose.xlu0.b32.cont [3/16] %v5810, 128
          %6315 = vxpose.xlu0.b32.cont [4/16] %v5813, 128
          %6316 = vxpose.xlu0.b32.cont [5/16] %v5818, 128
          %6317 = vxpose.xlu0.b32.cont [6/16] %v5821, 128
          %6318 = vxpose.xlu0.b32.cont [7/16] %v5826, 128
          %6319 = vxpose.xlu0.b32.cont [8/16] %v5829, 128
          %6320 = vxpose.xlu0.b32.cont [9/16] %v5834, 128
          %6321 = vxpose.xlu0.b32.cont [10/16] %v5837, 128
          %6322 = vxpose.xlu0.b32.cont [11/16] %v5842, 128
          %6323 = vxpose.xlu0.b32.cont [12/16] %v5845, 128
          %6324 = vxpose.xlu0.b32.cont [13/16] %v5850, 128
          %6325 = vxpose.xlu0.b32.cont [14/16] %v5853, 128
          %6326 = vxpose.xlu0.b32.cont [15/16] %v5858, 128
          %6327 = vxpose.xlu0.b32.end [16/16] %v5861, 128
          %v6328 = vpop.trf.xlu0
          %v6329 = vpop.trf.xlu0
          %v6330 = vpop.trf.xlu0
          %v6331 = vpop.trf.xlu0
          %v6332 = vpop.trf.xlu0
          %v6333 = vpop.trf.xlu0
          %v6334 = vpop.trf.xlu0
          %v6335 = vpop.trf.xlu0
          %v6336 = vpop.trf.xlu0
          %v6337 = vpop.trf.xlu0
          %v6338 = vpop.trf.xlu0
          %v6339 = vpop.trf.xlu0
          %v6340 = vpop.trf.xlu0
          %v6341 = vpop.trf.xlu0
          %v6342 = vpop.trf.xlu0
          %v6343 = vpop.trf.xlu0
          %6344 = vxpose.xlu0.b32.start [1/16] %v5866, 128
          %6345 = vxpose.xlu0.b32.cont [2/16] %v5869, 128
          %6346 = vxpose.xlu0.b32.cont [3/16] %v5874, 128
          %6347 = vxpose.xlu0.b32.cont [4/16] %v5877, 128
          %6348 = vxpose.xlu0.b32.cont [5/16] %v5882, 128
          %6349 = vxpose.xlu0.b32.cont [6/16] %v5885, 128
          %6350 = vxpose.xlu0.b32.cont [7/16] %v5890, 128
          %6351 = vxpose.xlu0.b32.cont [8/16] %v5893, 128
          %6352 = vxpose.xlu0.b32.cont [9/16] %v5898, 128
          %6353 = vxpose.xlu0.b32.cont [10/16] %v5901, 128
          %6354 = vxpose.xlu0.b32.cont [11/16] %v5906, 128
          %6355 = vxpose.xlu0.b32.cont [12/16] %v5909, 128
          %6356 = vxpose.xlu0.b32.cont [13/16] %v5914, 128
          %6357 = vxpose.xlu0.b32.cont [14/16] %v5917, 128
          %6358 = vxpose.xlu0.b32.cont [15/16] %v5922, 128
          %6359 = vxpose.xlu0.b32.end [16/16] %v5925, 128
          %v6360 = vpop.trf.xlu0
          %v6361 = vpop.trf.xlu0
          %v6362 = vpop.trf.xlu0
          %v6363 = vpop.trf.xlu0
          %v6364 = vpop.trf.xlu0
          %v6365 = vpop.trf.xlu0
          %v6366 = vpop.trf.xlu0
          %v6367 = vpop.trf.xlu0
          %v6368 = vpop.trf.xlu0
          %v6369 = vpop.trf.xlu0
          %v6370 = vpop.trf.xlu0
          %v6371 = vpop.trf.xlu0
          %v6372 = vpop.trf.xlu0
          %v6373 = vpop.trf.xlu0
          %v6374 = vpop.trf.xlu0
          %v6375 = vpop.trf.xlu0
          %6376 = vxpose.xlu0.b32.start [1/16] %v5930, 128
          %6377 = vxpose.xlu0.b32.cont [2/16] %v5933, 128
          %6378 = vxpose.xlu0.b32.cont [3/16] %v5938, 128
          %6379 = vxpose.xlu0.b32.cont [4/16] %v5941, 128
          %6380 = vxpose.xlu0.b32.cont [5/16] %v5946, 128
          %6381 = vxpose.xlu0.b32.cont [6/16] %v5949, 128
          %6382 = vxpose.xlu0.b32.cont [7/16] %v5954, 128
          %6383 = vxpose.xlu0.b32.cont [8/16] %v5957, 128
          %6384 = vxpose.xlu0.b32.cont [9/16] %v5962, 128
          %6385 = vxpose.xlu0.b32.cont [10/16] %v5965, 128
          %6386 = vxpose.xlu0.b32.cont [11/16] %v5970, 128
          %6387 = vxpose.xlu0.b32.cont [12/16] %v5973, 128
          %6388 = vxpose.xlu0.b32.cont [13/16] %v5978, 128
          %6389 = vxpose.xlu0.b32.cont [14/16] %v5981, 128
          %6390 = vxpose.xlu0.b32.cont [15/16] %v5986, 128
          %6391 = vxpose.xlu0.b32.end [16/16] %v5989, 128
          %v6392 = vpop.trf.xlu0
          %v6393 = vpop.trf.xlu0
          %v6394 = vpop.trf.xlu0
          %v6395 = vpop.trf.xlu0
          %v6396 = vpop.trf.xlu0
          %v6397 = vpop.trf.xlu0
          %v6398 = vpop.trf.xlu0
          %v6399 = vpop.trf.xlu0
          %v6400 = vpop.trf.xlu0
          %v6401 = vpop.trf.xlu0
          %v6402 = vpop.trf.xlu0
          %v6403 = vpop.trf.xlu0
          %v6404 = vpop.trf.xlu0
          %v6405 = vpop.trf.xlu0
          %v6406 = vpop.trf.xlu0
          %v6407 = vpop.trf.xlu0
          %6408 = vxpose.xlu0.b32.start [1/16] %v5994, 128
          %6409 = vxpose.xlu0.b32.cont [2/16] %v5997, 128
          %6410 = vxpose.xlu0.b32.cont [3/16] %v6002, 128
          %6411 = vxpose.xlu0.b32.cont [4/16] %v6005, 128
          %6412 = vxpose.xlu0.b32.cont [5/16] %v6010, 128
          %6413 = vxpose.xlu0.b32.cont [6/16] %v6013, 128
          %6414 = vxpose.xlu0.b32.cont [7/16] %v6018, 128
          %6415 = vxpose.xlu0.b32.cont [8/16] %v6021, 128
          %6416 = vxpose.xlu0.b32.cont [9/16] %v6026, 128
          %6417 = vxpose.xlu0.b32.cont [10/16] %v6029, 128
          %6418 = vxpose.xlu0.b32.cont [11/16] %v6034, 128
          %6419 = vxpose.xlu0.b32.cont [12/16] %v6037, 128
          %6420 = vxpose.xlu0.b32.cont [13/16] %v6042, 128
          %6421 = vxpose.xlu0.b32.cont [14/16] %v6045, 128
          %6422 = vxpose.xlu0.b32.cont [15/16] %v6050, 128
          %6423 = vxpose.xlu0.b32.end [16/16] %v6053, 128
          %v6424 = vpop.trf.xlu0
          %v6425 = vpop.trf.xlu0
          %v6426 = vpop.trf.xlu0
          %v6427 = vpop.trf.xlu0
          %v6428 = vpop.trf.xlu0
          %v6429 = vpop.trf.xlu0
          %v6430 = vpop.trf.xlu0
          %v6431 = vpop.trf.xlu0
          %v6432 = vpop.trf.xlu0
          %v6433 = vpop.trf.xlu0
          %v6434 = vpop.trf.xlu0
          %v6435 = vpop.trf.xlu0
          %v6436 = vpop.trf.xlu0
          %v6437 = vpop.trf.xlu0
          %v6438 = vpop.trf.xlu0
          %v6439 = vpop.trf.xlu0
          %6440 = vxpose.xlu0.b32.start [1/16] %v6058, 128
          %6441 = vxpose.xlu0.b32.cont [2/16] %v6061, 128
          %6442 = vxpose.xlu0.b32.cont [3/16] %v6066, 128
          %6443 = vxpose.xlu0.b32.cont [4/16] %v6069, 128
          %6444 = vxpose.xlu0.b32.cont [5/16] %v6074, 128
          %6445 = vxpose.xlu0.b32.cont [6/16] %v6077, 128
          %6446 = vxpose.xlu0.b32.cont [7/16] %v6082, 128
          %6447 = vxpose.xlu0.b32.cont [8/16] %v6085, 128
          %6448 = vxpose.xlu0.b32.cont [9/16] %v6090, 128
          %6449 = vxpose.xlu0.b32.cont [10/16] %v6093, 128
          %6450 = vxpose.xlu0.b32.cont [11/16] %v6098, 128
          %6451 = vxpose.xlu0.b32.cont [12/16] %v6101, 128
          %6452 = vxpose.xlu0.b32.cont [13/16] %v6106, 128
          %6453 = vxpose.xlu0.b32.cont [14/16] %v6109, 128
          %6454 = vxpose.xlu0.b32.cont [15/16] %v6114, 128
          %6455 = vxpose.xlu0.b32.end [16/16] %v6117, 128
          %v6456 = vpop.trf.xlu0
          %v6457 = vpop.trf.xlu0
          %v6458 = vpop.trf.xlu0
          %v6459 = vpop.trf.xlu0
          %v6460 = vpop.trf.xlu0
          %v6461 = vpop.trf.xlu0
          %v6462 = vpop.trf.xlu0
          %v6463 = vpop.trf.xlu0
          %v6464 = vpop.trf.xlu0
          %v6465 = vpop.trf.xlu0
          %v6466 = vpop.trf.xlu0
          %v6467 = vpop.trf.xlu0
          %v6468 = vpop.trf.xlu0
          %v6469 = vpop.trf.xlu0
          %v6470 = vpop.trf.xlu0
          %v6471 = vpop.trf.xlu0
          %6472 = vxpose.xlu0.b32.start [1/16] %v6122, 128
          %6473 = vxpose.xlu0.b32.cont [2/16] %v6125, 128
          %6474 = vxpose.xlu0.b32.cont [3/16] %v6130, 128
          %6475 = vxpose.xlu0.b32.cont [4/16] %v6133, 128
          %6476 = vxpose.xlu0.b32.cont [5/16] %v6138, 128
          %6477 = vxpose.xlu0.b32.cont [6/16] %v6141, 128
          %6478 = vxpose.xlu0.b32.cont [7/16] %v6146, 128
          %6479 = vxpose.xlu0.b32.cont [8/16] %v6149, 128
          %6480 = vxpose.xlu0.b32.cont [9/16] %v6154, 128
          %6481 = vxpose.xlu0.b32.cont [10/16] %v6157, 128
          %6482 = vxpose.xlu0.b32.cont [11/16] %v6162, 128
          %6483 = vxpose.xlu0.b32.cont [12/16] %v6165, 128
          %6484 = vxpose.xlu0.b32.cont [13/16] %v6170, 128
          %6485 = vxpose.xlu0.b32.cont [14/16] %v6173, 128
          %6486 = vxpose.xlu0.b32.cont [15/16] %v6178, 128
          %6487 = vxpose.xlu0.b32.end [16/16] %v6181, 128
          %v6488 = vpop.trf.xlu0
          %v6489 = vpop.trf.xlu0
          %v6490 = vpop.trf.xlu0
          %v6491 = vpop.trf.xlu0
          %v6492 = vpop.trf.xlu0
          %v6493 = vpop.trf.xlu0
          %v6494 = vpop.trf.xlu0
          %v6495 = vpop.trf.xlu0
          %v6496 = vpop.trf.xlu0
          %v6497 = vpop.trf.xlu0
          %v6498 = vpop.trf.xlu0
          %v6499 = vpop.trf.xlu0
          %v6500 = vpop.trf.xlu0
          %v6501 = vpop.trf.xlu0
          %v6502 = vpop.trf.xlu0
          %v6503 = vpop.trf.xlu0
          %6504 = vxpose.xlu0.b32.start [1/16] %v6186, 128
          %6505 = vxpose.xlu0.b32.cont [2/16] %v6189, 128
          %6506 = vxpose.xlu0.b32.cont [3/16] %v6194, 128
          %6507 = vxpose.xlu0.b32.cont [4/16] %v6197, 128
          %6508 = vxpose.xlu0.b32.cont [5/16] %v6202, 128
          %6509 = vxpose.xlu0.b32.cont [6/16] %v6205, 128
          %6510 = vxpose.xlu0.b32.cont [7/16] %v6210, 128
          %6511 = vxpose.xlu0.b32.cont [8/16] %v6213, 128
          %6512 = vxpose.xlu0.b32.cont [9/16] %v6218, 128
          %6513 = vxpose.xlu0.b32.cont [10/16] %v6221, 128
          %6514 = vxpose.xlu0.b32.cont [11/16] %v6226, 128
          %6515 = vxpose.xlu0.b32.cont [12/16] %v6229, 128
          %6516 = vxpose.xlu0.b32.cont [13/16] %v6234, 128
          %6517 = vxpose.xlu0.b32.cont [14/16] %v6237, 128
          %6518 = vxpose.xlu0.b32.cont [15/16] %v6242, 128
          %6519 = vxpose.xlu0.b32.end [16/16] %v6245, 128
          %v6520 = vpop.trf.xlu0
          %v6521 = vpop.trf.xlu0
          %v6522 = vpop.trf.xlu0
          %v6523 = vpop.trf.xlu0
          %v6524 = vpop.trf.xlu0
          %v6525 = vpop.trf.xlu0
          %v6526 = vpop.trf.xlu0
          %v6527 = vpop.trf.xlu0
          %v6528 = vpop.trf.xlu0
          %v6529 = vpop.trf.xlu0
          %v6530 = vpop.trf.xlu0
          %v6531 = vpop.trf.xlu0
          %v6532 = vpop.trf.xlu0
          %v6533 = vpop.trf.xlu0
          %v6534 = vpop.trf.xlu0
          %v6535 = vpop.trf.xlu0
          %6536 = vxpose.xlu0.b32.start [1/16] %v6250, 128
          %6537 = vxpose.xlu0.b32.cont [2/16] %v6253, 128
          %6538 = vxpose.xlu0.b32.cont [3/16] %v6258, 128
          %6539 = vxpose.xlu0.b32.cont [4/16] %v6261, 128
          %6540 = vxpose.xlu0.b32.cont [5/16] %v6266, 128
          %6541 = vxpose.xlu0.b32.cont [6/16] %v6269, 128
          %6542 = vxpose.xlu0.b32.cont [7/16] %v6274, 128
          %6543 = vxpose.xlu0.b32.cont [8/16] %v6277, 128
          %6544 = vxpose.xlu0.b32.cont [9/16] %v6282, 128
          %6545 = vxpose.xlu0.b32.cont [10/16] %v6285, 128
          %6546 = vxpose.xlu0.b32.cont [11/16] %v6290, 128
          %6547 = vxpose.xlu0.b32.cont [12/16] %v6293, 128
          %6548 = vxpose.xlu0.b32.cont [13/16] %v6298, 128
          %6549 = vxpose.xlu0.b32.cont [14/16] %v6301, 128
          %6550 = vxpose.xlu0.b32.cont [15/16] %v6306, 128
          %6551 = vxpose.xlu0.b32.end [16/16] %v6309, 128
          %v6552 = vpop.trf.xlu0
          %v6553 = vpop.trf.xlu0
          %v6554 = vpop.trf.xlu0
          %v6555 = vpop.trf.xlu0
          %v6556 = vpop.trf.xlu0
          %v6557 = vpop.trf.xlu0
          %v6558 = vpop.trf.xlu0
          %v6559 = vpop.trf.xlu0
          %v6560 = vpop.trf.xlu0
          %v6561 = vpop.trf.xlu0
          %v6562 = vpop.trf.xlu0
          %v6563 = vpop.trf.xlu0
          %v6564 = vpop.trf.xlu0
          %v6565 = vpop.trf.xlu0
          %v6566 = vpop.trf.xlu0
          %v6567 = vpop.trf.xlu0
          %v6569 = vrot.slane %v6360, 7
          %v6572 = vrot.slane %v6392, 6
          %v6575 = vrot.slane %v6424, 5
          %v6578 = vrot.slane %v6456, 4
          %v6581 = vrot.slane %v6488, 3
          %v6584 = vrot.slane %v6520, 2
          %v6587 = vrot.slane %v6552, 1
          %vm6589 = vcmask 1040384
          %v6590 = vsel %vm6589, %v6328, %v6569
          %vm6591 = vcmask 1041408
          %v6592 = vsel %vm6591, %v6590, %v6572
          %vm6593 = vcmask 1042432
          %v6594 = vsel %vm6593, %v6592, %v6575
          %vm6595 = vcmask 1043456
          %v6596 = vsel %vm6595, %v6594, %v6578
          %vm6597 = vcmask 1044480
          %v6598 = vsel %vm6597, %v6596, %v6581
          %vm6599 = vcmask 1045504
          %v6600 = vsel %vm6599, %v6598, %v6584
          %vm6601 = vcmask 1046528
          %v6602 = vsel %vm6601, %v6600, %v6587
          %v6603 = vsub.f32 0.0, %v6602
          %v6604 = vmul.f32 %v6603, 1.442695
          %v6605 = vpow.pop %v6604
          %v6606 = vadd.f32 %v6605, 1.0
          %v6607 = vrcp.pop %v6606
          %v6608 = vmul.f32 1.0, %v6607
          %6609 = vst [vmem:[%s418] sm:$0xff] %v6608
        $region80: #{tpu_custom_call.1} parent=63 // pred_fallthru
          _
        %s6610 = sand.u32 %s289, 1
        %s6611 = scalar_lea.sflag [#allocation9], %s6610
        %s6612 = sand.u32 %s289, 1
        %s6613 = smul.addr %s6612, 8
        %s6614 = scalar_lea.vmem [#allocation8], %s6613
        // Predicated region
        $region81: #{tpu_custom_call.1} parent=63 // pred_check
          %p6615 = pneg %p299
        $region82: #{tpu_custom_call.1} parent=63 // pred_check_branch
          %6617 = sbr.rel (%p6615) target = $region84
        $region83: #{tpu_custom_call.1} parent=63 // pred_region
          %p6618 = scmp.eq.s32.totalorder %s29, 2
          %s6619 = scalar_select %p6618, %s30, 0
          %s6621 = ssub.s32 128, 128
          %6622 = vsyncadd %s6611, %s6621
          %s6623 = smul.addr %s6619, 128
          %s6624 = scalar_lea.hbm %s11, %s6623
          %s6626 = sshll.u32 %s6614, 4
          %s6627 = int_to_ptr.vmem [resolvable:$true] %s6626
          %6629 = dma.vmem_to_hbm [thread:$0]  %s6627, 128, %s6624, %s6611
        $region84: #{tpu_custom_call.1} parent=63 // pred_fallthru
          _
      $region64: #{tpu_custom_call.1} parent=5 // pred_fallthru
        _
      %p6630 = scmp.le.s32.totalorder 2, %s20
      // Predicated region
      $region85: #{tpu_custom_call.1} parent=5 // pred_check
        %p6631 = pneg %p6630
      $region86: #{tpu_custom_call.1} parent=5 // pred_check_branch
        %6633 = sbr.rel (%p6631) target = $region88
      $region87: #{tpu_custom_call.1} parent=5 // pred_region
        %s6634 = ssub.s32 %s20, 2
        // Predicated region
        $region89: #{tpu_custom_call.1} parent=87 // pred_check
          %p6635 = pneg %p305
        $region90: #{tpu_custom_call.1} parent=87 // pred_check_branch
          %6637 = sbr.rel (%p6635) target = $region92
        $region91: #{tpu_custom_call.1} parent=87 // pred_region
          %s6638 = sand.u32 %s290, 1
          %s6639 = scalar_lea.sflag [#allocation9], %s6638
          %s6640 = sand.u32 %s290, 1
          %s6641 = smul.addr %s6640, 8
          %s6642 = scalar_lea.vmem [#allocation8], %s6641
          %6643 = dma.done %s6639, 128
        $region92: #{tpu_custom_call.1} parent=87 // pred_fallthru
          _
      $region88: #{tpu_custom_call.1} parent=5 // pred_fallthru
        _
    $region6: #{tpu_custom_call.1} parent=1 // loop_footer
      %s24 = sadd.s32 1, %s20
    $region7: #{tpu_custom_call.1} parent=1 // loop_footer_branch
      %19 = sbr.rel target = $region3
    $region8: #{tpu_custom_call.1} parent=1 // loop_exit
      _
    %6644 = vsyncpa [#allocation9], 1
    %s6645 = scalar_lea.sflag [#allocation9], 1
    %6646 = vsyncpa %s6645, 1

</llo_original>
